<compile_context>
chip_gen: v5e
topology: v5e:2x2
jax: 0.10.0
libtpu: 0.0.40
codegen_flags: <defaults>
</compile_context>

<pallas_src>
import functools

import numpy as np
import jax
import jax.numpy as jnp
from jax.experimental import pallas as pl
from jax.experimental.pallas import tpu as pltpu


DEFAULT_TB = 128  # images per grid step (multiple of 16); 256 is a good choice on v5e/v6e


def _choose_batch_tile(batch, tb_max=DEFAULT_TB):
    """Batch tile: multiple of 16, capped so the grid has >=2 steps when batch allows
    (both v7x TensorCores get work along the "parallel" grid axis)."""
    b16 = -(-batch // 16) * 16
    tb = min(tb_max, b16)
    if b16 >= 32:
        tb = min(tb, (b16 // 32) * 16)   # floor(b16/2) rounded down to a multiple of 16
    return max(16, (tb // 16) * 16)


# ----------------------------------------------------------------------------
# Fused kernel: conv1 -> pool1 -> conv2 -> pool2 -> flatten -> fc1+ReLU -> fc2
#   x_ref   : [28, TB, 28]  f32   input images, (H, batch, W)
#   m1_ref  : [140, 768]    bf16  conv1 Toeplitz, rows=(dy1, w), cols=(dx1, xo1, c1)
#   b1_ref  : [1, 384]      f32   conv1 bias tiled over xo1
#   m2_ref  : [1920, 512]   bf16  conv2 Toeplitz, rows=(dy2, xin, c1), cols=(dx2, xo2, c2)
#   b2_ref  : [1, 256]      f32   conv2 bias tiled over xo2
#   wf1_ref : [1024, 512]   bf16  fc1 weight, rows=(yo2, xo2, c2) (NCHW flatten folded in)
#   bf1_ref : [1, 512]      f32
#   wf2_ref : [512, Epad]   bf16  fc2 weight, N zero-padded to a multiple of 128
#   bf2_ref : [1, Epad]     f32
#   o_ref   : [TB, Epad]    f32
# ----------------------------------------------------------------------------
def fused_cnn_kernel(x_ref, m1_ref, b1_ref, m2_ref, b2_ref,
                     wf1_ref, bf1_ref, wf2_ref, bf2_ref, o_ref):
    tb = x_ref.shape[1]
    xb = x_ref[...].astype(jnp.bfloat16)                       # [28, tb, 28]

    # ---- conv1 (1 -> 32, 5x5 valid): single dot, fused K = 140 ----------------
    lhs1 = jnp.concatenate([xb[i:i + 24] for i in range(5)], axis=2)   # [24, tb, 140]
    lhs1 = lhs1.reshape(24 * tb, 140)                          # rows = (y1, b)
    acc1 = jnp.dot(lhs1, m1_ref[...],
                   preferred_element_type=jnp.float32)         # [24*tb, 768]

    # ---- maxpool1 (2x2): W via 128-aligned lane halves, H via row-pair max ----
    h1 = jnp.maximum(acc1[:, :384], acc1[:, 384:])             # [24*tb, 384]
    h1 = h1.reshape(12, 2, tb, 384)                            # rows = (yo1, dy1, b)
    p1 = (jnp.maximum(h1[:, 0], h1[:, 1]) + b1_ref[...]).astype(jnp.bfloat16)  # [12, tb, 384]

    # ---- conv2 (32 -> 64, 5x5 valid): single dot, fused K = 1920 --------------
    lhs2 = jnp.concatenate([p1[i:i + 8] for i in range(5)], axis=2)    # [8, tb, 1920]
    lhs2 = lhs2.reshape(8 * tb, 1920)                          # rows = (y2, b)
    acc2 = jnp.dot(lhs2, m2_ref[...],
                   preferred_element_type=jnp.float32)         # [8*tb, 512]

    # ---- maxpool2 (2x2) --------------------------------------------------------
    h2 = jnp.maximum(acc2[:, :256], acc2[:, 256:])             # [8*tb, 256]
    h2 = h2.reshape(4, 2, tb, 256)                             # rows = (yo2, dy2, b)
    p2 = (jnp.maximum(h2[:, 0], h2[:, 1]) + b2_ref[...]).astype(jnp.bfloat16)  # [4, tb, 256]

    # ---- fc1 + ReLU (NCHW flatten folded into wf1's row order), single dot ----
    lhsf = jnp.concatenate([p2[0], p2[1], p2[2], p2[3]], axis=1)       # [tb, 1024]
    f1 = jnp.dot(lhsf, wf1_ref[...],
                 preferred_element_type=jnp.float32) + bf1_ref[...]    # [tb, 512]
    f1 = jnp.maximum(f1, 0.0).astype(jnp.bfloat16)

    # ---- fc2 (lane-dense, padded to Epad lanes) --------------------------------
    out = jnp.dot(f1, wf2_ref[...],
                  preferred_element_type=jnp.float32) + bf2_ref[...]   # [tb, Epad]
    o_ref[...] = out.astype(o_ref.dtype)


# ----------------------------------------------------------------------------
# Host-side parameter preparation (runs once, outside the hot path)
# ----------------------------------------------------------------------------
def prepare_kernel_params(params, embedding_size):
    w1 = np.asarray(params["conv1_w"], np.float32)   # [32, 1, 5, 5]  (torch OIHW)
    b1 = np.asarray(params["conv1_b"], np.float32)
    w2 = np.asarray(params["conv2_w"], np.float32)   # [64, 32, 5, 5]
    b2 = np.asarray(params["conv2_b"], np.float32)
    wf1 = np.asarray(params["fc1_w"], np.float32)    # [512, 1024]    (torch [out, in])
    bf1 = np.asarray(params["fc1_b"], np.float32)
    wf2 = np.asarray(params["fc2_w"], np.float32)    # [E, 512]
    bf2 = np.asarray(params["fc2_b"], np.float32)

    # conv1 fused Toeplitz: M1[dy*28 + w, (dx*12 + xo)*32 + c] = w1[c, 0, dy, w - (2*xo+dx)]
    M1 = np.zeros((5 * 28, 2 * 12 * 32), np.float32)
    for dy in range(5):
        for dx in range(2):
            for xo in range(12):
                x0 = 2 * xo + dx
                col = (dx * 12 + xo) * 32
                for j in range(5):
                    M1[dy * 28 + x0 + j, col:col + 32] = w1[:, 0, dy, j]
    b1row = np.tile(b1, 12)[None, :]                              # [1, 384] (added post-pool)

    # conv2 fused Toeplitz:
    #   M2[dy*384 + xin*32 + cin, (dx*4 + xo)*64 + cout] = w2[cout, cin, dy, xin - (2*xo+dx)]
    M2 = np.zeros((5 * 384, 2 * 4 * 64), np.float32)
    for dy in range(5):
        for dx in range(2):
            for xo in range(4):
                x0 = 2 * xo + dx
                col = (dx * 4 + xo) * 64
                for j in range(5):
                    xin = x0 + j
                    M2[dy * 384 + xin * 32: dy * 384 + (xin + 1) * 32,
                       col:col + 64] = w2[:, :, dy, j].T
    b2row = np.tile(b2, 4)[None, :]                               # [1, 256] (added post-pool)

    # fc1: fold torch's NCHW flatten (f = c*16 + y*4 + x) into the row order (y, x, c):
    #   wf1k[y*256 + x*64 + c, o] = wf1[o, c*16 + y*4 + x]
    wt = wf1.reshape(512, 64, 4, 4)                               # [o, c, y, x]
    wf1k = np.ascontiguousarray(np.transpose(wt, (2, 3, 1, 0))).reshape(1024, 512)
    bf1row = bf1[None, :]                                         # [1, 512]

    # fc2: pad N to a multiple of 128 for lane-dense output stores.
    E = embedding_size
    Epad = max(128, -(-E // 128) * 128)
    wf2k = np.zeros((512, Epad), np.float32)
    wf2k[:, :E] = wf2.T
    bf2row = np.zeros((1, Epad), np.float32)
    bf2row[0, :E] = bf2

    return {
        "m1": jnp.asarray(M1, jnp.bfloat16),
        "b1": jnp.asarray(b1row, jnp.float32),
        "m2": jnp.asarray(M2, jnp.bfloat16),
        "b2": jnp.asarray(b2row, jnp.float32),
        "wf1": jnp.asarray(wf1k, jnp.bfloat16),
        "bf1": jnp.asarray(bf1row, jnp.float32),
        "wf2": jnp.asarray(wf2k, jnp.bfloat16),
        "bf2": jnp.asarray(bf2row, jnp.float32),
    }


# ----------------------------------------------------------------------------
# Forward pass (matches CNNBackbone.forward)
# ----------------------------------------------------------------------------
def cnn_backbone_forward(x, kp, *, embedding_size, batch_tile=DEFAULT_TB):
    B = x.shape[0]
    assert x.shape[1:] == (1, 28, 28), x.shape
    Epad = kp["wf2"].shape[1]

    tb = _choose_batch_tile(B, batch_tile)
    Bp = -(-B // tb) * tb

    xs = x.reshape(B, 28, 28).astype(jnp.float32)
    if Bp != B:
        xs = jnp.pad(xs, ((0, Bp - B), (0, 0), (0, 0)))
    xhbw = jnp.transpose(xs, (1, 0, 2))                    # [28, Bp, 28] = (H, batch, W)

    # VMEM budget scales with the batch tile (~56 MiB at tb=128, ~96 MiB at tb=256).
    vmem_limit = int(min(100, 16 + 40 * tb / 128) * 1024 * 1024)

    flops = 2 * Bp * (24 * 140 * 768 + 8 * 1920 * 512 + 1024 * 512 + 512 * Epad)
    bytes_accessed = (Bp * 28 * 28 * 4 + Bp * Epad * 4
                      + (140 * 768 + 1920 * 512 + 1024 * 512 + 512 * Epad) * 2
                      + (384 + 256 + 512 + Epad) * 4)

    out = pl.pallas_call(
        fused_cnn_kernel,
        out_shape=jax.ShapeDtypeStruct((Bp, Epad), jnp.float32),
        grid=(Bp // tb,),
        in_specs=[
            pl.BlockSpec((28, tb, 28), lambda i: (0, i, 0)),     # input batch tile
            pl.BlockSpec((140, 768), lambda i: (0, 0)),          # conv1 Toeplitz (resident)
            pl.BlockSpec((1, 384), lambda i: (0, 0)),
            pl.BlockSpec((1920, 512), lambda i: (0, 0)),         # conv2 Toeplitz (resident)
            pl.BlockSpec((1, 256), lambda i: (0, 0)),
            pl.BlockSpec((1024, 512), lambda i: (0, 0)),         # fc1 (flatten folded in)
            pl.BlockSpec((1, 512), lambda i: (0, 0)),
            pl.BlockSpec((512, Epad), lambda i: (0, 0)),         # fc2 (padded to 128 lanes)
            pl.BlockSpec((1, Epad), lambda i: (0, 0)),
        ],
        out_specs=pl.BlockSpec((tb, Epad), lambda i: (i, 0)),
        compiler_params=pltpu.CompilerParams(
            dimension_semantics=("parallel",),
            vmem_limit_bytes=vmem_limit,
        ),
        cost_estimate=pl.CostEstimate(
            flops=int(flops), transcendentals=0, bytes_accessed=int(bytes_accessed)),
    )(xhbw, kp["m1"], kp["b1"], kp["m2"], kp["b2"],
      kp["wf1"], kp["bf1"], kp["wf2"], kp["bf2"])

    return out[:B, :embedding_size]


# ----------------------------------------------------------------------------
# Parameters (deterministic torch-style U(-1/sqrt(fan_in), +) init, torch layouts)
# ----------------------------------------------------------------------------
def init_params(key, embedding_size):
    ks = jax.random.split(key, 8)

    def u(k, shape, fan_in):
        bound = 1.0 / float(np.sqrt(fan_in))
        return jax.random.uniform(k, shape, jnp.float32, -bound, bound)

    return {
        "conv1_w": u(ks[0], (32, 1, 5, 5), 1 * 25),
        "conv1_b": u(ks[1], (32,), 1 * 25),
        "conv2_w": u(ks[2], (64, 32, 5, 5), 32 * 25),
        "conv2_b": u(ks[3], (64,), 32 * 25),
        "fc1_w": u(ks[4], (512, 1024), 1024),
        "fc1_b": u(ks[5], (512,), 1024),
        "fc2_w": u(ks[6], (embedding_size, 512), 512),
        "fc2_b": u(ks[7], (embedding_size,), 512),
    }


# ----------------------------------------------------------------------------
# Pure-XLA f32 reference (identical math to the PyTorch module), used for self-check
# ----------------------------------------------------------------------------
def reference_forward(x, params):
    p = jax.lax.Precision.HIGHEST
    y = jax.lax.conv_general_dilated(
        x, params["conv1_w"], (1, 1), "VALID",
        dimension_numbers=("NCHW", "OIHW", "NCHW"), precision=p)
    y = y + params["conv1_b"][None, :, None, None]
    y = jax.lax.reduce_window(y, -jnp.inf, jax.lax.max, (1, 1, 2, 2), (1, 1, 2, 2), "VALID")
    y = jax.lax.conv_general_dilated(
        y, params["conv2_w"], (1, 1), "VALID",
        dimension_numbers=("NCHW", "OIHW", "NCHW"), precision=p)
    y = y + params["conv2_b"][None, :, None, None]
    y = jax.lax.reduce_window(y, -jnp.inf, jax.lax.max, (1, 1, 2, 2), (1, 1, 2, 2), "VALID")
    y = y.reshape(y.shape[0], -1)
    y = jnp.maximum(jnp.dot(y, params["fc1_w"].T, precision=p) + params["fc1_b"], 0.0)
    y = jnp.dot(y, params["fc2_w"].T, precision=p) + params["fc2_b"]
    return y


if __name__ == "__main__":
    key = jax.random.PRNGKey(0)
    k_x, k_p = jax.random.split(key)

    backbone_embedding_size = 64
    B = 2
    # fc1 expects 1024 = 64*4*4 features => input spatial must be 28x28 (MNIST).
    x = jax.random.normal(k_x, (B, 1, 28, 28), dtype=jnp.float32)

    params = init_params(k_p, backbone_embedding_size)
    kparams = prepare_kernel_params(params, backbone_embedding_size)

    fwd = jax.jit(functools.partial(cnn_backbone_forward,
                                    embedding_size=backbone_embedding_size))
    out = jax.block_until_ready(fwd(x, kparams))
    assert out.shape == (B, backbone_embedding_size), out.shape
    assert out.dtype == jnp.float32

    ref = jax.block_until_ready(jax.jit(reference_forward)(x, params))
    # bf16 matmul operands with f32 accumulation vs. an all-f32 HIGHEST reference.
    if not np.allclose(np.asarray(out), np.asarray(ref), rtol=3e-2, atol=3e-2):
        max_err = float(np.max(np.abs(np.asarray(out) - np.asarray(ref))))
        raise AssertionError(f"kernel / reference mismatch, max abs err = {max_err}")

    print("KERNEL_OK")
</pallas_src>

<mosaic_0001>
module attributes {stable_mosaic.version = 11 : i64} {
  func.func @fused_cnn_kernel(%arg0: i32, %arg1: memref<28x16x28xf32, #tpu.memory_space<vmem>>, %arg2: memref<140x768xbf16, #tpu.memory_space<vmem>>, %arg3: memref<1x384xf32, #tpu.memory_space<vmem>>, %arg4: memref<1920x512xbf16, #tpu.memory_space<vmem>>, %arg5: memref<1x256xf32, #tpu.memory_space<vmem>>, %arg6: memref<1024x512xbf16, #tpu.memory_space<vmem>>, %arg7: memref<1x512xf32, #tpu.memory_space<vmem>>, %arg8: memref<512x128xbf16, #tpu.memory_space<vmem>>, %arg9: memref<1x128xf32, #tpu.memory_space<vmem>>, %arg10: memref<16x128xf32, #tpu.memory_space<vmem>>) attributes {dimension_semantics = [#tpu.dimension_semantics<parallel>], iteration_bounds = array<i64: 1>, scalar_prefetch = 0 : i64, scratch_operands = 0 : i64, tpu.core_type = #tpu.core_type<tc>, window_params = [{transform_indices = @transform_0, window_bounds = array<i64: 28, 16, 28>}, {pipeline_mode = #tpu.pipeline_mode<synchronous>, transform_indices = @transform_1, window_bounds = array<i64: 140, 768>}, {pipeline_mode = #tpu.pipeline_mode<synchronous>, transform_indices = @transform_2, window_bounds = array<i64: 1, 384>}, {pipeline_mode = #tpu.pipeline_mode<synchronous>, transform_indices = @transform_3, window_bounds = array<i64: 1920, 512>}, {pipeline_mode = #tpu.pipeline_mode<synchronous>, transform_indices = @transform_4, window_bounds = array<i64: 1, 256>}, {pipeline_mode = #tpu.pipeline_mode<synchronous>, transform_indices = @transform_5, window_bounds = array<i64: 1024, 512>}, {pipeline_mode = #tpu.pipeline_mode<synchronous>, transform_indices = @transform_6, window_bounds = array<i64: 1, 512>}, {pipeline_mode = #tpu.pipeline_mode<synchronous>, transform_indices = @transform_7, window_bounds = array<i64: 512, 128>}, {pipeline_mode = #tpu.pipeline_mode<synchronous>, transform_indices = @transform_8, window_bounds = array<i64: 1, 128>}, {transform_indices = @transform_9, window_bounds = array<i64: 16, 128>}]} {
    %c0 = arith.constant 0 : index
    %c0_0 = arith.constant 0 : index
    %c0_1 = arith.constant 0 : index
    %0 = vector.load %arg1[%c0, %c0_0, %c0_1] : memref<28x16x28xf32, #tpu.memory_space<vmem>>, vector<28x16x28xf32>
    %1 = arith.truncf %0 : vector<28x16x28xf32> to vector<28x16x28xbf16>
    %2 = vector.extract_strided_slice %1 {offsets = [0, 0, 0], sizes = [24, 16, 28], strides = [1, 1, 1]} : vector<28x16x28xbf16> to vector<24x16x28xbf16>
    %3 = vector.extract_strided_slice %1 {offsets = [1, 0, 0], sizes = [24, 16, 28], strides = [1, 1, 1]} : vector<28x16x28xbf16> to vector<24x16x28xbf16>
    %4 = vector.extract_strided_slice %1 {offsets = [2, 0, 0], sizes = [24, 16, 28], strides = [1, 1, 1]} : vector<28x16x28xbf16> to vector<24x16x28xbf16>
    %5 = vector.extract_strided_slice %1 {offsets = [3, 0, 0], sizes = [24, 16, 28], strides = [1, 1, 1]} : vector<28x16x28xbf16> to vector<24x16x28xbf16>
    %6 = vector.extract_strided_slice %1 {offsets = [4, 0, 0], sizes = [24, 16, 28], strides = [1, 1, 1]} : vector<28x16x28xbf16> to vector<24x16x28xbf16>
    %7 = tpu.concatenate %2, %3, %4, %5, %6 in 2 : vector<24x16x28xbf16>, vector<24x16x28xbf16>, vector<24x16x28xbf16>, vector<24x16x28xbf16>, vector<24x16x28xbf16> -> vector<24x16x140xbf16>
    %8 = vector.shape_cast %7 : vector<24x16x140xbf16> to vector<384x140xbf16>
    %c0_2 = arith.constant 0 : index
    %c0_3 = arith.constant 0 : index
    %9 = vector.load %arg2[%c0_2, %c0_3] : memref<140x768xbf16, #tpu.memory_space<vmem>>, vector<140x768xbf16>
    %cst = arith.constant dense<0.000000e+00> : vector<384x768xf32>
    %10 = tpu.matmul %8, %9, %cst {dimension_numbers = #tpu.dot_dimension_numbers<[1], [0], [0], [1], [0, 0, 1, 1], [], []>} : vector<384x140xbf16>, vector<140x768xbf16>, vector<384x768xf32> -> vector<384x768xf32>
    %11 = vector.extract_strided_slice %10 {offsets = [0, 0], sizes = [384, 384], strides = [1, 1]} : vector<384x768xf32> to vector<384x384xf32>
    %12 = vector.extract_strided_slice %10 {offsets = [0, 384], sizes = [384, 384], strides = [1, 1]} : vector<384x768xf32> to vector<384x384xf32>
    %13 = arith.maximumf %11, %12 : vector<384x384xf32>
    %14 = vector.shape_cast %13 : vector<384x384xf32> to vector<12x2x16x384xf32>
    %15 = vector.extract_strided_slice %14 {offsets = [0, 0, 0, 0], sizes = [12, 1, 16, 384], strides = [1, 1, 1, 1]} : vector<12x2x16x384xf32> to vector<12x1x16x384xf32>
    %16 = vector.shape_cast %15 : vector<12x1x16x384xf32> to vector<12x16x384xf32>
    %17 = vector.extract_strided_slice %14 {offsets = [0, 1, 0, 0], sizes = [12, 1, 16, 384], strides = [1, 1, 1, 1]} : vector<12x2x16x384xf32> to vector<12x1x16x384xf32>
    %18 = vector.shape_cast %17 : vector<12x1x16x384xf32> to vector<12x16x384xf32>
    %19 = arith.maximumf %16, %18 : vector<12x16x384xf32>
    %c0_4 = arith.constant 0 : index
    %c0_5 = arith.constant 0 : index
    %20 = vector.load %arg3[%c0_4, %c0_5] : memref<1x384xf32, #tpu.memory_space<vmem>>, vector<1x384xf32>
    %21 = vector.shape_cast %20 : vector<1x384xf32> to vector<1x1x384xf32>
    %22 = vector.broadcast %21 : vector<1x1x384xf32> to vector<12x16x384xf32>
    %23 = arith.addf %19, %22 : vector<12x16x384xf32>
    %24 = arith.truncf %23 : vector<12x16x384xf32> to vector<12x16x384xbf16>
    %25 = vector.extract_strided_slice %24 {offsets = [0, 0, 0], sizes = [8, 16, 384], strides = [1, 1, 1]} : vector<12x16x384xbf16> to vector<8x16x384xbf16>
    %26 = vector.extract_strided_slice %24 {offsets = [1, 0, 0], sizes = [8, 16, 384], strides = [1, 1, 1]} : vector<12x16x384xbf16> to vector<8x16x384xbf16>
    %27 = vector.extract_strided_slice %24 {offsets = [2, 0, 0], sizes = [8, 16, 384], strides = [1, 1, 1]} : vector<12x16x384xbf16> to vector<8x16x384xbf16>
    %28 = vector.extract_strided_slice %24 {offsets = [3, 0, 0], sizes = [8, 16, 384], strides = [1, 1, 1]} : vector<12x16x384xbf16> to vector<8x16x384xbf16>
    %29 = vector.extract_strided_slice %24 {offsets = [4, 0, 0], sizes = [8, 16, 384], strides = [1, 1, 1]} : vector<12x16x384xbf16> to vector<8x16x384xbf16>
    %30 = tpu.concatenate %25, %26, %27, %28, %29 in 2 : vector<8x16x384xbf16>, vector<8x16x384xbf16>, vector<8x16x384xbf16>, vector<8x16x384xbf16>, vector<8x16x384xbf16> -> vector<8x16x1920xbf16>
    %31 = vector.shape_cast %30 : vector<8x16x1920xbf16> to vector<128x1920xbf16>
    %c0_6 = arith.constant 0 : index
    %c0_7 = arith.constant 0 : index
    %32 = vector.load %arg4[%c0_6, %c0_7] : memref<1920x512xbf16, #tpu.memory_space<vmem>>, vector<1920x512xbf16>
    %cst_8 = arith.constant dense<0.000000e+00> : vector<128x512xf32>
    %33 = tpu.matmul %31, %32, %cst_8 {dimension_numbers = #tpu.dot_dimension_numbers<[1], [0], [0], [1], [0, 0, 1, 1], [], []>} : vector<128x1920xbf16>, vector<1920x512xbf16>, vector<128x512xf32> -> vector<128x512xf32>
    %34 = vector.extract_strided_slice %33 {offsets = [0, 0], sizes = [128, 256], strides = [1, 1]} : vector<128x512xf32> to vector<128x256xf32>
    %35 = vector.extract_strided_slice %33 {offsets = [0, 256], sizes = [128, 256], strides = [1, 1]} : vector<128x512xf32> to vector<128x256xf32>
    %36 = arith.maximumf %34, %35 : vector<128x256xf32>
    %37 = vector.shape_cast %36 : vector<128x256xf32> to vector<4x2x16x256xf32>
    %38 = vector.extract_strided_slice %37 {offsets = [0, 0, 0, 0], sizes = [4, 1, 16, 256], strides = [1, 1, 1, 1]} : vector<4x2x16x256xf32> to vector<4x1x16x256xf32>
    %39 = vector.shape_cast %38 : vector<4x1x16x256xf32> to vector<4x16x256xf32>
    %40 = vector.extract_strided_slice %37 {offsets = [0, 1, 0, 0], sizes = [4, 1, 16, 256], strides = [1, 1, 1, 1]} : vector<4x2x16x256xf32> to vector<4x1x16x256xf32>
    %41 = vector.shape_cast %40 : vector<4x1x16x256xf32> to vector<4x16x256xf32>
    %42 = arith.maximumf %39, %41 : vector<4x16x256xf32>
    %c0_9 = arith.constant 0 : index
    %c0_10 = arith.constant 0 : index
    %43 = vector.load %arg5[%c0_9, %c0_10] : memref<1x256xf32, #tpu.memory_space<vmem>>, vector<1x256xf32>
    %44 = vector.shape_cast %43 : vector<1x256xf32> to vector<1x1x256xf32>
    %45 = vector.broadcast %44 : vector<1x1x256xf32> to vector<4x16x256xf32>
    %46 = arith.addf %42, %45 : vector<4x16x256xf32>
    %47 = arith.truncf %46 : vector<4x16x256xf32> to vector<4x16x256xbf16>
    %48 = vector.extract_strided_slice %47 {offsets = [0, 0, 0], sizes = [1, 16, 256], strides = [1, 1, 1]} : vector<4x16x256xbf16> to vector<1x16x256xbf16>
    %49 = vector.shape_cast %48 : vector<1x16x256xbf16> to vector<16x256xbf16>
    %50 = vector.extract_strided_slice %47 {offsets = [1, 0, 0], sizes = [1, 16, 256], strides = [1, 1, 1]} : vector<4x16x256xbf16> to vector<1x16x256xbf16>
    %51 = vector.shape_cast %50 : vector<1x16x256xbf16> to vector<16x256xbf16>
    %52 = vector.extract_strided_slice %47 {offsets = [2, 0, 0], sizes = [1, 16, 256], strides = [1, 1, 1]} : vector<4x16x256xbf16> to vector<1x16x256xbf16>
    %53 = vector.shape_cast %52 : vector<1x16x256xbf16> to vector<16x256xbf16>
    %54 = vector.extract_strided_slice %47 {offsets = [3, 0, 0], sizes = [1, 16, 256], strides = [1, 1, 1]} : vector<4x16x256xbf16> to vector<1x16x256xbf16>
    %55 = vector.shape_cast %54 : vector<1x16x256xbf16> to vector<16x256xbf16>
    %56 = tpu.concatenate %49, %51, %53, %55 in 1 : vector<16x256xbf16>, vector<16x256xbf16>, vector<16x256xbf16>, vector<16x256xbf16> -> vector<16x1024xbf16>
    %c0_11 = arith.constant 0 : index
    %c0_12 = arith.constant 0 : index
    %57 = vector.load %arg6[%c0_11, %c0_12] : memref<1024x512xbf16, #tpu.memory_space<vmem>>, vector<1024x512xbf16>
    %cst_13 = arith.constant dense<0.000000e+00> : vector<16x512xf32>
    %58 = tpu.matmul %56, %57, %cst_13 {dimension_numbers = #tpu.dot_dimension_numbers<[1], [0], [0], [1], [0, 0, 1, 1], [], []>} : vector<16x1024xbf16>, vector<1024x512xbf16>, vector<16x512xf32> -> vector<16x512xf32>
    %c0_14 = arith.constant 0 : index
    %c0_15 = arith.constant 0 : index
    %59 = vector.load %arg7[%c0_14, %c0_15] : memref<1x512xf32, #tpu.memory_space<vmem>>, vector<1x512xf32>
    %60 = vector.broadcast %59 : vector<1x512xf32> to vector<16x512xf32>
    %61 = arith.addf %58, %60 : vector<16x512xf32>
    %cst_16 = arith.constant 0.000000e+00 : f32
    %62 = vector.broadcast %cst_16 : f32 to vector<16x512xf32>
    %63 = arith.maximumf %61, %62 : vector<16x512xf32>
    %64 = arith.truncf %63 : vector<16x512xf32> to vector<16x512xbf16>
    %c0_17 = arith.constant 0 : index
    %c0_18 = arith.constant 0 : index
    %65 = vector.load %arg8[%c0_17, %c0_18] : memref<512x128xbf16, #tpu.memory_space<vmem>>, vector<512x128xbf16>
    %cst_19 = arith.constant dense<0.000000e+00> : vector<16x128xf32>
    %66 = tpu.matmul %64, %65, %cst_19 {dimension_numbers = #tpu.dot_dimension_numbers<[1], [0], [0], [1], [0, 0, 1, 1], [], []>} : vector<16x512xbf16>, vector<512x128xbf16>, vector<16x128xf32> -> vector<16x128xf32>
    %c0_20 = arith.constant 0 : index
    %c0_21 = arith.constant 0 : index
    %67 = vector.load %arg9[%c0_20, %c0_21] : memref<1x128xf32, #tpu.memory_space<vmem>>, vector<1x128xf32>
    %68 = vector.broadcast %67 : vector<1x128xf32> to vector<16x128xf32>
    %69 = arith.addf %66, %68 : vector<16x128xf32>
    %c0_22 = arith.constant 0 : index
    %c0_23 = arith.constant 0 : index
    %70 = vector.load %arg10[%c0_22, %c0_23] : memref<16x128xf32, #tpu.memory_space<vmem>>, vector<16x128xf32>
    tpu.vector_store %arg10[%c0_22, %c0_23], %69 {strides = array<i32>} : memref<16x128xf32, #tpu.memory_space<vmem>>, vector<16x128xf32>,
    return
  }
  func.func @transform_0(%arg0: i32) -> (i32, i32, i32) {
    %c0_i32 = arith.constant 0 : i32
    %c0_i32_0 = arith.constant 0 : i32
    %c0_i32_1 = arith.constant 0 : i32
    return %c0_i32, %arg0, %c0_i32_0 : i32, i32, i32
  }
  func.func @transform_1(%arg0: i32) -> (i32, i32) {
    %c0_i32 = arith.constant 0 : i32
    %c0_i32_0 = arith.constant 0 : i32
    %c0_i32_1 = arith.constant 0 : i32
    return %c0_i32, %c0_i32_0 : i32, i32
  }
  func.func @transform_2(%arg0: i32) -> (i32, i32) {
    %c0_i32 = arith.constant 0 : i32
    %c0_i32_0 = arith.constant 0 : i32
    %c0_i32_1 = arith.constant 0 : i32
    return %c0_i32, %c0_i32_0 : i32, i32
  }
  func.func @transform_3(%arg0: i32) -> (i32, i32) {
    %c0_i32 = arith.constant 0 : i32
    %c0_i32_0 = arith.constant 0 : i32
    %c0_i32_1 = arith.constant 0 : i32
    return %c0_i32, %c0_i32_0 : i32, i32
  }
  func.func @transform_4(%arg0: i32) -> (i32, i32) {
    %c0_i32 = arith.constant 0 : i32
    %c0_i32_0 = arith.constant 0 : i32
    %c0_i32_1 = arith.constant 0 : i32
    return %c0_i32, %c0_i32_0 : i32, i32
  }
  func.func @transform_5(%arg0: i32) -> (i32, i32) {
    %c0_i32 = arith.constant 0 : i32
    %c0_i32_0 = arith.constant 0 : i32
    %c0_i32_1 = arith.constant 0 : i32
    return %c0_i32, %c0_i32_0 : i32, i32
  }
  func.func @transform_6(%arg0: i32) -> (i32, i32) {
    %c0_i32 = arith.constant 0 : i32
    %c0_i32_0 = arith.constant 0 : i32
    %c0_i32_1 = arith.constant 0 : i32
    return %c0_i32, %c0_i32_0 : i32, i32
  }
  func.func @transform_7(%arg0: i32) -> (i32, i32) {
    %c0_i32 = arith.constant 0 : i32
    %c0_i32_0 = arith.constant 0 : i32
    %c0_i32_1 = arith.constant 0 : i32
    return %c0_i32, %c0_i32_0 : i32, i32
  }
  func.func @transform_8(%arg0: i32) -> (i32, i32) {
    %c0_i32 = arith.constant 0 : i32
    %c0_i32_0 = arith.constant 0 : i32
    %c0_i32_1 = arith.constant 0 : i32
    return %c0_i32, %c0_i32_0 : i32, i32
  }
  func.func @transform_9(%arg0: i32) -> (i32, i32) {
    %c0_i32 = arith.constant 0 : i32
    %c0_i32_0 = arith.constant 0 : i32
    return %arg0, %c0_i32 : i32, i32
  }
}

</mosaic_0001>

<llo_original>
// kernel: cnn_backbone_forward.1
$region0: #{cnn_backbone_forward.1}
  #allocation0 [shape = 'u32[]', space=smem, size = 0x4, offset = 0x4, fixed_abs, tag = 'smem constant byte address 0x4 - core index']
  #allocation1 [shape = 'u32[72,128]{1,0:T(1,128)}', space=vmem, size = 0x9000, scoped, tag = 'internal scratch']
  %s0 = inlined_call_operand.vmem [shape: f32[28,16,28], index: 0, kind: input, shape index: {}]
  %s1 = inlined_call_operand.hbm [shape: bf16[140,768], index: 1, kind: input, shape index: {}]
  %s2 = inlined_call_operand.hbm [shape: f32[1,384], index: 2, kind: input, shape index: {}]
  %s3 = inlined_call_operand.hbm [shape: bf16[1920,512], index: 3, kind: input, shape index: {}]
  %s4 = inlined_call_operand.hbm [shape: f32[1,256], index: 4, kind: input, shape index: {}]
  %s5 = inlined_call_operand.hbm [shape: bf16[1024,512], index: 5, kind: input, shape index: {}]
  %s6 = inlined_call_operand.hbm [shape: f32[1,512], index: 6, kind: input, shape index: {}]
  %s7 = inlined_call_operand.hbm [shape: bf16[512,128], index: 7, kind: input, shape index: {}]
  %s8 = inlined_call_operand.hbm [shape: f32[1,128], index: 8, kind: input, shape index: {}]
  %s9 = inlined_call_operand.vmem [shape: f32[16,128], index: 9, kind: output, shape index: {}]
  %s10 = sld [smem:[#allocation0]]
  $region78: #{cnn_backbone_forward.1} parent=0
    _
  %s12 = ssub.s32 1, %s10
  %s13 = scalar_select 0, %s12, %s10
  $region1: #{cnn_backbone_forward.1} parent=0
    #allocation2 [shape = 'u8[221184]{0}', space=vmem, size = 0x36000, scoped, tag = 'input window, operand 1, single buffered']
    #allocation3 [shape = 's32[1]{0}', space=sflag, size = 0x4, scoped, tag = 'scoped memory for cnn_backbone_forward.1']
    #allocation4 [shape = 'u8[1536]{0}', space=vmem, size = 0x800, scoped, tag = 'input window, operand 2, single buffered']
    #allocation5 [shape = 's32[1]{0}', space=sflag, size = 0x4, scoped, tag = 'scoped memory for cnn_backbone_forward.1']
    #allocation6 [shape = 'u8[1966080]{0}', space=vmem, size = 0x1e0000, scoped, tag = 'input window, operand 3, single buffered']
    #allocation7 [shape = 'u8[1024]{0}', space=vmem, size = 0x400, scoped, tag = 'input window, operand 4, single buffered']
    #allocation8 [shape = 's32[1]{0}', space=sflag, size = 0x4, scoped, tag = 'scoped memory for cnn_backbone_forward.1']
    #allocation9 [shape = 'u8[1048576]{0}', space=vmem, size = 0x100000, scoped, tag = 'input window, operand 5, single buffered']
    #allocation10 [shape = 'u8[2048]{0}', space=vmem, size = 0x800, scoped, tag = 'input window, operand 6, single buffered']
    #allocation11 [shape = 's32[1]{0}', space=sflag, size = 0x4, scoped, tag = 'scoped memory for cnn_backbone_forward.1']
    #allocation12 [shape = 'u8[131072]{0}', space=vmem, size = 0x20000, scoped, tag = 'input window, operand 7, single buffered']
    #allocation13 [shape = 'u8[512]{0}', space=vmem, size = 0x400, scoped, tag = 'input window, operand 8, single buffered']
    #allocation14 [shape = 's32[1]{0}', space=sflag, size = 0x4, scoped, tag = 'scoped memory for cnn_backbone_forward.1']
    %14 = vsyncpa [#allocation3], 0
    %15 = vsyncpa [#allocation5], 0
    %16 = vsyncpa [#allocation8], 0
    %17 = vsyncpa [#allocation11], 0
    %18 = vsyncpa [#allocation14], 0
    // Predicated region
    $region2: #{cnn_backbone_forward.1} parent=1 // pred_check
      _
    $region3: #{cnn_backbone_forward.1} parent=1 // pred_check_branch
      %20 = sbr.rel (0) target = $region5
    $region4: #{cnn_backbone_forward.1} parent=1 // pred_region
      _
    $region5: #{cnn_backbone_forward.1} parent=1 // pred_fallthru
      _
    // Predicated region
    $region6: #{cnn_backbone_forward.1} parent=1 // pred_check
      _
    $region7: #{cnn_backbone_forward.1} parent=1 // pred_check_branch
      %22 = sbr.rel (0) target = $region9
    $region8: #{cnn_backbone_forward.1} parent=1 // pred_region
      %24 = vsyncadd [#allocation3], 0
      %s25 = sshll.u32 %s1, 4
      %s26 = int_to_ptr.hbm [resolvable:$true] %s25
      %s27 = sshll.u32 [#allocation2], 4
      %s28 = int_to_ptr.vmem [resolvable:$true] %s27
      %33 = dma.hbm_to_vmem [thread:$0]  %s26, 6912, %s28, [#allocation3], 384, 384, 24
    $region9: #{cnn_backbone_forward.1} parent=1 // pred_fallthru
      _
    // Predicated region
    $region10: #{cnn_backbone_forward.1} parent=1 // pred_check
      _
    $region11: #{cnn_backbone_forward.1} parent=1 // pred_check_branch
      %35 = sbr.rel (0) target = $region13
    $region12: #{cnn_backbone_forward.1} parent=1 // pred_region
      %37 = vsyncadd [#allocation5], 0
      %s39 = sshll.u32 %s2, 4
      %s40 = int_to_ptr.hbm [resolvable:$true] %s39
      %s41 = sshll.u32 [#allocation4], 4
      %s42 = int_to_ptr.vmem [resolvable:$true] %s41
      %44 = dma.hbm_to_vmem [thread:$0]  %s40, 48, %s42, [#allocation5]
    $region13: #{cnn_backbone_forward.1} parent=1 // pred_fallthru
      _
    // Predicated region
    $region14: #{cnn_backbone_forward.1} parent=1 // pred_check
      _
    $region15: #{cnn_backbone_forward.1} parent=1 // pred_check_branch
      %46 = sbr.rel (0) target = $region17
    $region16: #{cnn_backbone_forward.1} parent=1 // pred_region
      %48 = vsyncadd [#allocation5], 0
      %s49 = sshll.u32 %s3, 4
      %s50 = int_to_ptr.hbm [resolvable:$true] %s49
      %s51 = sshll.u32 [#allocation6], 4
      %s52 = int_to_ptr.vmem [resolvable:$true] %s51
      %57 = dma.hbm_to_vmem [thread:$0]  %s50, 61440, %s52, [#allocation5], 256, 256, 16
    $region17: #{cnn_backbone_forward.1} parent=1 // pred_fallthru
      _
    // Predicated region
    $region18: #{cnn_backbone_forward.1} parent=1 // pred_check
      _
    $region19: #{cnn_backbone_forward.1} parent=1 // pred_check_branch
      %59 = sbr.rel (0) target = $region21
    $region20: #{cnn_backbone_forward.1} parent=1 // pred_region
      %61 = vsyncadd [#allocation8], 0
      %s63 = sshll.u32 %s4, 4
      %s64 = int_to_ptr.hbm [resolvable:$true] %s63
      %s65 = sshll.u32 [#allocation7], 4
      %s66 = int_to_ptr.vmem [resolvable:$true] %s65
      %68 = dma.hbm_to_vmem [thread:$0]  %s64, 32, %s66, [#allocation8]
    $region21: #{cnn_backbone_forward.1} parent=1 // pred_fallthru
      _
    // Predicated region
    $region22: #{cnn_backbone_forward.1} parent=1 // pred_check
      _
    $region23: #{cnn_backbone_forward.1} parent=1 // pred_check_branch
      %70 = sbr.rel (0) target = $region25
    $region24: #{cnn_backbone_forward.1} parent=1 // pred_region
      %72 = vsyncadd [#allocation8], 0
      %s73 = sshll.u32 %s5, 4
      %s74 = int_to_ptr.hbm [resolvable:$true] %s73
      %s75 = sshll.u32 [#allocation9], 4
      %s76 = int_to_ptr.vmem [resolvable:$true] %s75
      %81 = dma.hbm_to_vmem [thread:$0]  %s74, 32768, %s76, [#allocation8], 256, 256, 16
    $region25: #{cnn_backbone_forward.1} parent=1 // pred_fallthru
      _
    // Predicated region
    $region26: #{cnn_backbone_forward.1} parent=1 // pred_check
      _
    $region27: #{cnn_backbone_forward.1} parent=1 // pred_check_branch
      %83 = sbr.rel (0) target = $region29
    $region28: #{cnn_backbone_forward.1} parent=1 // pred_region
      %85 = vsyncadd [#allocation11], 0
      %s87 = sshll.u32 %s6, 4
      %s88 = int_to_ptr.hbm [resolvable:$true] %s87
      %s89 = sshll.u32 [#allocation10], 4
      %s90 = int_to_ptr.vmem [resolvable:$true] %s89
      %92 = dma.hbm_to_vmem [thread:$0]  %s88, 64, %s90, [#allocation11]
    $region29: #{cnn_backbone_forward.1} parent=1 // pred_fallthru
      _
    // Predicated region
    $region30: #{cnn_backbone_forward.1} parent=1 // pred_check
      _
    $region31: #{cnn_backbone_forward.1} parent=1 // pred_check_branch
      %94 = sbr.rel (0) target = $region33
    $region32: #{cnn_backbone_forward.1} parent=1 // pred_region
      %96 = vsyncadd [#allocation11], 0
      %s97 = sshll.u32 %s7, 4
      %s98 = int_to_ptr.hbm [resolvable:$true] %s97
      %s99 = sshll.u32 [#allocation12], 4
      %s100 = int_to_ptr.vmem [resolvable:$true] %s99
      %105 = dma.hbm_to_vmem [thread:$0]  %s98, 4096, %s100, [#allocation11], 64, 64, 4
    $region33: #{cnn_backbone_forward.1} parent=1 // pred_fallthru
      _
    // Predicated region
    $region34: #{cnn_backbone_forward.1} parent=1 // pred_check
      _
    $region35: #{cnn_backbone_forward.1} parent=1 // pred_check_branch
      %107 = sbr.rel (0) target = $region37
    $region36: #{cnn_backbone_forward.1} parent=1 // pred_region
      %109 = vsyncadd [#allocation14], 0
      %s111 = sshll.u32 %s8, 4
      %s112 = int_to_ptr.hbm [resolvable:$true] %s111
      %s113 = sshll.u32 [#allocation13], 4
      %s114 = int_to_ptr.vmem [resolvable:$true] %s113
      %116 = dma.hbm_to_vmem [thread:$0]  %s112, 16, %s114, [#allocation14]
    $region37: #{cnn_backbone_forward.1} parent=1 // pred_fallthru
      _
    // Predicated region
    $region38: #{cnn_backbone_forward.1} parent=1 // pred_check
      _
    $region39: #{cnn_backbone_forward.1} parent=1 // pred_check_branch
      %118 = sbr.rel (0) target = $region41
    $region40: #{cnn_backbone_forward.1} parent=1 // pred_region
      %120 = dma.done [#allocation3], 6912
    $region41: #{cnn_backbone_forward.1} parent=1 // pred_fallthru
      _
    // Predicated region
    $region42: #{cnn_backbone_forward.1} parent=1 // pred_check
      _
    $region43: #{cnn_backbone_forward.1} parent=1 // pred_check_branch
      %122 = sbr.rel (0) target = $region45
    $region44: #{cnn_backbone_forward.1} parent=1 // pred_region
      %124 = dma.done [#allocation5], 48
    $region45: #{cnn_backbone_forward.1} parent=1 // pred_fallthru
      _
    // Predicated region
    $region46: #{cnn_backbone_forward.1} parent=1 // pred_check
      _
    $region47: #{cnn_backbone_forward.1} parent=1 // pred_check_branch
      %126 = sbr.rel (0) target = $region49
    $region48: #{cnn_backbone_forward.1} parent=1 // pred_region
      %128 = dma.done [#allocation5], 61440
    $region49: #{cnn_backbone_forward.1} parent=1 // pred_fallthru
      _
    // Predicated region
    $region50: #{cnn_backbone_forward.1} parent=1 // pred_check
      _
    $region51: #{cnn_backbone_forward.1} parent=1 // pred_check_branch
      %130 = sbr.rel (0) target = $region53
    $region52: #{cnn_backbone_forward.1} parent=1 // pred_region
      %132 = dma.done [#allocation8], 32
    $region53: #{cnn_backbone_forward.1} parent=1 // pred_fallthru
      _
    // Predicated region
    $region54: #{cnn_backbone_forward.1} parent=1 // pred_check
      _
    $region55: #{cnn_backbone_forward.1} parent=1 // pred_check_branch
      %134 = sbr.rel (0) target = $region57
    $region56: #{cnn_backbone_forward.1} parent=1 // pred_region
      %136 = dma.done [#allocation8], 32768
    $region57: #{cnn_backbone_forward.1} parent=1 // pred_fallthru
      _
    // Predicated region
    $region58: #{cnn_backbone_forward.1} parent=1 // pred_check
      _
    $region59: #{cnn_backbone_forward.1} parent=1 // pred_check_branch
      %138 = sbr.rel (0) target = $region61
    $region60: #{cnn_backbone_forward.1} parent=1 // pred_region
      %140 = dma.done [#allocation11], 64
    $region61: #{cnn_backbone_forward.1} parent=1 // pred_fallthru
      _
    // Predicated region
    $region62: #{cnn_backbone_forward.1} parent=1 // pred_check
      _
    $region63: #{cnn_backbone_forward.1} parent=1 // pred_check_branch
      %142 = sbr.rel (0) target = $region65
    $region64: #{cnn_backbone_forward.1} parent=1 // pred_region
      %144 = dma.done [#allocation11], 4096
    $region65: #{cnn_backbone_forward.1} parent=1 // pred_fallthru
      _
    // Predicated region
    $region66: #{cnn_backbone_forward.1} parent=1 // pred_check
      _
    $region67: #{cnn_backbone_forward.1} parent=1 // pred_check_branch
      %146 = sbr.rel (0) target = $region69
    $region68: #{cnn_backbone_forward.1} parent=1 // pred_region
      %148 = dma.done [#allocation14], 16
    $region69: #{cnn_backbone_forward.1} parent=1 // pred_fallthru
      _
    %v150 = vld [vmem:[%s0] sm:$0xff]
    %v151 = vld [vmem:[%s0 + $0x8] sm:$0xff]
    %v152 = vld [vmem:[%s0 + $0x10] sm:$0xff]
    %v153 = vld [vmem:[%s0 + $0x18] sm:$0xff]
    %v154 = vld [vmem:[%s0 + $0x20] sm:$0xff]
    %v155 = vld [vmem:[%s0 + $0x28] sm:$0xff]
    %v156 = vld [vmem:[%s0 + $0x30] sm:$0xff]
    %v157 = vld [vmem:[%s0 + $0x38] sm:$0xff]
    %v158 = vld [vmem:[%s0 + $0x40] sm:$0xff]
    %v159 = vld [vmem:[%s0 + $0x48] sm:$0xff]
    %v160 = vld [vmem:[%s0 + $0x50] sm:$0xff]
    %v161 = vld [vmem:[%s0 + $0x58] sm:$0xff]
    %v162 = vld [vmem:[%s0 + $0x60] sm:$0xff]
    %v163 = vld [vmem:[%s0 + $0x68] sm:$0xff]
    %v164 = vld [vmem:[%s0 + $0x70] sm:$0xff]
    %v165 = vld [vmem:[%s0 + $0x78] sm:$0xff]
    %v166 = vld [vmem:[%s0 + $0x80] sm:$0xff]
    %v167 = vld [vmem:[%s0 + $0x88] sm:$0xff]
    %v168 = vld [vmem:[%s0 + $0x90] sm:$0xff]
    %v169 = vld [vmem:[%s0 + $0x98] sm:$0xff]
    %v170 = vld [vmem:[%s0 + $0xa0] sm:$0xff]
    %v171 = vld [vmem:[%s0 + $0xa8] sm:$0xff]
    %v172 = vld [vmem:[%s0 + $0xb0] sm:$0xff]
    %v173 = vld [vmem:[%s0 + $0xb8] sm:$0xff]
    %v174 = vld [vmem:[%s0 + $0xc0] sm:$0xff]
    %v175 = vld [vmem:[%s0 + $0xc8] sm:$0xff]
    %v176 = vld [vmem:[%s0 + $0xd0] sm:$0xff]
    %v177 = vld [vmem:[%s0 + $0xd8] sm:$0xff]
    %v178 = vld [vmem:[%s0 + $0xe0] sm:$0xff]
    %v179 = vld [vmem:[%s0 + $0xe8] sm:$0xff]
    %v180 = vld [vmem:[%s0 + $0xf0] sm:$0xff]
    %v181 = vld [vmem:[%s0 + $0xf8] sm:$0xff]
    %v182 = vld [vmem:[%s0 + $0x100] sm:$0xff]
    %v183 = vld [vmem:[%s0 + $0x108] sm:$0xff]
    %v184 = vld [vmem:[%s0 + $0x110] sm:$0xff]
    %v185 = vld [vmem:[%s0 + $0x118] sm:$0xff]
    %v186 = vld [vmem:[%s0 + $0x120] sm:$0xff]
    %v187 = vld [vmem:[%s0 + $0x128] sm:$0xff]
    %v188 = vld [vmem:[%s0 + $0x130] sm:$0xff]
    %v189 = vld [vmem:[%s0 + $0x138] sm:$0xff]
    %v190 = vld [vmem:[%s0 + $0x140] sm:$0xff]
    %v191 = vld [vmem:[%s0 + $0x148] sm:$0xff]
    %v192 = vld [vmem:[%s0 + $0x150] sm:$0xff]
    %v193 = vld [vmem:[%s0 + $0x158] sm:$0xff]
    %v194 = vld [vmem:[%s0 + $0x160] sm:$0xff]
    %v195 = vld [vmem:[%s0 + $0x168] sm:$0xff]
    %v196 = vld [vmem:[%s0 + $0x170] sm:$0xff]
    %v197 = vld [vmem:[%s0 + $0x178] sm:$0xff]
    %v198 = vld [vmem:[%s0 + $0x180] sm:$0xff]
    %v199 = vld [vmem:[%s0 + $0x188] sm:$0xff]
    %v200 = vld [vmem:[%s0 + $0x190] sm:$0xff]
    %v201 = vld [vmem:[%s0 + $0x198] sm:$0xff]
    %v202 = vld [vmem:[%s0 + $0x1a0] sm:$0xff]
    %v203 = vld [vmem:[%s0 + $0x1a8] sm:$0xff]
    %v204 = vld [vmem:[%s0 + $0x1b0] sm:$0xff]
    %v205 = vld [vmem:[%s0 + $0x1b8] sm:$0xff]
    %v206 = vpack.c.bf16 %v150, %v150
    %v207 = vpack.c.bf16 %v151, %v151
    %v208 = vpack.c.bf16 %v152, %v152
    %v209 = vpack.c.bf16 %v153, %v153
    %v210 = vpack.c.bf16 %v154, %v154
    %v211 = vpack.c.bf16 %v155, %v155
    %v212 = vpack.c.bf16 %v156, %v156
    %v213 = vpack.c.bf16 %v157, %v157
    %v214 = vpack.c.bf16 %v158, %v158
    %v215 = vpack.c.bf16 %v159, %v159
    %v216 = vpack.c.bf16 %v160, %v160
    %v217 = vpack.c.bf16 %v161, %v161
    %v218 = vpack.c.bf16 %v162, %v162
    %v219 = vpack.c.bf16 %v163, %v163
    %v220 = vpack.c.bf16 %v164, %v164
    %v221 = vpack.c.bf16 %v165, %v165
    %v222 = vpack.c.bf16 %v166, %v166
    %v223 = vpack.c.bf16 %v167, %v167
    %v224 = vpack.c.bf16 %v168, %v168
    %v225 = vpack.c.bf16 %v169, %v169
    %v226 = vpack.c.bf16 %v170, %v170
    %v227 = vpack.c.bf16 %v171, %v171
    %v228 = vpack.c.bf16 %v172, %v172
    %v229 = vpack.c.bf16 %v173, %v173
    %v230 = vpack.c.bf16 %v174, %v174
    %v231 = vpack.c.bf16 %v175, %v175
    %v232 = vpack.c.bf16 %v176, %v176
    %v233 = vpack.c.bf16 %v177, %v177
    %v234 = vpack.c.bf16 %v178, %v178
    %v235 = vpack.c.bf16 %v179, %v179
    %v236 = vpack.c.bf16 %v180, %v180
    %v237 = vpack.c.bf16 %v181, %v181
    %v238 = vpack.c.bf16 %v182, %v182
    %v239 = vpack.c.bf16 %v183, %v183
    %v240 = vpack.c.bf16 %v184, %v184
    %v241 = vpack.c.bf16 %v185, %v185
    %v242 = vpack.c.bf16 %v186, %v186
    %v243 = vpack.c.bf16 %v187, %v187
    %v244 = vpack.c.bf16 %v188, %v188
    %v245 = vpack.c.bf16 %v189, %v189
    %v246 = vpack.c.bf16 %v190, %v190
    %v247 = vpack.c.bf16 %v191, %v191
    %v248 = vpack.c.bf16 %v192, %v192
    %v249 = vpack.c.bf16 %v193, %v193
    %v250 = vpack.c.bf16 %v194, %v194
    %v251 = vpack.c.bf16 %v195, %v195
    %v252 = vpack.c.bf16 %v196, %v196
    %v253 = vpack.c.bf16 %v197, %v197
    %v254 = vpack.c.bf16 %v198, %v198
    %v255 = vpack.c.bf16 %v199, %v199
    %v256 = vpack.c.bf16 %v200, %v200
    %v257 = vpack.c.bf16 %v201, %v201
    %v258 = vpack.c.bf16 %v202, %v202
    %v259 = vpack.c.bf16 %v203, %v203
    %v260 = vpack.c.bf16 %v204, %v204
    %v261 = vpack.c.bf16 %v205, %v205
    %v310 = vunpack.c.l.b16 %v206
    %v311 = vunpack.c.l.b16 %v207
    %v312 = vunpack.c.l.b16 %v208
    %v313 = vunpack.c.l.b16 %v209
    %v314 = vunpack.c.l.b16 %v210
    %v315 = vunpack.c.l.b16 %v211
    %v316 = vunpack.c.l.b16 %v212
    %v317 = vunpack.c.l.b16 %v213
    %v318 = vunpack.c.l.b16 %v214
    %v319 = vunpack.c.l.b16 %v215
    %v320 = vunpack.c.l.b16 %v216
    %v321 = vunpack.c.l.b16 %v217
    %v322 = vunpack.c.l.b16 %v218
    %v323 = vunpack.c.l.b16 %v219
    %v324 = vunpack.c.l.b16 %v220
    %v325 = vunpack.c.l.b16 %v221
    %v326 = vunpack.c.l.b16 %v222
    %v327 = vunpack.c.l.b16 %v223
    %v328 = vunpack.c.l.b16 %v224
    %v329 = vunpack.c.l.b16 %v225
    %v330 = vunpack.c.l.b16 %v226
    %v331 = vunpack.c.l.b16 %v227
    %v332 = vunpack.c.l.b16 %v228
    %v333 = vunpack.c.l.b16 %v229
    %v334 = vunpack.c.l.b16 %v230
    %v335 = vunpack.c.l.b16 %v231
    %v336 = vunpack.c.l.b16 %v232
    %v337 = vunpack.c.l.b16 %v233
    %v338 = vunpack.c.l.b16 %v234
    %v339 = vunpack.c.l.b16 %v235
    %v340 = vunpack.c.l.b16 %v236
    %v341 = vunpack.c.l.b16 %v237
    %v342 = vunpack.c.l.b16 %v238
    %v343 = vunpack.c.l.b16 %v239
    %v344 = vunpack.c.l.b16 %v240
    %v345 = vunpack.c.l.b16 %v241
    %v346 = vunpack.c.l.b16 %v242
    %v347 = vunpack.c.l.b16 %v243
    %v348 = vunpack.c.l.b16 %v244
    %v349 = vunpack.c.l.b16 %v245
    %v350 = vunpack.c.l.b16 %v246
    %v351 = vunpack.c.l.b16 %v247
    %v352 = vunpack.c.l.b16 %v248
    %v353 = vunpack.c.l.b16 %v249
    %v354 = vunpack.c.l.b16 %v250
    %v355 = vunpack.c.l.b16 %v251
    %v356 = vunpack.c.l.b16 %v252
    %v357 = vunpack.c.l.b16 %v253
    %v358 = vpack.c.b16 %v311, %v310
    %v359 = vpack.c.b16 %v313, %v312
    %v360 = vpack.c.b16 %v315, %v314
    %v361 = vpack.c.b16 %v317, %v316
    %v362 = vpack.c.b16 %v319, %v318
    %v363 = vpack.c.b16 %v321, %v320
    %v364 = vpack.c.b16 %v323, %v322
    %v365 = vpack.c.b16 %v325, %v324
    %v366 = vpack.c.b16 %v327, %v326
    %v367 = vpack.c.b16 %v329, %v328
    %v368 = vpack.c.b16 %v331, %v330
    %v369 = vpack.c.b16 %v333, %v332
    %v370 = vpack.c.b16 %v335, %v334
    %v371 = vpack.c.b16 %v337, %v336
    %v372 = vpack.c.b16 %v339, %v338
    %v373 = vpack.c.b16 %v341, %v340
    %v374 = vpack.c.b16 %v343, %v342
    %v375 = vpack.c.b16 %v345, %v344
    %v376 = vpack.c.b16 %v347, %v346
    %v377 = vpack.c.b16 %v349, %v348
    %v378 = vpack.c.b16 %v351, %v350
    %v379 = vpack.c.b16 %v353, %v352
    %v380 = vpack.c.b16 %v355, %v354
    %v381 = vpack.c.b16 %v357, %v356
    %v384 = vunpack.c.l.b16 %v254
    %v385 = vunpack.c.l.b16 %v255
    %v386 = vpack.c.b16 %v385, %v384
    %387 = vrot.lane.b32.xlu0 %v359, 28
    %v388 = vpop.permute.xlu0 %387
    %389 = vrot.lane.b32.xlu0 %v360, 28
    %v390 = vpop.permute.xlu0 %389
    %391 = vrot.lane.b32.xlu0 %v361, 28
    %v392 = vpop.permute.xlu0 %391
    %393 = vrot.lane.b32.xlu0 %v362, 28
    %v394 = vpop.permute.xlu0 %393
    %395 = vrot.lane.b32.xlu0 %v363, 28
    %v396 = vpop.permute.xlu0 %395
    %397 = vrot.lane.b32.xlu0 %v364, 28
    %v398 = vpop.permute.xlu0 %397
    %399 = vrot.lane.b32.xlu0 %v365, 28
    %v400 = vpop.permute.xlu0 %399
    %401 = vrot.lane.b32.xlu0 %v366, 28
    %v402 = vpop.permute.xlu0 %401
    %403 = vrot.lane.b32.xlu0 %v367, 28
    %v404 = vpop.permute.xlu0 %403
    %405 = vrot.lane.b32.xlu0 %v368, 28
    %v406 = vpop.permute.xlu0 %405
    %407 = vrot.lane.b32.xlu0 %v369, 28
    %v408 = vpop.permute.xlu0 %407
    %409 = vrot.lane.b32.xlu0 %v370, 28
    %v410 = vpop.permute.xlu0 %409
    %411 = vrot.lane.b32.xlu0 %v371, 28
    %v412 = vpop.permute.xlu0 %411
    %413 = vrot.lane.b32.xlu0 %v372, 28
    %v414 = vpop.permute.xlu0 %413
    %415 = vrot.lane.b32.xlu0 %v373, 28
    %v416 = vpop.permute.xlu0 %415
    %417 = vrot.lane.b32.xlu0 %v374, 28
    %v418 = vpop.permute.xlu0 %417
    %419 = vrot.lane.b32.xlu0 %v375, 28
    %v420 = vpop.permute.xlu0 %419
    %421 = vrot.lane.b32.xlu0 %v376, 28
    %v422 = vpop.permute.xlu0 %421
    %423 = vrot.lane.b32.xlu0 %v377, 28
    %v424 = vpop.permute.xlu0 %423
    %425 = vrot.lane.b32.xlu0 %v378, 28
    %v426 = vpop.permute.xlu0 %425
    %427 = vrot.lane.b32.xlu0 %v379, 28
    %v428 = vpop.permute.xlu0 %427
    %429 = vrot.lane.b32.xlu0 %v380, 28
    %v430 = vpop.permute.xlu0 %429
    %431 = vrot.lane.b32.xlu0 %v381, 28
    %v432 = vpop.permute.xlu0 %431
    %433 = vrot.lane.b32.xlu0 %v386, 28
    %v434 = vpop.permute.xlu0 %433
    %v437 = vunpack.c.l.b16 %v256
    %v438 = vunpack.c.l.b16 %v257
    %v439 = vpack.c.b16 %v438, %v437
    %440 = vrot.lane.b32.xlu0 %v360, 56
    %v441 = vpop.permute.xlu0 %440
    %442 = vrot.lane.b32.xlu0 %v361, 56
    %v443 = vpop.permute.xlu0 %442
    %444 = vrot.lane.b32.xlu0 %v362, 56
    %v445 = vpop.permute.xlu0 %444
    %446 = vrot.lane.b32.xlu0 %v363, 56
    %v447 = vpop.permute.xlu0 %446
    %448 = vrot.lane.b32.xlu0 %v364, 56
    %v449 = vpop.permute.xlu0 %448
    %450 = vrot.lane.b32.xlu0 %v365, 56
    %v451 = vpop.permute.xlu0 %450
    %452 = vrot.lane.b32.xlu0 %v366, 56
    %v453 = vpop.permute.xlu0 %452
    %454 = vrot.lane.b32.xlu0 %v367, 56
    %v455 = vpop.permute.xlu0 %454
    %456 = vrot.lane.b32.xlu0 %v368, 56
    %v457 = vpop.permute.xlu0 %456
    %458 = vrot.lane.b32.xlu0 %v369, 56
    %v459 = vpop.permute.xlu0 %458
    %460 = vrot.lane.b32.xlu0 %v370, 56
    %v461 = vpop.permute.xlu0 %460
    %462 = vrot.lane.b32.xlu0 %v371, 56
    %v463 = vpop.permute.xlu0 %462
    %464 = vrot.lane.b32.xlu0 %v372, 56
    %v465 = vpop.permute.xlu0 %464
    %466 = vrot.lane.b32.xlu0 %v373, 56
    %v467 = vpop.permute.xlu0 %466
    %468 = vrot.lane.b32.xlu0 %v374, 56
    %v469 = vpop.permute.xlu0 %468
    %470 = vrot.lane.b32.xlu0 %v375, 56
    %v471 = vpop.permute.xlu0 %470
    %472 = vrot.lane.b32.xlu0 %v376, 56
    %v473 = vpop.permute.xlu0 %472
    %474 = vrot.lane.b32.xlu0 %v377, 56
    %v475 = vpop.permute.xlu0 %474
    %476 = vrot.lane.b32.xlu0 %v378, 56
    %v477 = vpop.permute.xlu0 %476
    %478 = vrot.lane.b32.xlu0 %v379, 56
    %v479 = vpop.permute.xlu0 %478
    %480 = vrot.lane.b32.xlu0 %v380, 56
    %v481 = vpop.permute.xlu0 %480
    %482 = vrot.lane.b32.xlu0 %v381, 56
    %v483 = vpop.permute.xlu0 %482
    %484 = vrot.lane.b32.xlu0 %v386, 56
    %v485 = vpop.permute.xlu0 %484
    %486 = vrot.lane.b32.xlu0 %v439, 56
    %v487 = vpop.permute.xlu0 %486
    %v490 = vunpack.c.l.b16 %v258
    %v491 = vunpack.c.l.b16 %v259
    %v492 = vpack.c.b16 %v491, %v490
    %493 = vrot.lane.b32.xlu0 %v361, 84
    %v494 = vpop.permute.xlu0 %493
    %495 = vrot.lane.b32.xlu0 %v362, 84
    %v496 = vpop.permute.xlu0 %495
    %497 = vrot.lane.b32.xlu0 %v363, 84
    %v498 = vpop.permute.xlu0 %497
    %499 = vrot.lane.b32.xlu0 %v364, 84
    %v500 = vpop.permute.xlu0 %499
    %501 = vrot.lane.b32.xlu0 %v365, 84
    %v502 = vpop.permute.xlu0 %501
    %503 = vrot.lane.b32.xlu0 %v366, 84
    %v504 = vpop.permute.xlu0 %503
    %505 = vrot.lane.b32.xlu0 %v367, 84
    %v506 = vpop.permute.xlu0 %505
    %507 = vrot.lane.b32.xlu0 %v368, 84
    %v508 = vpop.permute.xlu0 %507
    %509 = vrot.lane.b32.xlu0 %v369, 84
    %v510 = vpop.permute.xlu0 %509
    %511 = vrot.lane.b32.xlu0 %v370, 84
    %v512 = vpop.permute.xlu0 %511
    %513 = vrot.lane.b32.xlu0 %v371, 84
    %v514 = vpop.permute.xlu0 %513
    %515 = vrot.lane.b32.xlu0 %v372, 84
    %v516 = vpop.permute.xlu0 %515
    %517 = vrot.lane.b32.xlu0 %v373, 84
    %v518 = vpop.permute.xlu0 %517
    %519 = vrot.lane.b32.xlu0 %v374, 84
    %v520 = vpop.permute.xlu0 %519
    %521 = vrot.lane.b32.xlu0 %v375, 84
    %v522 = vpop.permute.xlu0 %521
    %523 = vrot.lane.b32.xlu0 %v376, 84
    %v524 = vpop.permute.xlu0 %523
    %525 = vrot.lane.b32.xlu0 %v377, 84
    %v526 = vpop.permute.xlu0 %525
    %527 = vrot.lane.b32.xlu0 %v378, 84
    %v528 = vpop.permute.xlu0 %527
    %529 = vrot.lane.b32.xlu0 %v379, 84
    %v530 = vpop.permute.xlu0 %529
    %531 = vrot.lane.b32.xlu0 %v380, 84
    %v532 = vpop.permute.xlu0 %531
    %533 = vrot.lane.b32.xlu0 %v381, 84
    %v534 = vpop.permute.xlu0 %533
    %535 = vrot.lane.b32.xlu0 %v386, 84
    %v536 = vpop.permute.xlu0 %535
    %537 = vrot.lane.b32.xlu0 %v439, 84
    %v538 = vpop.permute.xlu0 %537
    %539 = vrot.lane.b32.xlu0 %v492, 84
    %v540 = vpop.permute.xlu0 %539
    %v543 = vunpack.c.l.b16 %v260
    %v544 = vunpack.c.l.b16 %v261
    %v545 = vpack.c.b16 %v544, %v543
    %546 = vrot.lane.b32.xlu0 %v362, 112
    %v547 = vpop.permute.xlu0 %546
    %548 = vrot.lane.b32.xlu0 %v363, 112
    %v549 = vpop.permute.xlu0 %548
    %550 = vrot.lane.b32.xlu0 %v364, 112
    %v551 = vpop.permute.xlu0 %550
    %552 = vrot.lane.b32.xlu0 %v365, 112
    %v553 = vpop.permute.xlu0 %552
    %554 = vrot.lane.b32.xlu0 %v366, 112
    %v555 = vpop.permute.xlu0 %554
    %556 = vrot.lane.b32.xlu0 %v367, 112
    %v557 = vpop.permute.xlu0 %556
    %558 = vrot.lane.b32.xlu0 %v368, 112
    %v559 = vpop.permute.xlu0 %558
    %560 = vrot.lane.b32.xlu0 %v369, 112
    %v561 = vpop.permute.xlu0 %560
    %562 = vrot.lane.b32.xlu0 %v370, 112
    %v563 = vpop.permute.xlu0 %562
    %564 = vrot.lane.b32.xlu0 %v371, 112
    %v565 = vpop.permute.xlu0 %564
    %566 = vrot.lane.b32.xlu0 %v372, 112
    %v567 = vpop.permute.xlu0 %566
    %568 = vrot.lane.b32.xlu0 %v373, 112
    %v569 = vpop.permute.xlu0 %568
    %570 = vrot.lane.b32.xlu0 %v374, 112
    %v571 = vpop.permute.xlu0 %570
    %572 = vrot.lane.b32.xlu0 %v375, 112
    %v573 = vpop.permute.xlu0 %572
    %574 = vrot.lane.b32.xlu0 %v376, 112
    %v575 = vpop.permute.xlu0 %574
    %576 = vrot.lane.b32.xlu0 %v377, 112
    %v577 = vpop.permute.xlu0 %576
    %578 = vrot.lane.b32.xlu0 %v378, 112
    %v579 = vpop.permute.xlu0 %578
    %580 = vrot.lane.b32.xlu0 %v379, 112
    %v581 = vpop.permute.xlu0 %580
    %582 = vrot.lane.b32.xlu0 %v380, 112
    %v583 = vpop.permute.xlu0 %582
    %584 = vrot.lane.b32.xlu0 %v381, 112
    %v585 = vpop.permute.xlu0 %584
    %586 = vrot.lane.b32.xlu0 %v386, 112
    %v587 = vpop.permute.xlu0 %586
    %588 = vrot.lane.b32.xlu0 %v439, 112
    %v589 = vpop.permute.xlu0 %588
    %590 = vrot.lane.b32.xlu0 %v492, 112
    %v591 = vpop.permute.xlu0 %590
    %592 = vrot.lane.b32.xlu0 %v545, 112
    %v593 = vpop.permute.xlu0 %592
    %vm594 = vcmask 228352
    %v597 = vsel %vm594, %v358, %v388
    %v600 = vsel %vm594, %v359, %v390
    %v603 = vsel %vm594, %v360, %v392
    %v606 = vsel %vm594, %v361, %v394
    %v609 = vsel %vm594, %v362, %v396
    %v612 = vsel %vm594, %v363, %v398
    %v615 = vsel %vm594, %v364, %v400
    %v618 = vsel %vm594, %v365, %v402
    %v621 = vsel %vm594, %v366, %v404
    %v624 = vsel %vm594, %v367, %v406
    %v627 = vsel %vm594, %v368, %v408
    %v630 = vsel %vm594, %v369, %v410
    %v633 = vsel %vm594, %v370, %v412
    %v636 = vsel %vm594, %v371, %v414
    %v639 = vsel %vm594, %v372, %v416
    %v642 = vsel %vm594, %v373, %v418
    %v645 = vsel %vm594, %v374, %v420
    %v648 = vsel %vm594, %v375, %v422
    %v651 = vsel %vm594, %v376, %v424
    %v654 = vsel %vm594, %v377, %v426
    %v657 = vsel %vm594, %v378, %v428
    %v660 = vsel %vm594, %v379, %v430
    %v663 = vsel %vm594, %v380, %v432
    %v666 = vsel %vm594, %v381, %v434
    %vm667 = vcmask 457728
    %v669 = vsel %vm667, %v597, %v441
    %v671 = vsel %vm667, %v600, %v443
    %v673 = vsel %vm667, %v603, %v445
    %v675 = vsel %vm667, %v606, %v447
    %v677 = vsel %vm667, %v609, %v449
    %v679 = vsel %vm667, %v612, %v451
    %v681 = vsel %vm667, %v615, %v453
    %v683 = vsel %vm667, %v618, %v455
    %v685 = vsel %vm667, %v621, %v457
    %v687 = vsel %vm667, %v624, %v459
    %v689 = vsel %vm667, %v627, %v461
    %v691 = vsel %vm667, %v630, %v463
    %v693 = vsel %vm667, %v633, %v465
    %v695 = vsel %vm667, %v636, %v467
    %v697 = vsel %vm667, %v639, %v469
    %v699 = vsel %vm667, %v642, %v471
    %v701 = vsel %vm667, %v645, %v473
    %v703 = vsel %vm667, %v648, %v475
    %v705 = vsel %vm667, %v651, %v477
    %v707 = vsel %vm667, %v654, %v479
    %v709 = vsel %vm667, %v657, %v481
    %v711 = vsel %vm667, %v660, %v483
    %v713 = vsel %vm667, %v663, %v485
    %v715 = vsel %vm667, %v666, %v487
    %vm716 = vcmask 687104
    %v718 = vsel %vm716, %v669, %v494
    %v720 = vsel %vm716, %v671, %v496
    %v722 = vsel %vm716, %v673, %v498
    %v724 = vsel %vm716, %v675, %v500
    %v726 = vsel %vm716, %v677, %v502
    %v728 = vsel %vm716, %v679, %v504
    %v730 = vsel %vm716, %v681, %v506
    %v732 = vsel %vm716, %v683, %v508
    %v734 = vsel %vm716, %v685, %v510
    %v736 = vsel %vm716, %v687, %v512
    %v738 = vsel %vm716, %v689, %v514
    %v740 = vsel %vm716, %v691, %v516
    %v742 = vsel %vm716, %v693, %v518
    %v744 = vsel %vm716, %v695, %v520
    %v746 = vsel %vm716, %v697, %v522
    %v748 = vsel %vm716, %v699, %v524
    %v750 = vsel %vm716, %v701, %v526
    %v752 = vsel %vm716, %v703, %v528
    %v754 = vsel %vm716, %v705, %v530
    %v756 = vsel %vm716, %v707, %v532
    %v758 = vsel %vm716, %v709, %v534
    %v760 = vsel %vm716, %v711, %v536
    %v762 = vsel %vm716, %v713, %v538
    %v764 = vsel %vm716, %v715, %v540
    %vm765 = vcmask 916480
    %v767 = vsel %vm765, %v718, %v547
    %v770 = vsel %vm765, %v720, %v549
    %v773 = vsel %vm765, %v722, %v551
    %v776 = vsel %vm765, %v724, %v553
    %v779 = vsel %vm765, %v726, %v555
    %v782 = vsel %vm765, %v728, %v557
    %v785 = vsel %vm765, %v730, %v559
    %v788 = vsel %vm765, %v732, %v561
    %v791 = vsel %vm765, %v734, %v563
    %v794 = vsel %vm765, %v736, %v565
    %v797 = vsel %vm765, %v738, %v567
    %v800 = vsel %vm765, %v740, %v569
    %v803 = vsel %vm765, %v742, %v571
    %v806 = vsel %vm765, %v744, %v573
    %v809 = vsel %vm765, %v746, %v575
    %v812 = vsel %vm765, %v748, %v577
    %v815 = vsel %vm765, %v750, %v579
    %v818 = vsel %vm765, %v752, %v581
    %v821 = vsel %vm765, %v754, %v583
    %v824 = vsel %vm765, %v756, %v585
    %v827 = vsel %vm765, %v758, %v587
    %v830 = vsel %vm765, %v760, %v589
    %v833 = vsel %vm765, %v762, %v591
    %v836 = vsel %vm765, %v764, %v593
    %v838 = vld [vmem:[#allocation2] sm:$0xff]
    %v839 = vld [vmem:[#allocation2 + $0x8] sm:$0xff]
    %v840 = vld [vmem:[#allocation2 + $0x10] sm:$0xff]
    %v841 = vld [vmem:[#allocation2 + $0x18] sm:$0xff]
    %v842 = vld [vmem:[#allocation2 + $0x20] sm:$0xff]
    %v843 = vld [vmem:[#allocation2 + $0x28] sm:$0xff]
    %v844 = vld [vmem:[#allocation2 + $0x30] sm:$0xff]
    %v845 = vld [vmem:[#allocation2 + $0x38] sm:$0xff]
    %v846 = vld [vmem:[#allocation2 + $0x40] sm:$0xff]
    %v847 = vld [vmem:[#allocation2 + $0x48] sm:$0xff]
    %v848 = vld [vmem:[#allocation2 + $0x50] sm:$0xff]
    %v849 = vld [vmem:[#allocation2 + $0x58] sm:$0xff]
    %v850 = vld [vmem:[#allocation2 + $0x60] sm:$0xff]
    %v851 = vld [vmem:[#allocation2 + $0x68] sm:$0xff]
    %v852 = vld [vmem:[#allocation2 + $0x70] sm:$0xff]
    %v853 = vld [vmem:[#allocation2 + $0x78] sm:$0xff]
    %v854 = vld [vmem:[#allocation2 + $0x80] sm:$0xff]
    %v855 = vld [vmem:[#allocation2 + $0x88] sm:$0xff]
    %v856 = vld [vmem:[#allocation2 + $0x90] sm:$0xff]
    %v857 = vld [vmem:[#allocation2 + $0x98] sm:$0xff]
    %v858 = vld [vmem:[#allocation2 + $0xa0] sm:$0xff]
    %v859 = vld [vmem:[#allocation2 + $0xa8] sm:$0xff]
    %v860 = vld [vmem:[#allocation2 + $0xb0] sm:$0xff]
    %v861 = vld [vmem:[#allocation2 + $0xb8] sm:$0xff]
    %v862 = vld [vmem:[#allocation2 + $0xc0] sm:$0xff]
    %v863 = vld [vmem:[#allocation2 + $0xc8] sm:$0xff]
    %v864 = vld [vmem:[#allocation2 + $0xd0] sm:$0xff]
    %v865 = vld [vmem:[#allocation2 + $0xd8] sm:$0xff]
    %v866 = vld [vmem:[#allocation2 + $0xe0] sm:$0xff]
    %v867 = vld [vmem:[#allocation2 + $0xe8] sm:$0xff]
    %v868 = vld [vmem:[#allocation2 + $0xf0] sm:$0xff]
    %v869 = vld [vmem:[#allocation2 + $0xf8] sm:$0xff]
    %v870 = vld [vmem:[#allocation2 + $0x100] sm:$0xff]
    %v871 = vld [vmem:[#allocation2 + $0x108] sm:$0xff]
    %v872 = vld [vmem:[#allocation2 + $0x110] sm:$0xff]
    %v873 = vld [vmem:[#allocation2 + $0x118] sm:$0xff]
    %v874 = vld [vmem:[#allocation2 + $0x120] sm:$0xff]
    %v875 = vld [vmem:[#allocation2 + $0x128] sm:$0xff]
    %v876 = vld [vmem:[#allocation2 + $0x130] sm:$0xff]
    %v877 = vld [vmem:[#allocation2 + $0x138] sm:$0xff]
    %v878 = vld [vmem:[#allocation2 + $0x140] sm:$0xff]
    %v879 = vld [vmem:[#allocation2 + $0x148] sm:$0xff]
    %v880 = vld [vmem:[#allocation2 + $0x150] sm:$0xff]
    %v881 = vld [vmem:[#allocation2 + $0x158] sm:$0xff]
    %v882 = vld [vmem:[#allocation2 + $0x160] sm:$0xff]
    %v883 = vld [vmem:[#allocation2 + $0x168] sm:$0xff]
    %v884 = vld [vmem:[#allocation2 + $0x170] sm:$0xff]
    %v885 = vld [vmem:[#allocation2 + $0x178] sm:$0xff]
    %v886 = vld [vmem:[#allocation2 + $0x180] sm:$0xff]
    %v887 = vld [vmem:[#allocation2 + $0x188] sm:$0xff]
    %v888 = vld [vmem:[#allocation2 + $0x190] sm:$0xff]
    %v889 = vld [vmem:[#allocation2 + $0x198] sm:$0x33]
    %v890 = vld [vmem:[#allocation2 + $0x1a0] sm:$0x33]
    %v891 = vld [vmem:[#allocation2 + $0x1a8] sm:$0x33]
    %v946 = vunpack.c.l.b16 %v838
    %v947 = vunpack.c.h.b16 %v838
    %v948 = vunpack.c.l.b16 %v839
    %v949 = vunpack.c.h.b16 %v839
    %v950 = vunpack.c.l.b16 %v840
    %v951 = vunpack.c.h.b16 %v840
    %v952 = vunpack.c.l.b16 %v841
    %v953 = vunpack.c.h.b16 %v841
    %v954 = vunpack.c.l.b16 %v842
    %v955 = vunpack.c.h.b16 %v842
    %v956 = vunpack.c.l.b16 %v843
    %v957 = vunpack.c.h.b16 %v843
    %v958 = vunpack.c.l.b16 %v844
    %v959 = vunpack.c.h.b16 %v844
    %v960 = vunpack.c.l.b16 %v845
    %v961 = vunpack.c.h.b16 %v845
    %v962 = vunpack.c.l.b16 %v846
    %v963 = vunpack.c.h.b16 %v846
    %v964 = vunpack.c.l.b16 %v847
    %v965 = vunpack.c.h.b16 %v847
    %v966 = vunpack.c.l.b16 %v848
    %v967 = vunpack.c.h.b16 %v848
    %v968 = vunpack.c.l.b16 %v849
    %v969 = vunpack.c.h.b16 %v849
    %v970 = vunpack.c.l.b16 %v850
    %v971 = vunpack.c.h.b16 %v850
    %v972 = vunpack.c.l.b16 %v851
    %v973 = vunpack.c.h.b16 %v851
    %v974 = vunpack.c.l.b16 %v852
    %v975 = vunpack.c.h.b16 %v852
    %v976 = vunpack.c.l.b16 %v853
    %v977 = vunpack.c.h.b16 %v853
    %v978 = vunpack.c.l.b16 %v854
    %v979 = vunpack.c.h.b16 %v854
    %v980 = vunpack.c.l.b16 %v855
    %v981 = vunpack.c.h.b16 %v855
    %v982 = vunpack.c.l.b16 %v856
    %v983 = vunpack.c.h.b16 %v856
    %v984 = vunpack.c.l.b16 %v857
    %v985 = vunpack.c.h.b16 %v857
    %v986 = vunpack.c.l.b16 %v858
    %v987 = vunpack.c.h.b16 %v858
    %v988 = vunpack.c.l.b16 %v859
    %v989 = vunpack.c.h.b16 %v859
    %v990 = vunpack.c.l.b16 %v860
    %v991 = vunpack.c.h.b16 %v860
    %v992 = vunpack.c.l.b16 %v861
    %v993 = vunpack.c.h.b16 %v861
    %v994 = vunpack.c.l.b16 %v862
    %v995 = vunpack.c.h.b16 %v862
    %v996 = vunpack.c.l.b16 %v863
    %v997 = vunpack.c.h.b16 %v863
    %v998 = vunpack.c.l.b16 %v864
    %v999 = vunpack.c.h.b16 %v864
    %v1000 = vunpack.c.l.b16 %v865
    %v1001 = vunpack.c.h.b16 %v865
    %v1002 = vunpack.c.l.b16 %v866
    %v1003 = vunpack.c.h.b16 %v866
    %v1004 = vunpack.c.l.b16 %v867
    %v1005 = vunpack.c.h.b16 %v867
    %v1006 = vunpack.c.l.b16 %v868
    %v1007 = vunpack.c.h.b16 %v868
    %v1008 = vunpack.c.l.b16 %v869
    %v1009 = vunpack.c.h.b16 %v869
    %v1010 = vunpack.c.l.b16 %v870
    %v1011 = vunpack.c.h.b16 %v870
    %v1012 = vunpack.c.l.b16 %v871
    %v1013 = vunpack.c.h.b16 %v871
    %v1014 = vunpack.c.l.b16 %v872
    %v1015 = vunpack.c.h.b16 %v872
    %v1016 = vunpack.c.l.b16 %v873
    %v1017 = vunpack.c.h.b16 %v873
    %v1018 = vunpack.c.l.b16 %v874
    %v1019 = vunpack.c.h.b16 %v874
    %v1020 = vunpack.c.l.b16 %v875
    %v1021 = vunpack.c.h.b16 %v875
    %v1022 = vunpack.c.l.b16 %v876
    %v1023 = vunpack.c.h.b16 %v876
    %v1024 = vunpack.c.l.b16 %v877
    %v1025 = vunpack.c.h.b16 %v877
    %v1026 = vunpack.c.l.b16 %v878
    %v1027 = vunpack.c.h.b16 %v878
    %v1028 = vunpack.c.l.b16 %v879
    %v1029 = vunpack.c.h.b16 %v879
    %v1030 = vunpack.c.l.b16 %v880
    %v1031 = vunpack.c.h.b16 %v880
    %v1032 = vunpack.c.l.b16 %v881
    %v1033 = vunpack.c.h.b16 %v881
    %v1034 = vunpack.c.l.b16 %v882
    %v1035 = vunpack.c.h.b16 %v882
    %v1036 = vunpack.c.l.b16 %v883
    %v1037 = vunpack.c.h.b16 %v883
    %v1038 = vunpack.c.l.b16 %v884
    %v1039 = vunpack.c.h.b16 %v884
    %v1040 = vunpack.c.l.b16 %v885
    %v1041 = vunpack.c.h.b16 %v885
    %v1042 = vunpack.c.l.b16 %v886
    %v1043 = vunpack.c.h.b16 %v886
    %v1044 = vunpack.c.l.b16 %v887
    %v1045 = vunpack.c.h.b16 %v887
    %v1046 = vunpack.c.l.b16 %v888
    %v1047 = vunpack.c.h.b16 %v888
    %v1048 = vunpack.c.l.b16 %v889
    %v1049 = vunpack.c.h.b16 %v889
    %v1050 = vunpack.c.l.b16 %v890
    %v1051 = vunpack.c.h.b16 %v890
    %v1052 = vunpack.c.l.b16 %v891
    %v1053 = vunpack.c.h.b16 %v891
    %v1054 = vpack.c.b16 %v952, %v946
    %v1055 = vpack.c.b16 %v953, %v947
    %v1056 = vpack.c.b16 %v954, %v948
    %v1057 = vpack.c.b16 %v955, %v949
    %v1058 = vpack.c.b16 %v956, %v950
    %v1059 = vpack.c.b16 %v957, %v951
    %v1060 = vpack.c.b16 %v964, %v958
    %v1061 = vpack.c.b16 %v965, %v959
    %v1062 = vpack.c.b16 %v966, %v960
    %v1063 = vpack.c.b16 %v967, %v961
    %v1064 = vpack.c.b16 %v968, %v962
    %v1065 = vpack.c.b16 %v969, %v963
    %v1066 = vpack.c.b16 %v976, %v970
    %v1067 = vpack.c.b16 %v977, %v971
    %v1068 = vpack.c.b16 %v978, %v972
    %v1069 = vpack.c.b16 %v979, %v973
    %v1070 = vpack.c.b16 %v980, %v974
    %v1071 = vpack.c.b16 %v981, %v975
    %v1072 = vpack.c.b16 %v988, %v982
    %v1073 = vpack.c.b16 %v989, %v983
    %v1074 = vpack.c.b16 %v990, %v984
    %v1075 = vpack.c.b16 %v991, %v985
    %v1076 = vpack.c.b16 %v992, %v986
    %v1077 = vpack.c.b16 %v993, %v987
    %v1078 = vpack.c.b16 %v1000, %v994
    %v1079 = vpack.c.b16 %v1001, %v995
    %v1080 = vpack.c.b16 %v1002, %v996
    %v1081 = vpack.c.b16 %v1003, %v997
    %v1082 = vpack.c.b16 %v1004, %v998
    %v1083 = vpack.c.b16 %v1005, %v999
    %v1084 = vpack.c.b16 %v1012, %v1006
    %v1085 = vpack.c.b16 %v1013, %v1007
    %v1086 = vpack.c.b16 %v1014, %v1008
    %v1087 = vpack.c.b16 %v1015, %v1009
    %v1088 = vpack.c.b16 %v1016, %v1010
    %v1089 = vpack.c.b16 %v1017, %v1011
    %v1090 = vpack.c.b16 %v1024, %v1018
    %v1091 = vpack.c.b16 %v1025, %v1019
    %v1092 = vpack.c.b16 %v1026, %v1020
    %v1093 = vpack.c.b16 %v1027, %v1021
    %v1094 = vpack.c.b16 %v1028, %v1022
    %v1095 = vpack.c.b16 %v1029, %v1023
    %v1096 = vpack.c.b16 %v1036, %v1030
    %v1097 = vpack.c.b16 %v1037, %v1031
    %v1098 = vpack.c.b16 %v1038, %v1032
    %v1099 = vpack.c.b16 %v1039, %v1033
    %v1100 = vpack.c.b16 %v1040, %v1034
    %v1101 = vpack.c.b16 %v1041, %v1035
    %v1102 = vpack.c.b16 %v1048, %v1042
    %v1103 = vpack.c.b16 %v1049, %v1043
    %v1104 = vpack.c.b16 %v1050, %v1044
    %v1105 = vpack.c.b16 %v1051, %v1045
    %v1106 = vpack.c.b16 %v1052, %v1046
    %v1107 = vpack.c.b16 %v1053, %v1047
    %vm1156 = vcmask 97280
    %v1157 = vsel %vm1156, %v547, 0
    %v1159 = vsel %vm1156, %v549, 0
    %v1161 = vsel %vm1156, %v551, 0
    %v1163 = vsel %vm1156, %v553, 0
    %v1165 = vsel %vm1156, %v555, 0
    %v1167 = vsel %vm1156, %v557, 0
    %v1169 = vsel %vm1156, %v559, 0
    %v1171 = vsel %vm1156, %v561, 0
    %v1173 = vsel %vm1156, %v563, 0
    %v1175 = vsel %vm1156, %v565, 0
    %v1177 = vsel %vm1156, %v567, 0
    %v1179 = vsel %vm1156, %v569, 0
    %v1181 = vsel %vm1156, %v571, 0
    %v1183 = vsel %vm1156, %v573, 0
    %v1185 = vsel %vm1156, %v575, 0
    %v1187 = vsel %vm1156, %v577, 0
    %v1189 = vsel %vm1156, %v579, 0
    %v1191 = vsel %vm1156, %v581, 0
    %v1193 = vsel %vm1156, %v583, 0
    %v1195 = vsel %vm1156, %v585, 0
    %v1197 = vsel %vm1156, %v587, 0
    %v1199 = vsel %vm1156, %v589, 0
    %v1201 = vsel %vm1156, %v591, 0
    %v1203 = vsel %vm1156, %v593, 0
    %vm1205 = vcmask 1045504
    %v1207 = vsel %vm1205, %v1102, 0
    %v1210 = vsel %vm1205, %v1103, 0
    %v1213 = vsel %vm1205, %v1104, 0
    %v1216 = vsel %vm1205, %v1105, 0
    %v1219 = vsel %vm1205, %v1106, 0
    %v1222 = vsel %vm1205, %v1107, 0
    %1224 = vmatpush.bf16.msra.mxu0 %v1096
    %1225 = vmatpush.bf16.msra.mxu0 %v1090
    %1226 = vmatpush.bf16.msra.mxu0 %v1084
    %1227 = vmatpush.bf16.msra.mxu0 %v1078
    %1228 = vmatpush.bf16.msra.mxu0 %v1072
    %1229 = vmatpush.bf16.msra.mxu0 %v1066
    %1230 = vmatpush.bf16.msra.mxu0 %v1060
    %1231 = vmatpush.bf16.msra.mxu0 %v1054
    %1232 = vmatmul.bf16.gmra.mxu0 %v767
    %v1233 = vpop.f32.mrf.mxu0
    %v1234 = vadd.f32 0.0, %v1233
    %v1235 = vpop.f32.mrf.mxu0
    %v1236 = vadd.f32 0.0, %v1235
    %1237 = vmatmul.bf16.gmra.mxu0 %v770
    %v1238 = vpop.f32.mrf.mxu0
    %v1239 = vadd.f32 0.0, %v1238
    %v1240 = vpop.f32.mrf.mxu0
    %v1241 = vadd.f32 0.0, %v1240
    %1242 = vmatmul.bf16.gmra.mxu0 %v773
    %v1243 = vpop.f32.mrf.mxu0
    %v1244 = vadd.f32 0.0, %v1243
    %v1245 = vpop.f32.mrf.mxu0
    %v1246 = vadd.f32 0.0, %v1245
    %1247 = vmatmul.bf16.gmra.mxu0 %v776
    %v1248 = vpop.f32.mrf.mxu0
    %v1249 = vadd.f32 0.0, %v1248
    %v1250 = vpop.f32.mrf.mxu0
    %v1251 = vadd.f32 0.0, %v1250
    %1252 = vmatmul.bf16.gmra.mxu0 %v779
    %v1253 = vpop.f32.mrf.mxu0
    %v1254 = vadd.f32 0.0, %v1253
    %v1255 = vpop.f32.mrf.mxu0
    %v1256 = vadd.f32 0.0, %v1255
    %1257 = vmatmul.bf16.gmra.mxu0 %v782
    %v1258 = vpop.f32.mrf.mxu0
    %v1259 = vadd.f32 0.0, %v1258
    %v1260 = vpop.f32.mrf.mxu0
    %v1261 = vadd.f32 0.0, %v1260
    %1262 = vmatmul.bf16.gmra.mxu0 %v785
    %v1263 = vpop.f32.mrf.mxu0
    %v1264 = vadd.f32 0.0, %v1263
    %v1265 = vpop.f32.mrf.mxu0
    %v1266 = vadd.f32 0.0, %v1265
    %1267 = vmatmul.bf16.gmra.mxu0 %v788
    %v1268 = vpop.f32.mrf.mxu0
    %v1269 = vadd.f32 0.0, %v1268
    %v1270 = vpop.f32.mrf.mxu0
    %v1271 = vadd.f32 0.0, %v1270
    %1272 = vmatmul.bf16.gmra.mxu0 %v791
    %v1273 = vpop.f32.mrf.mxu0
    %v1274 = vadd.f32 0.0, %v1273
    %v1275 = vpop.f32.mrf.mxu0
    %v1276 = vadd.f32 0.0, %v1275
    %1277 = vmatmul.bf16.gmra.mxu0 %v794
    %v1278 = vpop.f32.mrf.mxu0
    %v1279 = vadd.f32 0.0, %v1278
    %v1280 = vpop.f32.mrf.mxu0
    %v1281 = vadd.f32 0.0, %v1280
    %1282 = vmatmul.bf16.gmra.mxu0 %v797
    %v1283 = vpop.f32.mrf.mxu0
    %v1284 = vadd.f32 0.0, %v1283
    %v1285 = vpop.f32.mrf.mxu0
    %v1286 = vadd.f32 0.0, %v1285
    %1287 = vmatmul.bf16.gmra.mxu0 %v800
    %v1288 = vpop.f32.mrf.mxu0
    %v1289 = vadd.f32 0.0, %v1288
    %v1290 = vpop.f32.mrf.mxu0
    %v1291 = vadd.f32 0.0, %v1290
    %1292 = vmatmul.bf16.gmra.mxu0 %v803
    %v1293 = vpop.f32.mrf.mxu0
    %v1294 = vadd.f32 0.0, %v1293
    %v1295 = vpop.f32.mrf.mxu0
    %v1296 = vadd.f32 0.0, %v1295
    %1297 = vmatmul.bf16.gmra.mxu0 %v806
    %v1298 = vpop.f32.mrf.mxu0
    %v1299 = vadd.f32 0.0, %v1298
    %v1300 = vpop.f32.mrf.mxu0
    %v1301 = vadd.f32 0.0, %v1300
    %1302 = vmatmul.bf16.gmra.mxu0 %v809
    %v1303 = vpop.f32.mrf.mxu0
    %v1304 = vadd.f32 0.0, %v1303
    %v1305 = vpop.f32.mrf.mxu0
    %v1306 = vadd.f32 0.0, %v1305
    %1307 = vmatmul.bf16.gmra.mxu0 %v812
    %v1308 = vpop.f32.mrf.mxu0
    %v1309 = vadd.f32 0.0, %v1308
    %v1310 = vpop.f32.mrf.mxu0
    %v1311 = vadd.f32 0.0, %v1310
    %1312 = vmatmul.bf16.gmra.mxu0 %v815
    %v1313 = vpop.f32.mrf.mxu0
    %v1314 = vadd.f32 0.0, %v1313
    %v1315 = vpop.f32.mrf.mxu0
    %v1316 = vadd.f32 0.0, %v1315
    %1317 = vmatmul.bf16.gmra.mxu0 %v818
    %v1318 = vpop.f32.mrf.mxu0
    %v1319 = vadd.f32 0.0, %v1318
    %v1320 = vpop.f32.mrf.mxu0
    %v1321 = vadd.f32 0.0, %v1320
    %1322 = vmatmul.bf16.gmra.mxu0 %v821
    %v1323 = vpop.f32.mrf.mxu0
    %v1324 = vadd.f32 0.0, %v1323
    %v1325 = vpop.f32.mrf.mxu0
    %v1326 = vadd.f32 0.0, %v1325
    %1327 = vmatmul.bf16.gmra.mxu0 %v824
    %v1328 = vpop.f32.mrf.mxu0
    %v1329 = vadd.f32 0.0, %v1328
    %v1330 = vpop.f32.mrf.mxu0
    %v1331 = vadd.f32 0.0, %v1330
    %1332 = vmatmul.bf16.gmra.mxu0 %v827
    %v1333 = vpop.f32.mrf.mxu0
    %v1334 = vadd.f32 0.0, %v1333
    %v1335 = vpop.f32.mrf.mxu0
    %v1336 = vadd.f32 0.0, %v1335
    %1337 = vmatmul.bf16.gmra.mxu0 %v830
    %v1338 = vpop.f32.mrf.mxu0
    %v1339 = vadd.f32 0.0, %v1338
    %v1340 = vpop.f32.mrf.mxu0
    %v1341 = vadd.f32 0.0, %v1340
    %1342 = vmatmul.bf16.gmra.mxu0 %v833
    %v1343 = vpop.f32.mrf.mxu0
    %v1344 = vadd.f32 0.0, %v1343
    %v1345 = vpop.f32.mrf.mxu0
    %v1346 = vadd.f32 0.0, %v1345
    %1347 = vmatmul.bf16.gmra.mxu0 %v836
    %v1348 = vpop.f32.mrf.mxu0
    %v1349 = vadd.f32 0.0, %v1348
    %v1350 = vpop.f32.mrf.mxu0
    %v1351 = vadd.f32 0.0, %v1350
    %1352 = vdwg.mxu0
    %1353 = vmatpush.bf16.msra.mxu0 0
    %1354 = vmatpush.bf16.msra.mxu0 0
    %1355 = vmatpush.bf16.msra.mxu0 0
    %1356 = vmatpush.bf16.msra.mxu0 0
    %1357 = vmatpush.bf16.msra.mxu0 0
    %1358 = vmatpush.bf16.msra.mxu0 0
    %1359 = vmatpush.bf16.msra.mxu0 0
    %1360 = vmatpush.bf16.msra.mxu0 %v1207
    %1361 = vmatmul.bf16.gmra.mxu0 %v1157
    %v1362 = vpop.f32.mrf.mxu0
    %v1363 = vadd.f32 %v1234, %v1362
    %v1364 = vpop.f32.mrf.mxu0
    %v1365 = vadd.f32 %v1236, %v1364
    %1366 = vmatmul.bf16.gmra.mxu0 %v1159
    %v1367 = vpop.f32.mrf.mxu0
    %v1368 = vadd.f32 %v1239, %v1367
    %v1369 = vpop.f32.mrf.mxu0
    %v1370 = vadd.f32 %v1241, %v1369
    %1371 = vmatmul.bf16.gmra.mxu0 %v1161
    %v1372 = vpop.f32.mrf.mxu0
    %v1373 = vadd.f32 %v1244, %v1372
    %v1374 = vpop.f32.mrf.mxu0
    %v1375 = vadd.f32 %v1246, %v1374
    %1376 = vmatmul.bf16.gmra.mxu0 %v1163
    %v1377 = vpop.f32.mrf.mxu0
    %v1378 = vadd.f32 %v1249, %v1377
    %v1379 = vpop.f32.mrf.mxu0
    %v1380 = vadd.f32 %v1251, %v1379
    %1381 = vmatmul.bf16.gmra.mxu0 %v1165
    %v1382 = vpop.f32.mrf.mxu0
    %v1383 = vadd.f32 %v1254, %v1382
    %v1384 = vpop.f32.mrf.mxu0
    %v1385 = vadd.f32 %v1256, %v1384
    %1386 = vmatmul.bf16.gmra.mxu0 %v1167
    %v1387 = vpop.f32.mrf.mxu0
    %v1388 = vadd.f32 %v1259, %v1387
    %v1389 = vpop.f32.mrf.mxu0
    %v1390 = vadd.f32 %v1261, %v1389
    %1391 = vmatmul.bf16.gmra.mxu0 %v1169
    %v1392 = vpop.f32.mrf.mxu0
    %v1393 = vadd.f32 %v1264, %v1392
    %v1394 = vpop.f32.mrf.mxu0
    %v1395 = vadd.f32 %v1266, %v1394
    %1396 = vmatmul.bf16.gmra.mxu0 %v1171
    %v1397 = vpop.f32.mrf.mxu0
    %v1398 = vadd.f32 %v1269, %v1397
    %v1399 = vpop.f32.mrf.mxu0
    %v1400 = vadd.f32 %v1271, %v1399
    %1401 = vmatmul.bf16.gmra.mxu0 %v1173
    %v1402 = vpop.f32.mrf.mxu0
    %v1403 = vadd.f32 %v1274, %v1402
    %v1404 = vpop.f32.mrf.mxu0
    %v1405 = vadd.f32 %v1276, %v1404
    %1406 = vmatmul.bf16.gmra.mxu0 %v1175
    %v1407 = vpop.f32.mrf.mxu0
    %v1408 = vadd.f32 %v1279, %v1407
    %v1409 = vpop.f32.mrf.mxu0
    %v1410 = vadd.f32 %v1281, %v1409
    %1411 = vmatmul.bf16.gmra.mxu0 %v1177
    %v1412 = vpop.f32.mrf.mxu0
    %v1413 = vadd.f32 %v1284, %v1412
    %v1414 = vpop.f32.mrf.mxu0
    %v1415 = vadd.f32 %v1286, %v1414
    %1416 = vmatmul.bf16.gmra.mxu0 %v1179
    %v1417 = vpop.f32.mrf.mxu0
    %v1418 = vadd.f32 %v1289, %v1417
    %v1419 = vpop.f32.mrf.mxu0
    %v1420 = vadd.f32 %v1291, %v1419
    %1421 = vmatmul.bf16.gmra.mxu0 %v1181
    %v1422 = vpop.f32.mrf.mxu0
    %v1423 = vadd.f32 %v1294, %v1422
    %v1424 = vpop.f32.mrf.mxu0
    %v1425 = vadd.f32 %v1296, %v1424
    %1426 = vmatmul.bf16.gmra.mxu0 %v1183
    %v1427 = vpop.f32.mrf.mxu0
    %v1428 = vadd.f32 %v1299, %v1427
    %v1429 = vpop.f32.mrf.mxu0
    %v1430 = vadd.f32 %v1301, %v1429
    %1431 = vmatmul.bf16.gmra.mxu0 %v1185
    %v1432 = vpop.f32.mrf.mxu0
    %v1433 = vadd.f32 %v1304, %v1432
    %v1434 = vpop.f32.mrf.mxu0
    %v1435 = vadd.f32 %v1306, %v1434
    %1436 = vmatmul.bf16.gmra.mxu0 %v1187
    %v1437 = vpop.f32.mrf.mxu0
    %v1438 = vadd.f32 %v1309, %v1437
    %v1439 = vpop.f32.mrf.mxu0
    %v1440 = vadd.f32 %v1311, %v1439
    %1441 = vmatmul.bf16.gmra.mxu0 %v1189
    %v1442 = vpop.f32.mrf.mxu0
    %v1443 = vadd.f32 %v1314, %v1442
    %v1444 = vpop.f32.mrf.mxu0
    %v1445 = vadd.f32 %v1316, %v1444
    %1446 = vmatmul.bf16.gmra.mxu0 %v1191
    %v1447 = vpop.f32.mrf.mxu0
    %v1448 = vadd.f32 %v1319, %v1447
    %v1449 = vpop.f32.mrf.mxu0
    %v1450 = vadd.f32 %v1321, %v1449
    %1451 = vmatmul.bf16.gmra.mxu0 %v1193
    %v1452 = vpop.f32.mrf.mxu0
    %v1453 = vadd.f32 %v1324, %v1452
    %v1454 = vpop.f32.mrf.mxu0
    %v1455 = vadd.f32 %v1326, %v1454
    %1456 = vmatmul.bf16.gmra.mxu0 %v1195
    %v1457 = vpop.f32.mrf.mxu0
    %v1458 = vadd.f32 %v1329, %v1457
    %v1459 = vpop.f32.mrf.mxu0
    %v1460 = vadd.f32 %v1331, %v1459
    %1461 = vmatmul.bf16.gmra.mxu0 %v1197
    %v1462 = vpop.f32.mrf.mxu0
    %v1463 = vadd.f32 %v1334, %v1462
    %v1464 = vpop.f32.mrf.mxu0
    %v1465 = vadd.f32 %v1336, %v1464
    %1466 = vmatmul.bf16.gmra.mxu0 %v1199
    %v1467 = vpop.f32.mrf.mxu0
    %v1468 = vadd.f32 %v1339, %v1467
    %v1469 = vpop.f32.mrf.mxu0
    %v1470 = vadd.f32 %v1341, %v1469
    %1471 = vmatmul.bf16.gmra.mxu0 %v1201
    %v1472 = vpop.f32.mrf.mxu0
    %v1473 = vadd.f32 %v1344, %v1472
    %v1474 = vpop.f32.mrf.mxu0
    %v1475 = vadd.f32 %v1346, %v1474
    %1476 = vmatmul.bf16.gmra.mxu0 %v1203
    %v1477 = vpop.f32.mrf.mxu0
    %v1478 = vadd.f32 %v1349, %v1477
    %v1479 = vpop.f32.mrf.mxu0
    %v1480 = vadd.f32 %v1351, %v1479
    %1481 = vdwg.mxu0
    %1482 = vmatpush.bf16.msra.mxu0 %v1097
    %1483 = vmatpush.bf16.msra.mxu0 %v1091
    %1484 = vmatpush.bf16.msra.mxu0 %v1085
    %1485 = vmatpush.bf16.msra.mxu0 %v1079
    %1486 = vmatpush.bf16.msra.mxu0 %v1073
    %1487 = vmatpush.bf16.msra.mxu0 %v1067
    %1488 = vmatpush.bf16.msra.mxu0 %v1061
    %1489 = vmatpush.bf16.msra.mxu0 %v1055
    %1490 = vmatmul.bf16.gmra.mxu0 %v767
    %v1491 = vpop.f32.mrf.mxu0
    %v1492 = vadd.f32 0.0, %v1491
    %v1493 = vpop.f32.mrf.mxu0
    %v1494 = vadd.f32 0.0, %v1493
    %1495 = vmatmul.bf16.gmra.mxu0 %v770
    %v1496 = vpop.f32.mrf.mxu0
    %v1497 = vadd.f32 0.0, %v1496
    %v1498 = vpop.f32.mrf.mxu0
    %v1499 = vadd.f32 0.0, %v1498
    %1500 = vmatmul.bf16.gmra.mxu0 %v773
    %v1501 = vpop.f32.mrf.mxu0
    %v1502 = vadd.f32 0.0, %v1501
    %v1503 = vpop.f32.mrf.mxu0
    %v1504 = vadd.f32 0.0, %v1503
    %1505 = vmatmul.bf16.gmra.mxu0 %v776
    %v1506 = vpop.f32.mrf.mxu0
    %v1507 = vadd.f32 0.0, %v1506
    %v1508 = vpop.f32.mrf.mxu0
    %v1509 = vadd.f32 0.0, %v1508
    %1510 = vmatmul.bf16.gmra.mxu0 %v779
    %v1511 = vpop.f32.mrf.mxu0
    %v1512 = vadd.f32 0.0, %v1511
    %v1513 = vpop.f32.mrf.mxu0
    %v1514 = vadd.f32 0.0, %v1513
    %1515 = vmatmul.bf16.gmra.mxu0 %v782
    %v1516 = vpop.f32.mrf.mxu0
    %v1517 = vadd.f32 0.0, %v1516
    %v1518 = vpop.f32.mrf.mxu0
    %v1519 = vadd.f32 0.0, %v1518
    %1520 = vmatmul.bf16.gmra.mxu0 %v785
    %v1521 = vpop.f32.mrf.mxu0
    %v1522 = vadd.f32 0.0, %v1521
    %v1523 = vpop.f32.mrf.mxu0
    %v1524 = vadd.f32 0.0, %v1523
    %1525 = vmatmul.bf16.gmra.mxu0 %v788
    %v1526 = vpop.f32.mrf.mxu0
    %v1527 = vadd.f32 0.0, %v1526
    %v1528 = vpop.f32.mrf.mxu0
    %v1529 = vadd.f32 0.0, %v1528
    %1530 = vmatmul.bf16.gmra.mxu0 %v791
    %v1531 = vpop.f32.mrf.mxu0
    %v1532 = vadd.f32 0.0, %v1531
    %v1533 = vpop.f32.mrf.mxu0
    %v1534 = vadd.f32 0.0, %v1533
    %1535 = vmatmul.bf16.gmra.mxu0 %v794
    %v1536 = vpop.f32.mrf.mxu0
    %v1537 = vadd.f32 0.0, %v1536
    %v1538 = vpop.f32.mrf.mxu0
    %v1539 = vadd.f32 0.0, %v1538
    %1540 = vmatmul.bf16.gmra.mxu0 %v797
    %v1541 = vpop.f32.mrf.mxu0
    %v1542 = vadd.f32 0.0, %v1541
    %v1543 = vpop.f32.mrf.mxu0
    %v1544 = vadd.f32 0.0, %v1543
    %1545 = vmatmul.bf16.gmra.mxu0 %v800
    %v1546 = vpop.f32.mrf.mxu0
    %v1547 = vadd.f32 0.0, %v1546
    %v1548 = vpop.f32.mrf.mxu0
    %v1549 = vadd.f32 0.0, %v1548
    %1550 = vmatmul.bf16.gmra.mxu0 %v803
    %v1551 = vpop.f32.mrf.mxu0
    %v1552 = vadd.f32 0.0, %v1551
    %v1553 = vpop.f32.mrf.mxu0
    %v1554 = vadd.f32 0.0, %v1553
    %1555 = vmatmul.bf16.gmra.mxu0 %v806
    %v1556 = vpop.f32.mrf.mxu0
    %v1557 = vadd.f32 0.0, %v1556
    %v1558 = vpop.f32.mrf.mxu0
    %v1559 = vadd.f32 0.0, %v1558
    %1560 = vmatmul.bf16.gmra.mxu0 %v809
    %v1561 = vpop.f32.mrf.mxu0
    %v1562 = vadd.f32 0.0, %v1561
    %v1563 = vpop.f32.mrf.mxu0
    %v1564 = vadd.f32 0.0, %v1563
    %1565 = vmatmul.bf16.gmra.mxu0 %v812
    %v1566 = vpop.f32.mrf.mxu0
    %v1567 = vadd.f32 0.0, %v1566
    %v1568 = vpop.f32.mrf.mxu0
    %v1569 = vadd.f32 0.0, %v1568
    %1570 = vmatmul.bf16.gmra.mxu0 %v815
    %v1571 = vpop.f32.mrf.mxu0
    %v1572 = vadd.f32 0.0, %v1571
    %v1573 = vpop.f32.mrf.mxu0
    %v1574 = vadd.f32 0.0, %v1573
    %1575 = vmatmul.bf16.gmra.mxu0 %v818
    %v1576 = vpop.f32.mrf.mxu0
    %v1577 = vadd.f32 0.0, %v1576
    %v1578 = vpop.f32.mrf.mxu0
    %v1579 = vadd.f32 0.0, %v1578
    %1580 = vmatmul.bf16.gmra.mxu0 %v821
    %v1581 = vpop.f32.mrf.mxu0
    %v1582 = vadd.f32 0.0, %v1581
    %v1583 = vpop.f32.mrf.mxu0
    %v1584 = vadd.f32 0.0, %v1583
    %1585 = vmatmul.bf16.gmra.mxu0 %v824
    %v1586 = vpop.f32.mrf.mxu0
    %v1587 = vadd.f32 0.0, %v1586
    %v1588 = vpop.f32.mrf.mxu0
    %v1589 = vadd.f32 0.0, %v1588
    %1590 = vmatmul.bf16.gmra.mxu0 %v827
    %v1591 = vpop.f32.mrf.mxu0
    %v1592 = vadd.f32 0.0, %v1591
    %v1593 = vpop.f32.mrf.mxu0
    %v1594 = vadd.f32 0.0, %v1593
    %1595 = vmatmul.bf16.gmra.mxu0 %v830
    %v1596 = vpop.f32.mrf.mxu0
    %v1597 = vadd.f32 0.0, %v1596
    %v1598 = vpop.f32.mrf.mxu0
    %v1599 = vadd.f32 0.0, %v1598
    %1600 = vmatmul.bf16.gmra.mxu0 %v833
    %v1601 = vpop.f32.mrf.mxu0
    %v1602 = vadd.f32 0.0, %v1601
    %v1603 = vpop.f32.mrf.mxu0
    %v1604 = vadd.f32 0.0, %v1603
    %1605 = vmatmul.bf16.gmra.mxu0 %v836
    %v1606 = vpop.f32.mrf.mxu0
    %v1607 = vadd.f32 0.0, %v1606
    %v1608 = vpop.f32.mrf.mxu0
    %v1609 = vadd.f32 0.0, %v1608
    %1610 = vdwg.mxu0
    %1611 = vmatpush.bf16.msra.mxu0 0
    %1612 = vmatpush.bf16.msra.mxu0 0
    %1613 = vmatpush.bf16.msra.mxu0 0
    %1614 = vmatpush.bf16.msra.mxu0 0
    %1615 = vmatpush.bf16.msra.mxu0 0
    %1616 = vmatpush.bf16.msra.mxu0 0
    %1617 = vmatpush.bf16.msra.mxu0 0
    %1618 = vmatpush.bf16.msra.mxu0 %v1210
    %1619 = vmatmul.bf16.gmra.mxu0 %v1157
    %v1620 = vpop.f32.mrf.mxu0
    %v1621 = vadd.f32 %v1492, %v1620
    %v1622 = vpop.f32.mrf.mxu0
    %v1623 = vadd.f32 %v1494, %v1622
    %1624 = vmatmul.bf16.gmra.mxu0 %v1159
    %v1625 = vpop.f32.mrf.mxu0
    %v1626 = vadd.f32 %v1497, %v1625
    %v1627 = vpop.f32.mrf.mxu0
    %v1628 = vadd.f32 %v1499, %v1627
    %1629 = vmatmul.bf16.gmra.mxu0 %v1161
    %v1630 = vpop.f32.mrf.mxu0
    %v1631 = vadd.f32 %v1502, %v1630
    %v1632 = vpop.f32.mrf.mxu0
    %v1633 = vadd.f32 %v1504, %v1632
    %1634 = vmatmul.bf16.gmra.mxu0 %v1163
    %v1635 = vpop.f32.mrf.mxu0
    %v1636 = vadd.f32 %v1507, %v1635
    %v1637 = vpop.f32.mrf.mxu0
    %v1638 = vadd.f32 %v1509, %v1637
    %1639 = vmatmul.bf16.gmra.mxu0 %v1165
    %v1640 = vpop.f32.mrf.mxu0
    %v1641 = vadd.f32 %v1512, %v1640
    %v1642 = vpop.f32.mrf.mxu0
    %v1643 = vadd.f32 %v1514, %v1642
    %1644 = vmatmul.bf16.gmra.mxu0 %v1167
    %v1645 = vpop.f32.mrf.mxu0
    %v1646 = vadd.f32 %v1517, %v1645
    %v1647 = vpop.f32.mrf.mxu0
    %v1648 = vadd.f32 %v1519, %v1647
    %1649 = vmatmul.bf16.gmra.mxu0 %v1169
    %v1650 = vpop.f32.mrf.mxu0
    %v1651 = vadd.f32 %v1522, %v1650
    %v1652 = vpop.f32.mrf.mxu0
    %v1653 = vadd.f32 %v1524, %v1652
    %1654 = vmatmul.bf16.gmra.mxu0 %v1171
    %v1655 = vpop.f32.mrf.mxu0
    %v1656 = vadd.f32 %v1527, %v1655
    %v1657 = vpop.f32.mrf.mxu0
    %v1658 = vadd.f32 %v1529, %v1657
    %1659 = vmatmul.bf16.gmra.mxu0 %v1173
    %v1660 = vpop.f32.mrf.mxu0
    %v1661 = vadd.f32 %v1532, %v1660
    %v1662 = vpop.f32.mrf.mxu0
    %v1663 = vadd.f32 %v1534, %v1662
    %1664 = vmatmul.bf16.gmra.mxu0 %v1175
    %v1665 = vpop.f32.mrf.mxu0
    %v1666 = vadd.f32 %v1537, %v1665
    %v1667 = vpop.f32.mrf.mxu0
    %v1668 = vadd.f32 %v1539, %v1667
    %1669 = vmatmul.bf16.gmra.mxu0 %v1177
    %v1670 = vpop.f32.mrf.mxu0
    %v1671 = vadd.f32 %v1542, %v1670
    %v1672 = vpop.f32.mrf.mxu0
    %v1673 = vadd.f32 %v1544, %v1672
    %1674 = vmatmul.bf16.gmra.mxu0 %v1179
    %v1675 = vpop.f32.mrf.mxu0
    %v1676 = vadd.f32 %v1547, %v1675
    %v1677 = vpop.f32.mrf.mxu0
    %v1678 = vadd.f32 %v1549, %v1677
    %1679 = vmatmul.bf16.gmra.mxu0 %v1181
    %v1680 = vpop.f32.mrf.mxu0
    %v1681 = vadd.f32 %v1552, %v1680
    %v1682 = vpop.f32.mrf.mxu0
    %v1683 = vadd.f32 %v1554, %v1682
    %1684 = vmatmul.bf16.gmra.mxu0 %v1183
    %v1685 = vpop.f32.mrf.mxu0
    %v1686 = vadd.f32 %v1557, %v1685
    %v1687 = vpop.f32.mrf.mxu0
    %v1688 = vadd.f32 %v1559, %v1687
    %1689 = vmatmul.bf16.gmra.mxu0 %v1185
    %v1690 = vpop.f32.mrf.mxu0
    %v1691 = vadd.f32 %v1562, %v1690
    %v1692 = vpop.f32.mrf.mxu0
    %v1693 = vadd.f32 %v1564, %v1692
    %1694 = vmatmul.bf16.gmra.mxu0 %v1187
    %v1695 = vpop.f32.mrf.mxu0
    %v1696 = vadd.f32 %v1567, %v1695
    %v1697 = vpop.f32.mrf.mxu0
    %v1698 = vadd.f32 %v1569, %v1697
    %1699 = vmatmul.bf16.gmra.mxu0 %v1189
    %v1700 = vpop.f32.mrf.mxu0
    %v1701 = vadd.f32 %v1572, %v1700
    %v1702 = vpop.f32.mrf.mxu0
    %v1703 = vadd.f32 %v1574, %v1702
    %1704 = vmatmul.bf16.gmra.mxu0 %v1191
    %v1705 = vpop.f32.mrf.mxu0
    %v1706 = vadd.f32 %v1577, %v1705
    %v1707 = vpop.f32.mrf.mxu0
    %v1708 = vadd.f32 %v1579, %v1707
    %1709 = vmatmul.bf16.gmra.mxu0 %v1193
    %v1710 = vpop.f32.mrf.mxu0
    %v1711 = vadd.f32 %v1582, %v1710
    %v1712 = vpop.f32.mrf.mxu0
    %v1713 = vadd.f32 %v1584, %v1712
    %1714 = vmatmul.bf16.gmra.mxu0 %v1195
    %v1715 = vpop.f32.mrf.mxu0
    %v1716 = vadd.f32 %v1587, %v1715
    %v1717 = vpop.f32.mrf.mxu0
    %v1718 = vadd.f32 %v1589, %v1717
    %1719 = vmatmul.bf16.gmra.mxu0 %v1197
    %v1720 = vpop.f32.mrf.mxu0
    %v1721 = vadd.f32 %v1592, %v1720
    %v1722 = vpop.f32.mrf.mxu0
    %v1723 = vadd.f32 %v1594, %v1722
    %1724 = vmatmul.bf16.gmra.mxu0 %v1199
    %v1725 = vpop.f32.mrf.mxu0
    %v1726 = vadd.f32 %v1597, %v1725
    %v1727 = vpop.f32.mrf.mxu0
    %v1728 = vadd.f32 %v1599, %v1727
    %1729 = vmatmul.bf16.gmra.mxu0 %v1201
    %v1730 = vpop.f32.mrf.mxu0
    %v1731 = vadd.f32 %v1602, %v1730
    %v1732 = vpop.f32.mrf.mxu0
    %v1733 = vadd.f32 %v1604, %v1732
    %1734 = vmatmul.bf16.gmra.mxu0 %v1203
    %v1735 = vpop.f32.mrf.mxu0
    %v1736 = vadd.f32 %v1607, %v1735
    %v1737 = vpop.f32.mrf.mxu0
    %v1738 = vadd.f32 %v1609, %v1737
    %1739 = vdwg.mxu0
    %1740 = vmatpush.bf16.msra.mxu0 %v1098
    %1741 = vmatpush.bf16.msra.mxu0 %v1092
    %1742 = vmatpush.bf16.msra.mxu0 %v1086
    %1743 = vmatpush.bf16.msra.mxu0 %v1080
    %1744 = vmatpush.bf16.msra.mxu0 %v1074
    %1745 = vmatpush.bf16.msra.mxu0 %v1068
    %1746 = vmatpush.bf16.msra.mxu0 %v1062
    %1747 = vmatpush.bf16.msra.mxu0 %v1056
    %1748 = vmatmul.bf16.gmra.mxu0 %v767
    %v1749 = vpop.f32.mrf.mxu0
    %v1750 = vadd.f32 0.0, %v1749
    %v1751 = vpop.f32.mrf.mxu0
    %v1752 = vadd.f32 0.0, %v1751
    %1753 = vmatmul.bf16.gmra.mxu0 %v770
    %v1754 = vpop.f32.mrf.mxu0
    %v1755 = vadd.f32 0.0, %v1754
    %v1756 = vpop.f32.mrf.mxu0
    %v1757 = vadd.f32 0.0, %v1756
    %1758 = vmatmul.bf16.gmra.mxu0 %v773
    %v1759 = vpop.f32.mrf.mxu0
    %v1760 = vadd.f32 0.0, %v1759
    %v1761 = vpop.f32.mrf.mxu0
    %v1762 = vadd.f32 0.0, %v1761
    %1763 = vmatmul.bf16.gmra.mxu0 %v776
    %v1764 = vpop.f32.mrf.mxu0
    %v1765 = vadd.f32 0.0, %v1764
    %v1766 = vpop.f32.mrf.mxu0
    %v1767 = vadd.f32 0.0, %v1766
    %1768 = vmatmul.bf16.gmra.mxu0 %v779
    %v1769 = vpop.f32.mrf.mxu0
    %v1770 = vadd.f32 0.0, %v1769
    %v1771 = vpop.f32.mrf.mxu0
    %v1772 = vadd.f32 0.0, %v1771
    %1773 = vmatmul.bf16.gmra.mxu0 %v782
    %v1774 = vpop.f32.mrf.mxu0
    %v1775 = vadd.f32 0.0, %v1774
    %v1776 = vpop.f32.mrf.mxu0
    %v1777 = vadd.f32 0.0, %v1776
    %1778 = vmatmul.bf16.gmra.mxu0 %v785
    %v1779 = vpop.f32.mrf.mxu0
    %v1780 = vadd.f32 0.0, %v1779
    %v1781 = vpop.f32.mrf.mxu0
    %v1782 = vadd.f32 0.0, %v1781
    %1783 = vmatmul.bf16.gmra.mxu0 %v788
    %v1784 = vpop.f32.mrf.mxu0
    %v1785 = vadd.f32 0.0, %v1784
    %v1786 = vpop.f32.mrf.mxu0
    %v1787 = vadd.f32 0.0, %v1786
    %1788 = vmatmul.bf16.gmra.mxu0 %v791
    %v1789 = vpop.f32.mrf.mxu0
    %v1790 = vadd.f32 0.0, %v1789
    %v1791 = vpop.f32.mrf.mxu0
    %v1792 = vadd.f32 0.0, %v1791
    %1793 = vmatmul.bf16.gmra.mxu0 %v794
    %v1794 = vpop.f32.mrf.mxu0
    %v1795 = vadd.f32 0.0, %v1794
    %v1796 = vpop.f32.mrf.mxu0
    %v1797 = vadd.f32 0.0, %v1796
    %1798 = vmatmul.bf16.gmra.mxu0 %v797
    %v1799 = vpop.f32.mrf.mxu0
    %v1800 = vadd.f32 0.0, %v1799
    %v1801 = vpop.f32.mrf.mxu0
    %v1802 = vadd.f32 0.0, %v1801
    %1803 = vmatmul.bf16.gmra.mxu0 %v800
    %v1804 = vpop.f32.mrf.mxu0
    %v1805 = vadd.f32 0.0, %v1804
    %v1806 = vpop.f32.mrf.mxu0
    %v1807 = vadd.f32 0.0, %v1806
    %1808 = vmatmul.bf16.gmra.mxu0 %v803
    %v1809 = vpop.f32.mrf.mxu0
    %v1810 = vadd.f32 0.0, %v1809
    %v1811 = vpop.f32.mrf.mxu0
    %v1812 = vadd.f32 0.0, %v1811
    %1813 = vmatmul.bf16.gmra.mxu0 %v806
    %v1814 = vpop.f32.mrf.mxu0
    %v1815 = vadd.f32 0.0, %v1814
    %v1816 = vpop.f32.mrf.mxu0
    %v1817 = vadd.f32 0.0, %v1816
    %1818 = vmatmul.bf16.gmra.mxu0 %v809
    %v1819 = vpop.f32.mrf.mxu0
    %v1820 = vadd.f32 0.0, %v1819
    %v1821 = vpop.f32.mrf.mxu0
    %v1822 = vadd.f32 0.0, %v1821
    %1823 = vmatmul.bf16.gmra.mxu0 %v812
    %v1824 = vpop.f32.mrf.mxu0
    %v1825 = vadd.f32 0.0, %v1824
    %v1826 = vpop.f32.mrf.mxu0
    %v1827 = vadd.f32 0.0, %v1826
    %1828 = vmatmul.bf16.gmra.mxu0 %v815
    %v1829 = vpop.f32.mrf.mxu0
    %v1830 = vadd.f32 0.0, %v1829
    %v1831 = vpop.f32.mrf.mxu0
    %v1832 = vadd.f32 0.0, %v1831
    %1833 = vmatmul.bf16.gmra.mxu0 %v818
    %v1834 = vpop.f32.mrf.mxu0
    %v1835 = vadd.f32 0.0, %v1834
    %v1836 = vpop.f32.mrf.mxu0
    %v1837 = vadd.f32 0.0, %v1836
    %1838 = vmatmul.bf16.gmra.mxu0 %v821
    %v1839 = vpop.f32.mrf.mxu0
    %v1840 = vadd.f32 0.0, %v1839
    %v1841 = vpop.f32.mrf.mxu0
    %v1842 = vadd.f32 0.0, %v1841
    %1843 = vmatmul.bf16.gmra.mxu0 %v824
    %v1844 = vpop.f32.mrf.mxu0
    %v1845 = vadd.f32 0.0, %v1844
    %v1846 = vpop.f32.mrf.mxu0
    %v1847 = vadd.f32 0.0, %v1846
    %1848 = vmatmul.bf16.gmra.mxu0 %v827
    %v1849 = vpop.f32.mrf.mxu0
    %v1850 = vadd.f32 0.0, %v1849
    %v1851 = vpop.f32.mrf.mxu0
    %v1852 = vadd.f32 0.0, %v1851
    %1853 = vmatmul.bf16.gmra.mxu0 %v830
    %v1854 = vpop.f32.mrf.mxu0
    %v1855 = vadd.f32 0.0, %v1854
    %v1856 = vpop.f32.mrf.mxu0
    %v1857 = vadd.f32 0.0, %v1856
    %1858 = vmatmul.bf16.gmra.mxu0 %v833
    %v1859 = vpop.f32.mrf.mxu0
    %v1860 = vadd.f32 0.0, %v1859
    %v1861 = vpop.f32.mrf.mxu0
    %v1862 = vadd.f32 0.0, %v1861
    %1863 = vmatmul.bf16.gmra.mxu0 %v836
    %v1864 = vpop.f32.mrf.mxu0
    %v1865 = vadd.f32 0.0, %v1864
    %v1866 = vpop.f32.mrf.mxu0
    %v1867 = vadd.f32 0.0, %v1866
    %1868 = vdwg.mxu0
    %1869 = vmatpush.bf16.msra.mxu0 0
    %1870 = vmatpush.bf16.msra.mxu0 0
    %1871 = vmatpush.bf16.msra.mxu0 0
    %1872 = vmatpush.bf16.msra.mxu0 0
    %1873 = vmatpush.bf16.msra.mxu0 0
    %1874 = vmatpush.bf16.msra.mxu0 0
    %1875 = vmatpush.bf16.msra.mxu0 0
    %1876 = vmatpush.bf16.msra.mxu0 %v1213
    %1877 = vmatmul.bf16.gmra.mxu0 %v1157
    %v1878 = vpop.f32.mrf.mxu0
    %v1879 = vadd.f32 %v1750, %v1878
    %v1880 = vpop.f32.mrf.mxu0
    %v1881 = vadd.f32 %v1752, %v1880
    %1882 = vmatmul.bf16.gmra.mxu0 %v1159
    %v1883 = vpop.f32.mrf.mxu0
    %v1884 = vadd.f32 %v1755, %v1883
    %v1885 = vpop.f32.mrf.mxu0
    %v1886 = vadd.f32 %v1757, %v1885
    %1887 = vmatmul.bf16.gmra.mxu0 %v1161
    %v1888 = vpop.f32.mrf.mxu0
    %v1889 = vadd.f32 %v1760, %v1888
    %v1890 = vpop.f32.mrf.mxu0
    %v1891 = vadd.f32 %v1762, %v1890
    %1892 = vmatmul.bf16.gmra.mxu0 %v1163
    %v1893 = vpop.f32.mrf.mxu0
    %v1894 = vadd.f32 %v1765, %v1893
    %v1895 = vpop.f32.mrf.mxu0
    %v1896 = vadd.f32 %v1767, %v1895
    %1897 = vmatmul.bf16.gmra.mxu0 %v1165
    %v1898 = vpop.f32.mrf.mxu0
    %v1899 = vadd.f32 %v1770, %v1898
    %v1900 = vpop.f32.mrf.mxu0
    %v1901 = vadd.f32 %v1772, %v1900
    %1902 = vmatmul.bf16.gmra.mxu0 %v1167
    %v1903 = vpop.f32.mrf.mxu0
    %v1904 = vadd.f32 %v1775, %v1903
    %v1905 = vpop.f32.mrf.mxu0
    %v1906 = vadd.f32 %v1777, %v1905
    %1907 = vmatmul.bf16.gmra.mxu0 %v1169
    %v1908 = vpop.f32.mrf.mxu0
    %v1909 = vadd.f32 %v1780, %v1908
    %v1910 = vpop.f32.mrf.mxu0
    %v1911 = vadd.f32 %v1782, %v1910
    %1912 = vmatmul.bf16.gmra.mxu0 %v1171
    %v1913 = vpop.f32.mrf.mxu0
    %v1914 = vadd.f32 %v1785, %v1913
    %v1915 = vpop.f32.mrf.mxu0
    %v1916 = vadd.f32 %v1787, %v1915
    %1917 = vmatmul.bf16.gmra.mxu0 %v1173
    %v1918 = vpop.f32.mrf.mxu0
    %v1919 = vadd.f32 %v1790, %v1918
    %v1920 = vpop.f32.mrf.mxu0
    %v1921 = vadd.f32 %v1792, %v1920
    %1922 = vmatmul.bf16.gmra.mxu0 %v1175
    %v1923 = vpop.f32.mrf.mxu0
    %v1924 = vadd.f32 %v1795, %v1923
    %v1925 = vpop.f32.mrf.mxu0
    %v1926 = vadd.f32 %v1797, %v1925
    %1927 = vmatmul.bf16.gmra.mxu0 %v1177
    %v1928 = vpop.f32.mrf.mxu0
    %v1929 = vadd.f32 %v1800, %v1928
    %v1930 = vpop.f32.mrf.mxu0
    %v1931 = vadd.f32 %v1802, %v1930
    %1932 = vmatmul.bf16.gmra.mxu0 %v1179
    %v1933 = vpop.f32.mrf.mxu0
    %v1934 = vadd.f32 %v1805, %v1933
    %v1935 = vpop.f32.mrf.mxu0
    %v1936 = vadd.f32 %v1807, %v1935
    %1937 = vmatmul.bf16.gmra.mxu0 %v1181
    %v1938 = vpop.f32.mrf.mxu0
    %v1939 = vadd.f32 %v1810, %v1938
    %v1940 = vpop.f32.mrf.mxu0
    %v1941 = vadd.f32 %v1812, %v1940
    %1942 = vmatmul.bf16.gmra.mxu0 %v1183
    %v1943 = vpop.f32.mrf.mxu0
    %v1944 = vadd.f32 %v1815, %v1943
    %v1945 = vpop.f32.mrf.mxu0
    %v1946 = vadd.f32 %v1817, %v1945
    %1947 = vmatmul.bf16.gmra.mxu0 %v1185
    %v1948 = vpop.f32.mrf.mxu0
    %v1949 = vadd.f32 %v1820, %v1948
    %v1950 = vpop.f32.mrf.mxu0
    %v1951 = vadd.f32 %v1822, %v1950
    %1952 = vmatmul.bf16.gmra.mxu0 %v1187
    %v1953 = vpop.f32.mrf.mxu0
    %v1954 = vadd.f32 %v1825, %v1953
    %v1955 = vpop.f32.mrf.mxu0
    %v1956 = vadd.f32 %v1827, %v1955
    %1957 = vmatmul.bf16.gmra.mxu0 %v1189
    %v1958 = vpop.f32.mrf.mxu0
    %v1959 = vadd.f32 %v1830, %v1958
    %v1960 = vpop.f32.mrf.mxu0
    %v1961 = vadd.f32 %v1832, %v1960
    %1962 = vmatmul.bf16.gmra.mxu0 %v1191
    %v1963 = vpop.f32.mrf.mxu0
    %v1964 = vadd.f32 %v1835, %v1963
    %v1965 = vpop.f32.mrf.mxu0
    %v1966 = vadd.f32 %v1837, %v1965
    %1967 = vmatmul.bf16.gmra.mxu0 %v1193
    %v1968 = vpop.f32.mrf.mxu0
    %v1969 = vadd.f32 %v1840, %v1968
    %v1970 = vpop.f32.mrf.mxu0
    %v1971 = vadd.f32 %v1842, %v1970
    %1972 = vmatmul.bf16.gmra.mxu0 %v1195
    %v1973 = vpop.f32.mrf.mxu0
    %v1974 = vadd.f32 %v1845, %v1973
    %v1975 = vpop.f32.mrf.mxu0
    %v1976 = vadd.f32 %v1847, %v1975
    %1977 = vmatmul.bf16.gmra.mxu0 %v1197
    %v1978 = vpop.f32.mrf.mxu0
    %v1979 = vadd.f32 %v1850, %v1978
    %v1980 = vpop.f32.mrf.mxu0
    %v1981 = vadd.f32 %v1852, %v1980
    %1982 = vmatmul.bf16.gmra.mxu0 %v1199
    %v1983 = vpop.f32.mrf.mxu0
    %v1984 = vadd.f32 %v1855, %v1983
    %v1985 = vpop.f32.mrf.mxu0
    %v1986 = vadd.f32 %v1857, %v1985
    %1987 = vmatmul.bf16.gmra.mxu0 %v1201
    %v1988 = vpop.f32.mrf.mxu0
    %v1989 = vadd.f32 %v1860, %v1988
    %v1990 = vpop.f32.mrf.mxu0
    %v1991 = vadd.f32 %v1862, %v1990
    %1992 = vmatmul.bf16.gmra.mxu0 %v1203
    %v1993 = vpop.f32.mrf.mxu0
    %v1994 = vadd.f32 %v1865, %v1993
    %v1995 = vpop.f32.mrf.mxu0
    %v1996 = vadd.f32 %v1867, %v1995
    %1997 = vdwg.mxu0
    %1998 = vmatpush.bf16.msra.mxu0 %v1099
    %1999 = vmatpush.bf16.msra.mxu0 %v1093
    %2000 = vmatpush.bf16.msra.mxu0 %v1087
    %2001 = vmatpush.bf16.msra.mxu0 %v1081
    %2002 = vmatpush.bf16.msra.mxu0 %v1075
    %2003 = vmatpush.bf16.msra.mxu0 %v1069
    %2004 = vmatpush.bf16.msra.mxu0 %v1063
    %2005 = vmatpush.bf16.msra.mxu0 %v1057
    %2006 = vmatmul.bf16.gmra.mxu0 %v767
    %v2007 = vpop.f32.mrf.mxu0
    %v2008 = vadd.f32 0.0, %v2007
    %v2009 = vpop.f32.mrf.mxu0
    %v2010 = vadd.f32 0.0, %v2009
    %2011 = vmatmul.bf16.gmra.mxu0 %v770
    %v2012 = vpop.f32.mrf.mxu0
    %v2013 = vadd.f32 0.0, %v2012
    %v2014 = vpop.f32.mrf.mxu0
    %v2015 = vadd.f32 0.0, %v2014
    %2016 = vmatmul.bf16.gmra.mxu0 %v773
    %v2017 = vpop.f32.mrf.mxu0
    %v2018 = vadd.f32 0.0, %v2017
    %v2019 = vpop.f32.mrf.mxu0
    %v2020 = vadd.f32 0.0, %v2019
    %2021 = vmatmul.bf16.gmra.mxu0 %v776
    %v2022 = vpop.f32.mrf.mxu0
    %v2023 = vadd.f32 0.0, %v2022
    %v2024 = vpop.f32.mrf.mxu0
    %v2025 = vadd.f32 0.0, %v2024
    %2026 = vmatmul.bf16.gmra.mxu0 %v779
    %v2027 = vpop.f32.mrf.mxu0
    %v2028 = vadd.f32 0.0, %v2027
    %v2029 = vpop.f32.mrf.mxu0
    %v2030 = vadd.f32 0.0, %v2029
    %2031 = vmatmul.bf16.gmra.mxu0 %v782
    %v2032 = vpop.f32.mrf.mxu0
    %v2033 = vadd.f32 0.0, %v2032
    %v2034 = vpop.f32.mrf.mxu0
    %v2035 = vadd.f32 0.0, %v2034
    %2036 = vmatmul.bf16.gmra.mxu0 %v785
    %v2037 = vpop.f32.mrf.mxu0
    %v2038 = vadd.f32 0.0, %v2037
    %v2039 = vpop.f32.mrf.mxu0
    %v2040 = vadd.f32 0.0, %v2039
    %2041 = vmatmul.bf16.gmra.mxu0 %v788
    %v2042 = vpop.f32.mrf.mxu0
    %v2043 = vadd.f32 0.0, %v2042
    %v2044 = vpop.f32.mrf.mxu0
    %v2045 = vadd.f32 0.0, %v2044
    %2046 = vmatmul.bf16.gmra.mxu0 %v791
    %v2047 = vpop.f32.mrf.mxu0
    %v2048 = vadd.f32 0.0, %v2047
    %v2049 = vpop.f32.mrf.mxu0
    %v2050 = vadd.f32 0.0, %v2049
    %2051 = vmatmul.bf16.gmra.mxu0 %v794
    %v2052 = vpop.f32.mrf.mxu0
    %v2053 = vadd.f32 0.0, %v2052
    %v2054 = vpop.f32.mrf.mxu0
    %v2055 = vadd.f32 0.0, %v2054
    %2056 = vmatmul.bf16.gmra.mxu0 %v797
    %v2057 = vpop.f32.mrf.mxu0
    %v2058 = vadd.f32 0.0, %v2057
    %v2059 = vpop.f32.mrf.mxu0
    %v2060 = vadd.f32 0.0, %v2059
    %2061 = vmatmul.bf16.gmra.mxu0 %v800
    %v2062 = vpop.f32.mrf.mxu0
    %v2063 = vadd.f32 0.0, %v2062
    %v2064 = vpop.f32.mrf.mxu0
    %v2065 = vadd.f32 0.0, %v2064
    %2066 = vmatmul.bf16.gmra.mxu0 %v803
    %v2067 = vpop.f32.mrf.mxu0
    %v2068 = vadd.f32 0.0, %v2067
    %v2069 = vpop.f32.mrf.mxu0
    %v2070 = vadd.f32 0.0, %v2069
    %2071 = vmatmul.bf16.gmra.mxu0 %v806
    %v2072 = vpop.f32.mrf.mxu0
    %v2073 = vadd.f32 0.0, %v2072
    %v2074 = vpop.f32.mrf.mxu0
    %v2075 = vadd.f32 0.0, %v2074
    %2076 = vmatmul.bf16.gmra.mxu0 %v809
    %v2077 = vpop.f32.mrf.mxu0
    %v2078 = vadd.f32 0.0, %v2077
    %v2079 = vpop.f32.mrf.mxu0
    %v2080 = vadd.f32 0.0, %v2079
    %2081 = vmatmul.bf16.gmra.mxu0 %v812
    %v2082 = vpop.f32.mrf.mxu0
    %v2083 = vadd.f32 0.0, %v2082
    %v2084 = vpop.f32.mrf.mxu0
    %v2085 = vadd.f32 0.0, %v2084
    %2086 = vmatmul.bf16.gmra.mxu0 %v815
    %v2087 = vpop.f32.mrf.mxu0
    %v2088 = vadd.f32 0.0, %v2087
    %v2089 = vpop.f32.mrf.mxu0
    %v2090 = vadd.f32 0.0, %v2089
    %2091 = vmatmul.bf16.gmra.mxu0 %v818
    %v2092 = vpop.f32.mrf.mxu0
    %v2093 = vadd.f32 0.0, %v2092
    %v2094 = vpop.f32.mrf.mxu0
    %v2095 = vadd.f32 0.0, %v2094
    %2096 = vmatmul.bf16.gmra.mxu0 %v821
    %v2097 = vpop.f32.mrf.mxu0
    %v2098 = vadd.f32 0.0, %v2097
    %v2099 = vpop.f32.mrf.mxu0
    %v2100 = vadd.f32 0.0, %v2099
    %2101 = vmatmul.bf16.gmra.mxu0 %v824
    %v2102 = vpop.f32.mrf.mxu0
    %v2103 = vadd.f32 0.0, %v2102
    %v2104 = vpop.f32.mrf.mxu0
    %v2105 = vadd.f32 0.0, %v2104
    %2106 = vmatmul.bf16.gmra.mxu0 %v827
    %v2107 = vpop.f32.mrf.mxu0
    %v2108 = vadd.f32 0.0, %v2107
    %v2109 = vpop.f32.mrf.mxu0
    %v2110 = vadd.f32 0.0, %v2109
    %2111 = vmatmul.bf16.gmra.mxu0 %v830
    %v2112 = vpop.f32.mrf.mxu0
    %v2113 = vadd.f32 0.0, %v2112
    %v2114 = vpop.f32.mrf.mxu0
    %v2115 = vadd.f32 0.0, %v2114
    %2116 = vmatmul.bf16.gmra.mxu0 %v833
    %v2117 = vpop.f32.mrf.mxu0
    %v2118 = vadd.f32 0.0, %v2117
    %v2119 = vpop.f32.mrf.mxu0
    %v2120 = vadd.f32 0.0, %v2119
    %2121 = vmatmul.bf16.gmra.mxu0 %v836
    %v2122 = vpop.f32.mrf.mxu0
    %v2123 = vadd.f32 0.0, %v2122
    %v2124 = vpop.f32.mrf.mxu0
    %v2125 = vadd.f32 0.0, %v2124
    %2126 = vdwg.mxu0
    %2127 = vmatpush.bf16.msra.mxu0 0
    %2128 = vmatpush.bf16.msra.mxu0 0
    %2129 = vmatpush.bf16.msra.mxu0 0
    %2130 = vmatpush.bf16.msra.mxu0 0
    %2131 = vmatpush.bf16.msra.mxu0 0
    %2132 = vmatpush.bf16.msra.mxu0 0
    %2133 = vmatpush.bf16.msra.mxu0 0
    %2134 = vmatpush.bf16.msra.mxu0 %v1216
    %2135 = vmatmul.bf16.gmra.mxu0 %v1157
    %v2136 = vpop.f32.mrf.mxu0
    %v2137 = vadd.f32 %v2008, %v2136
    %v2138 = vpop.f32.mrf.mxu0
    %v2139 = vadd.f32 %v2010, %v2138
    %2140 = vmatmul.bf16.gmra.mxu0 %v1159
    %v2141 = vpop.f32.mrf.mxu0
    %v2142 = vadd.f32 %v2013, %v2141
    %v2143 = vpop.f32.mrf.mxu0
    %v2144 = vadd.f32 %v2015, %v2143
    %2145 = vmatmul.bf16.gmra.mxu0 %v1161
    %v2146 = vpop.f32.mrf.mxu0
    %v2147 = vadd.f32 %v2018, %v2146
    %v2148 = vpop.f32.mrf.mxu0
    %v2149 = vadd.f32 %v2020, %v2148
    %2150 = vmatmul.bf16.gmra.mxu0 %v1163
    %v2151 = vpop.f32.mrf.mxu0
    %v2152 = vadd.f32 %v2023, %v2151
    %v2153 = vpop.f32.mrf.mxu0
    %v2154 = vadd.f32 %v2025, %v2153
    %2155 = vmatmul.bf16.gmra.mxu0 %v1165
    %v2156 = vpop.f32.mrf.mxu0
    %v2157 = vadd.f32 %v2028, %v2156
    %v2158 = vpop.f32.mrf.mxu0
    %v2159 = vadd.f32 %v2030, %v2158
    %2160 = vmatmul.bf16.gmra.mxu0 %v1167
    %v2161 = vpop.f32.mrf.mxu0
    %v2162 = vadd.f32 %v2033, %v2161
    %v2163 = vpop.f32.mrf.mxu0
    %v2164 = vadd.f32 %v2035, %v2163
    %2165 = vmatmul.bf16.gmra.mxu0 %v1169
    %v2166 = vpop.f32.mrf.mxu0
    %v2167 = vadd.f32 %v2038, %v2166
    %v2168 = vpop.f32.mrf.mxu0
    %v2169 = vadd.f32 %v2040, %v2168
    %2170 = vmatmul.bf16.gmra.mxu0 %v1171
    %v2171 = vpop.f32.mrf.mxu0
    %v2172 = vadd.f32 %v2043, %v2171
    %v2173 = vpop.f32.mrf.mxu0
    %v2174 = vadd.f32 %v2045, %v2173
    %2175 = vmatmul.bf16.gmra.mxu0 %v1173
    %v2176 = vpop.f32.mrf.mxu0
    %v2177 = vadd.f32 %v2048, %v2176
    %v2178 = vpop.f32.mrf.mxu0
    %v2179 = vadd.f32 %v2050, %v2178
    %2180 = vmatmul.bf16.gmra.mxu0 %v1175
    %v2181 = vpop.f32.mrf.mxu0
    %v2182 = vadd.f32 %v2053, %v2181
    %v2183 = vpop.f32.mrf.mxu0
    %v2184 = vadd.f32 %v2055, %v2183
    %2185 = vmatmul.bf16.gmra.mxu0 %v1177
    %v2186 = vpop.f32.mrf.mxu0
    %v2187 = vadd.f32 %v2058, %v2186
    %v2188 = vpop.f32.mrf.mxu0
    %v2189 = vadd.f32 %v2060, %v2188
    %2190 = vmatmul.bf16.gmra.mxu0 %v1179
    %v2191 = vpop.f32.mrf.mxu0
    %v2192 = vadd.f32 %v2063, %v2191
    %v2193 = vpop.f32.mrf.mxu0
    %v2194 = vadd.f32 %v2065, %v2193
    %2195 = vmatmul.bf16.gmra.mxu0 %v1181
    %v2196 = vpop.f32.mrf.mxu0
    %v2197 = vadd.f32 %v2068, %v2196
    %v2198 = vpop.f32.mrf.mxu0
    %v2199 = vadd.f32 %v2070, %v2198
    %2200 = vmatmul.bf16.gmra.mxu0 %v1183
    %v2201 = vpop.f32.mrf.mxu0
    %v2202 = vadd.f32 %v2073, %v2201
    %v2203 = vpop.f32.mrf.mxu0
    %v2204 = vadd.f32 %v2075, %v2203
    %2205 = vmatmul.bf16.gmra.mxu0 %v1185
    %v2206 = vpop.f32.mrf.mxu0
    %v2207 = vadd.f32 %v2078, %v2206
    %v2208 = vpop.f32.mrf.mxu0
    %v2209 = vadd.f32 %v2080, %v2208
    %2210 = vmatmul.bf16.gmra.mxu0 %v1187
    %v2211 = vpop.f32.mrf.mxu0
    %v2212 = vadd.f32 %v2083, %v2211
    %v2213 = vpop.f32.mrf.mxu0
    %v2214 = vadd.f32 %v2085, %v2213
    %2215 = vmatmul.bf16.gmra.mxu0 %v1189
    %v2216 = vpop.f32.mrf.mxu0
    %v2217 = vadd.f32 %v2088, %v2216
    %v2218 = vpop.f32.mrf.mxu0
    %v2219 = vadd.f32 %v2090, %v2218
    %2220 = vmatmul.bf16.gmra.mxu0 %v1191
    %v2221 = vpop.f32.mrf.mxu0
    %v2222 = vadd.f32 %v2093, %v2221
    %v2223 = vpop.f32.mrf.mxu0
    %v2224 = vadd.f32 %v2095, %v2223
    %2225 = vmatmul.bf16.gmra.mxu0 %v1193
    %v2226 = vpop.f32.mrf.mxu0
    %v2227 = vadd.f32 %v2098, %v2226
    %v2228 = vpop.f32.mrf.mxu0
    %v2229 = vadd.f32 %v2100, %v2228
    %2230 = vmatmul.bf16.gmra.mxu0 %v1195
    %v2231 = vpop.f32.mrf.mxu0
    %v2232 = vadd.f32 %v2103, %v2231
    %v2233 = vpop.f32.mrf.mxu0
    %v2234 = vadd.f32 %v2105, %v2233
    %2235 = vmatmul.bf16.gmra.mxu0 %v1197
    %v2236 = vpop.f32.mrf.mxu0
    %v2237 = vadd.f32 %v2108, %v2236
    %v2238 = vpop.f32.mrf.mxu0
    %v2239 = vadd.f32 %v2110, %v2238
    %2240 = vmatmul.bf16.gmra.mxu0 %v1199
    %v2241 = vpop.f32.mrf.mxu0
    %v2242 = vadd.f32 %v2113, %v2241
    %v2243 = vpop.f32.mrf.mxu0
    %v2244 = vadd.f32 %v2115, %v2243
    %2245 = vmatmul.bf16.gmra.mxu0 %v1201
    %v2246 = vpop.f32.mrf.mxu0
    %v2247 = vadd.f32 %v2118, %v2246
    %v2248 = vpop.f32.mrf.mxu0
    %v2249 = vadd.f32 %v2120, %v2248
    %2250 = vmatmul.bf16.gmra.mxu0 %v1203
    %v2251 = vpop.f32.mrf.mxu0
    %v2252 = vadd.f32 %v2123, %v2251
    %v2253 = vpop.f32.mrf.mxu0
    %v2254 = vadd.f32 %v2125, %v2253
    %2255 = vdwg.mxu0
    %2256 = vmatpush.bf16.msra.mxu0 %v1100
    %2257 = vmatpush.bf16.msra.mxu0 %v1094
    %2258 = vmatpush.bf16.msra.mxu0 %v1088
    %2259 = vmatpush.bf16.msra.mxu0 %v1082
    %2260 = vmatpush.bf16.msra.mxu0 %v1076
    %2261 = vmatpush.bf16.msra.mxu0 %v1070
    %2262 = vmatpush.bf16.msra.mxu0 %v1064
    %2263 = vmatpush.bf16.msra.mxu0 %v1058
    %2264 = vmatmul.bf16.gmra.mxu0 %v767
    %v2265 = vpop.f32.mrf.mxu0
    %v2266 = vadd.f32 0.0, %v2265
    %v2267 = vpop.f32.mrf.mxu0
    %v2268 = vadd.f32 0.0, %v2267
    %2269 = vmatmul.bf16.gmra.mxu0 %v770
    %v2270 = vpop.f32.mrf.mxu0
    %v2271 = vadd.f32 0.0, %v2270
    %v2272 = vpop.f32.mrf.mxu0
    %v2273 = vadd.f32 0.0, %v2272
    %2274 = vmatmul.bf16.gmra.mxu0 %v773
    %v2275 = vpop.f32.mrf.mxu0
    %v2276 = vadd.f32 0.0, %v2275
    %v2277 = vpop.f32.mrf.mxu0
    %v2278 = vadd.f32 0.0, %v2277
    %2279 = vmatmul.bf16.gmra.mxu0 %v776
    %v2280 = vpop.f32.mrf.mxu0
    %v2281 = vadd.f32 0.0, %v2280
    %v2282 = vpop.f32.mrf.mxu0
    %v2283 = vadd.f32 0.0, %v2282
    %2284 = vmatmul.bf16.gmra.mxu0 %v779
    %v2285 = vpop.f32.mrf.mxu0
    %v2286 = vadd.f32 0.0, %v2285
    %v2287 = vpop.f32.mrf.mxu0
    %v2288 = vadd.f32 0.0, %v2287
    %2289 = vmatmul.bf16.gmra.mxu0 %v782
    %v2290 = vpop.f32.mrf.mxu0
    %v2291 = vadd.f32 0.0, %v2290
    %v2292 = vpop.f32.mrf.mxu0
    %v2293 = vadd.f32 0.0, %v2292
    %2294 = vmatmul.bf16.gmra.mxu0 %v785
    %v2295 = vpop.f32.mrf.mxu0
    %v2296 = vadd.f32 0.0, %v2295
    %v2297 = vpop.f32.mrf.mxu0
    %v2298 = vadd.f32 0.0, %v2297
    %2299 = vmatmul.bf16.gmra.mxu0 %v788
    %v2300 = vpop.f32.mrf.mxu0
    %v2301 = vadd.f32 0.0, %v2300
    %v2302 = vpop.f32.mrf.mxu0
    %v2303 = vadd.f32 0.0, %v2302
    %2304 = vmatmul.bf16.gmra.mxu0 %v791
    %v2305 = vpop.f32.mrf.mxu0
    %v2306 = vadd.f32 0.0, %v2305
    %v2307 = vpop.f32.mrf.mxu0
    %v2308 = vadd.f32 0.0, %v2307
    %2309 = vmatmul.bf16.gmra.mxu0 %v794
    %v2310 = vpop.f32.mrf.mxu0
    %v2311 = vadd.f32 0.0, %v2310
    %v2312 = vpop.f32.mrf.mxu0
    %v2313 = vadd.f32 0.0, %v2312
    %2314 = vmatmul.bf16.gmra.mxu0 %v797
    %v2315 = vpop.f32.mrf.mxu0
    %v2316 = vadd.f32 0.0, %v2315
    %v2317 = vpop.f32.mrf.mxu0
    %v2318 = vadd.f32 0.0, %v2317
    %2319 = vmatmul.bf16.gmra.mxu0 %v800
    %v2320 = vpop.f32.mrf.mxu0
    %v2321 = vadd.f32 0.0, %v2320
    %v2322 = vpop.f32.mrf.mxu0
    %v2323 = vadd.f32 0.0, %v2322
    %2324 = vmatmul.bf16.gmra.mxu0 %v803
    %v2325 = vpop.f32.mrf.mxu0
    %v2326 = vadd.f32 0.0, %v2325
    %v2327 = vpop.f32.mrf.mxu0
    %v2328 = vadd.f32 0.0, %v2327
    %2329 = vmatmul.bf16.gmra.mxu0 %v806
    %v2330 = vpop.f32.mrf.mxu0
    %v2331 = vadd.f32 0.0, %v2330
    %v2332 = vpop.f32.mrf.mxu0
    %v2333 = vadd.f32 0.0, %v2332
    %2334 = vmatmul.bf16.gmra.mxu0 %v809
    %v2335 = vpop.f32.mrf.mxu0
    %v2336 = vadd.f32 0.0, %v2335
    %v2337 = vpop.f32.mrf.mxu0
    %v2338 = vadd.f32 0.0, %v2337
    %2339 = vmatmul.bf16.gmra.mxu0 %v812
    %v2340 = vpop.f32.mrf.mxu0
    %v2341 = vadd.f32 0.0, %v2340
    %v2342 = vpop.f32.mrf.mxu0
    %v2343 = vadd.f32 0.0, %v2342
    %2344 = vmatmul.bf16.gmra.mxu0 %v815
    %v2345 = vpop.f32.mrf.mxu0
    %v2346 = vadd.f32 0.0, %v2345
    %v2347 = vpop.f32.mrf.mxu0
    %v2348 = vadd.f32 0.0, %v2347
    %2349 = vmatmul.bf16.gmra.mxu0 %v818
    %v2350 = vpop.f32.mrf.mxu0
    %v2351 = vadd.f32 0.0, %v2350
    %v2352 = vpop.f32.mrf.mxu0
    %v2353 = vadd.f32 0.0, %v2352
    %2354 = vmatmul.bf16.gmra.mxu0 %v821
    %v2355 = vpop.f32.mrf.mxu0
    %v2356 = vadd.f32 0.0, %v2355
    %v2357 = vpop.f32.mrf.mxu0
    %v2358 = vadd.f32 0.0, %v2357
    %2359 = vmatmul.bf16.gmra.mxu0 %v824
    %v2360 = vpop.f32.mrf.mxu0
    %v2361 = vadd.f32 0.0, %v2360
    %v2362 = vpop.f32.mrf.mxu0
    %v2363 = vadd.f32 0.0, %v2362
    %2364 = vmatmul.bf16.gmra.mxu0 %v827
    %v2365 = vpop.f32.mrf.mxu0
    %v2366 = vadd.f32 0.0, %v2365
    %v2367 = vpop.f32.mrf.mxu0
    %v2368 = vadd.f32 0.0, %v2367
    %2369 = vmatmul.bf16.gmra.mxu0 %v830
    %v2370 = vpop.f32.mrf.mxu0
    %v2371 = vadd.f32 0.0, %v2370
    %v2372 = vpop.f32.mrf.mxu0
    %v2373 = vadd.f32 0.0, %v2372
    %2374 = vmatmul.bf16.gmra.mxu0 %v833
    %v2375 = vpop.f32.mrf.mxu0
    %v2376 = vadd.f32 0.0, %v2375
    %v2377 = vpop.f32.mrf.mxu0
    %v2378 = vadd.f32 0.0, %v2377
    %2379 = vmatmul.bf16.gmra.mxu0 %v836
    %v2380 = vpop.f32.mrf.mxu0
    %v2381 = vadd.f32 0.0, %v2380
    %v2382 = vpop.f32.mrf.mxu0
    %v2383 = vadd.f32 0.0, %v2382
    %2384 = vdwg.mxu0
    %2385 = vmatpush.bf16.msra.mxu0 0
    %2386 = vmatpush.bf16.msra.mxu0 0
    %2387 = vmatpush.bf16.msra.mxu0 0
    %2388 = vmatpush.bf16.msra.mxu0 0
    %2389 = vmatpush.bf16.msra.mxu0 0
    %2390 = vmatpush.bf16.msra.mxu0 0
    %2391 = vmatpush.bf16.msra.mxu0 0
    %2392 = vmatpush.bf16.msra.mxu0 %v1219
    %2393 = vmatmul.bf16.gmra.mxu0 %v1157
    %v2394 = vpop.f32.mrf.mxu0
    %v2395 = vadd.f32 %v2266, %v2394
    %v2396 = vpop.f32.mrf.mxu0
    %v2397 = vadd.f32 %v2268, %v2396
    %2398 = vmatmul.bf16.gmra.mxu0 %v1159
    %v2399 = vpop.f32.mrf.mxu0
    %v2400 = vadd.f32 %v2271, %v2399
    %v2401 = vpop.f32.mrf.mxu0
    %v2402 = vadd.f32 %v2273, %v2401
    %2403 = vmatmul.bf16.gmra.mxu0 %v1161
    %v2404 = vpop.f32.mrf.mxu0
    %v2405 = vadd.f32 %v2276, %v2404
    %v2406 = vpop.f32.mrf.mxu0
    %v2407 = vadd.f32 %v2278, %v2406
    %2408 = vmatmul.bf16.gmra.mxu0 %v1163
    %v2409 = vpop.f32.mrf.mxu0
    %v2410 = vadd.f32 %v2281, %v2409
    %v2411 = vpop.f32.mrf.mxu0
    %v2412 = vadd.f32 %v2283, %v2411
    %2413 = vmatmul.bf16.gmra.mxu0 %v1165
    %v2414 = vpop.f32.mrf.mxu0
    %v2415 = vadd.f32 %v2286, %v2414
    %v2416 = vpop.f32.mrf.mxu0
    %v2417 = vadd.f32 %v2288, %v2416
    %2418 = vmatmul.bf16.gmra.mxu0 %v1167
    %v2419 = vpop.f32.mrf.mxu0
    %v2420 = vadd.f32 %v2291, %v2419
    %v2421 = vpop.f32.mrf.mxu0
    %v2422 = vadd.f32 %v2293, %v2421
    %2423 = vmatmul.bf16.gmra.mxu0 %v1169
    %v2424 = vpop.f32.mrf.mxu0
    %v2425 = vadd.f32 %v2296, %v2424
    %v2426 = vpop.f32.mrf.mxu0
    %v2427 = vadd.f32 %v2298, %v2426
    %2428 = vmatmul.bf16.gmra.mxu0 %v1171
    %v2429 = vpop.f32.mrf.mxu0
    %v2430 = vadd.f32 %v2301, %v2429
    %v2431 = vpop.f32.mrf.mxu0
    %v2432 = vadd.f32 %v2303, %v2431
    %2433 = vmatmul.bf16.gmra.mxu0 %v1173
    %v2434 = vpop.f32.mrf.mxu0
    %v2435 = vadd.f32 %v2306, %v2434
    %v2436 = vpop.f32.mrf.mxu0
    %v2437 = vadd.f32 %v2308, %v2436
    %2438 = vmatmul.bf16.gmra.mxu0 %v1175
    %v2439 = vpop.f32.mrf.mxu0
    %v2440 = vadd.f32 %v2311, %v2439
    %v2441 = vpop.f32.mrf.mxu0
    %v2442 = vadd.f32 %v2313, %v2441
    %2443 = vmatmul.bf16.gmra.mxu0 %v1177
    %v2444 = vpop.f32.mrf.mxu0
    %v2445 = vadd.f32 %v2316, %v2444
    %v2446 = vpop.f32.mrf.mxu0
    %v2447 = vadd.f32 %v2318, %v2446
    %2448 = vmatmul.bf16.gmra.mxu0 %v1179
    %v2449 = vpop.f32.mrf.mxu0
    %v2450 = vadd.f32 %v2321, %v2449
    %v2451 = vpop.f32.mrf.mxu0
    %v2452 = vadd.f32 %v2323, %v2451
    %2453 = vmatmul.bf16.gmra.mxu0 %v1181
    %v2454 = vpop.f32.mrf.mxu0
    %v2455 = vadd.f32 %v2326, %v2454
    %v2456 = vpop.f32.mrf.mxu0
    %v2457 = vadd.f32 %v2328, %v2456
    %2458 = vmatmul.bf16.gmra.mxu0 %v1183
    %v2459 = vpop.f32.mrf.mxu0
    %v2460 = vadd.f32 %v2331, %v2459
    %v2461 = vpop.f32.mrf.mxu0
    %v2462 = vadd.f32 %v2333, %v2461
    %2463 = vmatmul.bf16.gmra.mxu0 %v1185
    %v2464 = vpop.f32.mrf.mxu0
    %v2465 = vadd.f32 %v2336, %v2464
    %v2466 = vpop.f32.mrf.mxu0
    %v2467 = vadd.f32 %v2338, %v2466
    %2468 = vmatmul.bf16.gmra.mxu0 %v1187
    %v2469 = vpop.f32.mrf.mxu0
    %v2470 = vadd.f32 %v2341, %v2469
    %v2471 = vpop.f32.mrf.mxu0
    %v2472 = vadd.f32 %v2343, %v2471
    %2473 = vmatmul.bf16.gmra.mxu0 %v1189
    %v2474 = vpop.f32.mrf.mxu0
    %v2475 = vadd.f32 %v2346, %v2474
    %v2476 = vpop.f32.mrf.mxu0
    %v2477 = vadd.f32 %v2348, %v2476
    %2478 = vmatmul.bf16.gmra.mxu0 %v1191
    %v2479 = vpop.f32.mrf.mxu0
    %v2480 = vadd.f32 %v2351, %v2479
    %v2481 = vpop.f32.mrf.mxu0
    %v2482 = vadd.f32 %v2353, %v2481
    %2483 = vmatmul.bf16.gmra.mxu0 %v1193
    %v2484 = vpop.f32.mrf.mxu0
    %v2485 = vadd.f32 %v2356, %v2484
    %v2486 = vpop.f32.mrf.mxu0
    %v2487 = vadd.f32 %v2358, %v2486
    %2488 = vmatmul.bf16.gmra.mxu0 %v1195
    %v2489 = vpop.f32.mrf.mxu0
    %v2490 = vadd.f32 %v2361, %v2489
    %v2491 = vpop.f32.mrf.mxu0
    %v2492 = vadd.f32 %v2363, %v2491
    %2493 = vmatmul.bf16.gmra.mxu0 %v1197
    %v2494 = vpop.f32.mrf.mxu0
    %v2495 = vadd.f32 %v2366, %v2494
    %v2496 = vpop.f32.mrf.mxu0
    %v2497 = vadd.f32 %v2368, %v2496
    %2498 = vmatmul.bf16.gmra.mxu0 %v1199
    %v2499 = vpop.f32.mrf.mxu0
    %v2500 = vadd.f32 %v2371, %v2499
    %v2501 = vpop.f32.mrf.mxu0
    %v2502 = vadd.f32 %v2373, %v2501
    %2503 = vmatmul.bf16.gmra.mxu0 %v1201
    %v2504 = vpop.f32.mrf.mxu0
    %v2505 = vadd.f32 %v2376, %v2504
    %v2506 = vpop.f32.mrf.mxu0
    %v2507 = vadd.f32 %v2378, %v2506
    %2508 = vmatmul.bf16.gmra.mxu0 %v1203
    %v2509 = vpop.f32.mrf.mxu0
    %v2510 = vadd.f32 %v2381, %v2509
    %v2511 = vpop.f32.mrf.mxu0
    %v2512 = vadd.f32 %v2383, %v2511
    %2513 = vdwg.mxu0
    %2514 = vmatpush.bf16.msra.mxu0 %v1101
    %2515 = vmatpush.bf16.msra.mxu0 %v1095
    %2516 = vmatpush.bf16.msra.mxu0 %v1089
    %2517 = vmatpush.bf16.msra.mxu0 %v1083
    %2518 = vmatpush.bf16.msra.mxu0 %v1077
    %2519 = vmatpush.bf16.msra.mxu0 %v1071
    %2520 = vmatpush.bf16.msra.mxu0 %v1065
    %2521 = vmatpush.bf16.msra.mxu0 %v1059
    %2522 = vmatmul.bf16.gmra.mxu0 %v767
    %v2523 = vpop.f32.mrf.mxu0
    %v2524 = vadd.f32 0.0, %v2523
    %v2525 = vpop.f32.mrf.mxu0
    %v2526 = vadd.f32 0.0, %v2525
    %2527 = vmatmul.bf16.gmra.mxu0 %v770
    %v2528 = vpop.f32.mrf.mxu0
    %v2529 = vadd.f32 0.0, %v2528
    %v2530 = vpop.f32.mrf.mxu0
    %v2531 = vadd.f32 0.0, %v2530
    %2532 = vmatmul.bf16.gmra.mxu0 %v773
    %v2533 = vpop.f32.mrf.mxu0
    %v2534 = vadd.f32 0.0, %v2533
    %v2535 = vpop.f32.mrf.mxu0
    %v2536 = vadd.f32 0.0, %v2535
    %2537 = vmatmul.bf16.gmra.mxu0 %v776
    %v2538 = vpop.f32.mrf.mxu0
    %v2539 = vadd.f32 0.0, %v2538
    %v2540 = vpop.f32.mrf.mxu0
    %v2541 = vadd.f32 0.0, %v2540
    %2542 = vmatmul.bf16.gmra.mxu0 %v779
    %v2543 = vpop.f32.mrf.mxu0
    %v2544 = vadd.f32 0.0, %v2543
    %v2545 = vpop.f32.mrf.mxu0
    %v2546 = vadd.f32 0.0, %v2545
    %2547 = vmatmul.bf16.gmra.mxu0 %v782
    %v2548 = vpop.f32.mrf.mxu0
    %v2549 = vadd.f32 0.0, %v2548
    %v2550 = vpop.f32.mrf.mxu0
    %v2551 = vadd.f32 0.0, %v2550
    %2552 = vmatmul.bf16.gmra.mxu0 %v785
    %v2553 = vpop.f32.mrf.mxu0
    %v2554 = vadd.f32 0.0, %v2553
    %v2555 = vpop.f32.mrf.mxu0
    %v2556 = vadd.f32 0.0, %v2555
    %2557 = vmatmul.bf16.gmra.mxu0 %v788
    %v2558 = vpop.f32.mrf.mxu0
    %v2559 = vadd.f32 0.0, %v2558
    %v2560 = vpop.f32.mrf.mxu0
    %v2561 = vadd.f32 0.0, %v2560
    %2562 = vmatmul.bf16.gmra.mxu0 %v791
    %v2563 = vpop.f32.mrf.mxu0
    %v2564 = vadd.f32 0.0, %v2563
    %v2565 = vpop.f32.mrf.mxu0
    %v2566 = vadd.f32 0.0, %v2565
    %2567 = vmatmul.bf16.gmra.mxu0 %v794
    %v2568 = vpop.f32.mrf.mxu0
    %v2569 = vadd.f32 0.0, %v2568
    %v2570 = vpop.f32.mrf.mxu0
    %v2571 = vadd.f32 0.0, %v2570
    %2572 = vmatmul.bf16.gmra.mxu0 %v797
    %v2573 = vpop.f32.mrf.mxu0
    %v2574 = vadd.f32 0.0, %v2573
    %v2575 = vpop.f32.mrf.mxu0
    %v2576 = vadd.f32 0.0, %v2575
    %2577 = vmatmul.bf16.gmra.mxu0 %v800
    %v2578 = vpop.f32.mrf.mxu0
    %v2579 = vadd.f32 0.0, %v2578
    %v2580 = vpop.f32.mrf.mxu0
    %v2581 = vadd.f32 0.0, %v2580
    %2582 = vmatmul.bf16.gmra.mxu0 %v803
    %v2583 = vpop.f32.mrf.mxu0
    %v2584 = vadd.f32 0.0, %v2583
    %v2585 = vpop.f32.mrf.mxu0
    %v2586 = vadd.f32 0.0, %v2585
    %2587 = vmatmul.bf16.gmra.mxu0 %v806
    %v2588 = vpop.f32.mrf.mxu0
    %v2589 = vadd.f32 0.0, %v2588
    %v2590 = vpop.f32.mrf.mxu0
    %v2591 = vadd.f32 0.0, %v2590
    %2592 = vmatmul.bf16.gmra.mxu0 %v809
    %v2593 = vpop.f32.mrf.mxu0
    %v2594 = vadd.f32 0.0, %v2593
    %v2595 = vpop.f32.mrf.mxu0
    %v2596 = vadd.f32 0.0, %v2595
    %2597 = vmatmul.bf16.gmra.mxu0 %v812
    %v2598 = vpop.f32.mrf.mxu0
    %v2599 = vadd.f32 0.0, %v2598
    %v2600 = vpop.f32.mrf.mxu0
    %v2601 = vadd.f32 0.0, %v2600
    %2602 = vmatmul.bf16.gmra.mxu0 %v815
    %v2603 = vpop.f32.mrf.mxu0
    %v2604 = vadd.f32 0.0, %v2603
    %v2605 = vpop.f32.mrf.mxu0
    %v2606 = vadd.f32 0.0, %v2605
    %2607 = vmatmul.bf16.gmra.mxu0 %v818
    %v2608 = vpop.f32.mrf.mxu0
    %v2609 = vadd.f32 0.0, %v2608
    %v2610 = vpop.f32.mrf.mxu0
    %v2611 = vadd.f32 0.0, %v2610
    %2612 = vmatmul.bf16.gmra.mxu0 %v821
    %v2613 = vpop.f32.mrf.mxu0
    %v2614 = vadd.f32 0.0, %v2613
    %v2615 = vpop.f32.mrf.mxu0
    %v2616 = vadd.f32 0.0, %v2615
    %2617 = vmatmul.bf16.gmra.mxu0 %v824
    %v2618 = vpop.f32.mrf.mxu0
    %v2619 = vadd.f32 0.0, %v2618
    %v2620 = vpop.f32.mrf.mxu0
    %v2621 = vadd.f32 0.0, %v2620
    %2622 = vmatmul.bf16.gmra.mxu0 %v827
    %v2623 = vpop.f32.mrf.mxu0
    %v2624 = vadd.f32 0.0, %v2623
    %v2625 = vpop.f32.mrf.mxu0
    %v2626 = vadd.f32 0.0, %v2625
    %2627 = vmatmul.bf16.gmra.mxu0 %v830
    %v2628 = vpop.f32.mrf.mxu0
    %v2629 = vadd.f32 0.0, %v2628
    %v2630 = vpop.f32.mrf.mxu0
    %v2631 = vadd.f32 0.0, %v2630
    %2632 = vmatmul.bf16.gmra.mxu0 %v833
    %v2633 = vpop.f32.mrf.mxu0
    %v2634 = vadd.f32 0.0, %v2633
    %v2635 = vpop.f32.mrf.mxu0
    %v2636 = vadd.f32 0.0, %v2635
    %2637 = vmatmul.bf16.gmra.mxu0 %v836
    %v2638 = vpop.f32.mrf.mxu0
    %v2639 = vadd.f32 0.0, %v2638
    %v2640 = vpop.f32.mrf.mxu0
    %v2641 = vadd.f32 0.0, %v2640
    %2642 = vdwg.mxu0
    %2643 = vmatpush.bf16.msra.mxu0 0
    %2644 = vmatpush.bf16.msra.mxu0 0
    %2645 = vmatpush.bf16.msra.mxu0 0
    %2646 = vmatpush.bf16.msra.mxu0 0
    %2647 = vmatpush.bf16.msra.mxu0 0
    %2648 = vmatpush.bf16.msra.mxu0 0
    %2649 = vmatpush.bf16.msra.mxu0 0
    %2650 = vmatpush.bf16.msra.mxu0 %v1222
    %2651 = vmatmul.bf16.gmra.mxu0 %v1157
    %v2652 = vpop.f32.mrf.mxu0
    %v2653 = vadd.f32 %v2524, %v2652
    %v2654 = vpop.f32.mrf.mxu0
    %v2655 = vadd.f32 %v2526, %v2654
    %2656 = vmatmul.bf16.gmra.mxu0 %v1159
    %v2657 = vpop.f32.mrf.mxu0
    %v2658 = vadd.f32 %v2529, %v2657
    %v2659 = vpop.f32.mrf.mxu0
    %v2660 = vadd.f32 %v2531, %v2659
    %2661 = vmatmul.bf16.gmra.mxu0 %v1161
    %v2662 = vpop.f32.mrf.mxu0
    %v2663 = vadd.f32 %v2534, %v2662
    %v2664 = vpop.f32.mrf.mxu0
    %v2665 = vadd.f32 %v2536, %v2664
    %2666 = vmatmul.bf16.gmra.mxu0 %v1163
    %v2667 = vpop.f32.mrf.mxu0
    %v2668 = vadd.f32 %v2539, %v2667
    %v2669 = vpop.f32.mrf.mxu0
    %v2670 = vadd.f32 %v2541, %v2669
    %2671 = vmatmul.bf16.gmra.mxu0 %v1165
    %v2672 = vpop.f32.mrf.mxu0
    %v2673 = vadd.f32 %v2544, %v2672
    %v2674 = vpop.f32.mrf.mxu0
    %v2675 = vadd.f32 %v2546, %v2674
    %2676 = vmatmul.bf16.gmra.mxu0 %v1167
    %v2677 = vpop.f32.mrf.mxu0
    %v2678 = vadd.f32 %v2549, %v2677
    %v2679 = vpop.f32.mrf.mxu0
    %v2680 = vadd.f32 %v2551, %v2679
    %2681 = vmatmul.bf16.gmra.mxu0 %v1169
    %v2682 = vpop.f32.mrf.mxu0
    %v2683 = vadd.f32 %v2554, %v2682
    %v2684 = vpop.f32.mrf.mxu0
    %v2685 = vadd.f32 %v2556, %v2684
    %2686 = vmatmul.bf16.gmra.mxu0 %v1171
    %v2687 = vpop.f32.mrf.mxu0
    %v2688 = vadd.f32 %v2559, %v2687
    %v2689 = vpop.f32.mrf.mxu0
    %v2690 = vadd.f32 %v2561, %v2689
    %2691 = vmatmul.bf16.gmra.mxu0 %v1173
    %v2692 = vpop.f32.mrf.mxu0
    %v2693 = vadd.f32 %v2564, %v2692
    %v2694 = vpop.f32.mrf.mxu0
    %v2695 = vadd.f32 %v2566, %v2694
    %2696 = vmatmul.bf16.gmra.mxu0 %v1175
    %v2697 = vpop.f32.mrf.mxu0
    %v2698 = vadd.f32 %v2569, %v2697
    %v2699 = vpop.f32.mrf.mxu0
    %v2700 = vadd.f32 %v2571, %v2699
    %2701 = vmatmul.bf16.gmra.mxu0 %v1177
    %v2702 = vpop.f32.mrf.mxu0
    %v2703 = vadd.f32 %v2574, %v2702
    %v2704 = vpop.f32.mrf.mxu0
    %v2705 = vadd.f32 %v2576, %v2704
    %2706 = vmatmul.bf16.gmra.mxu0 %v1179
    %v2707 = vpop.f32.mrf.mxu0
    %v2708 = vadd.f32 %v2579, %v2707
    %v2709 = vpop.f32.mrf.mxu0
    %v2710 = vadd.f32 %v2581, %v2709
    %2711 = vmatmul.bf16.gmra.mxu0 %v1181
    %v2712 = vpop.f32.mrf.mxu0
    %v2713 = vadd.f32 %v2584, %v2712
    %v2714 = vpop.f32.mrf.mxu0
    %v2715 = vadd.f32 %v2586, %v2714
    %2716 = vmatmul.bf16.gmra.mxu0 %v1183
    %v2717 = vpop.f32.mrf.mxu0
    %v2718 = vadd.f32 %v2589, %v2717
    %v2719 = vpop.f32.mrf.mxu0
    %v2720 = vadd.f32 %v2591, %v2719
    %2721 = vmatmul.bf16.gmra.mxu0 %v1185
    %v2722 = vpop.f32.mrf.mxu0
    %v2723 = vadd.f32 %v2594, %v2722
    %v2724 = vpop.f32.mrf.mxu0
    %v2725 = vadd.f32 %v2596, %v2724
    %2726 = vmatmul.bf16.gmra.mxu0 %v1187
    %v2727 = vpop.f32.mrf.mxu0
    %v2728 = vadd.f32 %v2599, %v2727
    %v2729 = vpop.f32.mrf.mxu0
    %v2730 = vadd.f32 %v2601, %v2729
    %2731 = vmatmul.bf16.gmra.mxu0 %v1189
    %v2732 = vpop.f32.mrf.mxu0
    %v2733 = vadd.f32 %v2604, %v2732
    %v2734 = vpop.f32.mrf.mxu0
    %v2735 = vadd.f32 %v2606, %v2734
    %2736 = vmatmul.bf16.gmra.mxu0 %v1191
    %v2737 = vpop.f32.mrf.mxu0
    %v2738 = vadd.f32 %v2609, %v2737
    %v2739 = vpop.f32.mrf.mxu0
    %v2740 = vadd.f32 %v2611, %v2739
    %2741 = vmatmul.bf16.gmra.mxu0 %v1193
    %v2742 = vpop.f32.mrf.mxu0
    %v2743 = vadd.f32 %v2614, %v2742
    %v2744 = vpop.f32.mrf.mxu0
    %v2745 = vadd.f32 %v2616, %v2744
    %2746 = vmatmul.bf16.gmra.mxu0 %v1195
    %v2747 = vpop.f32.mrf.mxu0
    %v2748 = vadd.f32 %v2619, %v2747
    %v2749 = vpop.f32.mrf.mxu0
    %v2750 = vadd.f32 %v2621, %v2749
    %2751 = vmatmul.bf16.gmra.mxu0 %v1197
    %v2752 = vpop.f32.mrf.mxu0
    %v2753 = vadd.f32 %v2624, %v2752
    %v2754 = vpop.f32.mrf.mxu0
    %v2755 = vadd.f32 %v2626, %v2754
    %2756 = vmatmul.bf16.gmra.mxu0 %v1199
    %v2757 = vpop.f32.mrf.mxu0
    %v2758 = vadd.f32 %v2629, %v2757
    %v2759 = vpop.f32.mrf.mxu0
    %v2760 = vadd.f32 %v2631, %v2759
    %2761 = vmatmul.bf16.gmra.mxu0 %v1201
    %v2762 = vpop.f32.mrf.mxu0
    %v2763 = vadd.f32 %v2634, %v2762
    %v2764 = vpop.f32.mrf.mxu0
    %v2765 = vadd.f32 %v2636, %v2764
    %2766 = vmatmul.bf16.gmra.mxu0 %v1203
    %v2767 = vpop.f32.mrf.mxu0
    %v2768 = vadd.f32 %v2639, %v2767
    %v2769 = vpop.f32.mrf.mxu0
    %v2770 = vadd.f32 %v2641, %v2769
    %2771 = vdwg.mxu0
    %v2772 = vmax.f32 %v1363, %v2137
    %v2773 = vmax.f32 %v1621, %v2395
    %v2774 = vmax.f32 %v1879, %v2653
    %v2775 = vmax.f32 %v1365, %v2139
    %v2776 = vmax.f32 %v1623, %v2397
    %v2777 = vmax.f32 %v1881, %v2655
    %v2778 = vmax.f32 %v1368, %v2142
    %v2779 = vmax.f32 %v1626, %v2400
    %v2780 = vmax.f32 %v1884, %v2658
    %v2781 = vmax.f32 %v1370, %v2144
    %v2782 = vmax.f32 %v1628, %v2402
    %v2783 = vmax.f32 %v1886, %v2660
    %v2784 = vmax.f32 %v1373, %v2147
    %v2785 = vmax.f32 %v1631, %v2405
    %v2786 = vmax.f32 %v1889, %v2663
    %v2787 = vmax.f32 %v1375, %v2149
    %v2788 = vmax.f32 %v1633, %v2407
    %v2789 = vmax.f32 %v1891, %v2665
    %v2790 = vmax.f32 %v1378, %v2152
    %v2791 = vmax.f32 %v1636, %v2410
    %v2792 = vmax.f32 %v1894, %v2668
    %v2793 = vmax.f32 %v1380, %v2154
    %v2794 = vmax.f32 %v1638, %v2412
    %v2795 = vmax.f32 %v1896, %v2670
    %v2796 = vmax.f32 %v1383, %v2157
    %v2797 = vmax.f32 %v1641, %v2415
    %v2798 = vmax.f32 %v1899, %v2673
    %v2799 = vmax.f32 %v1385, %v2159
    %v2800 = vmax.f32 %v1643, %v2417
    %v2801 = vmax.f32 %v1901, %v2675
    %v2802 = vmax.f32 %v1388, %v2162
    %v2803 = vmax.f32 %v1646, %v2420
    %v2804 = vmax.f32 %v1904, %v2678
    %v2805 = vmax.f32 %v1390, %v2164
    %v2806 = vmax.f32 %v1648, %v2422
    %v2807 = vmax.f32 %v1906, %v2680
    %v2808 = vmax.f32 %v1393, %v2167
    %v2809 = vmax.f32 %v1651, %v2425
    %v2810 = vmax.f32 %v1909, %v2683
    %v2811 = vmax.f32 %v1395, %v2169
    %v2812 = vmax.f32 %v1653, %v2427
    %v2813 = vmax.f32 %v1911, %v2685
    %v2814 = vmax.f32 %v1398, %v2172
    %v2815 = vmax.f32 %v1656, %v2430
    %v2816 = vmax.f32 %v1914, %v2688
    %v2817 = vmax.f32 %v1400, %v2174
    %v2818 = vmax.f32 %v1658, %v2432
    %v2819 = vmax.f32 %v1916, %v2690
    %v2820 = vmax.f32 %v1403, %v2177
    %v2821 = vmax.f32 %v1661, %v2435
    %v2822 = vmax.f32 %v1919, %v2693
    %v2823 = vmax.f32 %v1405, %v2179
    %v2824 = vmax.f32 %v1663, %v2437
    %v2825 = vmax.f32 %v1921, %v2695
    %v2826 = vmax.f32 %v1408, %v2182
    %v2827 = vmax.f32 %v1666, %v2440
    %v2828 = vmax.f32 %v1924, %v2698
    %v2829 = vmax.f32 %v1410, %v2184
    %v2830 = vmax.f32 %v1668, %v2442
    %v2831 = vmax.f32 %v1926, %v2700
    %v2832 = vmax.f32 %v1413, %v2187
    %v2833 = vmax.f32 %v1671, %v2445
    %v2834 = vmax.f32 %v1929, %v2703
    %v2835 = vmax.f32 %v1415, %v2189
    %v2836 = vmax.f32 %v1673, %v2447
    %v2837 = vmax.f32 %v1931, %v2705
    %v2838 = vmax.f32 %v1418, %v2192
    %v2839 = vmax.f32 %v1676, %v2450
    %v2840 = vmax.f32 %v1934, %v2708
    %v2841 = vmax.f32 %v1420, %v2194
    %v2842 = vmax.f32 %v1678, %v2452
    %v2843 = vmax.f32 %v1936, %v2710
    %v2844 = vmax.f32 %v1423, %v2197
    %v2845 = vmax.f32 %v1681, %v2455
    %v2846 = vmax.f32 %v1939, %v2713
    %v2847 = vmax.f32 %v1425, %v2199
    %v2848 = vmax.f32 %v1683, %v2457
    %v2849 = vmax.f32 %v1941, %v2715
    %v2850 = vmax.f32 %v1428, %v2202
    %v2851 = vmax.f32 %v1686, %v2460
    %v2852 = vmax.f32 %v1944, %v2718
    %v2853 = vmax.f32 %v1430, %v2204
    %v2854 = vmax.f32 %v1688, %v2462
    %v2855 = vmax.f32 %v1946, %v2720
    %v2856 = vmax.f32 %v1433, %v2207
    %v2857 = vmax.f32 %v1691, %v2465
    %v2858 = vmax.f32 %v1949, %v2723
    %v2859 = vmax.f32 %v1435, %v2209
    %v2860 = vmax.f32 %v1693, %v2467
    %v2861 = vmax.f32 %v1951, %v2725
    %v2862 = vmax.f32 %v1438, %v2212
    %v2863 = vmax.f32 %v1696, %v2470
    %v2864 = vmax.f32 %v1954, %v2728
    %v2865 = vmax.f32 %v1440, %v2214
    %v2866 = vmax.f32 %v1698, %v2472
    %v2867 = vmax.f32 %v1956, %v2730
    %v2868 = vmax.f32 %v1443, %v2217
    %v2869 = vmax.f32 %v1701, %v2475
    %v2870 = vmax.f32 %v1959, %v2733
    %v2871 = vmax.f32 %v1445, %v2219
    %v2872 = vmax.f32 %v1703, %v2477
    %v2873 = vmax.f32 %v1961, %v2735
    %v2874 = vmax.f32 %v1448, %v2222
    %v2875 = vmax.f32 %v1706, %v2480
    %v2876 = vmax.f32 %v1964, %v2738
    %v2877 = vmax.f32 %v1450, %v2224
    %v2878 = vmax.f32 %v1708, %v2482
    %v2879 = vmax.f32 %v1966, %v2740
    %v2880 = vmax.f32 %v1453, %v2227
    %v2881 = vmax.f32 %v1711, %v2485
    %v2882 = vmax.f32 %v1969, %v2743
    %v2883 = vmax.f32 %v1455, %v2229
    %v2884 = vmax.f32 %v1713, %v2487
    %v2885 = vmax.f32 %v1971, %v2745
    %v2886 = vmax.f32 %v1458, %v2232
    %v2887 = vmax.f32 %v1716, %v2490
    %v2888 = vmax.f32 %v1974, %v2748
    %v2889 = vmax.f32 %v1460, %v2234
    %v2890 = vmax.f32 %v1718, %v2492
    %v2891 = vmax.f32 %v1976, %v2750
    %v2892 = vmax.f32 %v1463, %v2237
    %v2893 = vmax.f32 %v1721, %v2495
    %v2894 = vmax.f32 %v1979, %v2753
    %v2895 = vmax.f32 %v1465, %v2239
    %v2896 = vmax.f32 %v1723, %v2497
    %v2897 = vmax.f32 %v1981, %v2755
    %v2898 = vmax.f32 %v1468, %v2242
    %v2899 = vmax.f32 %v1726, %v2500
    %v2900 = vmax.f32 %v1984, %v2758
    %v2901 = vmax.f32 %v1470, %v2244
    %v2902 = vmax.f32 %v1728, %v2502
    %v2903 = vmax.f32 %v1986, %v2760
    %v2904 = vmax.f32 %v1473, %v2247
    %v2905 = vmax.f32 %v1731, %v2505
    %v2906 = vmax.f32 %v1989, %v2763
    %v2907 = vmax.f32 %v1475, %v2249
    %v2908 = vmax.f32 %v1733, %v2507
    %v2909 = vmax.f32 %v1991, %v2765
    %v2910 = vmax.f32 %v1478, %v2252
    %v2911 = vmax.f32 %v1736, %v2510
    %v2912 = vmax.f32 %v1994, %v2768
    %v2913 = vmax.f32 %v1480, %v2254
    %v2914 = vmax.f32 %v1738, %v2512
    %v2915 = vmax.f32 %v1996, %v2770
    %v2916 = vmax.f32 %v2772, %v2778
    %v2917 = vmax.f32 %v2773, %v2779
    %v2918 = vmax.f32 %v2774, %v2780
    %v2919 = vmax.f32 %v2775, %v2781
    %v2920 = vmax.f32 %v2776, %v2782
    %v2921 = vmax.f32 %v2777, %v2783
    %v2922 = vmax.f32 %v2784, %v2790
    %v2923 = vmax.f32 %v2785, %v2791
    %v2924 = vmax.f32 %v2786, %v2792
    %v2925 = vmax.f32 %v2787, %v2793
    %v2926 = vmax.f32 %v2788, %v2794
    %v2927 = vmax.f32 %v2789, %v2795
    %v2928 = vmax.f32 %v2796, %v2802
    %v2929 = vmax.f32 %v2797, %v2803
    %v2930 = vmax.f32 %v2798, %v2804
    %v2931 = vmax.f32 %v2799, %v2805
    %v2932 = vmax.f32 %v2800, %v2806
    %v2933 = vmax.f32 %v2801, %v2807
    %v2934 = vmax.f32 %v2808, %v2814
    %v2935 = vmax.f32 %v2809, %v2815
    %v2936 = vmax.f32 %v2810, %v2816
    %v2937 = vmax.f32 %v2811, %v2817
    %v2938 = vmax.f32 %v2812, %v2818
    %v2939 = vmax.f32 %v2813, %v2819
    %v2940 = vmax.f32 %v2820, %v2826
    %v2941 = vmax.f32 %v2821, %v2827
    %v2942 = vmax.f32 %v2822, %v2828
    %v2943 = vmax.f32 %v2823, %v2829
    %v2944 = vmax.f32 %v2824, %v2830
    %v2945 = vmax.f32 %v2825, %v2831
    %v2946 = vmax.f32 %v2832, %v2838
    %v2947 = vmax.f32 %v2833, %v2839
    %v2948 = vmax.f32 %v2834, %v2840
    %v2949 = vmax.f32 %v2835, %v2841
    %v2950 = vmax.f32 %v2836, %v2842
    %v2951 = vmax.f32 %v2837, %v2843
    %v2952 = vmax.f32 %v2844, %v2850
    %v2953 = vmax.f32 %v2845, %v2851
    %v2954 = vmax.f32 %v2846, %v2852
    %v2955 = vmax.f32 %v2847, %v2853
    %v2956 = vmax.f32 %v2848, %v2854
    %v2957 = vmax.f32 %v2849, %v2855
    %v2958 = vmax.f32 %v2856, %v2862
    %v2959 = vmax.f32 %v2857, %v2863
    %v2960 = vmax.f32 %v2858, %v2864
    %v2961 = vmax.f32 %v2859, %v2865
    %v2962 = vmax.f32 %v2860, %v2866
    %v2963 = vmax.f32 %v2861, %v2867
    %v2964 = vmax.f32 %v2868, %v2874
    %v2965 = vmax.f32 %v2869, %v2875
    %v2966 = vmax.f32 %v2870, %v2876
    %v2967 = vmax.f32 %v2871, %v2877
    %v2968 = vmax.f32 %v2872, %v2878
    %v2969 = vmax.f32 %v2873, %v2879
    %v2970 = vmax.f32 %v2880, %v2886
    %v2971 = vmax.f32 %v2881, %v2887
    %v2972 = vmax.f32 %v2882, %v2888
    %v2973 = vmax.f32 %v2883, %v2889
    %v2974 = vmax.f32 %v2884, %v2890
    %v2975 = vmax.f32 %v2885, %v2891
    %v2976 = vmax.f32 %v2892, %v2898
    %v2977 = vmax.f32 %v2893, %v2899
    %v2978 = vmax.f32 %v2894, %v2900
    %v2979 = vmax.f32 %v2895, %v2901
    %v2980 = vmax.f32 %v2896, %v2902
    %v2981 = vmax.f32 %v2897, %v2903
    %v2982 = vmax.f32 %v2904, %v2910
    %v2983 = vmax.f32 %v2905, %v2911
    %v2984 = vmax.f32 %v2906, %v2912
    %v2985 = vmax.f32 %v2907, %v2913
    %v2986 = vmax.f32 %v2908, %v2914
    %v2987 = vmax.f32 %v2909, %v2915
    %v2988 = vld [vmem:[#allocation4] sm:$0x7]
    %v2990 = vperm.slane %v2988, 0
    %v2991 = vperm.slane %v2988, 1
    %v2992 = vperm.slane %v2988, 2
    %v2996 = vadd.f32 %v2916, %v2990
    %v2997 = vadd.f32 %v2917, %v2991
    %v2998 = vadd.f32 %v2918, %v2992
    %v2999 = vadd.f32 %v2919, %v2990
    %v3000 = vadd.f32 %v2920, %v2991
    %v3001 = vadd.f32 %v2921, %v2992
    %v3002 = vadd.f32 %v2922, %v2990
    %v3003 = vadd.f32 %v2923, %v2991
    %v3004 = vadd.f32 %v2924, %v2992
    %v3005 = vadd.f32 %v2925, %v2990
    %v3006 = vadd.f32 %v2926, %v2991
    %v3007 = vadd.f32 %v2927, %v2992
    %v3008 = vadd.f32 %v2928, %v2990
    %v3009 = vadd.f32 %v2929, %v2991
    %v3010 = vadd.f32 %v2930, %v2992
    %v3011 = vadd.f32 %v2931, %v2990
    %v3012 = vadd.f32 %v2932, %v2991
    %v3013 = vadd.f32 %v2933, %v2992
    %v3014 = vadd.f32 %v2934, %v2990
    %v3015 = vadd.f32 %v2935, %v2991
    %v3016 = vadd.f32 %v2936, %v2992
    %v3017 = vadd.f32 %v2937, %v2990
    %v3018 = vadd.f32 %v2938, %v2991
    %v3019 = vadd.f32 %v2939, %v2992
    %v3020 = vadd.f32 %v2940, %v2990
    %v3021 = vadd.f32 %v2941, %v2991
    %v3022 = vadd.f32 %v2942, %v2992
    %v3023 = vadd.f32 %v2943, %v2990
    %v3024 = vadd.f32 %v2944, %v2991
    %v3025 = vadd.f32 %v2945, %v2992
    %v3026 = vadd.f32 %v2946, %v2990
    %v3027 = vadd.f32 %v2947, %v2991
    %v3028 = vadd.f32 %v2948, %v2992
    %v3029 = vadd.f32 %v2949, %v2990
    %v3030 = vadd.f32 %v2950, %v2991
    %v3031 = vadd.f32 %v2951, %v2992
    %v3032 = vadd.f32 %v2952, %v2990
    %v3033 = vadd.f32 %v2953, %v2991
    %v3034 = vadd.f32 %v2954, %v2992
    %v3035 = vadd.f32 %v2955, %v2990
    %v3036 = vadd.f32 %v2956, %v2991
    %v3037 = vadd.f32 %v2957, %v2992
    %v3038 = vadd.f32 %v2958, %v2990
    %v3039 = vadd.f32 %v2959, %v2991
    %v3040 = vadd.f32 %v2960, %v2992
    %v3041 = vadd.f32 %v2961, %v2990
    %v3042 = vadd.f32 %v2962, %v2991
    %v3043 = vadd.f32 %v2963, %v2992
    %v3044 = vadd.f32 %v2964, %v2990
    %v3045 = vadd.f32 %v2965, %v2991
    %v3046 = vadd.f32 %v2966, %v2992
    %v3047 = vadd.f32 %v2967, %v2990
    %v3048 = vadd.f32 %v2968, %v2991
    %v3049 = vadd.f32 %v2969, %v2992
    %v3050 = vadd.f32 %v2970, %v2990
    %v3051 = vadd.f32 %v2971, %v2991
    %v3052 = vadd.f32 %v2972, %v2992
    %v3053 = vadd.f32 %v2973, %v2990
    %v3054 = vadd.f32 %v2974, %v2991
    %v3055 = vadd.f32 %v2975, %v2992
    %v3056 = vadd.f32 %v2976, %v2990
    %v3057 = vadd.f32 %v2977, %v2991
    %v3058 = vadd.f32 %v2978, %v2992
    %v3059 = vadd.f32 %v2979, %v2990
    %v3060 = vadd.f32 %v2980, %v2991
    %v3061 = vadd.f32 %v2981, %v2992
    %v3062 = vadd.f32 %v2982, %v2990
    %v3063 = vadd.f32 %v2983, %v2991
    %v3064 = vadd.f32 %v2984, %v2992
    %v3065 = vadd.f32 %v2985, %v2990
    %v3066 = vadd.f32 %v2986, %v2991
    %v3067 = vadd.f32 %v2987, %v2992
    %v3068 = vpack.c.bf16 %v2997, %v2996
    %v3069 = vpack.c.bf16 %v2998, %v2998
    %v3070 = vpack.c.bf16 %v3000, %v2999
    %v3071 = vpack.c.bf16 %v3001, %v3001
    %v3072 = vpack.c.bf16 %v3003, %v3002
    %v3073 = vpack.c.bf16 %v3004, %v3004
    %v3074 = vpack.c.bf16 %v3006, %v3005
    %v3075 = vpack.c.bf16 %v3007, %v3007
    %v3076 = vpack.c.bf16 %v3009, %v3008
    %v3077 = vpack.c.bf16 %v3010, %v3010
    %v3078 = vpack.c.bf16 %v3012, %v3011
    %v3079 = vpack.c.bf16 %v3013, %v3013
    %v3080 = vpack.c.bf16 %v3015, %v3014
    %v3081 = vpack.c.bf16 %v3016, %v3016
    %v3082 = vpack.c.bf16 %v3018, %v3017
    %v3083 = vpack.c.bf16 %v3019, %v3019
    %v3084 = vpack.c.bf16 %v3021, %v3020
    %v3085 = vpack.c.bf16 %v3022, %v3022
    %v3086 = vpack.c.bf16 %v3024, %v3023
    %v3087 = vpack.c.bf16 %v3025, %v3025
    %v3088 = vpack.c.bf16 %v3027, %v3026
    %v3089 = vpack.c.bf16 %v3028, %v3028
    %v3090 = vpack.c.bf16 %v3030, %v3029
    %v3091 = vpack.c.bf16 %v3031, %v3031
    %v3092 = vpack.c.bf16 %v3033, %v3032
    %v3093 = vpack.c.bf16 %v3034, %v3034
    %v3094 = vpack.c.bf16 %v3036, %v3035
    %v3095 = vpack.c.bf16 %v3037, %v3037
    %v3096 = vpack.c.bf16 %v3039, %v3038
    %v3097 = vpack.c.bf16 %v3040, %v3040
    %v3098 = vpack.c.bf16 %v3042, %v3041
    %v3099 = vpack.c.bf16 %v3043, %v3043
    %v3100 = vpack.c.bf16 %v3045, %v3044
    %v3101 = vpack.c.bf16 %v3046, %v3046
    %v3102 = vpack.c.bf16 %v3048, %v3047
    %v3103 = vpack.c.bf16 %v3049, %v3049
    %v3104 = vpack.c.bf16 %v3051, %v3050
    %v3105 = vpack.c.bf16 %v3052, %v3052
    %v3106 = vpack.c.bf16 %v3054, %v3053
    %v3107 = vpack.c.bf16 %v3055, %v3055
    %v3108 = vpack.c.bf16 %v3057, %v3056
    %v3109 = vpack.c.bf16 %v3058, %v3058
    %v3110 = vpack.c.bf16 %v3060, %v3059
    %v3111 = vpack.c.bf16 %v3061, %v3061
    %v3112 = vpack.c.bf16 %v3063, %v3062
    %v3113 = vpack.c.bf16 %v3064, %v3064
    %v3114 = vpack.c.bf16 %v3066, %v3065
    %v3115 = vpack.c.bf16 %v3067, %v3067
    %v3148 = vunpack.c.l.b16 %v3068
    %v3149 = vunpack.c.h.b16 %v3068
    %v3150 = vunpack.c.l.b16 %v3069
    %v3151 = vunpack.c.l.b16 %v3070
    %v3152 = vunpack.c.h.b16 %v3070
    %v3153 = vunpack.c.l.b16 %v3071
    %v3154 = vunpack.c.l.b16 %v3072
    %v3155 = vunpack.c.h.b16 %v3072
    %v3156 = vunpack.c.l.b16 %v3073
    %v3157 = vunpack.c.l.b16 %v3074
    %v3158 = vunpack.c.h.b16 %v3074
    %v3159 = vunpack.c.l.b16 %v3075
    %v3160 = vunpack.c.l.b16 %v3076
    %v3161 = vunpack.c.h.b16 %v3076
    %v3162 = vunpack.c.l.b16 %v3077
    %v3163 = vunpack.c.l.b16 %v3078
    %v3164 = vunpack.c.h.b16 %v3078
    %v3165 = vunpack.c.l.b16 %v3079
    %v3166 = vunpack.c.l.b16 %v3080
    %v3167 = vunpack.c.h.b16 %v3080
    %v3168 = vunpack.c.l.b16 %v3081
    %v3169 = vunpack.c.l.b16 %v3082
    %v3170 = vunpack.c.h.b16 %v3082
    %v3171 = vunpack.c.l.b16 %v3083
    %v3172 = vunpack.c.l.b16 %v3084
    %v3173 = vunpack.c.h.b16 %v3084
    %v3174 = vunpack.c.l.b16 %v3085
    %v3175 = vunpack.c.l.b16 %v3086
    %v3176 = vunpack.c.h.b16 %v3086
    %v3177 = vunpack.c.l.b16 %v3087
    %v3178 = vunpack.c.l.b16 %v3088
    %v3179 = vunpack.c.h.b16 %v3088
    %v3180 = vunpack.c.l.b16 %v3089
    %v3181 = vunpack.c.l.b16 %v3090
    %v3182 = vunpack.c.h.b16 %v3090
    %v3183 = vunpack.c.l.b16 %v3091
    %v3184 = vunpack.c.l.b16 %v3092
    %v3185 = vunpack.c.h.b16 %v3092
    %v3186 = vunpack.c.l.b16 %v3093
    %v3187 = vunpack.c.l.b16 %v3094
    %v3188 = vunpack.c.h.b16 %v3094
    %v3189 = vunpack.c.l.b16 %v3095
    %v3190 = vunpack.c.l.b16 %v3096
    %v3191 = vunpack.c.h.b16 %v3096
    %v3192 = vunpack.c.l.b16 %v3097
    %v3193 = vunpack.c.l.b16 %v3098
    %v3194 = vunpack.c.h.b16 %v3098
    %v3195 = vunpack.c.l.b16 %v3099
    %v3196 = vpack.c.b16 %v3151, %v3148
    %v3197 = vpack.c.b16 %v3152, %v3149
    %v3198 = vpack.c.b16 %v3153, %v3150
    %v3199 = vpack.c.b16 %v3157, %v3154
    %v3200 = vpack.c.b16 %v3158, %v3155
    %v3201 = vpack.c.b16 %v3159, %v3156
    %v3202 = vpack.c.b16 %v3163, %v3160
    %v3203 = vpack.c.b16 %v3164, %v3161
    %v3204 = vpack.c.b16 %v3165, %v3162
    %v3205 = vpack.c.b16 %v3169, %v3166
    %v3206 = vpack.c.b16 %v3170, %v3167
    %v3207 = vpack.c.b16 %v3171, %v3168
    %v3208 = vpack.c.b16 %v3175, %v3172
    %v3209 = vpack.c.b16 %v3176, %v3173
    %v3210 = vpack.c.b16 %v3177, %v3174
    %v3211 = vpack.c.b16 %v3181, %v3178
    %v3212 = vpack.c.b16 %v3182, %v3179
    %v3213 = vpack.c.b16 %v3183, %v3180
    %v3214 = vpack.c.b16 %v3187, %v3184
    %v3215 = vpack.c.b16 %v3188, %v3185
    %v3216 = vpack.c.b16 %v3189, %v3186
    %v3217 = vpack.c.b16 %v3193, %v3190
    %v3218 = vpack.c.b16 %v3194, %v3191
    %v3219 = vpack.c.b16 %v3195, %v3192
    %v3248 = vunpack.c.l.b16 %v3100
    %v3249 = vunpack.c.h.b16 %v3100
    %v3250 = vunpack.c.l.b16 %v3101
    %v3251 = vunpack.c.l.b16 %v3102
    %v3252 = vunpack.c.h.b16 %v3102
    %v3253 = vunpack.c.l.b16 %v3103
    %v3254 = vpack.c.b16 %v3251, %v3248
    %v3255 = vpack.c.b16 %v3252, %v3249
    %v3256 = vpack.c.b16 %v3253, %v3250
    %v3264 = vunpack.c.l.b16 %v3104
    %v3265 = vunpack.c.h.b16 %v3104
    %v3266 = vunpack.c.l.b16 %v3105
    %v3267 = vunpack.c.l.b16 %v3106
    %v3268 = vunpack.c.h.b16 %v3106
    %v3269 = vunpack.c.l.b16 %v3107
    %v3270 = vpack.c.b16 %v3267, %v3264
    %v3271 = vpack.c.b16 %v3268, %v3265
    %v3272 = vpack.c.b16 %v3269, %v3266
    %v3280 = vunpack.c.l.b16 %v3108
    %v3281 = vunpack.c.h.b16 %v3108
    %v3282 = vunpack.c.l.b16 %v3109
    %v3283 = vunpack.c.l.b16 %v3110
    %v3284 = vunpack.c.h.b16 %v3110
    %v3285 = vunpack.c.l.b16 %v3111
    %v3286 = vpack.c.b16 %v3283, %v3280
    %v3287 = vpack.c.b16 %v3284, %v3281
    %v3288 = vpack.c.b16 %v3285, %v3282
    %v3296 = vunpack.c.l.b16 %v3112
    %v3297 = vunpack.c.h.b16 %v3112
    %v3298 = vunpack.c.l.b16 %v3113
    %v3299 = vunpack.c.l.b16 %v3114
    %v3300 = vunpack.c.h.b16 %v3114
    %v3301 = vunpack.c.l.b16 %v3115
    %v3302 = vpack.c.b16 %v3299, %v3296
    %v3303 = vpack.c.b16 %v3300, %v3297
    %v3304 = vpack.c.b16 %v3301, %v3298
    %v3308 = vld [vmem:[#allocation6] sm:$0xff]
    %v3309 = vld [vmem:[#allocation6 + $0x8] sm:$0xff]
    %v3310 = vld [vmem:[#allocation6 + $0x10] sm:$0xff]
    %v3311 = vld [vmem:[#allocation6 + $0x18] sm:$0xff]
    %v3312 = vld [vmem:[#allocation6 + $0x20] sm:$0xff]
    %v3313 = vld [vmem:[#allocation6 + $0x28] sm:$0xff]
    %v3314 = vld [vmem:[#allocation6 + $0x30] sm:$0xff]
    %v3315 = vld [vmem:[#allocation6 + $0x38] sm:$0xff]
    %v3316 = vld [vmem:[#allocation6 + $0x40] sm:$0xff]
    %v3317 = vld [vmem:[#allocation6 + $0x48] sm:$0xff]
    %v3318 = vld [vmem:[#allocation6 + $0x50] sm:$0xff]
    %v3319 = vld [vmem:[#allocation6 + $0x58] sm:$0xff]
    %v3320 = vld [vmem:[#allocation6 + $0x60] sm:$0xff]
    %v3321 = vld [vmem:[#allocation6 + $0x68] sm:$0xff]
    %v3322 = vld [vmem:[#allocation6 + $0x70] sm:$0xff]
    %v3323 = vld [vmem:[#allocation6 + $0x78] sm:$0xff]
    %v3324 = vld [vmem:[#allocation6 + $0x80] sm:$0xff]
    %v3325 = vld [vmem:[#allocation6 + $0x88] sm:$0xff]
    %v3326 = vld [vmem:[#allocation6 + $0x90] sm:$0xff]
    %v3327 = vld [vmem:[#allocation6 + $0x98] sm:$0xff]
    %v3328 = vld [vmem:[#allocation6 + $0xa0] sm:$0xff]
    %v3329 = vld [vmem:[#allocation6 + $0xa8] sm:$0xff]
    %v3330 = vld [vmem:[#allocation6 + $0xb0] sm:$0xff]
    %v3331 = vld [vmem:[#allocation6 + $0xb8] sm:$0xff]
    %v3332 = vld [vmem:[#allocation6 + $0xc0] sm:$0xff]
    %v3333 = vld [vmem:[#allocation6 + $0xc8] sm:$0xff]
    %v3334 = vld [vmem:[#allocation6 + $0xd0] sm:$0xff]
    %v3335 = vld [vmem:[#allocation6 + $0xd8] sm:$0xff]
    %v3336 = vld [vmem:[#allocation6 + $0xe0] sm:$0xff]
    %v3337 = vld [vmem:[#allocation6 + $0xe8] sm:$0xff]
    %v3338 = vld [vmem:[#allocation6 + $0xf0] sm:$0xff]
    %v3339 = vld [vmem:[#allocation6 + $0xf8] sm:$0xff]
    %v3340 = vld [vmem:[#allocation6 + $0x100] sm:$0xff]
    %v3341 = vld [vmem:[#allocation6 + $0x108] sm:$0xff]
    %v3342 = vld [vmem:[#allocation6 + $0x110] sm:$0xff]
    %v3343 = vld [vmem:[#allocation6 + $0x118] sm:$0xff]
    %v3344 = vld [vmem:[#allocation6 + $0x120] sm:$0xff]
    %v3345 = vld [vmem:[#allocation6 + $0x128] sm:$0xff]
    %v3346 = vld [vmem:[#allocation6 + $0x130] sm:$0xff]
    %v3347 = vld [vmem:[#allocation6 + $0x138] sm:$0xff]
    %v3348 = vld [vmem:[#allocation6 + $0x140] sm:$0xff]
    %v3349 = vld [vmem:[#allocation6 + $0x148] sm:$0xff]
    %v3350 = vld [vmem:[#allocation6 + $0x150] sm:$0xff]
    %v3351 = vld [vmem:[#allocation6 + $0x158] sm:$0xff]
    %v3352 = vld [vmem:[#allocation6 + $0x160] sm:$0xff]
    %v3353 = vld [vmem:[#allocation6 + $0x168] sm:$0xff]
    %v3354 = vld [vmem:[#allocation6 + $0x170] sm:$0xff]
    %v3355 = vld [vmem:[#allocation6 + $0x178] sm:$0xff]
    %v3356 = vld [vmem:[#allocation6 + $0x180] sm:$0xff]
    %v3357 = vld [vmem:[#allocation6 + $0x188] sm:$0xff]
    %v3358 = vld [vmem:[#allocation6 + $0x190] sm:$0xff]
    %v3359 = vld [vmem:[#allocation6 + $0x198] sm:$0xff]
    %v3360 = vld [vmem:[#allocation6 + $0x1a0] sm:$0xff]
    %v3361 = vld [vmem:[#allocation6 + $0x1a8] sm:$0xff]
    %v3362 = vld [vmem:[#allocation6 + $0x1b0] sm:$0xff]
    %v3363 = vld [vmem:[#allocation6 + $0x1b8] sm:$0xff]
    %v3364 = vld [vmem:[#allocation6 + $0x1c0] sm:$0xff]
    %v3365 = vld [vmem:[#allocation6 + $0x1c8] sm:$0xff]
    %v3366 = vld [vmem:[#allocation6 + $0x1d0] sm:$0xff]
    %v3367 = vld [vmem:[#allocation6 + $0x1d8] sm:$0xff]
    %v3368 = vld [vmem:[#allocation6 + $0x1e0] sm:$0xff]
    %v3369 = vld [vmem:[#allocation6 + $0x1e8] sm:$0xff]
    %v3370 = vld [vmem:[#allocation6 + $0x1f0] sm:$0xff]
    %v3371 = vld [vmem:[#allocation6 + $0x1f8] sm:$0xff]
    %v3372 = vld [vmem:[#allocation6 + $0x200] sm:$0xff]
    %v3373 = vld [vmem:[#allocation6 + $0x208] sm:$0xff]
    %v3374 = vld [vmem:[#allocation6 + $0x210] sm:$0xff]
    %v3375 = vld [vmem:[#allocation6 + $0x218] sm:$0xff]
    %v3376 = vld [vmem:[#allocation6 + $0x220] sm:$0xff]
    %v3377 = vld [vmem:[#allocation6 + $0x228] sm:$0xff]
    %v3378 = vld [vmem:[#allocation6 + $0x230] sm:$0xff]
    %v3379 = vld [vmem:[#allocation6 + $0x238] sm:$0xff]
    %v3380 = vld [vmem:[#allocation6 + $0x240] sm:$0xff]
    %v3381 = vld [vmem:[#allocation6 + $0x248] sm:$0xff]
    %v3382 = vld [vmem:[#allocation6 + $0x250] sm:$0xff]
    %v3383 = vld [vmem:[#allocation6 + $0x258] sm:$0xff]
    %v3384 = vld [vmem:[#allocation6 + $0x260] sm:$0xff]
    %v3385 = vld [vmem:[#allocation6 + $0x268] sm:$0xff]
    %v3386 = vld [vmem:[#allocation6 + $0x270] sm:$0xff]
    %v3387 = vld [vmem:[#allocation6 + $0x278] sm:$0xff]
    %v3388 = vld [vmem:[#allocation6 + $0x280] sm:$0xff]
    %v3389 = vld [vmem:[#allocation6 + $0x288] sm:$0xff]
    %v3390 = vld [vmem:[#allocation6 + $0x290] sm:$0xff]
    %v3391 = vld [vmem:[#allocation6 + $0x298] sm:$0xff]
    %v3392 = vld [vmem:[#allocation6 + $0x2a0] sm:$0xff]
    %v3393 = vld [vmem:[#allocation6 + $0x2a8] sm:$0xff]
    %v3394 = vld [vmem:[#allocation6 + $0x2b0] sm:$0xff]
    %v3395 = vld [vmem:[#allocation6 + $0x2b8] sm:$0xff]
    %v3396 = vld [vmem:[#allocation6 + $0x2c0] sm:$0xff]
    %v3397 = vld [vmem:[#allocation6 + $0x2c8] sm:$0xff]
    %v3398 = vld [vmem:[#allocation6 + $0x2d0] sm:$0xff]
    %v3399 = vld [vmem:[#allocation6 + $0x2d8] sm:$0xff]
    %v3400 = vld [vmem:[#allocation6 + $0x2e0] sm:$0xff]
    %v3401 = vld [vmem:[#allocation6 + $0x2e8] sm:$0xff]
    %v3402 = vld [vmem:[#allocation6 + $0x2f0] sm:$0xff]
    %v3403 = vld [vmem:[#allocation6 + $0x2f8] sm:$0xff]
    %v3404 = vld [vmem:[#allocation6 + $0x300] sm:$0xff]
    %v3405 = vld [vmem:[#allocation6 + $0x308] sm:$0xff]
    %v3406 = vld [vmem:[#allocation6 + $0x310] sm:$0xff]
    %v3407 = vld [vmem:[#allocation6 + $0x318] sm:$0xff]
    %v3408 = vld [vmem:[#allocation6 + $0x320] sm:$0xff]
    %v3409 = vld [vmem:[#allocation6 + $0x328] sm:$0xff]
    %v3410 = vld [vmem:[#allocation6 + $0x330] sm:$0xff]
    %v3411 = vld [vmem:[#allocation6 + $0x338] sm:$0xff]
    %v3412 = vld [vmem:[#allocation6 + $0x340] sm:$0xff]
    %v3413 = vld [vmem:[#allocation6 + $0x348] sm:$0xff]
    %v3414 = vld [vmem:[#allocation6 + $0x350] sm:$0xff]
    %v3415 = vld [vmem:[#allocation6 + $0x358] sm:$0xff]
    %v3416 = vld [vmem:[#allocation6 + $0x360] sm:$0xff]
    %v3417 = vld [vmem:[#allocation6 + $0x368] sm:$0xff]
    %v3418 = vld [vmem:[#allocation6 + $0x370] sm:$0xff]
    %v3419 = vld [vmem:[#allocation6 + $0x378] sm:$0xff]
    %v3420 = vld [vmem:[#allocation6 + $0x380] sm:$0xff]
    %v3421 = vld [vmem:[#allocation6 + $0x388] sm:$0xff]
    %v3422 = vld [vmem:[#allocation6 + $0x390] sm:$0xff]
    %v3423 = vld [vmem:[#allocation6 + $0x398] sm:$0xff]
    %v3424 = vld [vmem:[#allocation6 + $0x3a0] sm:$0xff]
    %v3425 = vld [vmem:[#allocation6 + $0x3a8] sm:$0xff]
    %v3426 = vld [vmem:[#allocation6 + $0x3b0] sm:$0xff]
    %v3427 = vld [vmem:[#allocation6 + $0x3b8] sm:$0xff]
    %v3428 = vld [vmem:[#allocation6 + $0x3c0] sm:$0xff]
    %v3429 = vld [vmem:[#allocation6 + $0x3c8] sm:$0xff]
    %v3430 = vld [vmem:[#allocation6 + $0x3d0] sm:$0xff]
    %v3431 = vld [vmem:[#allocation6 + $0x3d8] sm:$0xff]
    %v3432 = vld [vmem:[#allocation6 + $0x3e0] sm:$0xff]
    %v3433 = vld [vmem:[#allocation6 + $0x3e8] sm:$0xff]
    %v3434 = vld [vmem:[#allocation6 + $0x3f0] sm:$0xff]
    %v3435 = vld [vmem:[#allocation6 + $0x3f8] sm:$0xff]
    %v3436 = vld [vmem:[#allocation6 + $0x400] sm:$0xff]
    %v3437 = vld [vmem:[#allocation6 + $0x408] sm:$0xff]
    %v3438 = vld [vmem:[#allocation6 + $0x410] sm:$0xff]
    %v3439 = vld [vmem:[#allocation6 + $0x418] sm:$0xff]
    %v3440 = vld [vmem:[#allocation6 + $0x420] sm:$0xff]
    %v3441 = vld [vmem:[#allocation6 + $0x428] sm:$0xff]
    %v3442 = vld [vmem:[#allocation6 + $0x430] sm:$0xff]
    %v3443 = vld [vmem:[#allocation6 + $0x438] sm:$0xff]
    %v3444 = vld [vmem:[#allocation6 + $0x440] sm:$0xff]
    %v3445 = vld [vmem:[#allocation6 + $0x448] sm:$0xff]
    %v3446 = vld [vmem:[#allocation6 + $0x450] sm:$0xff]
    %v3447 = vld [vmem:[#allocation6 + $0x458] sm:$0xff]
    %v3448 = vld [vmem:[#allocation6 + $0x460] sm:$0xff]
    %v3449 = vld [vmem:[#allocation6 + $0x468] sm:$0xff]
    %v3450 = vld [vmem:[#allocation6 + $0x470] sm:$0xff]
    %v3451 = vld [vmem:[#allocation6 + $0x478] sm:$0xff]
    %v3452 = vld [vmem:[#allocation6 + $0x480] sm:$0xff]
    %v3453 = vld [vmem:[#allocation6 + $0x488] sm:$0xff]
    %v3454 = vld [vmem:[#allocation6 + $0x490] sm:$0xff]
    %v3455 = vld [vmem:[#allocation6 + $0x498] sm:$0xff]
    %v3456 = vld [vmem:[#allocation6 + $0x4a0] sm:$0xff]
    %v3457 = vld [vmem:[#allocation6 + $0x4a8] sm:$0xff]
    %v3458 = vld [vmem:[#allocation6 + $0x4b0] sm:$0xff]
    %v3459 = vld [vmem:[#allocation6 + $0x4b8] sm:$0xff]
    %v3460 = vld [vmem:[#allocation6 + $0x4c0] sm:$0xff]
    %v3461 = vld [vmem:[#allocation6 + $0x4c8] sm:$0xff]
    %v3462 = vld [vmem:[#allocation6 + $0x4d0] sm:$0xff]
    %v3463 = vld [vmem:[#allocation6 + $0x4d8] sm:$0xff]
    %v3464 = vld [vmem:[#allocation6 + $0x4e0] sm:$0xff]
    %v3465 = vld [vmem:[#allocation6 + $0x4e8] sm:$0xff]
    %v3466 = vld [vmem:[#allocation6 + $0x4f0] sm:$0xff]
    %v3467 = vld [vmem:[#allocation6 + $0x4f8] sm:$0xff]
    %v3468 = vld [vmem:[#allocation6 + $0x500] sm:$0xff]
    %v3469 = vld [vmem:[#allocation6 + $0x508] sm:$0xff]
    %v3470 = vld [vmem:[#allocation6 + $0x510] sm:$0xff]
    %v3471 = vld [vmem:[#allocation6 + $0x518] sm:$0xff]
    %v3472 = vld [vmem:[#allocation6 + $0x520] sm:$0xff]
    %v3473 = vld [vmem:[#allocation6 + $0x528] sm:$0xff]
    %v3474 = vld [vmem:[#allocation6 + $0x530] sm:$0xff]
    %v3475 = vld [vmem:[#allocation6 + $0x538] sm:$0xff]
    %v3476 = vld [vmem:[#allocation6 + $0x540] sm:$0xff]
    %v3477 = vld [vmem:[#allocation6 + $0x548] sm:$0xff]
    %v3478 = vld [vmem:[#allocation6 + $0x550] sm:$0xff]
    %v3479 = vld [vmem:[#allocation6 + $0x558] sm:$0xff]
    %v3480 = vld [vmem:[#allocation6 + $0x560] sm:$0xff]
    %v3481 = vld [vmem:[#allocation6 + $0x568] sm:$0xff]
    %v3482 = vld [vmem:[#allocation6 + $0x570] sm:$0xff]
    %v3483 = vld [vmem:[#allocation6 + $0x578] sm:$0xff]
    %v3484 = vld [vmem:[#allocation6 + $0x580] sm:$0xff]
    %v3485 = vld [vmem:[#allocation6 + $0x588] sm:$0xff]
    %v3486 = vld [vmem:[#allocation6 + $0x590] sm:$0xff]
    %v3487 = vld [vmem:[#allocation6 + $0x598] sm:$0xff]
    %v3488 = vld [vmem:[#allocation6 + $0x5a0] sm:$0xff]
    %v3489 = vld [vmem:[#allocation6 + $0x5a8] sm:$0xff]
    %v3490 = vld [vmem:[#allocation6 + $0x5b0] sm:$0xff]
    %v3491 = vld [vmem:[#allocation6 + $0x5b8] sm:$0xff]
    %v3492 = vld [vmem:[#allocation6 + $0x5c0] sm:$0xff]
    %v3493 = vld [vmem:[#allocation6 + $0x5c8] sm:$0xff]
    %v3494 = vld [vmem:[#allocation6 + $0x5d0] sm:$0xff]
    %v3495 = vld [vmem:[#allocation6 + $0x5d8] sm:$0xff]
    %v3496 = vld [vmem:[#allocation6 + $0x5e0] sm:$0xff]
    %v3497 = vld [vmem:[#allocation6 + $0x5e8] sm:$0xff]
    %v3498 = vld [vmem:[#allocation6 + $0x5f0] sm:$0xff]
    %v3499 = vld [vmem:[#allocation6 + $0x5f8] sm:$0xff]
    %v3500 = vld [vmem:[#allocation6 + $0x600] sm:$0xff]
    %v3501 = vld [vmem:[#allocation6 + $0x608] sm:$0xff]
    %v3502 = vld [vmem:[#allocation6 + $0x610] sm:$0xff]
    %v3503 = vld [vmem:[#allocation6 + $0x618] sm:$0xff]
    %v3504 = vld [vmem:[#allocation6 + $0x620] sm:$0xff]
    %v3505 = vld [vmem:[#allocation6 + $0x628] sm:$0xff]
    %v3506 = vld [vmem:[#allocation6 + $0x630] sm:$0xff]
    %v3507 = vld [vmem:[#allocation6 + $0x638] sm:$0xff]
    %v3508 = vld [vmem:[#allocation6 + $0x640] sm:$0xff]
    %v3509 = vld [vmem:[#allocation6 + $0x648] sm:$0xff]
    %v3510 = vld [vmem:[#allocation6 + $0x650] sm:$0xff]
    %v3511 = vld [vmem:[#allocation6 + $0x658] sm:$0xff]
    %v3512 = vld [vmem:[#allocation6 + $0x660] sm:$0xff]
    %v3513 = vld [vmem:[#allocation6 + $0x668] sm:$0xff]
    %v3514 = vld [vmem:[#allocation6 + $0x670] sm:$0xff]
    %v3515 = vld [vmem:[#allocation6 + $0x678] sm:$0xff]
    %v3516 = vld [vmem:[#allocation6 + $0x680] sm:$0xff]
    %v3517 = vld [vmem:[#allocation6 + $0x688] sm:$0xff]
    %v3518 = vld [vmem:[#allocation6 + $0x690] sm:$0xff]
    %v3519 = vld [vmem:[#allocation6 + $0x698] sm:$0xff]
    %v3520 = vld [vmem:[#allocation6 + $0x6a0] sm:$0xff]
    %v3521 = vld [vmem:[#allocation6 + $0x6a8] sm:$0xff]
    %v3522 = vld [vmem:[#allocation6 + $0x6b0] sm:$0xff]
    %v3523 = vld [vmem:[#allocation6 + $0x6b8] sm:$0xff]
    %v3524 = vld [vmem:[#allocation6 + $0x6c0] sm:$0xff]
    %v3525 = vld [vmem:[#allocation6 + $0x6c8] sm:$0xff]
    %v3526 = vld [vmem:[#allocation6 + $0x6d0] sm:$0xff]
    %v3527 = vld [vmem:[#allocation6 + $0x6d8] sm:$0xff]
    %v3528 = vld [vmem:[#allocation6 + $0x6e0] sm:$0xff]
    %v3529 = vld [vmem:[#allocation6 + $0x6e8] sm:$0xff]
    %v3530 = vld [vmem:[#allocation6 + $0x6f0] sm:$0xff]
    %v3531 = vld [vmem:[#allocation6 + $0x6f8] sm:$0xff]
    %v3532 = vld [vmem:[#allocation6 + $0x700] sm:$0xff]
    %v3533 = vld [vmem:[#allocation6 + $0x708] sm:$0xff]
    %v3534 = vld [vmem:[#allocation6 + $0x710] sm:$0xff]
    %v3535 = vld [vmem:[#allocation6 + $0x718] sm:$0xff]
    %v3536 = vld [vmem:[#allocation6 + $0x720] sm:$0xff]
    %v3537 = vld [vmem:[#allocation6 + $0x728] sm:$0xff]
    %v3538 = vld [vmem:[#allocation6 + $0x730] sm:$0xff]
    %v3539 = vld [vmem:[#allocation6 + $0x738] sm:$0xff]
    %v3540 = vld [vmem:[#allocation6 + $0x740] sm:$0xff]
    %v3541 = vld [vmem:[#allocation6 + $0x748] sm:$0xff]
    %v3542 = vld [vmem:[#allocation6 + $0x750] sm:$0xff]
    %v3543 = vld [vmem:[#allocation6 + $0x758] sm:$0xff]
    %v3544 = vld [vmem:[#allocation6 + $0x760] sm:$0xff]
    %v3545 = vld [vmem:[#allocation6 + $0x768] sm:$0xff]
    %v3546 = vld [vmem:[#allocation6 + $0x770] sm:$0xff]
    %v3547 = vld [vmem:[#allocation6 + $0x778] sm:$0xff]
    %v3548 = vld [vmem:[#allocation6 + $0x780] sm:$0xff]
    %v3549 = vld [vmem:[#allocation6 + $0x788] sm:$0xff]
    %v3550 = vld [vmem:[#allocation6 + $0x790] sm:$0xff]
    %v3551 = vld [vmem:[#allocation6 + $0x798] sm:$0xff]
    %v3552 = vld [vmem:[#allocation6 + $0x7a0] sm:$0xff]
    %v3553 = vld [vmem:[#allocation6 + $0x7a8] sm:$0xff]
    %v3554 = vld [vmem:[#allocation6 + $0x7b0] sm:$0xff]
    %v3555 = vld [vmem:[#allocation6 + $0x7b8] sm:$0xff]
    %v3556 = vld [vmem:[#allocation6 + $0x7c0] sm:$0xff]
    %v3557 = vld [vmem:[#allocation6 + $0x7c8] sm:$0xff]
    %v3558 = vld [vmem:[#allocation6 + $0x7d0] sm:$0xff]
    %v3559 = vld [vmem:[#allocation6 + $0x7d8] sm:$0xff]
    %v3560 = vld [vmem:[#allocation6 + $0x7e0] sm:$0xff]
    %v3561 = vld [vmem:[#allocation6 + $0x7e8] sm:$0xff]
    %v3562 = vld [vmem:[#allocation6 + $0x7f0] sm:$0xff]
    %v3563 = vld [vmem:[#allocation6 + $0x7f8] sm:$0xff]
    %v3564 = vld [vmem:[#allocation6 + $0x800] sm:$0xff]
    %v3565 = vld [vmem:[#allocation6 + $0x808] sm:$0xff]
    %v3566 = vld [vmem:[#allocation6 + $0x810] sm:$0xff]
    %v3567 = vld [vmem:[#allocation6 + $0x818] sm:$0xff]
    %v3568 = vld [vmem:[#allocation6 + $0x820] sm:$0xff]
    %v3569 = vld [vmem:[#allocation6 + $0x828] sm:$0xff]
    %v3570 = vld [vmem:[#allocation6 + $0x830] sm:$0xff]
    %v3571 = vld [vmem:[#allocation6 + $0x838] sm:$0xff]
    %v3572 = vld [vmem:[#allocation6 + $0x840] sm:$0xff]
    %v3573 = vld [vmem:[#allocation6 + $0x848] sm:$0xff]
    %v3574 = vld [vmem:[#allocation6 + $0x850] sm:$0xff]
    %v3575 = vld [vmem:[#allocation6 + $0x858] sm:$0xff]
    %v3576 = vld [vmem:[#allocation6 + $0x860] sm:$0xff]
    %v3577 = vld [vmem:[#allocation6 + $0x868] sm:$0xff]
    %v3578 = vld [vmem:[#allocation6 + $0x870] sm:$0xff]
    %v3579 = vld [vmem:[#allocation6 + $0x878] sm:$0xff]
    %v3580 = vld [vmem:[#allocation6 + $0x880] sm:$0xff]
    %v3581 = vld [vmem:[#allocation6 + $0x888] sm:$0xff]
    %v3582 = vld [vmem:[#allocation6 + $0x890] sm:$0xff]
    %v3583 = vld [vmem:[#allocation6 + $0x898] sm:$0xff]
    %v3584 = vld [vmem:[#allocation6 + $0x8a0] sm:$0xff]
    %v3585 = vld [vmem:[#allocation6 + $0x8a8] sm:$0xff]
    %v3586 = vld [vmem:[#allocation6 + $0x8b0] sm:$0xff]
    %v3587 = vld [vmem:[#allocation6 + $0x8b8] sm:$0xff]
    %v3588 = vld [vmem:[#allocation6 + $0x8c0] sm:$0xff]
    %v3589 = vld [vmem:[#allocation6 + $0x8c8] sm:$0xff]
    %v3590 = vld [vmem:[#allocation6 + $0x8d0] sm:$0xff]
    %v3591 = vld [vmem:[#allocation6 + $0x8d8] sm:$0xff]
    %v3592 = vld [vmem:[#allocation6 + $0x8e0] sm:$0xff]
    %v3593 = vld [vmem:[#allocation6 + $0x8e8] sm:$0xff]
    %v3594 = vld [vmem:[#allocation6 + $0x8f0] sm:$0xff]
    %v3595 = vld [vmem:[#allocation6 + $0x8f8] sm:$0xff]
    %v3596 = vld [vmem:[#allocation6 + $0x900] sm:$0xff]
    %v3597 = vld [vmem:[#allocation6 + $0x908] sm:$0xff]
    %v3598 = vld [vmem:[#allocation6 + $0x910] sm:$0xff]
    %v3599 = vld [vmem:[#allocation6 + $0x918] sm:$0xff]
    %v3600 = vld [vmem:[#allocation6 + $0x920] sm:$0xff]
    %v3601 = vld [vmem:[#allocation6 + $0x928] sm:$0xff]
    %v3602 = vld [vmem:[#allocation6 + $0x930] sm:$0xff]
    %v3603 = vld [vmem:[#allocation6 + $0x938] sm:$0xff]
    %v3604 = vld [vmem:[#allocation6 + $0x940] sm:$0xff]
    %v3605 = vld [vmem:[#allocation6 + $0x948] sm:$0xff]
    %v3606 = vld [vmem:[#allocation6 + $0x950] sm:$0xff]
    %v3607 = vld [vmem:[#allocation6 + $0x958] sm:$0xff]
    %v3608 = vld [vmem:[#allocation6 + $0x960] sm:$0xff]
    %v3609 = vld [vmem:[#allocation6 + $0x968] sm:$0xff]
    %v3610 = vld [vmem:[#allocation6 + $0x970] sm:$0xff]
    %v3611 = vld [vmem:[#allocation6 + $0x978] sm:$0xff]
    %v3612 = vld [vmem:[#allocation6 + $0x980] sm:$0xff]
    %v3613 = vld [vmem:[#allocation6 + $0x988] sm:$0xff]
    %v3614 = vld [vmem:[#allocation6 + $0x990] sm:$0xff]
    %v3615 = vld [vmem:[#allocation6 + $0x998] sm:$0xff]
    %v3616 = vld [vmem:[#allocation6 + $0x9a0] sm:$0xff]
    %v3617 = vld [vmem:[#allocation6 + $0x9a8] sm:$0xff]
    %v3618 = vld [vmem:[#allocation6 + $0x9b0] sm:$0xff]
    %v3619 = vld [vmem:[#allocation6 + $0x9b8] sm:$0xff]
    %v3620 = vld [vmem:[#allocation6 + $0x9c0] sm:$0xff]
    %v3621 = vld [vmem:[#allocation6 + $0x9c8] sm:$0xff]
    %v3622 = vld [vmem:[#allocation6 + $0x9d0] sm:$0xff]
    %v3623 = vld [vmem:[#allocation6 + $0x9d8] sm:$0xff]
    %v3624 = vld [vmem:[#allocation6 + $0x9e0] sm:$0xff]
    %v3625 = vld [vmem:[#allocation6 + $0x9e8] sm:$0xff]
    %v3626 = vld [vmem:[#allocation6 + $0x9f0] sm:$0xff]
    %v3627 = vld [vmem:[#allocation6 + $0x9f8] sm:$0xff]
    %v3628 = vld [vmem:[#allocation6 + $0xa00] sm:$0xff]
    %v3629 = vld [vmem:[#allocation6 + $0xa08] sm:$0xff]
    %v3630 = vld [vmem:[#allocation6 + $0xa10] sm:$0xff]
    %v3631 = vld [vmem:[#allocation6 + $0xa18] sm:$0xff]
    %v3632 = vld [vmem:[#allocation6 + $0xa20] sm:$0xff]
    %v3633 = vld [vmem:[#allocation6 + $0xa28] sm:$0xff]
    %v3634 = vld [vmem:[#allocation6 + $0xa30] sm:$0xff]
    %v3635 = vld [vmem:[#allocation6 + $0xa38] sm:$0xff]
    %v3636 = vld [vmem:[#allocation6 + $0xa40] sm:$0xff]
    %v3637 = vld [vmem:[#allocation6 + $0xa48] sm:$0xff]
    %v3638 = vld [vmem:[#allocation6 + $0xa50] sm:$0xff]
    %v3639 = vld [vmem:[#allocation6 + $0xa58] sm:$0xff]
    %v3640 = vld [vmem:[#allocation6 + $0xa60] sm:$0xff]
    %v3641 = vld [vmem:[#allocation6 + $0xa68] sm:$0xff]
    %v3642 = vld [vmem:[#allocation6 + $0xa70] sm:$0xff]
    %v3643 = vld [vmem:[#allocation6 + $0xa78] sm:$0xff]
    %v3644 = vld [vmem:[#allocation6 + $0xa80] sm:$0xff]
    %v3645 = vld [vmem:[#allocation6 + $0xa88] sm:$0xff]
    %v3646 = vld [vmem:[#allocation6 + $0xa90] sm:$0xff]
    %v3647 = vld [vmem:[#allocation6 + $0xa98] sm:$0xff]
    %v3648 = vld [vmem:[#allocation6 + $0xaa0] sm:$0xff]
    %v3649 = vld [vmem:[#allocation6 + $0xaa8] sm:$0xff]
    %v3650 = vld [vmem:[#allocation6 + $0xab0] sm:$0xff]
    %v3651 = vld [vmem:[#allocation6 + $0xab8] sm:$0xff]
    %v3652 = vld [vmem:[#allocation6 + $0xac0] sm:$0xff]
    %v3653 = vld [vmem:[#allocation6 + $0xac8] sm:$0xff]
    %v3654 = vld [vmem:[#allocation6 + $0xad0] sm:$0xff]
    %v3655 = vld [vmem:[#allocation6 + $0xad8] sm:$0xff]
    %v3656 = vld [vmem:[#allocation6 + $0xae0] sm:$0xff]
    %v3657 = vld [vmem:[#allocation6 + $0xae8] sm:$0xff]
    %v3658 = vld [vmem:[#allocation6 + $0xaf0] sm:$0xff]
    %v3659 = vld [vmem:[#allocation6 + $0xaf8] sm:$0xff]
    %v3660 = vld [vmem:[#allocation6 + $0xb00] sm:$0xff]
    %v3661 = vld [vmem:[#allocation6 + $0xb08] sm:$0xff]
    %v3662 = vld [vmem:[#allocation6 + $0xb10] sm:$0xff]
    %v3663 = vld [vmem:[#allocation6 + $0xb18] sm:$0xff]
    %v3664 = vld [vmem:[#allocation6 + $0xb20] sm:$0xff]
    %v3665 = vld [vmem:[#allocation6 + $0xb28] sm:$0xff]
    %v3666 = vld [vmem:[#allocation6 + $0xb30] sm:$0xff]
    %v3667 = vld [vmem:[#allocation6 + $0xb38] sm:$0xff]
    %v3668 = vld [vmem:[#allocation6 + $0xb40] sm:$0xff]
    %v3669 = vld [vmem:[#allocation6 + $0xb48] sm:$0xff]
    %v3670 = vld [vmem:[#allocation6 + $0xb50] sm:$0xff]
    %v3671 = vld [vmem:[#allocation6 + $0xb58] sm:$0xff]
    %v3672 = vld [vmem:[#allocation6 + $0xb60] sm:$0xff]
    %v3673 = vld [vmem:[#allocation6 + $0xb68] sm:$0xff]
    %v3674 = vld [vmem:[#allocation6 + $0xb70] sm:$0xff]
    %v3675 = vld [vmem:[#allocation6 + $0xb78] sm:$0xff]
    %v3676 = vld [vmem:[#allocation6 + $0xb80] sm:$0xff]
    %v3677 = vld [vmem:[#allocation6 + $0xb88] sm:$0xff]
    %v3678 = vld [vmem:[#allocation6 + $0xb90] sm:$0xff]
    %v3679 = vld [vmem:[#allocation6 + $0xb98] sm:$0xff]
    %v3680 = vld [vmem:[#allocation6 + $0xba0] sm:$0xff]
    %v3681 = vld [vmem:[#allocation6 + $0xba8] sm:$0xff]
    %v3682 = vld [vmem:[#allocation6 + $0xbb0] sm:$0xff]
    %v3683 = vld [vmem:[#allocation6 + $0xbb8] sm:$0xff]
    %v3684 = vld [vmem:[#allocation6 + $0xbc0] sm:$0xff]
    %v3685 = vld [vmem:[#allocation6 + $0xbc8] sm:$0xff]
    %v3686 = vld [vmem:[#allocation6 + $0xbd0] sm:$0xff]
    %v3687 = vld [vmem:[#allocation6 + $0xbd8] sm:$0xff]
    %v3688 = vld [vmem:[#allocation6 + $0xbe0] sm:$0xff]
    %v3689 = vld [vmem:[#allocation6 + $0xbe8] sm:$0xff]
    %v3690 = vld [vmem:[#allocation6 + $0xbf0] sm:$0xff]
    %v3691 = vld [vmem:[#allocation6 + $0xbf8] sm:$0xff]
    %v3692 = vld [vmem:[#allocation6 + $0xc00] sm:$0xff]
    %v3693 = vld [vmem:[#allocation6 + $0xc08] sm:$0xff]
    %v3694 = vld [vmem:[#allocation6 + $0xc10] sm:$0xff]
    %v3695 = vld [vmem:[#allocation6 + $0xc18] sm:$0xff]
    %v3696 = vld [vmem:[#allocation6 + $0xc20] sm:$0xff]
    %v3697 = vld [vmem:[#allocation6 + $0xc28] sm:$0xff]
    %v3698 = vld [vmem:[#allocation6 + $0xc30] sm:$0xff]
    %v3699 = vld [vmem:[#allocation6 + $0xc38] sm:$0xff]
    %v3700 = vld [vmem:[#allocation6 + $0xc40] sm:$0xff]
    %v3701 = vld [vmem:[#allocation6 + $0xc48] sm:$0xff]
    %v3702 = vld [vmem:[#allocation6 + $0xc50] sm:$0xff]
    %v3703 = vld [vmem:[#allocation6 + $0xc58] sm:$0xff]
    %v3704 = vld [vmem:[#allocation6 + $0xc60] sm:$0xff]
    %v3705 = vld [vmem:[#allocation6 + $0xc68] sm:$0xff]
    %v3706 = vld [vmem:[#allocation6 + $0xc70] sm:$0xff]
    %v3707 = vld [vmem:[#allocation6 + $0xc78] sm:$0xff]
    %v3708 = vld [vmem:[#allocation6 + $0xc80] sm:$0xff]
    %v3709 = vld [vmem:[#allocation6 + $0xc88] sm:$0xff]
    %v3710 = vld [vmem:[#allocation6 + $0xc90] sm:$0xff]
    %v3711 = vld [vmem:[#allocation6 + $0xc98] sm:$0xff]
    %v3712 = vld [vmem:[#allocation6 + $0xca0] sm:$0xff]
    %v3713 = vld [vmem:[#allocation6 + $0xca8] sm:$0xff]
    %v3714 = vld [vmem:[#allocation6 + $0xcb0] sm:$0xff]
    %v3715 = vld [vmem:[#allocation6 + $0xcb8] sm:$0xff]
    %v3716 = vld [vmem:[#allocation6 + $0xcc0] sm:$0xff]
    %v3717 = vld [vmem:[#allocation6 + $0xcc8] sm:$0xff]
    %v3718 = vld [vmem:[#allocation6 + $0xcd0] sm:$0xff]
    %v3719 = vld [vmem:[#allocation6 + $0xcd8] sm:$0xff]
    %v3720 = vld [vmem:[#allocation6 + $0xce0] sm:$0xff]
    %v3721 = vld [vmem:[#allocation6 + $0xce8] sm:$0xff]
    %v3722 = vld [vmem:[#allocation6 + $0xcf0] sm:$0xff]
    %v3723 = vld [vmem:[#allocation6 + $0xcf8] sm:$0xff]
    %v3724 = vld [vmem:[#allocation6 + $0xd00] sm:$0xff]
    %v3725 = vld [vmem:[#allocation6 + $0xd08] sm:$0xff]
    %v3726 = vld [vmem:[#allocation6 + $0xd10] sm:$0xff]
    %v3727 = vld [vmem:[#allocation6 + $0xd18] sm:$0xff]
    %v3728 = vld [vmem:[#allocation6 + $0xd20] sm:$0xff]
    %v3729 = vld [vmem:[#allocation6 + $0xd28] sm:$0xff]
    %v3730 = vld [vmem:[#allocation6 + $0xd30] sm:$0xff]
    %v3731 = vld [vmem:[#allocation6 + $0xd38] sm:$0xff]
    %v3732 = vld [vmem:[#allocation6 + $0xd40] sm:$0xff]
    %v3733 = vld [vmem:[#allocation6 + $0xd48] sm:$0xff]
    %v3734 = vld [vmem:[#allocation6 + $0xd50] sm:$0xff]
    %v3735 = vld [vmem:[#allocation6 + $0xd58] sm:$0xff]
    %v3736 = vld [vmem:[#allocation6 + $0xd60] sm:$0xff]
    %v3737 = vld [vmem:[#allocation6 + $0xd68] sm:$0xff]
    %v3738 = vld [vmem:[#allocation6 + $0xd70] sm:$0xff]
    %v3739 = vld [vmem:[#allocation6 + $0xd78] sm:$0xff]
    %v3740 = vld [vmem:[#allocation6 + $0xd80] sm:$0xff]
    %v3741 = vld [vmem:[#allocation6 + $0xd88] sm:$0xff]
    %v3742 = vld [vmem:[#allocation6 + $0xd90] sm:$0xff]
    %v3743 = vld [vmem:[#allocation6 + $0xd98] sm:$0xff]
    %v3744 = vld [vmem:[#allocation6 + $0xda0] sm:$0xff]
    %v3745 = vld [vmem:[#allocation6 + $0xda8] sm:$0xff]
    %v3746 = vld [vmem:[#allocation6 + $0xdb0] sm:$0xff]
    %v3747 = vld [vmem:[#allocation6 + $0xdb8] sm:$0xff]
    %v3748 = vld [vmem:[#allocation6 + $0xdc0] sm:$0xff]
    %v3749 = vld [vmem:[#allocation6 + $0xdc8] sm:$0xff]
    %v3750 = vld [vmem:[#allocation6 + $0xdd0] sm:$0xff]
    %v3751 = vld [vmem:[#allocation6 + $0xdd8] sm:$0xff]
    %v3752 = vld [vmem:[#allocation6 + $0xde0] sm:$0xff]
    %v3753 = vld [vmem:[#allocation6 + $0xde8] sm:$0xff]
    %v3754 = vld [vmem:[#allocation6 + $0xdf0] sm:$0xff]
    %v3755 = vld [vmem:[#allocation6 + $0xdf8] sm:$0xff]
    %v3756 = vld [vmem:[#allocation6 + $0xe00] sm:$0xff]
    %v3757 = vld [vmem:[#allocation6 + $0xe08] sm:$0xff]
    %v3758 = vld [vmem:[#allocation6 + $0xe10] sm:$0xff]
    %v3759 = vld [vmem:[#allocation6 + $0xe18] sm:$0xff]
    %v3760 = vld [vmem:[#allocation6 + $0xe20] sm:$0xff]
    %v3761 = vld [vmem:[#allocation6 + $0xe28] sm:$0xff]
    %v3762 = vld [vmem:[#allocation6 + $0xe30] sm:$0xff]
    %v3763 = vld [vmem:[#allocation6 + $0xe38] sm:$0xff]
    %v3764 = vld [vmem:[#allocation6 + $0xe40] sm:$0xff]
    %v3765 = vld [vmem:[#allocation6 + $0xe48] sm:$0xff]
    %v3766 = vld [vmem:[#allocation6 + $0xe50] sm:$0xff]
    %v3767 = vld [vmem:[#allocation6 + $0xe58] sm:$0xff]
    %v3768 = vld [vmem:[#allocation6 + $0xe60] sm:$0xff]
    %v3769 = vld [vmem:[#allocation6 + $0xe68] sm:$0xff]
    %v3770 = vld [vmem:[#allocation6 + $0xe70] sm:$0xff]
    %v3771 = vld [vmem:[#allocation6 + $0xe78] sm:$0xff]
    %v3772 = vld [vmem:[#allocation6 + $0xe80] sm:$0xff]
    %v3773 = vld [vmem:[#allocation6 + $0xe88] sm:$0xff]
    %v3774 = vld [vmem:[#allocation6 + $0xe90] sm:$0xff]
    %v3775 = vld [vmem:[#allocation6 + $0xe98] sm:$0xff]
    %v3776 = vld [vmem:[#allocation6 + $0xea0] sm:$0xff]
    %v3777 = vld [vmem:[#allocation6 + $0xea8] sm:$0xff]
    %v3778 = vld [vmem:[#allocation6 + $0xeb0] sm:$0xff]
    %v3779 = vld [vmem:[#allocation6 + $0xeb8] sm:$0xff]
    %v3780 = vld [vmem:[#allocation6 + $0xec0] sm:$0xff]
    %v3781 = vld [vmem:[#allocation6 + $0xec8] sm:$0xff]
    %v3782 = vld [vmem:[#allocation6 + $0xed0] sm:$0xff]
    %v3783 = vld [vmem:[#allocation6 + $0xed8] sm:$0xff]
    %v3784 = vld [vmem:[#allocation6 + $0xee0] sm:$0xff]
    %v3785 = vld [vmem:[#allocation6 + $0xee8] sm:$0xff]
    %v3786 = vld [vmem:[#allocation6 + $0xef0] sm:$0xff]
    %v3787 = vld [vmem:[#allocation6 + $0xef8] sm:$0xff]
    %v4268 = vunpack.c.l.b16 %v3308
    %v4269 = vunpack.c.h.b16 %v3308
    %v4270 = vunpack.c.l.b16 %v3309
    %v4271 = vunpack.c.h.b16 %v3309
    %v4272 = vunpack.c.l.b16 %v3310
    %v4273 = vunpack.c.h.b16 %v3310
    %v4274 = vunpack.c.l.b16 %v3311
    %v4275 = vunpack.c.h.b16 %v3311
    %v4276 = vunpack.c.l.b16 %v3312
    %v4277 = vunpack.c.h.b16 %v3312
    %v4278 = vunpack.c.l.b16 %v3313
    %v4279 = vunpack.c.h.b16 %v3313
    %v4280 = vunpack.c.l.b16 %v3314
    %v4281 = vunpack.c.h.b16 %v3314
    %v4282 = vunpack.c.l.b16 %v3315
    %v4283 = vunpack.c.h.b16 %v3315
    %v4284 = vunpack.c.l.b16 %v3316
    %v4285 = vunpack.c.h.b16 %v3316
    %v4286 = vunpack.c.l.b16 %v3317
    %v4287 = vunpack.c.h.b16 %v3317
    %v4288 = vunpack.c.l.b16 %v3318
    %v4289 = vunpack.c.h.b16 %v3318
    %v4290 = vunpack.c.l.b16 %v3319
    %v4291 = vunpack.c.h.b16 %v3319
    %v4292 = vunpack.c.l.b16 %v3320
    %v4293 = vunpack.c.h.b16 %v3320
    %v4294 = vunpack.c.l.b16 %v3321
    %v4295 = vunpack.c.h.b16 %v3321
    %v4296 = vunpack.c.l.b16 %v3322
    %v4297 = vunpack.c.h.b16 %v3322
    %v4298 = vunpack.c.l.b16 %v3323
    %v4299 = vunpack.c.h.b16 %v3323
    %v4300 = vunpack.c.l.b16 %v3324
    %v4301 = vunpack.c.h.b16 %v3324
    %v4302 = vunpack.c.l.b16 %v3325
    %v4303 = vunpack.c.h.b16 %v3325
    %v4304 = vunpack.c.l.b16 %v3326
    %v4305 = vunpack.c.h.b16 %v3326
    %v4306 = vunpack.c.l.b16 %v3327
    %v4307 = vunpack.c.h.b16 %v3327
    %v4308 = vunpack.c.l.b16 %v3328
    %v4309 = vunpack.c.h.b16 %v3328
    %v4310 = vunpack.c.l.b16 %v3329
    %v4311 = vunpack.c.h.b16 %v3329
    %v4312 = vunpack.c.l.b16 %v3330
    %v4313 = vunpack.c.h.b16 %v3330
    %v4314 = vunpack.c.l.b16 %v3331
    %v4315 = vunpack.c.h.b16 %v3331
    %v4316 = vunpack.c.l.b16 %v3332
    %v4317 = vunpack.c.h.b16 %v3332
    %v4318 = vunpack.c.l.b16 %v3333
    %v4319 = vunpack.c.h.b16 %v3333
    %v4320 = vunpack.c.l.b16 %v3334
    %v4321 = vunpack.c.h.b16 %v3334
    %v4322 = vunpack.c.l.b16 %v3335
    %v4323 = vunpack.c.h.b16 %v3335
    %v4324 = vunpack.c.l.b16 %v3336
    %v4325 = vunpack.c.h.b16 %v3336
    %v4326 = vunpack.c.l.b16 %v3337
    %v4327 = vunpack.c.h.b16 %v3337
    %v4328 = vunpack.c.l.b16 %v3338
    %v4329 = vunpack.c.h.b16 %v3338
    %v4330 = vunpack.c.l.b16 %v3339
    %v4331 = vunpack.c.h.b16 %v3339
    %v4332 = vunpack.c.l.b16 %v3340
    %v4333 = vunpack.c.h.b16 %v3340
    %v4334 = vunpack.c.l.b16 %v3341
    %v4335 = vunpack.c.h.b16 %v3341
    %v4336 = vunpack.c.l.b16 %v3342
    %v4337 = vunpack.c.h.b16 %v3342
    %v4338 = vunpack.c.l.b16 %v3343
    %v4339 = vunpack.c.h.b16 %v3343
    %v4340 = vunpack.c.l.b16 %v3344
    %v4341 = vunpack.c.h.b16 %v3344
    %v4342 = vunpack.c.l.b16 %v3345
    %v4343 = vunpack.c.h.b16 %v3345
    %v4344 = vunpack.c.l.b16 %v3346
    %v4345 = vunpack.c.h.b16 %v3346
    %v4346 = vunpack.c.l.b16 %v3347
    %v4347 = vunpack.c.h.b16 %v3347
    %v4348 = vunpack.c.l.b16 %v3348
    %v4349 = vunpack.c.h.b16 %v3348
    %v4350 = vunpack.c.l.b16 %v3349
    %v4351 = vunpack.c.h.b16 %v3349
    %v4352 = vunpack.c.l.b16 %v3350
    %v4353 = vunpack.c.h.b16 %v3350
    %v4354 = vunpack.c.l.b16 %v3351
    %v4355 = vunpack.c.h.b16 %v3351
    %v4356 = vunpack.c.l.b16 %v3352
    %v4357 = vunpack.c.h.b16 %v3352
    %v4358 = vunpack.c.l.b16 %v3353
    %v4359 = vunpack.c.h.b16 %v3353
    %v4360 = vunpack.c.l.b16 %v3354
    %v4361 = vunpack.c.h.b16 %v3354
    %v4362 = vunpack.c.l.b16 %v3355
    %v4363 = vunpack.c.h.b16 %v3355
    %v4364 = vunpack.c.l.b16 %v3356
    %v4365 = vunpack.c.h.b16 %v3356
    %v4366 = vunpack.c.l.b16 %v3357
    %v4367 = vunpack.c.h.b16 %v3357
    %v4368 = vunpack.c.l.b16 %v3358
    %v4369 = vunpack.c.h.b16 %v3358
    %v4370 = vunpack.c.l.b16 %v3359
    %v4371 = vunpack.c.h.b16 %v3359
    %v4372 = vunpack.c.l.b16 %v3360
    %v4373 = vunpack.c.h.b16 %v3360
    %v4374 = vunpack.c.l.b16 %v3361
    %v4375 = vunpack.c.h.b16 %v3361
    %v4376 = vunpack.c.l.b16 %v3362
    %v4377 = vunpack.c.h.b16 %v3362
    %v4378 = vunpack.c.l.b16 %v3363
    %v4379 = vunpack.c.h.b16 %v3363
    %v4380 = vunpack.c.l.b16 %v3364
    %v4381 = vunpack.c.h.b16 %v3364
    %v4382 = vunpack.c.l.b16 %v3365
    %v4383 = vunpack.c.h.b16 %v3365
    %v4384 = vunpack.c.l.b16 %v3366
    %v4385 = vunpack.c.h.b16 %v3366
    %v4386 = vunpack.c.l.b16 %v3367
    %v4387 = vunpack.c.h.b16 %v3367
    %v4388 = vunpack.c.l.b16 %v3368
    %v4389 = vunpack.c.h.b16 %v3368
    %v4390 = vunpack.c.l.b16 %v3369
    %v4391 = vunpack.c.h.b16 %v3369
    %v4392 = vunpack.c.l.b16 %v3370
    %v4393 = vunpack.c.h.b16 %v3370
    %v4394 = vunpack.c.l.b16 %v3371
    %v4395 = vunpack.c.h.b16 %v3371
    %v4396 = vunpack.c.l.b16 %v3372
    %v4397 = vunpack.c.h.b16 %v3372
    %v4398 = vunpack.c.l.b16 %v3373
    %v4399 = vunpack.c.h.b16 %v3373
    %v4400 = vunpack.c.l.b16 %v3374
    %v4401 = vunpack.c.h.b16 %v3374
    %v4402 = vunpack.c.l.b16 %v3375
    %v4403 = vunpack.c.h.b16 %v3375
    %v4404 = vunpack.c.l.b16 %v3376
    %v4405 = vunpack.c.h.b16 %v3376
    %v4406 = vunpack.c.l.b16 %v3377
    %v4407 = vunpack.c.h.b16 %v3377
    %v4408 = vunpack.c.l.b16 %v3378
    %v4409 = vunpack.c.h.b16 %v3378
    %v4410 = vunpack.c.l.b16 %v3379
    %v4411 = vunpack.c.h.b16 %v3379
    %v4412 = vunpack.c.l.b16 %v3380
    %v4413 = vunpack.c.h.b16 %v3380
    %v4414 = vunpack.c.l.b16 %v3381
    %v4415 = vunpack.c.h.b16 %v3381
    %v4416 = vunpack.c.l.b16 %v3382
    %v4417 = vunpack.c.h.b16 %v3382
    %v4418 = vunpack.c.l.b16 %v3383
    %v4419 = vunpack.c.h.b16 %v3383
    %v4420 = vunpack.c.l.b16 %v3384
    %v4421 = vunpack.c.h.b16 %v3384
    %v4422 = vunpack.c.l.b16 %v3385
    %v4423 = vunpack.c.h.b16 %v3385
    %v4424 = vunpack.c.l.b16 %v3386
    %v4425 = vunpack.c.h.b16 %v3386
    %v4426 = vunpack.c.l.b16 %v3387
    %v4427 = vunpack.c.h.b16 %v3387
    %v4428 = vunpack.c.l.b16 %v3388
    %v4429 = vunpack.c.h.b16 %v3388
    %v4430 = vunpack.c.l.b16 %v3389
    %v4431 = vunpack.c.h.b16 %v3389
    %v4432 = vunpack.c.l.b16 %v3390
    %v4433 = vunpack.c.h.b16 %v3390
    %v4434 = vunpack.c.l.b16 %v3391
    %v4435 = vunpack.c.h.b16 %v3391
    %v4436 = vunpack.c.l.b16 %v3392
    %v4437 = vunpack.c.h.b16 %v3392
    %v4438 = vunpack.c.l.b16 %v3393
    %v4439 = vunpack.c.h.b16 %v3393
    %v4440 = vunpack.c.l.b16 %v3394
    %v4441 = vunpack.c.h.b16 %v3394
    %v4442 = vunpack.c.l.b16 %v3395
    %v4443 = vunpack.c.h.b16 %v3395
    %v4444 = vunpack.c.l.b16 %v3396
    %v4445 = vunpack.c.h.b16 %v3396
    %v4446 = vunpack.c.l.b16 %v3397
    %v4447 = vunpack.c.h.b16 %v3397
    %v4448 = vunpack.c.l.b16 %v3398
    %v4449 = vunpack.c.h.b16 %v3398
    %v4450 = vunpack.c.l.b16 %v3399
    %v4451 = vunpack.c.h.b16 %v3399
    %v4452 = vunpack.c.l.b16 %v3400
    %v4453 = vunpack.c.h.b16 %v3400
    %v4454 = vunpack.c.l.b16 %v3401
    %v4455 = vunpack.c.h.b16 %v3401
    %v4456 = vunpack.c.l.b16 %v3402
    %v4457 = vunpack.c.h.b16 %v3402
    %v4458 = vunpack.c.l.b16 %v3403
    %v4459 = vunpack.c.h.b16 %v3403
    %v4460 = vunpack.c.l.b16 %v3404
    %v4461 = vunpack.c.h.b16 %v3404
    %v4462 = vunpack.c.l.b16 %v3405
    %v4463 = vunpack.c.h.b16 %v3405
    %v4464 = vunpack.c.l.b16 %v3406
    %v4465 = vunpack.c.h.b16 %v3406
    %v4466 = vunpack.c.l.b16 %v3407
    %v4467 = vunpack.c.h.b16 %v3407
    %v4468 = vunpack.c.l.b16 %v3408
    %v4469 = vunpack.c.h.b16 %v3408
    %v4470 = vunpack.c.l.b16 %v3409
    %v4471 = vunpack.c.h.b16 %v3409
    %v4472 = vunpack.c.l.b16 %v3410
    %v4473 = vunpack.c.h.b16 %v3410
    %v4474 = vunpack.c.l.b16 %v3411
    %v4475 = vunpack.c.h.b16 %v3411
    %v4476 = vunpack.c.l.b16 %v3412
    %v4477 = vunpack.c.h.b16 %v3412
    %v4478 = vunpack.c.l.b16 %v3413
    %v4479 = vunpack.c.h.b16 %v3413
    %v4480 = vunpack.c.l.b16 %v3414
    %v4481 = vunpack.c.h.b16 %v3414
    %v4482 = vunpack.c.l.b16 %v3415
    %v4483 = vunpack.c.h.b16 %v3415
    %v4484 = vunpack.c.l.b16 %v3416
    %v4485 = vunpack.c.h.b16 %v3416
    %v4486 = vunpack.c.l.b16 %v3417
    %v4487 = vunpack.c.h.b16 %v3417
    %v4488 = vunpack.c.l.b16 %v3418
    %v4489 = vunpack.c.h.b16 %v3418
    %v4490 = vunpack.c.l.b16 %v3419
    %v4491 = vunpack.c.h.b16 %v3419
    %v4492 = vunpack.c.l.b16 %v3420
    %v4493 = vunpack.c.h.b16 %v3420
    %v4494 = vunpack.c.l.b16 %v3421
    %v4495 = vunpack.c.h.b16 %v3421
    %v4496 = vunpack.c.l.b16 %v3422
    %v4497 = vunpack.c.h.b16 %v3422
    %v4498 = vunpack.c.l.b16 %v3423
    %v4499 = vunpack.c.h.b16 %v3423
    %v4500 = vunpack.c.l.b16 %v3424
    %v4501 = vunpack.c.h.b16 %v3424
    %v4502 = vunpack.c.l.b16 %v3425
    %v4503 = vunpack.c.h.b16 %v3425
    %v4504 = vunpack.c.l.b16 %v3426
    %v4505 = vunpack.c.h.b16 %v3426
    %v4506 = vunpack.c.l.b16 %v3427
    %v4507 = vunpack.c.h.b16 %v3427
    %v4508 = vunpack.c.l.b16 %v3428
    %v4509 = vunpack.c.h.b16 %v3428
    %v4510 = vunpack.c.l.b16 %v3429
    %v4511 = vunpack.c.h.b16 %v3429
    %v4512 = vunpack.c.l.b16 %v3430
    %v4513 = vunpack.c.h.b16 %v3430
    %v4514 = vunpack.c.l.b16 %v3431
    %v4515 = vunpack.c.h.b16 %v3431
    %v4516 = vunpack.c.l.b16 %v3432
    %v4517 = vunpack.c.h.b16 %v3432
    %v4518 = vunpack.c.l.b16 %v3433
    %v4519 = vunpack.c.h.b16 %v3433
    %v4520 = vunpack.c.l.b16 %v3434
    %v4521 = vunpack.c.h.b16 %v3434
    %v4522 = vunpack.c.l.b16 %v3435
    %v4523 = vunpack.c.h.b16 %v3435
    %v4524 = vunpack.c.l.b16 %v3436
    %v4525 = vunpack.c.h.b16 %v3436
    %v4526 = vunpack.c.l.b16 %v3437
    %v4527 = vunpack.c.h.b16 %v3437
    %v4528 = vunpack.c.l.b16 %v3438
    %v4529 = vunpack.c.h.b16 %v3438
    %v4530 = vunpack.c.l.b16 %v3439
    %v4531 = vunpack.c.h.b16 %v3439
    %v4532 = vunpack.c.l.b16 %v3440
    %v4533 = vunpack.c.h.b16 %v3440
    %v4534 = vunpack.c.l.b16 %v3441
    %v4535 = vunpack.c.h.b16 %v3441
    %v4536 = vunpack.c.l.b16 %v3442
    %v4537 = vunpack.c.h.b16 %v3442
    %v4538 = vunpack.c.l.b16 %v3443
    %v4539 = vunpack.c.h.b16 %v3443
    %v4540 = vunpack.c.l.b16 %v3444
    %v4541 = vunpack.c.h.b16 %v3444
    %v4542 = vunpack.c.l.b16 %v3445
    %v4543 = vunpack.c.h.b16 %v3445
    %v4544 = vunpack.c.l.b16 %v3446
    %v4545 = vunpack.c.h.b16 %v3446
    %v4546 = vunpack.c.l.b16 %v3447
    %v4547 = vunpack.c.h.b16 %v3447
    %v4548 = vunpack.c.l.b16 %v3448
    %v4549 = vunpack.c.h.b16 %v3448
    %v4550 = vunpack.c.l.b16 %v3449
    %v4551 = vunpack.c.h.b16 %v3449
    %v4552 = vunpack.c.l.b16 %v3450
    %v4553 = vunpack.c.h.b16 %v3450
    %v4554 = vunpack.c.l.b16 %v3451
    %v4555 = vunpack.c.h.b16 %v3451
    %v4556 = vunpack.c.l.b16 %v3452
    %v4557 = vunpack.c.h.b16 %v3452
    %v4558 = vunpack.c.l.b16 %v3453
    %v4559 = vunpack.c.h.b16 %v3453
    %v4560 = vunpack.c.l.b16 %v3454
    %v4561 = vunpack.c.h.b16 %v3454
    %v4562 = vunpack.c.l.b16 %v3455
    %v4563 = vunpack.c.h.b16 %v3455
    %v4564 = vunpack.c.l.b16 %v3456
    %v4565 = vunpack.c.h.b16 %v3456
    %v4566 = vunpack.c.l.b16 %v3457
    %v4567 = vunpack.c.h.b16 %v3457
    %v4568 = vunpack.c.l.b16 %v3458
    %v4569 = vunpack.c.h.b16 %v3458
    %v4570 = vunpack.c.l.b16 %v3459
    %v4571 = vunpack.c.h.b16 %v3459
    %v4572 = vunpack.c.l.b16 %v3460
    %v4573 = vunpack.c.h.b16 %v3460
    %v4574 = vunpack.c.l.b16 %v3461
    %v4575 = vunpack.c.h.b16 %v3461
    %v4576 = vunpack.c.l.b16 %v3462
    %v4577 = vunpack.c.h.b16 %v3462
    %v4578 = vunpack.c.l.b16 %v3463
    %v4579 = vunpack.c.h.b16 %v3463
    %v4580 = vunpack.c.l.b16 %v3464
    %v4581 = vunpack.c.h.b16 %v3464
    %v4582 = vunpack.c.l.b16 %v3465
    %v4583 = vunpack.c.h.b16 %v3465
    %v4584 = vunpack.c.l.b16 %v3466
    %v4585 = vunpack.c.h.b16 %v3466
    %v4586 = vunpack.c.l.b16 %v3467
    %v4587 = vunpack.c.h.b16 %v3467
    %v4588 = vunpack.c.l.b16 %v3468
    %v4589 = vunpack.c.h.b16 %v3468
    %v4590 = vunpack.c.l.b16 %v3469
    %v4591 = vunpack.c.h.b16 %v3469
    %v4592 = vunpack.c.l.b16 %v3470
    %v4593 = vunpack.c.h.b16 %v3470
    %v4594 = vunpack.c.l.b16 %v3471
    %v4595 = vunpack.c.h.b16 %v3471
    %v4596 = vunpack.c.l.b16 %v3472
    %v4597 = vunpack.c.h.b16 %v3472
    %v4598 = vunpack.c.l.b16 %v3473
    %v4599 = vunpack.c.h.b16 %v3473
    %v4600 = vunpack.c.l.b16 %v3474
    %v4601 = vunpack.c.h.b16 %v3474
    %v4602 = vunpack.c.l.b16 %v3475
    %v4603 = vunpack.c.h.b16 %v3475
    %v4604 = vunpack.c.l.b16 %v3476
    %v4605 = vunpack.c.h.b16 %v3476
    %v4606 = vunpack.c.l.b16 %v3477
    %v4607 = vunpack.c.h.b16 %v3477
    %v4608 = vunpack.c.l.b16 %v3478
    %v4609 = vunpack.c.h.b16 %v3478
    %v4610 = vunpack.c.l.b16 %v3479
    %v4611 = vunpack.c.h.b16 %v3479
    %v4612 = vunpack.c.l.b16 %v3480
    %v4613 = vunpack.c.h.b16 %v3480
    %v4614 = vunpack.c.l.b16 %v3481
    %v4615 = vunpack.c.h.b16 %v3481
    %v4616 = vunpack.c.l.b16 %v3482
    %v4617 = vunpack.c.h.b16 %v3482
    %v4618 = vunpack.c.l.b16 %v3483
    %v4619 = vunpack.c.h.b16 %v3483
    %v4620 = vunpack.c.l.b16 %v3484
    %v4621 = vunpack.c.h.b16 %v3484
    %v4622 = vunpack.c.l.b16 %v3485
    %v4623 = vunpack.c.h.b16 %v3485
    %v4624 = vunpack.c.l.b16 %v3486
    %v4625 = vunpack.c.h.b16 %v3486
    %v4626 = vunpack.c.l.b16 %v3487
    %v4627 = vunpack.c.h.b16 %v3487
    %v4628 = vunpack.c.l.b16 %v3488
    %v4629 = vunpack.c.h.b16 %v3488
    %v4630 = vunpack.c.l.b16 %v3489
    %v4631 = vunpack.c.h.b16 %v3489
    %v4632 = vunpack.c.l.b16 %v3490
    %v4633 = vunpack.c.h.b16 %v3490
    %v4634 = vunpack.c.l.b16 %v3491
    %v4635 = vunpack.c.h.b16 %v3491
    %v4636 = vunpack.c.l.b16 %v3492
    %v4637 = vunpack.c.h.b16 %v3492
    %v4638 = vunpack.c.l.b16 %v3493
    %v4639 = vunpack.c.h.b16 %v3493
    %v4640 = vunpack.c.l.b16 %v3494
    %v4641 = vunpack.c.h.b16 %v3494
    %v4642 = vunpack.c.l.b16 %v3495
    %v4643 = vunpack.c.h.b16 %v3495
    %v4644 = vunpack.c.l.b16 %v3496
    %v4645 = vunpack.c.h.b16 %v3496
    %v4646 = vunpack.c.l.b16 %v3497
    %v4647 = vunpack.c.h.b16 %v3497
    %v4648 = vunpack.c.l.b16 %v3498
    %v4649 = vunpack.c.h.b16 %v3498
    %v4650 = vunpack.c.l.b16 %v3499
    %v4651 = vunpack.c.h.b16 %v3499
    %v4652 = vunpack.c.l.b16 %v3500
    %v4653 = vunpack.c.h.b16 %v3500
    %v4654 = vunpack.c.l.b16 %v3501
    %v4655 = vunpack.c.h.b16 %v3501
    %v4656 = vunpack.c.l.b16 %v3502
    %v4657 = vunpack.c.h.b16 %v3502
    %v4658 = vunpack.c.l.b16 %v3503
    %v4659 = vunpack.c.h.b16 %v3503
    %v4660 = vunpack.c.l.b16 %v3504
    %v4661 = vunpack.c.h.b16 %v3504
    %v4662 = vunpack.c.l.b16 %v3505
    %v4663 = vunpack.c.h.b16 %v3505
    %v4664 = vunpack.c.l.b16 %v3506
    %v4665 = vunpack.c.h.b16 %v3506
    %v4666 = vunpack.c.l.b16 %v3507
    %v4667 = vunpack.c.h.b16 %v3507
    %v4668 = vunpack.c.l.b16 %v3508
    %v4669 = vunpack.c.h.b16 %v3508
    %v4670 = vunpack.c.l.b16 %v3509
    %v4671 = vunpack.c.h.b16 %v3509
    %v4672 = vunpack.c.l.b16 %v3510
    %v4673 = vunpack.c.h.b16 %v3510
    %v4674 = vunpack.c.l.b16 %v3511
    %v4675 = vunpack.c.h.b16 %v3511
    %v4676 = vunpack.c.l.b16 %v3512
    %v4677 = vunpack.c.h.b16 %v3512
    %v4678 = vunpack.c.l.b16 %v3513
    %v4679 = vunpack.c.h.b16 %v3513
    %v4680 = vunpack.c.l.b16 %v3514
    %v4681 = vunpack.c.h.b16 %v3514
    %v4682 = vunpack.c.l.b16 %v3515
    %v4683 = vunpack.c.h.b16 %v3515
    %v4684 = vunpack.c.l.b16 %v3516
    %v4685 = vunpack.c.h.b16 %v3516
    %v4686 = vunpack.c.l.b16 %v3517
    %v4687 = vunpack.c.h.b16 %v3517
    %v4688 = vunpack.c.l.b16 %v3518
    %v4689 = vunpack.c.h.b16 %v3518
    %v4690 = vunpack.c.l.b16 %v3519
    %v4691 = vunpack.c.h.b16 %v3519
    %v4692 = vunpack.c.l.b16 %v3520
    %v4693 = vunpack.c.h.b16 %v3520
    %v4694 = vunpack.c.l.b16 %v3521
    %v4695 = vunpack.c.h.b16 %v3521
    %v4696 = vunpack.c.l.b16 %v3522
    %v4697 = vunpack.c.h.b16 %v3522
    %v4698 = vunpack.c.l.b16 %v3523
    %v4699 = vunpack.c.h.b16 %v3523
    %v4700 = vunpack.c.l.b16 %v3524
    %v4701 = vunpack.c.h.b16 %v3524
    %v4702 = vunpack.c.l.b16 %v3525
    %v4703 = vunpack.c.h.b16 %v3525
    %v4704 = vunpack.c.l.b16 %v3526
    %v4705 = vunpack.c.h.b16 %v3526
    %v4706 = vunpack.c.l.b16 %v3527
    %v4707 = vunpack.c.h.b16 %v3527
    %v4708 = vunpack.c.l.b16 %v3528
    %v4709 = vunpack.c.h.b16 %v3528
    %v4710 = vunpack.c.l.b16 %v3529
    %v4711 = vunpack.c.h.b16 %v3529
    %v4712 = vunpack.c.l.b16 %v3530
    %v4713 = vunpack.c.h.b16 %v3530
    %v4714 = vunpack.c.l.b16 %v3531
    %v4715 = vunpack.c.h.b16 %v3531
    %v4716 = vunpack.c.l.b16 %v3532
    %v4717 = vunpack.c.h.b16 %v3532
    %v4718 = vunpack.c.l.b16 %v3533
    %v4719 = vunpack.c.h.b16 %v3533
    %v4720 = vunpack.c.l.b16 %v3534
    %v4721 = vunpack.c.h.b16 %v3534
    %v4722 = vunpack.c.l.b16 %v3535
    %v4723 = vunpack.c.h.b16 %v3535
    %v4724 = vunpack.c.l.b16 %v3536
    %v4725 = vunpack.c.h.b16 %v3536
    %v4726 = vunpack.c.l.b16 %v3537
    %v4727 = vunpack.c.h.b16 %v3537
    %v4728 = vunpack.c.l.b16 %v3538
    %v4729 = vunpack.c.h.b16 %v3538
    %v4730 = vunpack.c.l.b16 %v3539
    %v4731 = vunpack.c.h.b16 %v3539
    %v4732 = vunpack.c.l.b16 %v3540
    %v4733 = vunpack.c.h.b16 %v3540
    %v4734 = vunpack.c.l.b16 %v3541
    %v4735 = vunpack.c.h.b16 %v3541
    %v4736 = vunpack.c.l.b16 %v3542
    %v4737 = vunpack.c.h.b16 %v3542
    %v4738 = vunpack.c.l.b16 %v3543
    %v4739 = vunpack.c.h.b16 %v3543
    %v4740 = vunpack.c.l.b16 %v3544
    %v4741 = vunpack.c.h.b16 %v3544
    %v4742 = vunpack.c.l.b16 %v3545
    %v4743 = vunpack.c.h.b16 %v3545
    %v4744 = vunpack.c.l.b16 %v3546
    %v4745 = vunpack.c.h.b16 %v3546
    %v4746 = vunpack.c.l.b16 %v3547
    %v4747 = vunpack.c.h.b16 %v3547
    %v4748 = vunpack.c.l.b16 %v3548
    %v4749 = vunpack.c.h.b16 %v3548
    %v4750 = vunpack.c.l.b16 %v3549
    %v4751 = vunpack.c.h.b16 %v3549
    %v4752 = vunpack.c.l.b16 %v3550
    %v4753 = vunpack.c.h.b16 %v3550
    %v4754 = vunpack.c.l.b16 %v3551
    %v4755 = vunpack.c.h.b16 %v3551
    %v4756 = vunpack.c.l.b16 %v3552
    %v4757 = vunpack.c.h.b16 %v3552
    %v4758 = vunpack.c.l.b16 %v3553
    %v4759 = vunpack.c.h.b16 %v3553
    %v4760 = vunpack.c.l.b16 %v3554
    %v4761 = vunpack.c.h.b16 %v3554
    %v4762 = vunpack.c.l.b16 %v3555
    %v4763 = vunpack.c.h.b16 %v3555
    %v4764 = vunpack.c.l.b16 %v3556
    %v4765 = vunpack.c.h.b16 %v3556
    %v4766 = vunpack.c.l.b16 %v3557
    %v4767 = vunpack.c.h.b16 %v3557
    %v4768 = vunpack.c.l.b16 %v3558
    %v4769 = vunpack.c.h.b16 %v3558
    %v4770 = vunpack.c.l.b16 %v3559
    %v4771 = vunpack.c.h.b16 %v3559
    %v4772 = vunpack.c.l.b16 %v3560
    %v4773 = vunpack.c.h.b16 %v3560
    %v4774 = vunpack.c.l.b16 %v3561
    %v4775 = vunpack.c.h.b16 %v3561
    %v4776 = vunpack.c.l.b16 %v3562
    %v4777 = vunpack.c.h.b16 %v3562
    %v4778 = vunpack.c.l.b16 %v3563
    %v4779 = vunpack.c.h.b16 %v3563
    %v4780 = vunpack.c.l.b16 %v3564
    %v4781 = vunpack.c.h.b16 %v3564
    %v4782 = vunpack.c.l.b16 %v3565
    %v4783 = vunpack.c.h.b16 %v3565
    %v4784 = vunpack.c.l.b16 %v3566
    %v4785 = vunpack.c.h.b16 %v3566
    %v4786 = vunpack.c.l.b16 %v3567
    %v4787 = vunpack.c.h.b16 %v3567
    %v4788 = vunpack.c.l.b16 %v3568
    %v4789 = vunpack.c.h.b16 %v3568
    %v4790 = vunpack.c.l.b16 %v3569
    %v4791 = vunpack.c.h.b16 %v3569
    %v4792 = vunpack.c.l.b16 %v3570
    %v4793 = vunpack.c.h.b16 %v3570
    %v4794 = vunpack.c.l.b16 %v3571
    %v4795 = vunpack.c.h.b16 %v3571
    %v4796 = vunpack.c.l.b16 %v3572
    %v4797 = vunpack.c.h.b16 %v3572
    %v4798 = vunpack.c.l.b16 %v3573
    %v4799 = vunpack.c.h.b16 %v3573
    %v4800 = vunpack.c.l.b16 %v3574
    %v4801 = vunpack.c.h.b16 %v3574
    %v4802 = vunpack.c.l.b16 %v3575
    %v4803 = vunpack.c.h.b16 %v3575
    %v4804 = vunpack.c.l.b16 %v3576
    %v4805 = vunpack.c.h.b16 %v3576
    %v4806 = vunpack.c.l.b16 %v3577
    %v4807 = vunpack.c.h.b16 %v3577
    %v4808 = vunpack.c.l.b16 %v3578
    %v4809 = vunpack.c.h.b16 %v3578
    %v4810 = vunpack.c.l.b16 %v3579
    %v4811 = vunpack.c.h.b16 %v3579
    %v4812 = vunpack.c.l.b16 %v3580
    %v4813 = vunpack.c.h.b16 %v3580
    %v4814 = vunpack.c.l.b16 %v3581
    %v4815 = vunpack.c.h.b16 %v3581
    %v4816 = vunpack.c.l.b16 %v3582
    %v4817 = vunpack.c.h.b16 %v3582
    %v4818 = vunpack.c.l.b16 %v3583
    %v4819 = vunpack.c.h.b16 %v3583
    %v4820 = vunpack.c.l.b16 %v3584
    %v4821 = vunpack.c.h.b16 %v3584
    %v4822 = vunpack.c.l.b16 %v3585
    %v4823 = vunpack.c.h.b16 %v3585
    %v4824 = vunpack.c.l.b16 %v3586
    %v4825 = vunpack.c.h.b16 %v3586
    %v4826 = vunpack.c.l.b16 %v3587
    %v4827 = vunpack.c.h.b16 %v3587
    %v4828 = vunpack.c.l.b16 %v3588
    %v4829 = vunpack.c.h.b16 %v3588
    %v4830 = vunpack.c.l.b16 %v3589
    %v4831 = vunpack.c.h.b16 %v3589
    %v4832 = vunpack.c.l.b16 %v3590
    %v4833 = vunpack.c.h.b16 %v3590
    %v4834 = vunpack.c.l.b16 %v3591
    %v4835 = vunpack.c.h.b16 %v3591
    %v4836 = vunpack.c.l.b16 %v3592
    %v4837 = vunpack.c.h.b16 %v3592
    %v4838 = vunpack.c.l.b16 %v3593
    %v4839 = vunpack.c.h.b16 %v3593
    %v4840 = vunpack.c.l.b16 %v3594
    %v4841 = vunpack.c.h.b16 %v3594
    %v4842 = vunpack.c.l.b16 %v3595
    %v4843 = vunpack.c.h.b16 %v3595
    %v4844 = vunpack.c.l.b16 %v3596
    %v4845 = vunpack.c.h.b16 %v3596
    %v4846 = vunpack.c.l.b16 %v3597
    %v4847 = vunpack.c.h.b16 %v3597
    %v4848 = vunpack.c.l.b16 %v3598
    %v4849 = vunpack.c.h.b16 %v3598
    %v4850 = vunpack.c.l.b16 %v3599
    %v4851 = vunpack.c.h.b16 %v3599
    %v4852 = vunpack.c.l.b16 %v3600
    %v4853 = vunpack.c.h.b16 %v3600
    %v4854 = vunpack.c.l.b16 %v3601
    %v4855 = vunpack.c.h.b16 %v3601
    %v4856 = vunpack.c.l.b16 %v3602
    %v4857 = vunpack.c.h.b16 %v3602
    %v4858 = vunpack.c.l.b16 %v3603
    %v4859 = vunpack.c.h.b16 %v3603
    %v4860 = vunpack.c.l.b16 %v3604
    %v4861 = vunpack.c.h.b16 %v3604
    %v4862 = vunpack.c.l.b16 %v3605
    %v4863 = vunpack.c.h.b16 %v3605
    %v4864 = vunpack.c.l.b16 %v3606
    %v4865 = vunpack.c.h.b16 %v3606
    %v4866 = vunpack.c.l.b16 %v3607
    %v4867 = vunpack.c.h.b16 %v3607
    %v4868 = vunpack.c.l.b16 %v3608
    %v4869 = vunpack.c.h.b16 %v3608
    %v4870 = vunpack.c.l.b16 %v3609
    %v4871 = vunpack.c.h.b16 %v3609
    %v4872 = vunpack.c.l.b16 %v3610
    %v4873 = vunpack.c.h.b16 %v3610
    %v4874 = vunpack.c.l.b16 %v3611
    %v4875 = vunpack.c.h.b16 %v3611
    %v4876 = vunpack.c.l.b16 %v3612
    %v4877 = vunpack.c.h.b16 %v3612
    %v4878 = vunpack.c.l.b16 %v3613
    %v4879 = vunpack.c.h.b16 %v3613
    %v4880 = vunpack.c.l.b16 %v3614
    %v4881 = vunpack.c.h.b16 %v3614
    %v4882 = vunpack.c.l.b16 %v3615
    %v4883 = vunpack.c.h.b16 %v3615
    %v4884 = vunpack.c.l.b16 %v3616
    %v4885 = vunpack.c.h.b16 %v3616
    %v4886 = vunpack.c.l.b16 %v3617
    %v4887 = vunpack.c.h.b16 %v3617
    %v4888 = vunpack.c.l.b16 %v3618
    %v4889 = vunpack.c.h.b16 %v3618
    %v4890 = vunpack.c.l.b16 %v3619
    %v4891 = vunpack.c.h.b16 %v3619
    %v4892 = vunpack.c.l.b16 %v3620
    %v4893 = vunpack.c.h.b16 %v3620
    %v4894 = vunpack.c.l.b16 %v3621
    %v4895 = vunpack.c.h.b16 %v3621
    %v4896 = vunpack.c.l.b16 %v3622
    %v4897 = vunpack.c.h.b16 %v3622
    %v4898 = vunpack.c.l.b16 %v3623
    %v4899 = vunpack.c.h.b16 %v3623
    %v4900 = vunpack.c.l.b16 %v3624
    %v4901 = vunpack.c.h.b16 %v3624
    %v4902 = vunpack.c.l.b16 %v3625
    %v4903 = vunpack.c.h.b16 %v3625
    %v4904 = vunpack.c.l.b16 %v3626
    %v4905 = vunpack.c.h.b16 %v3626
    %v4906 = vunpack.c.l.b16 %v3627
    %v4907 = vunpack.c.h.b16 %v3627
    %v4908 = vunpack.c.l.b16 %v3628
    %v4909 = vunpack.c.h.b16 %v3628
    %v4910 = vunpack.c.l.b16 %v3629
    %v4911 = vunpack.c.h.b16 %v3629
    %v4912 = vunpack.c.l.b16 %v3630
    %v4913 = vunpack.c.h.b16 %v3630
    %v4914 = vunpack.c.l.b16 %v3631
    %v4915 = vunpack.c.h.b16 %v3631
    %v4916 = vunpack.c.l.b16 %v3632
    %v4917 = vunpack.c.h.b16 %v3632
    %v4918 = vunpack.c.l.b16 %v3633
    %v4919 = vunpack.c.h.b16 %v3633
    %v4920 = vunpack.c.l.b16 %v3634
    %v4921 = vunpack.c.h.b16 %v3634
    %v4922 = vunpack.c.l.b16 %v3635
    %v4923 = vunpack.c.h.b16 %v3635
    %v4924 = vunpack.c.l.b16 %v3636
    %v4925 = vunpack.c.h.b16 %v3636
    %v4926 = vunpack.c.l.b16 %v3637
    %v4927 = vunpack.c.h.b16 %v3637
    %v4928 = vunpack.c.l.b16 %v3638
    %v4929 = vunpack.c.h.b16 %v3638
    %v4930 = vunpack.c.l.b16 %v3639
    %v4931 = vunpack.c.h.b16 %v3639
    %v4932 = vunpack.c.l.b16 %v3640
    %v4933 = vunpack.c.h.b16 %v3640
    %v4934 = vunpack.c.l.b16 %v3641
    %v4935 = vunpack.c.h.b16 %v3641
    %v4936 = vunpack.c.l.b16 %v3642
    %v4937 = vunpack.c.h.b16 %v3642
    %v4938 = vunpack.c.l.b16 %v3643
    %v4939 = vunpack.c.h.b16 %v3643
    %v4940 = vunpack.c.l.b16 %v3644
    %v4941 = vunpack.c.h.b16 %v3644
    %v4942 = vunpack.c.l.b16 %v3645
    %v4943 = vunpack.c.h.b16 %v3645
    %v4944 = vunpack.c.l.b16 %v3646
    %v4945 = vunpack.c.h.b16 %v3646
    %v4946 = vunpack.c.l.b16 %v3647
    %v4947 = vunpack.c.h.b16 %v3647
    %v4948 = vunpack.c.l.b16 %v3648
    %v4949 = vunpack.c.h.b16 %v3648
    %v4950 = vunpack.c.l.b16 %v3649
    %v4951 = vunpack.c.h.b16 %v3649
    %v4952 = vunpack.c.l.b16 %v3650
    %v4953 = vunpack.c.h.b16 %v3650
    %v4954 = vunpack.c.l.b16 %v3651
    %v4955 = vunpack.c.h.b16 %v3651
    %v4956 = vunpack.c.l.b16 %v3652
    %v4957 = vunpack.c.h.b16 %v3652
    %v4958 = vunpack.c.l.b16 %v3653
    %v4959 = vunpack.c.h.b16 %v3653
    %v4960 = vunpack.c.l.b16 %v3654
    %v4961 = vunpack.c.h.b16 %v3654
    %v4962 = vunpack.c.l.b16 %v3655
    %v4963 = vunpack.c.h.b16 %v3655
    %v4964 = vunpack.c.l.b16 %v3656
    %v4965 = vunpack.c.h.b16 %v3656
    %v4966 = vunpack.c.l.b16 %v3657
    %v4967 = vunpack.c.h.b16 %v3657
    %v4968 = vunpack.c.l.b16 %v3658
    %v4969 = vunpack.c.h.b16 %v3658
    %v4970 = vunpack.c.l.b16 %v3659
    %v4971 = vunpack.c.h.b16 %v3659
    %v4972 = vunpack.c.l.b16 %v3660
    %v4973 = vunpack.c.h.b16 %v3660
    %v4974 = vunpack.c.l.b16 %v3661
    %v4975 = vunpack.c.h.b16 %v3661
    %v4976 = vunpack.c.l.b16 %v3662
    %v4977 = vunpack.c.h.b16 %v3662
    %v4978 = vunpack.c.l.b16 %v3663
    %v4979 = vunpack.c.h.b16 %v3663
    %v4980 = vunpack.c.l.b16 %v3664
    %v4981 = vunpack.c.h.b16 %v3664
    %v4982 = vunpack.c.l.b16 %v3665
    %v4983 = vunpack.c.h.b16 %v3665
    %v4984 = vunpack.c.l.b16 %v3666
    %v4985 = vunpack.c.h.b16 %v3666
    %v4986 = vunpack.c.l.b16 %v3667
    %v4987 = vunpack.c.h.b16 %v3667
    %v4988 = vunpack.c.l.b16 %v3668
    %v4989 = vunpack.c.h.b16 %v3668
    %v4990 = vunpack.c.l.b16 %v3669
    %v4991 = vunpack.c.h.b16 %v3669
    %v4992 = vunpack.c.l.b16 %v3670
    %v4993 = vunpack.c.h.b16 %v3670
    %v4994 = vunpack.c.l.b16 %v3671
    %v4995 = vunpack.c.h.b16 %v3671
    %v4996 = vunpack.c.l.b16 %v3672
    %v4997 = vunpack.c.h.b16 %v3672
    %v4998 = vunpack.c.l.b16 %v3673
    %v4999 = vunpack.c.h.b16 %v3673
    %v5000 = vunpack.c.l.b16 %v3674
    %v5001 = vunpack.c.h.b16 %v3674
    %v5002 = vunpack.c.l.b16 %v3675
    %v5003 = vunpack.c.h.b16 %v3675
    %v5004 = vunpack.c.l.b16 %v3676
    %v5005 = vunpack.c.h.b16 %v3676
    %v5006 = vunpack.c.l.b16 %v3677
    %v5007 = vunpack.c.h.b16 %v3677
    %v5008 = vunpack.c.l.b16 %v3678
    %v5009 = vunpack.c.h.b16 %v3678
    %v5010 = vunpack.c.l.b16 %v3679
    %v5011 = vunpack.c.h.b16 %v3679
    %v5012 = vunpack.c.l.b16 %v3680
    %v5013 = vunpack.c.h.b16 %v3680
    %v5014 = vunpack.c.l.b16 %v3681
    %v5015 = vunpack.c.h.b16 %v3681
    %v5016 = vunpack.c.l.b16 %v3682
    %v5017 = vunpack.c.h.b16 %v3682
    %v5018 = vunpack.c.l.b16 %v3683
    %v5019 = vunpack.c.h.b16 %v3683
    %v5020 = vunpack.c.l.b16 %v3684
    %v5021 = vunpack.c.h.b16 %v3684
    %v5022 = vunpack.c.l.b16 %v3685
    %v5023 = vunpack.c.h.b16 %v3685
    %v5024 = vunpack.c.l.b16 %v3686
    %v5025 = vunpack.c.h.b16 %v3686
    %v5026 = vunpack.c.l.b16 %v3687
    %v5027 = vunpack.c.h.b16 %v3687
    %v5028 = vunpack.c.l.b16 %v3688
    %v5029 = vunpack.c.h.b16 %v3688
    %v5030 = vunpack.c.l.b16 %v3689
    %v5031 = vunpack.c.h.b16 %v3689
    %v5032 = vunpack.c.l.b16 %v3690
    %v5033 = vunpack.c.h.b16 %v3690
    %v5034 = vunpack.c.l.b16 %v3691
    %v5035 = vunpack.c.h.b16 %v3691
    %v5036 = vunpack.c.l.b16 %v3692
    %v5037 = vunpack.c.h.b16 %v3692
    %v5038 = vunpack.c.l.b16 %v3693
    %v5039 = vunpack.c.h.b16 %v3693
    %v5040 = vunpack.c.l.b16 %v3694
    %v5041 = vunpack.c.h.b16 %v3694
    %v5042 = vunpack.c.l.b16 %v3695
    %v5043 = vunpack.c.h.b16 %v3695
    %v5044 = vunpack.c.l.b16 %v3696
    %v5045 = vunpack.c.h.b16 %v3696
    %v5046 = vunpack.c.l.b16 %v3697
    %v5047 = vunpack.c.h.b16 %v3697
    %v5048 = vunpack.c.l.b16 %v3698
    %v5049 = vunpack.c.h.b16 %v3698
    %v5050 = vunpack.c.l.b16 %v3699
    %v5051 = vunpack.c.h.b16 %v3699
    %v5052 = vunpack.c.l.b16 %v3700
    %v5053 = vunpack.c.h.b16 %v3700
    %v5054 = vunpack.c.l.b16 %v3701
    %v5055 = vunpack.c.h.b16 %v3701
    %v5056 = vunpack.c.l.b16 %v3702
    %v5057 = vunpack.c.h.b16 %v3702
    %v5058 = vunpack.c.l.b16 %v3703
    %v5059 = vunpack.c.h.b16 %v3703
    %v5060 = vunpack.c.l.b16 %v3704
    %v5061 = vunpack.c.h.b16 %v3704
    %v5062 = vunpack.c.l.b16 %v3705
    %v5063 = vunpack.c.h.b16 %v3705
    %v5064 = vunpack.c.l.b16 %v3706
    %v5065 = vunpack.c.h.b16 %v3706
    %v5066 = vunpack.c.l.b16 %v3707
    %v5067 = vunpack.c.h.b16 %v3707
    %v5068 = vunpack.c.l.b16 %v3708
    %v5069 = vunpack.c.h.b16 %v3708
    %v5070 = vunpack.c.l.b16 %v3709
    %v5071 = vunpack.c.h.b16 %v3709
    %v5072 = vunpack.c.l.b16 %v3710
    %v5073 = vunpack.c.h.b16 %v3710
    %v5074 = vunpack.c.l.b16 %v3711
    %v5075 = vunpack.c.h.b16 %v3711
    %v5076 = vunpack.c.l.b16 %v3712
    %v5077 = vunpack.c.h.b16 %v3712
    %v5078 = vunpack.c.l.b16 %v3713
    %v5079 = vunpack.c.h.b16 %v3713
    %v5080 = vunpack.c.l.b16 %v3714
    %v5081 = vunpack.c.h.b16 %v3714
    %v5082 = vunpack.c.l.b16 %v3715
    %v5083 = vunpack.c.h.b16 %v3715
    %v5084 = vunpack.c.l.b16 %v3716
    %v5085 = vunpack.c.h.b16 %v3716
    %v5086 = vunpack.c.l.b16 %v3717
    %v5087 = vunpack.c.h.b16 %v3717
    %v5088 = vunpack.c.l.b16 %v3718
    %v5089 = vunpack.c.h.b16 %v3718
    %v5090 = vunpack.c.l.b16 %v3719
    %v5091 = vunpack.c.h.b16 %v3719
    %v5092 = vunpack.c.l.b16 %v3720
    %v5093 = vunpack.c.h.b16 %v3720
    %v5094 = vunpack.c.l.b16 %v3721
    %v5095 = vunpack.c.h.b16 %v3721
    %v5096 = vunpack.c.l.b16 %v3722
    %v5097 = vunpack.c.h.b16 %v3722
    %v5098 = vunpack.c.l.b16 %v3723
    %v5099 = vunpack.c.h.b16 %v3723
    %v5100 = vunpack.c.l.b16 %v3724
    %v5101 = vunpack.c.h.b16 %v3724
    %v5102 = vunpack.c.l.b16 %v3725
    %v5103 = vunpack.c.h.b16 %v3725
    %v5104 = vunpack.c.l.b16 %v3726
    %v5105 = vunpack.c.h.b16 %v3726
    %v5106 = vunpack.c.l.b16 %v3727
    %v5107 = vunpack.c.h.b16 %v3727
    %v5108 = vunpack.c.l.b16 %v3728
    %v5109 = vunpack.c.h.b16 %v3728
    %v5110 = vunpack.c.l.b16 %v3729
    %v5111 = vunpack.c.h.b16 %v3729
    %v5112 = vunpack.c.l.b16 %v3730
    %v5113 = vunpack.c.h.b16 %v3730
    %v5114 = vunpack.c.l.b16 %v3731
    %v5115 = vunpack.c.h.b16 %v3731
    %v5116 = vunpack.c.l.b16 %v3732
    %v5117 = vunpack.c.h.b16 %v3732
    %v5118 = vunpack.c.l.b16 %v3733
    %v5119 = vunpack.c.h.b16 %v3733
    %v5120 = vunpack.c.l.b16 %v3734
    %v5121 = vunpack.c.h.b16 %v3734
    %v5122 = vunpack.c.l.b16 %v3735
    %v5123 = vunpack.c.h.b16 %v3735
    %v5124 = vunpack.c.l.b16 %v3736
    %v5125 = vunpack.c.h.b16 %v3736
    %v5126 = vunpack.c.l.b16 %v3737
    %v5127 = vunpack.c.h.b16 %v3737
    %v5128 = vunpack.c.l.b16 %v3738
    %v5129 = vunpack.c.h.b16 %v3738
    %v5130 = vunpack.c.l.b16 %v3739
    %v5131 = vunpack.c.h.b16 %v3739
    %v5132 = vunpack.c.l.b16 %v3740
    %v5133 = vunpack.c.h.b16 %v3740
    %v5134 = vunpack.c.l.b16 %v3741
    %v5135 = vunpack.c.h.b16 %v3741
    %v5136 = vunpack.c.l.b16 %v3742
    %v5137 = vunpack.c.h.b16 %v3742
    %v5138 = vunpack.c.l.b16 %v3743
    %v5139 = vunpack.c.h.b16 %v3743
    %v5140 = vunpack.c.l.b16 %v3744
    %v5141 = vunpack.c.h.b16 %v3744
    %v5142 = vunpack.c.l.b16 %v3745
    %v5143 = vunpack.c.h.b16 %v3745
    %v5144 = vunpack.c.l.b16 %v3746
    %v5145 = vunpack.c.h.b16 %v3746
    %v5146 = vunpack.c.l.b16 %v3747
    %v5147 = vunpack.c.h.b16 %v3747
    %v5148 = vunpack.c.l.b16 %v3748
    %v5149 = vunpack.c.h.b16 %v3748
    %v5150 = vunpack.c.l.b16 %v3749
    %v5151 = vunpack.c.h.b16 %v3749
    %v5152 = vunpack.c.l.b16 %v3750
    %v5153 = vunpack.c.h.b16 %v3750
    %v5154 = vunpack.c.l.b16 %v3751
    %v5155 = vunpack.c.h.b16 %v3751
    %v5156 = vunpack.c.l.b16 %v3752
    %v5157 = vunpack.c.h.b16 %v3752
    %v5158 = vunpack.c.l.b16 %v3753
    %v5159 = vunpack.c.h.b16 %v3753
    %v5160 = vunpack.c.l.b16 %v3754
    %v5161 = vunpack.c.h.b16 %v3754
    %v5162 = vunpack.c.l.b16 %v3755
    %v5163 = vunpack.c.h.b16 %v3755
    %v5164 = vunpack.c.l.b16 %v3756
    %v5165 = vunpack.c.h.b16 %v3756
    %v5166 = vunpack.c.l.b16 %v3757
    %v5167 = vunpack.c.h.b16 %v3757
    %v5168 = vunpack.c.l.b16 %v3758
    %v5169 = vunpack.c.h.b16 %v3758
    %v5170 = vunpack.c.l.b16 %v3759
    %v5171 = vunpack.c.h.b16 %v3759
    %v5172 = vunpack.c.l.b16 %v3760
    %v5173 = vunpack.c.h.b16 %v3760
    %v5174 = vunpack.c.l.b16 %v3761
    %v5175 = vunpack.c.h.b16 %v3761
    %v5176 = vunpack.c.l.b16 %v3762
    %v5177 = vunpack.c.h.b16 %v3762
    %v5178 = vunpack.c.l.b16 %v3763
    %v5179 = vunpack.c.h.b16 %v3763
    %v5180 = vunpack.c.l.b16 %v3764
    %v5181 = vunpack.c.h.b16 %v3764
    %v5182 = vunpack.c.l.b16 %v3765
    %v5183 = vunpack.c.h.b16 %v3765
    %v5184 = vunpack.c.l.b16 %v3766
    %v5185 = vunpack.c.h.b16 %v3766
    %v5186 = vunpack.c.l.b16 %v3767
    %v5187 = vunpack.c.h.b16 %v3767
    %v5188 = vunpack.c.l.b16 %v3768
    %v5189 = vunpack.c.h.b16 %v3768
    %v5190 = vunpack.c.l.b16 %v3769
    %v5191 = vunpack.c.h.b16 %v3769
    %v5192 = vunpack.c.l.b16 %v3770
    %v5193 = vunpack.c.h.b16 %v3770
    %v5194 = vunpack.c.l.b16 %v3771
    %v5195 = vunpack.c.h.b16 %v3771
    %v5196 = vunpack.c.l.b16 %v3772
    %v5197 = vunpack.c.h.b16 %v3772
    %v5198 = vunpack.c.l.b16 %v3773
    %v5199 = vunpack.c.h.b16 %v3773
    %v5200 = vunpack.c.l.b16 %v3774
    %v5201 = vunpack.c.h.b16 %v3774
    %v5202 = vunpack.c.l.b16 %v3775
    %v5203 = vunpack.c.h.b16 %v3775
    %v5204 = vunpack.c.l.b16 %v3776
    %v5205 = vunpack.c.h.b16 %v3776
    %v5206 = vunpack.c.l.b16 %v3777
    %v5207 = vunpack.c.h.b16 %v3777
    %v5208 = vunpack.c.l.b16 %v3778
    %v5209 = vunpack.c.h.b16 %v3778
    %v5210 = vunpack.c.l.b16 %v3779
    %v5211 = vunpack.c.h.b16 %v3779
    %v5212 = vunpack.c.l.b16 %v3780
    %v5213 = vunpack.c.h.b16 %v3780
    %v5214 = vunpack.c.l.b16 %v3781
    %v5215 = vunpack.c.h.b16 %v3781
    %v5216 = vunpack.c.l.b16 %v3782
    %v5217 = vunpack.c.h.b16 %v3782
    %v5218 = vunpack.c.l.b16 %v3783
    %v5219 = vunpack.c.h.b16 %v3783
    %v5220 = vunpack.c.l.b16 %v3784
    %v5221 = vunpack.c.h.b16 %v3784
    %v5222 = vunpack.c.l.b16 %v3785
    %v5223 = vunpack.c.h.b16 %v3785
    %v5224 = vunpack.c.l.b16 %v3786
    %v5225 = vunpack.c.h.b16 %v3786
    %v5226 = vunpack.c.l.b16 %v3787
    %v5227 = vunpack.c.h.b16 %v3787
    %v5228 = vpack.c.b16 %v4272, %v4268
    %v5229 = vpack.c.b16 %v4273, %v4269
    %v5230 = vpack.c.b16 %v4274, %v4270
    %v5231 = vpack.c.b16 %v4275, %v4271
    %v5232 = vpack.c.b16 %v4280, %v4276
    %v5233 = vpack.c.b16 %v4281, %v4277
    %v5234 = vpack.c.b16 %v4282, %v4278
    %v5235 = vpack.c.b16 %v4283, %v4279
    %v5236 = vpack.c.b16 %v4288, %v4284
    %v5237 = vpack.c.b16 %v4289, %v4285
    %v5238 = vpack.c.b16 %v4290, %v4286
    %v5239 = vpack.c.b16 %v4291, %v4287
    %v5240 = vpack.c.b16 %v4296, %v4292
    %v5241 = vpack.c.b16 %v4297, %v4293
    %v5242 = vpack.c.b16 %v4298, %v4294
    %v5243 = vpack.c.b16 %v4299, %v4295
    %v5244 = vpack.c.b16 %v4304, %v4300
    %v5245 = vpack.c.b16 %v4305, %v4301
    %v5246 = vpack.c.b16 %v4306, %v4302
    %v5247 = vpack.c.b16 %v4307, %v4303
    %v5248 = vpack.c.b16 %v4312, %v4308
    %v5249 = vpack.c.b16 %v4313, %v4309
    %v5250 = vpack.c.b16 %v4314, %v4310
    %v5251 = vpack.c.b16 %v4315, %v4311
    %v5252 = vpack.c.b16 %v4320, %v4316
    %v5253 = vpack.c.b16 %v4321, %v4317
    %v5254 = vpack.c.b16 %v4322, %v4318
    %v5255 = vpack.c.b16 %v4323, %v4319
    %v5256 = vpack.c.b16 %v4328, %v4324
    %v5257 = vpack.c.b16 %v4329, %v4325
    %v5258 = vpack.c.b16 %v4330, %v4326
    %v5259 = vpack.c.b16 %v4331, %v4327
    %v5260 = vpack.c.b16 %v4336, %v4332
    %v5261 = vpack.c.b16 %v4337, %v4333
    %v5262 = vpack.c.b16 %v4338, %v4334
    %v5263 = vpack.c.b16 %v4339, %v4335
    %v5264 = vpack.c.b16 %v4344, %v4340
    %v5265 = vpack.c.b16 %v4345, %v4341
    %v5266 = vpack.c.b16 %v4346, %v4342
    %v5267 = vpack.c.b16 %v4347, %v4343
    %v5268 = vpack.c.b16 %v4352, %v4348
    %v5269 = vpack.c.b16 %v4353, %v4349
    %v5270 = vpack.c.b16 %v4354, %v4350
    %v5271 = vpack.c.b16 %v4355, %v4351
    %v5272 = vpack.c.b16 %v4360, %v4356
    %v5273 = vpack.c.b16 %v4361, %v4357
    %v5274 = vpack.c.b16 %v4362, %v4358
    %v5275 = vpack.c.b16 %v4363, %v4359
    %v5276 = vpack.c.b16 %v4368, %v4364
    %v5277 = vpack.c.b16 %v4369, %v4365
    %v5278 = vpack.c.b16 %v4370, %v4366
    %v5279 = vpack.c.b16 %v4371, %v4367
    %v5280 = vpack.c.b16 %v4376, %v4372
    %v5281 = vpack.c.b16 %v4377, %v4373
    %v5282 = vpack.c.b16 %v4378, %v4374
    %v5283 = vpack.c.b16 %v4379, %v4375
    %v5284 = vpack.c.b16 %v4384, %v4380
    %v5285 = vpack.c.b16 %v4385, %v4381
    %v5286 = vpack.c.b16 %v4386, %v4382
    %v5287 = vpack.c.b16 %v4387, %v4383
    %v5288 = vpack.c.b16 %v4392, %v4388
    %v5289 = vpack.c.b16 %v4393, %v4389
    %v5290 = vpack.c.b16 %v4394, %v4390
    %v5291 = vpack.c.b16 %v4395, %v4391
    %v5292 = vpack.c.b16 %v4400, %v4396
    %v5293 = vpack.c.b16 %v4401, %v4397
    %v5294 = vpack.c.b16 %v4402, %v4398
    %v5295 = vpack.c.b16 %v4403, %v4399
    %v5296 = vpack.c.b16 %v4408, %v4404
    %v5297 = vpack.c.b16 %v4409, %v4405
    %v5298 = vpack.c.b16 %v4410, %v4406
    %v5299 = vpack.c.b16 %v4411, %v4407
    %v5300 = vpack.c.b16 %v4416, %v4412
    %v5301 = vpack.c.b16 %v4417, %v4413
    %v5302 = vpack.c.b16 %v4418, %v4414
    %v5303 = vpack.c.b16 %v4419, %v4415
    %v5304 = vpack.c.b16 %v4424, %v4420
    %v5305 = vpack.c.b16 %v4425, %v4421
    %v5306 = vpack.c.b16 %v4426, %v4422
    %v5307 = vpack.c.b16 %v4427, %v4423
    %v5308 = vpack.c.b16 %v4432, %v4428
    %v5309 = vpack.c.b16 %v4433, %v4429
    %v5310 = vpack.c.b16 %v4434, %v4430
    %v5311 = vpack.c.b16 %v4435, %v4431
    %v5312 = vpack.c.b16 %v4440, %v4436
    %v5313 = vpack.c.b16 %v4441, %v4437
    %v5314 = vpack.c.b16 %v4442, %v4438
    %v5315 = vpack.c.b16 %v4443, %v4439
    %v5316 = vpack.c.b16 %v4448, %v4444
    %v5317 = vpack.c.b16 %v4449, %v4445
    %v5318 = vpack.c.b16 %v4450, %v4446
    %v5319 = vpack.c.b16 %v4451, %v4447
    %v5320 = vpack.c.b16 %v4456, %v4452
    %v5321 = vpack.c.b16 %v4457, %v4453
    %v5322 = vpack.c.b16 %v4458, %v4454
    %v5323 = vpack.c.b16 %v4459, %v4455
    %v5324 = vpack.c.b16 %v4464, %v4460
    %v5325 = vpack.c.b16 %v4465, %v4461
    %v5326 = vpack.c.b16 %v4466, %v4462
    %v5327 = vpack.c.b16 %v4467, %v4463
    %v5328 = vpack.c.b16 %v4472, %v4468
    %v5329 = vpack.c.b16 %v4473, %v4469
    %v5330 = vpack.c.b16 %v4474, %v4470
    %v5331 = vpack.c.b16 %v4475, %v4471
    %v5332 = vpack.c.b16 %v4480, %v4476
    %v5333 = vpack.c.b16 %v4481, %v4477
    %v5334 = vpack.c.b16 %v4482, %v4478
    %v5335 = vpack.c.b16 %v4483, %v4479
    %v5336 = vpack.c.b16 %v4488, %v4484
    %v5337 = vpack.c.b16 %v4489, %v4485
    %v5338 = vpack.c.b16 %v4490, %v4486
    %v5339 = vpack.c.b16 %v4491, %v4487
    %v5340 = vpack.c.b16 %v4496, %v4492
    %v5341 = vpack.c.b16 %v4497, %v4493
    %v5342 = vpack.c.b16 %v4498, %v4494
    %v5343 = vpack.c.b16 %v4499, %v4495
    %v5344 = vpack.c.b16 %v4504, %v4500
    %v5345 = vpack.c.b16 %v4505, %v4501
    %v5346 = vpack.c.b16 %v4506, %v4502
    %v5347 = vpack.c.b16 %v4507, %v4503
    %v5348 = vpack.c.b16 %v4512, %v4508
    %v5349 = vpack.c.b16 %v4513, %v4509
    %v5350 = vpack.c.b16 %v4514, %v4510
    %v5351 = vpack.c.b16 %v4515, %v4511
    %v5352 = vpack.c.b16 %v4520, %v4516
    %v5353 = vpack.c.b16 %v4521, %v4517
    %v5354 = vpack.c.b16 %v4522, %v4518
    %v5355 = vpack.c.b16 %v4523, %v4519
    %v5356 = vpack.c.b16 %v4528, %v4524
    %v5357 = vpack.c.b16 %v4529, %v4525
    %v5358 = vpack.c.b16 %v4530, %v4526
    %v5359 = vpack.c.b16 %v4531, %v4527
    %v5360 = vpack.c.b16 %v4536, %v4532
    %v5361 = vpack.c.b16 %v4537, %v4533
    %v5362 = vpack.c.b16 %v4538, %v4534
    %v5363 = vpack.c.b16 %v4539, %v4535
    %v5364 = vpack.c.b16 %v4544, %v4540
    %v5365 = vpack.c.b16 %v4545, %v4541
    %v5366 = vpack.c.b16 %v4546, %v4542
    %v5367 = vpack.c.b16 %v4547, %v4543
    %v5368 = vpack.c.b16 %v4552, %v4548
    %v5369 = vpack.c.b16 %v4553, %v4549
    %v5370 = vpack.c.b16 %v4554, %v4550
    %v5371 = vpack.c.b16 %v4555, %v4551
    %v5372 = vpack.c.b16 %v4560, %v4556
    %v5373 = vpack.c.b16 %v4561, %v4557
    %v5374 = vpack.c.b16 %v4562, %v4558
    %v5375 = vpack.c.b16 %v4563, %v4559
    %v5376 = vpack.c.b16 %v4568, %v4564
    %v5377 = vpack.c.b16 %v4569, %v4565
    %v5378 = vpack.c.b16 %v4570, %v4566
    %v5379 = vpack.c.b16 %v4571, %v4567
    %v5380 = vpack.c.b16 %v4576, %v4572
    %v5381 = vpack.c.b16 %v4577, %v4573
    %v5382 = vpack.c.b16 %v4578, %v4574
    %v5383 = vpack.c.b16 %v4579, %v4575
    %v5384 = vpack.c.b16 %v4584, %v4580
    %v5385 = vpack.c.b16 %v4585, %v4581
    %v5386 = vpack.c.b16 %v4586, %v4582
    %v5387 = vpack.c.b16 %v4587, %v4583
    %v5388 = vpack.c.b16 %v4592, %v4588
    %v5389 = vpack.c.b16 %v4593, %v4589
    %v5390 = vpack.c.b16 %v4594, %v4590
    %v5391 = vpack.c.b16 %v4595, %v4591
    %v5392 = vpack.c.b16 %v4600, %v4596
    %v5393 = vpack.c.b16 %v4601, %v4597
    %v5394 = vpack.c.b16 %v4602, %v4598
    %v5395 = vpack.c.b16 %v4603, %v4599
    %v5396 = vpack.c.b16 %v4608, %v4604
    %v5397 = vpack.c.b16 %v4609, %v4605
    %v5398 = vpack.c.b16 %v4610, %v4606
    %v5399 = vpack.c.b16 %v4611, %v4607
    %v5400 = vpack.c.b16 %v4616, %v4612
    %v5401 = vpack.c.b16 %v4617, %v4613
    %v5402 = vpack.c.b16 %v4618, %v4614
    %v5403 = vpack.c.b16 %v4619, %v4615
    %v5404 = vpack.c.b16 %v4624, %v4620
    %v5405 = vpack.c.b16 %v4625, %v4621
    %v5406 = vpack.c.b16 %v4626, %v4622
    %v5407 = vpack.c.b16 %v4627, %v4623
    %v5408 = vpack.c.b16 %v4632, %v4628
    %v5409 = vpack.c.b16 %v4633, %v4629
    %v5410 = vpack.c.b16 %v4634, %v4630
    %v5411 = vpack.c.b16 %v4635, %v4631
    %v5412 = vpack.c.b16 %v4640, %v4636
    %v5413 = vpack.c.b16 %v4641, %v4637
    %v5414 = vpack.c.b16 %v4642, %v4638
    %v5415 = vpack.c.b16 %v4643, %v4639
    %v5416 = vpack.c.b16 %v4648, %v4644
    %v5417 = vpack.c.b16 %v4649, %v4645
    %v5418 = vpack.c.b16 %v4650, %v4646
    %v5419 = vpack.c.b16 %v4651, %v4647
    %v5420 = vpack.c.b16 %v4656, %v4652
    %v5421 = vpack.c.b16 %v4657, %v4653
    %v5422 = vpack.c.b16 %v4658, %v4654
    %v5423 = vpack.c.b16 %v4659, %v4655
    %v5424 = vpack.c.b16 %v4664, %v4660
    %v5425 = vpack.c.b16 %v4665, %v4661
    %v5426 = vpack.c.b16 %v4666, %v4662
    %v5427 = vpack.c.b16 %v4667, %v4663
    %v5428 = vpack.c.b16 %v4672, %v4668
    %v5429 = vpack.c.b16 %v4673, %v4669
    %v5430 = vpack.c.b16 %v4674, %v4670
    %v5431 = vpack.c.b16 %v4675, %v4671
    %v5432 = vpack.c.b16 %v4680, %v4676
    %v5433 = vpack.c.b16 %v4681, %v4677
    %v5434 = vpack.c.b16 %v4682, %v4678
    %v5435 = vpack.c.b16 %v4683, %v4679
    %v5436 = vpack.c.b16 %v4688, %v4684
    %v5437 = vpack.c.b16 %v4689, %v4685
    %v5438 = vpack.c.b16 %v4690, %v4686
    %v5439 = vpack.c.b16 %v4691, %v4687
    %v5440 = vpack.c.b16 %v4696, %v4692
    %v5441 = vpack.c.b16 %v4697, %v4693
    %v5442 = vpack.c.b16 %v4698, %v4694
    %v5443 = vpack.c.b16 %v4699, %v4695
    %v5444 = vpack.c.b16 %v4704, %v4700
    %v5445 = vpack.c.b16 %v4705, %v4701
    %v5446 = vpack.c.b16 %v4706, %v4702
    %v5447 = vpack.c.b16 %v4707, %v4703
    %v5448 = vpack.c.b16 %v4712, %v4708
    %v5449 = vpack.c.b16 %v4713, %v4709
    %v5450 = vpack.c.b16 %v4714, %v4710
    %v5451 = vpack.c.b16 %v4715, %v4711
    %v5452 = vpack.c.b16 %v4720, %v4716
    %v5453 = vpack.c.b16 %v4721, %v4717
    %v5454 = vpack.c.b16 %v4722, %v4718
    %v5455 = vpack.c.b16 %v4723, %v4719
    %v5456 = vpack.c.b16 %v4728, %v4724
    %v5457 = vpack.c.b16 %v4729, %v4725
    %v5458 = vpack.c.b16 %v4730, %v4726
    %v5459 = vpack.c.b16 %v4731, %v4727
    %v5460 = vpack.c.b16 %v4736, %v4732
    %v5461 = vpack.c.b16 %v4737, %v4733
    %v5462 = vpack.c.b16 %v4738, %v4734
    %v5463 = vpack.c.b16 %v4739, %v4735
    %v5464 = vpack.c.b16 %v4744, %v4740
    %v5465 = vpack.c.b16 %v4745, %v4741
    %v5466 = vpack.c.b16 %v4746, %v4742
    %v5467 = vpack.c.b16 %v4747, %v4743
    %v5468 = vpack.c.b16 %v4752, %v4748
    %v5469 = vpack.c.b16 %v4753, %v4749
    %v5470 = vpack.c.b16 %v4754, %v4750
    %v5471 = vpack.c.b16 %v4755, %v4751
    %v5472 = vpack.c.b16 %v4760, %v4756
    %v5473 = vpack.c.b16 %v4761, %v4757
    %v5474 = vpack.c.b16 %v4762, %v4758
    %v5475 = vpack.c.b16 %v4763, %v4759
    %v5476 = vpack.c.b16 %v4768, %v4764
    %v5477 = vpack.c.b16 %v4769, %v4765
    %v5478 = vpack.c.b16 %v4770, %v4766
    %v5479 = vpack.c.b16 %v4771, %v4767
    %v5480 = vpack.c.b16 %v4776, %v4772
    %v5481 = vpack.c.b16 %v4777, %v4773
    %v5482 = vpack.c.b16 %v4778, %v4774
    %v5483 = vpack.c.b16 %v4779, %v4775
    %v5484 = vpack.c.b16 %v4784, %v4780
    %v5485 = vpack.c.b16 %v4785, %v4781
    %v5486 = vpack.c.b16 %v4786, %v4782
    %v5487 = vpack.c.b16 %v4787, %v4783
    %v5488 = vpack.c.b16 %v4792, %v4788
    %v5489 = vpack.c.b16 %v4793, %v4789
    %v5490 = vpack.c.b16 %v4794, %v4790
    %v5491 = vpack.c.b16 %v4795, %v4791
    %v5492 = vpack.c.b16 %v4800, %v4796
    %v5493 = vpack.c.b16 %v4801, %v4797
    %v5494 = vpack.c.b16 %v4802, %v4798
    %v5495 = vpack.c.b16 %v4803, %v4799
    %v5496 = vpack.c.b16 %v4808, %v4804
    %v5497 = vpack.c.b16 %v4809, %v4805
    %v5498 = vpack.c.b16 %v4810, %v4806
    %v5499 = vpack.c.b16 %v4811, %v4807
    %v5500 = vpack.c.b16 %v4816, %v4812
    %v5501 = vpack.c.b16 %v4817, %v4813
    %v5502 = vpack.c.b16 %v4818, %v4814
    %v5503 = vpack.c.b16 %v4819, %v4815
    %v5504 = vpack.c.b16 %v4824, %v4820
    %v5505 = vpack.c.b16 %v4825, %v4821
    %v5506 = vpack.c.b16 %v4826, %v4822
    %v5507 = vpack.c.b16 %v4827, %v4823
    %v5508 = vpack.c.b16 %v4832, %v4828
    %v5509 = vpack.c.b16 %v4833, %v4829
    %v5510 = vpack.c.b16 %v4834, %v4830
    %v5511 = vpack.c.b16 %v4835, %v4831
    %v5512 = vpack.c.b16 %v4840, %v4836
    %v5513 = vpack.c.b16 %v4841, %v4837
    %v5514 = vpack.c.b16 %v4842, %v4838
    %v5515 = vpack.c.b16 %v4843, %v4839
    %v5516 = vpack.c.b16 %v4848, %v4844
    %v5517 = vpack.c.b16 %v4849, %v4845
    %v5518 = vpack.c.b16 %v4850, %v4846
    %v5519 = vpack.c.b16 %v4851, %v4847
    %v5520 = vpack.c.b16 %v4856, %v4852
    %v5521 = vpack.c.b16 %v4857, %v4853
    %v5522 = vpack.c.b16 %v4858, %v4854
    %v5523 = vpack.c.b16 %v4859, %v4855
    %v5524 = vpack.c.b16 %v4864, %v4860
    %v5525 = vpack.c.b16 %v4865, %v4861
    %v5526 = vpack.c.b16 %v4866, %v4862
    %v5527 = vpack.c.b16 %v4867, %v4863
    %v5528 = vpack.c.b16 %v4872, %v4868
    %v5529 = vpack.c.b16 %v4873, %v4869
    %v5530 = vpack.c.b16 %v4874, %v4870
    %v5531 = vpack.c.b16 %v4875, %v4871
    %v5532 = vpack.c.b16 %v4880, %v4876
    %v5533 = vpack.c.b16 %v4881, %v4877
    %v5534 = vpack.c.b16 %v4882, %v4878
    %v5535 = vpack.c.b16 %v4883, %v4879
    %v5536 = vpack.c.b16 %v4888, %v4884
    %v5537 = vpack.c.b16 %v4889, %v4885
    %v5538 = vpack.c.b16 %v4890, %v4886
    %v5539 = vpack.c.b16 %v4891, %v4887
    %v5540 = vpack.c.b16 %v4896, %v4892
    %v5541 = vpack.c.b16 %v4897, %v4893
    %v5542 = vpack.c.b16 %v4898, %v4894
    %v5543 = vpack.c.b16 %v4899, %v4895
    %v5544 = vpack.c.b16 %v4904, %v4900
    %v5545 = vpack.c.b16 %v4905, %v4901
    %v5546 = vpack.c.b16 %v4906, %v4902
    %v5547 = vpack.c.b16 %v4907, %v4903
    %v5548 = vpack.c.b16 %v4912, %v4908
    %v5549 = vpack.c.b16 %v4913, %v4909
    %v5550 = vpack.c.b16 %v4914, %v4910
    %v5551 = vpack.c.b16 %v4915, %v4911
    %v5552 = vpack.c.b16 %v4920, %v4916
    %v5553 = vpack.c.b16 %v4921, %v4917
    %v5554 = vpack.c.b16 %v4922, %v4918
    %v5555 = vpack.c.b16 %v4923, %v4919
    %v5556 = vpack.c.b16 %v4928, %v4924
    %v5557 = vpack.c.b16 %v4929, %v4925
    %v5558 = vpack.c.b16 %v4930, %v4926
    %v5559 = vpack.c.b16 %v4931, %v4927
    %v5560 = vpack.c.b16 %v4936, %v4932
    %v5561 = vpack.c.b16 %v4937, %v4933
    %v5562 = vpack.c.b16 %v4938, %v4934
    %v5563 = vpack.c.b16 %v4939, %v4935
    %v5564 = vpack.c.b16 %v4944, %v4940
    %v5565 = vpack.c.b16 %v4945, %v4941
    %v5566 = vpack.c.b16 %v4946, %v4942
    %v5567 = vpack.c.b16 %v4947, %v4943
    %v5568 = vpack.c.b16 %v4952, %v4948
    %v5569 = vpack.c.b16 %v4953, %v4949
    %v5570 = vpack.c.b16 %v4954, %v4950
    %v5571 = vpack.c.b16 %v4955, %v4951
    %v5572 = vpack.c.b16 %v4960, %v4956
    %v5573 = vpack.c.b16 %v4961, %v4957
    %v5574 = vpack.c.b16 %v4962, %v4958
    %v5575 = vpack.c.b16 %v4963, %v4959
    %v5576 = vpack.c.b16 %v4968, %v4964
    %v5577 = vpack.c.b16 %v4969, %v4965
    %v5578 = vpack.c.b16 %v4970, %v4966
    %v5579 = vpack.c.b16 %v4971, %v4967
    %v5580 = vpack.c.b16 %v4976, %v4972
    %v5581 = vpack.c.b16 %v4977, %v4973
    %v5582 = vpack.c.b16 %v4978, %v4974
    %v5583 = vpack.c.b16 %v4979, %v4975
    %v5584 = vpack.c.b16 %v4984, %v4980
    %v5585 = vpack.c.b16 %v4985, %v4981
    %v5586 = vpack.c.b16 %v4986, %v4982
    %v5587 = vpack.c.b16 %v4987, %v4983
    %v5588 = vpack.c.b16 %v4992, %v4988
    %v5589 = vpack.c.b16 %v4993, %v4989
    %v5590 = vpack.c.b16 %v4994, %v4990
    %v5591 = vpack.c.b16 %v4995, %v4991
    %v5592 = vpack.c.b16 %v5000, %v4996
    %v5593 = vpack.c.b16 %v5001, %v4997
    %v5594 = vpack.c.b16 %v5002, %v4998
    %v5595 = vpack.c.b16 %v5003, %v4999
    %v5596 = vpack.c.b16 %v5008, %v5004
    %v5597 = vpack.c.b16 %v5009, %v5005
    %v5598 = vpack.c.b16 %v5010, %v5006
    %v5599 = vpack.c.b16 %v5011, %v5007
    %v5600 = vpack.c.b16 %v5016, %v5012
    %v5601 = vpack.c.b16 %v5017, %v5013
    %v5602 = vpack.c.b16 %v5018, %v5014
    %v5603 = vpack.c.b16 %v5019, %v5015
    %v5604 = vpack.c.b16 %v5024, %v5020
    %v5605 = vpack.c.b16 %v5025, %v5021
    %v5606 = vpack.c.b16 %v5026, %v5022
    %v5607 = vpack.c.b16 %v5027, %v5023
    %v5608 = vpack.c.b16 %v5032, %v5028
    %v5609 = vpack.c.b16 %v5033, %v5029
    %v5610 = vpack.c.b16 %v5034, %v5030
    %v5611 = vpack.c.b16 %v5035, %v5031
    %v5612 = vpack.c.b16 %v5040, %v5036
    %v5613 = vpack.c.b16 %v5041, %v5037
    %v5614 = vpack.c.b16 %v5042, %v5038
    %v5615 = vpack.c.b16 %v5043, %v5039
    %v5616 = vpack.c.b16 %v5048, %v5044
    %v5617 = vpack.c.b16 %v5049, %v5045
    %v5618 = vpack.c.b16 %v5050, %v5046
    %v5619 = vpack.c.b16 %v5051, %v5047
    %v5620 = vpack.c.b16 %v5056, %v5052
    %v5621 = vpack.c.b16 %v5057, %v5053
    %v5622 = vpack.c.b16 %v5058, %v5054
    %v5623 = vpack.c.b16 %v5059, %v5055
    %v5624 = vpack.c.b16 %v5064, %v5060
    %v5625 = vpack.c.b16 %v5065, %v5061
    %v5626 = vpack.c.b16 %v5066, %v5062
    %v5627 = vpack.c.b16 %v5067, %v5063
    %v5628 = vpack.c.b16 %v5072, %v5068
    %v5629 = vpack.c.b16 %v5073, %v5069
    %v5630 = vpack.c.b16 %v5074, %v5070
    %v5631 = vpack.c.b16 %v5075, %v5071
    %v5632 = vpack.c.b16 %v5080, %v5076
    %v5633 = vpack.c.b16 %v5081, %v5077
    %v5634 = vpack.c.b16 %v5082, %v5078
    %v5635 = vpack.c.b16 %v5083, %v5079
    %v5636 = vpack.c.b16 %v5088, %v5084
    %v5637 = vpack.c.b16 %v5089, %v5085
    %v5638 = vpack.c.b16 %v5090, %v5086
    %v5639 = vpack.c.b16 %v5091, %v5087
    %v5640 = vpack.c.b16 %v5096, %v5092
    %v5641 = vpack.c.b16 %v5097, %v5093
    %v5642 = vpack.c.b16 %v5098, %v5094
    %v5643 = vpack.c.b16 %v5099, %v5095
    %v5644 = vpack.c.b16 %v5104, %v5100
    %v5645 = vpack.c.b16 %v5105, %v5101
    %v5646 = vpack.c.b16 %v5106, %v5102
    %v5647 = vpack.c.b16 %v5107, %v5103
    %v5648 = vpack.c.b16 %v5112, %v5108
    %v5649 = vpack.c.b16 %v5113, %v5109
    %v5650 = vpack.c.b16 %v5114, %v5110
    %v5651 = vpack.c.b16 %v5115, %v5111
    %v5652 = vpack.c.b16 %v5120, %v5116
    %v5653 = vpack.c.b16 %v5121, %v5117
    %v5654 = vpack.c.b16 %v5122, %v5118
    %v5655 = vpack.c.b16 %v5123, %v5119
    %v5656 = vpack.c.b16 %v5128, %v5124
    %v5657 = vpack.c.b16 %v5129, %v5125
    %v5658 = vpack.c.b16 %v5130, %v5126
    %v5659 = vpack.c.b16 %v5131, %v5127
    %v5660 = vpack.c.b16 %v5136, %v5132
    %v5661 = vpack.c.b16 %v5137, %v5133
    %v5662 = vpack.c.b16 %v5138, %v5134
    %v5663 = vpack.c.b16 %v5139, %v5135
    %v5664 = vpack.c.b16 %v5144, %v5140
    %v5665 = vpack.c.b16 %v5145, %v5141
    %v5666 = vpack.c.b16 %v5146, %v5142
    %v5667 = vpack.c.b16 %v5147, %v5143
    %v5668 = vpack.c.b16 %v5152, %v5148
    %v5669 = vpack.c.b16 %v5153, %v5149
    %v5670 = vpack.c.b16 %v5154, %v5150
    %v5671 = vpack.c.b16 %v5155, %v5151
    %v5672 = vpack.c.b16 %v5160, %v5156
    %v5673 = vpack.c.b16 %v5161, %v5157
    %v5674 = vpack.c.b16 %v5162, %v5158
    %v5675 = vpack.c.b16 %v5163, %v5159
    %v5676 = vpack.c.b16 %v5168, %v5164
    %v5677 = vpack.c.b16 %v5169, %v5165
    %v5678 = vpack.c.b16 %v5170, %v5166
    %v5679 = vpack.c.b16 %v5171, %v5167
    %v5680 = vpack.c.b16 %v5176, %v5172
    %v5681 = vpack.c.b16 %v5177, %v5173
    %v5682 = vpack.c.b16 %v5178, %v5174
    %v5683 = vpack.c.b16 %v5179, %v5175
    %v5684 = vpack.c.b16 %v5184, %v5180
    %v5685 = vpack.c.b16 %v5185, %v5181
    %v5686 = vpack.c.b16 %v5186, %v5182
    %v5687 = vpack.c.b16 %v5187, %v5183
    %v5688 = vpack.c.b16 %v5192, %v5188
    %v5689 = vpack.c.b16 %v5193, %v5189
    %v5690 = vpack.c.b16 %v5194, %v5190
    %v5691 = vpack.c.b16 %v5195, %v5191
    %v5692 = vpack.c.b16 %v5200, %v5196
    %v5693 = vpack.c.b16 %v5201, %v5197
    %v5694 = vpack.c.b16 %v5202, %v5198
    %v5695 = vpack.c.b16 %v5203, %v5199
    %v5696 = vpack.c.b16 %v5208, %v5204
    %v5697 = vpack.c.b16 %v5209, %v5205
    %v5698 = vpack.c.b16 %v5210, %v5206
    %v5699 = vpack.c.b16 %v5211, %v5207
    %v5700 = vpack.c.b16 %v5216, %v5212
    %v5701 = vpack.c.b16 %v5217, %v5213
    %v5702 = vpack.c.b16 %v5218, %v5214
    %v5703 = vpack.c.b16 %v5219, %v5215
    %v5704 = vpack.c.b16 %v5224, %v5220
    %v5705 = vpack.c.b16 %v5225, %v5221
    %v5706 = vpack.c.b16 %v5226, %v5222
    %v5707 = vpack.c.b16 %v5227, %v5223
    %6188 = vmatpush.bf16.msra.mxu0 %v5256
    %6189 = vmatpush.bf16.msra.mxu0 %v5252
    %6190 = vmatpush.bf16.msra.mxu0 %v5248
    %6191 = vmatpush.bf16.msra.mxu0 %v5244
    %6192 = vmatpush.bf16.msra.mxu0 %v5240
    %6193 = vmatpush.bf16.msra.mxu0 %v5236
    %6194 = vmatpush.bf16.msra.mxu0 %v5232
    %6195 = vmatpush.bf16.msra.mxu0 %v5228
    %6196 = vmatmul.bf16.gmra.mxu0 %v3196
    %v6197 = vpop.f32.mrf.mxu0
    %v6198 = vadd.f32 0.0, %v6197
    %v6199 = vpop.f32.mrf.mxu0
    %v6200 = vadd.f32 0.0, %v6199
    %6201 = vmatmul.bf16.gmra.mxu0 %v3199
    %v6202 = vpop.f32.mrf.mxu0
    %v6203 = vadd.f32 0.0, %v6202
    %v6204 = vpop.f32.mrf.mxu0
    %v6205 = vadd.f32 0.0, %v6204
    %6206 = vmatmul.bf16.gmra.mxu0 %v3202
    %v6207 = vpop.f32.mrf.mxu0
    %v6208 = vadd.f32 0.0, %v6207
    %v6209 = vpop.f32.mrf.mxu0
    %v6210 = vadd.f32 0.0, %v6209
    %6211 = vmatmul.bf16.gmra.mxu0 %v3205
    %v6212 = vpop.f32.mrf.mxu0
    %v6213 = vadd.f32 0.0, %v6212
    %v6214 = vpop.f32.mrf.mxu0
    %v6215 = vadd.f32 0.0, %v6214
    %6216 = vmatmul.bf16.gmra.mxu0 %v3208
    %v6217 = vpop.f32.mrf.mxu0
    %v6218 = vadd.f32 0.0, %v6217
    %v6219 = vpop.f32.mrf.mxu0
    %v6220 = vadd.f32 0.0, %v6219
    %6221 = vmatmul.bf16.gmra.mxu0 %v3211
    %v6222 = vpop.f32.mrf.mxu0
    %v6223 = vadd.f32 0.0, %v6222
    %v6224 = vpop.f32.mrf.mxu0
    %v6225 = vadd.f32 0.0, %v6224
    %6226 = vmatmul.bf16.gmra.mxu0 %v3214
    %v6227 = vpop.f32.mrf.mxu0
    %v6228 = vadd.f32 0.0, %v6227
    %v6229 = vpop.f32.mrf.mxu0
    %v6230 = vadd.f32 0.0, %v6229
    %6231 = vmatmul.bf16.gmra.mxu0 %v3217
    %v6232 = vpop.f32.mrf.mxu0
    %v6233 = vadd.f32 0.0, %v6232
    %v6234 = vpop.f32.mrf.mxu0
    %v6235 = vadd.f32 0.0, %v6234
    %6236 = vdwg.mxu0
    %6237 = vmatpush.bf16.msra.mxu0 %v5288
    %6238 = vmatpush.bf16.msra.mxu0 %v5284
    %6239 = vmatpush.bf16.msra.mxu0 %v5280
    %6240 = vmatpush.bf16.msra.mxu0 %v5276
    %6241 = vmatpush.bf16.msra.mxu0 %v5272
    %6242 = vmatpush.bf16.msra.mxu0 %v5268
    %6243 = vmatpush.bf16.msra.mxu0 %v5264
    %6244 = vmatpush.bf16.msra.mxu0 %v5260
    %6245 = vmatmul.bf16.gmra.mxu0 %v3197
    %v6246 = vpop.f32.mrf.mxu0
    %v6247 = vadd.f32 %v6198, %v6246
    %v6248 = vpop.f32.mrf.mxu0
    %v6249 = vadd.f32 %v6200, %v6248
    %6250 = vmatmul.bf16.gmra.mxu0 %v3200
    %v6251 = vpop.f32.mrf.mxu0
    %v6252 = vadd.f32 %v6203, %v6251
    %v6253 = vpop.f32.mrf.mxu0
    %v6254 = vadd.f32 %v6205, %v6253
    %6255 = vmatmul.bf16.gmra.mxu0 %v3203
    %v6256 = vpop.f32.mrf.mxu0
    %v6257 = vadd.f32 %v6208, %v6256
    %v6258 = vpop.f32.mrf.mxu0
    %v6259 = vadd.f32 %v6210, %v6258
    %6260 = vmatmul.bf16.gmra.mxu0 %v3206
    %v6261 = vpop.f32.mrf.mxu0
    %v6262 = vadd.f32 %v6213, %v6261
    %v6263 = vpop.f32.mrf.mxu0
    %v6264 = vadd.f32 %v6215, %v6263
    %6265 = vmatmul.bf16.gmra.mxu0 %v3209
    %v6266 = vpop.f32.mrf.mxu0
    %v6267 = vadd.f32 %v6218, %v6266
    %v6268 = vpop.f32.mrf.mxu0
    %v6269 = vadd.f32 %v6220, %v6268
    %6270 = vmatmul.bf16.gmra.mxu0 %v3212
    %v6271 = vpop.f32.mrf.mxu0
    %v6272 = vadd.f32 %v6223, %v6271
    %v6273 = vpop.f32.mrf.mxu0
    %v6274 = vadd.f32 %v6225, %v6273
    %6275 = vmatmul.bf16.gmra.mxu0 %v3215
    %v6276 = vpop.f32.mrf.mxu0
    %v6277 = vadd.f32 %v6228, %v6276
    %v6278 = vpop.f32.mrf.mxu0
    %v6279 = vadd.f32 %v6230, %v6278
    %6280 = vmatmul.bf16.gmra.mxu0 %v3218
    %v6281 = vpop.f32.mrf.mxu0
    %v6282 = vadd.f32 %v6233, %v6281
    %v6283 = vpop.f32.mrf.mxu0
    %v6284 = vadd.f32 %v6235, %v6283
    %6285 = vdwg.mxu0
    %6286 = vmatpush.bf16.msra.mxu0 %v5320
    %6287 = vmatpush.bf16.msra.mxu0 %v5316
    %6288 = vmatpush.bf16.msra.mxu0 %v5312
    %6289 = vmatpush.bf16.msra.mxu0 %v5308
    %6290 = vmatpush.bf16.msra.mxu0 %v5304
    %6291 = vmatpush.bf16.msra.mxu0 %v5300
    %6292 = vmatpush.bf16.msra.mxu0 %v5296
    %6293 = vmatpush.bf16.msra.mxu0 %v5292
    %6294 = vmatmul.bf16.gmra.mxu0 %v3198
    %v6295 = vpop.f32.mrf.mxu0
    %v6296 = vadd.f32 %v6247, %v6295
    %v6297 = vpop.f32.mrf.mxu0
    %v6298 = vadd.f32 %v6249, %v6297
    %6299 = vmatmul.bf16.gmra.mxu0 %v3201
    %v6300 = vpop.f32.mrf.mxu0
    %v6301 = vadd.f32 %v6252, %v6300
    %v6302 = vpop.f32.mrf.mxu0
    %v6303 = vadd.f32 %v6254, %v6302
    %6304 = vmatmul.bf16.gmra.mxu0 %v3204
    %v6305 = vpop.f32.mrf.mxu0
    %v6306 = vadd.f32 %v6257, %v6305
    %v6307 = vpop.f32.mrf.mxu0
    %v6308 = vadd.f32 %v6259, %v6307
    %6309 = vmatmul.bf16.gmra.mxu0 %v3207
    %v6310 = vpop.f32.mrf.mxu0
    %v6311 = vadd.f32 %v6262, %v6310
    %v6312 = vpop.f32.mrf.mxu0
    %v6313 = vadd.f32 %v6264, %v6312
    %6314 = vmatmul.bf16.gmra.mxu0 %v3210
    %v6315 = vpop.f32.mrf.mxu0
    %v6316 = vadd.f32 %v6267, %v6315
    %v6317 = vpop.f32.mrf.mxu0
    %v6318 = vadd.f32 %v6269, %v6317
    %6319 = vmatmul.bf16.gmra.mxu0 %v3213
    %v6320 = vpop.f32.mrf.mxu0
    %v6321 = vadd.f32 %v6272, %v6320
    %v6322 = vpop.f32.mrf.mxu0
    %v6323 = vadd.f32 %v6274, %v6322
    %6324 = vmatmul.bf16.gmra.mxu0 %v3216
    %v6325 = vpop.f32.mrf.mxu0
    %v6326 = vadd.f32 %v6277, %v6325
    %v6327 = vpop.f32.mrf.mxu0
    %v6328 = vadd.f32 %v6279, %v6327
    %6329 = vmatmul.bf16.gmra.mxu0 %v3219
    %v6330 = vpop.f32.mrf.mxu0
    %v6331 = vadd.f32 %v6282, %v6330
    %v6332 = vpop.f32.mrf.mxu0
    %v6333 = vadd.f32 %v6284, %v6332
    %6334 = vdwg.mxu0
    %6335 = vmatpush.bf16.msra.mxu0 %v5352
    %6336 = vmatpush.bf16.msra.mxu0 %v5348
    %6337 = vmatpush.bf16.msra.mxu0 %v5344
    %6338 = vmatpush.bf16.msra.mxu0 %v5340
    %6339 = vmatpush.bf16.msra.mxu0 %v5336
    %6340 = vmatpush.bf16.msra.mxu0 %v5332
    %6341 = vmatpush.bf16.msra.mxu0 %v5328
    %6342 = vmatpush.bf16.msra.mxu0 %v5324
    %6343 = vmatmul.bf16.gmra.mxu0 %v3199
    %v6344 = vpop.f32.mrf.mxu0
    %v6345 = vadd.f32 %v6296, %v6344
    %v6346 = vpop.f32.mrf.mxu0
    %v6347 = vadd.f32 %v6298, %v6346
    %6348 = vmatmul.bf16.gmra.mxu0 %v3202
    %v6349 = vpop.f32.mrf.mxu0
    %v6350 = vadd.f32 %v6301, %v6349
    %v6351 = vpop.f32.mrf.mxu0
    %v6352 = vadd.f32 %v6303, %v6351
    %6353 = vmatmul.bf16.gmra.mxu0 %v3205
    %v6354 = vpop.f32.mrf.mxu0
    %v6355 = vadd.f32 %v6306, %v6354
    %v6356 = vpop.f32.mrf.mxu0
    %v6357 = vadd.f32 %v6308, %v6356
    %6358 = vmatmul.bf16.gmra.mxu0 %v3208
    %v6359 = vpop.f32.mrf.mxu0
    %v6360 = vadd.f32 %v6311, %v6359
    %v6361 = vpop.f32.mrf.mxu0
    %v6362 = vadd.f32 %v6313, %v6361
    %6363 = vmatmul.bf16.gmra.mxu0 %v3211
    %v6364 = vpop.f32.mrf.mxu0
    %v6365 = vadd.f32 %v6316, %v6364
    %v6366 = vpop.f32.mrf.mxu0
    %v6367 = vadd.f32 %v6318, %v6366
    %6368 = vmatmul.bf16.gmra.mxu0 %v3214
    %v6369 = vpop.f32.mrf.mxu0
    %v6370 = vadd.f32 %v6321, %v6369
    %v6371 = vpop.f32.mrf.mxu0
    %v6372 = vadd.f32 %v6323, %v6371
    %6373 = vmatmul.bf16.gmra.mxu0 %v3217
    %v6374 = vpop.f32.mrf.mxu0
    %v6375 = vadd.f32 %v6326, %v6374
    %v6376 = vpop.f32.mrf.mxu0
    %v6377 = vadd.f32 %v6328, %v6376
    %6378 = vmatmul.bf16.gmra.mxu0 %v3254
    %v6379 = vpop.f32.mrf.mxu0
    %v6380 = vadd.f32 %v6331, %v6379
    %v6381 = vpop.f32.mrf.mxu0
    %v6382 = vadd.f32 %v6333, %v6381
    %6383 = vdwg.mxu0
    %6384 = vmatpush.bf16.msra.mxu0 %v5384
    %6385 = vmatpush.bf16.msra.mxu0 %v5380
    %6386 = vmatpush.bf16.msra.mxu0 %v5376
    %6387 = vmatpush.bf16.msra.mxu0 %v5372
    %6388 = vmatpush.bf16.msra.mxu0 %v5368
    %6389 = vmatpush.bf16.msra.mxu0 %v5364
    %6390 = vmatpush.bf16.msra.mxu0 %v5360
    %6391 = vmatpush.bf16.msra.mxu0 %v5356
    %6392 = vmatmul.bf16.gmra.mxu0 %v3200
    %v6393 = vpop.f32.mrf.mxu0
    %v6394 = vadd.f32 %v6345, %v6393
    %v6395 = vpop.f32.mrf.mxu0
    %v6396 = vadd.f32 %v6347, %v6395
    %6397 = vmatmul.bf16.gmra.mxu0 %v3203
    %v6398 = vpop.f32.mrf.mxu0
    %v6399 = vadd.f32 %v6350, %v6398
    %v6400 = vpop.f32.mrf.mxu0
    %v6401 = vadd.f32 %v6352, %v6400
    %6402 = vmatmul.bf16.gmra.mxu0 %v3206
    %v6403 = vpop.f32.mrf.mxu0
    %v6404 = vadd.f32 %v6355, %v6403
    %v6405 = vpop.f32.mrf.mxu0
    %v6406 = vadd.f32 %v6357, %v6405
    %6407 = vmatmul.bf16.gmra.mxu0 %v3209
    %v6408 = vpop.f32.mrf.mxu0
    %v6409 = vadd.f32 %v6360, %v6408
    %v6410 = vpop.f32.mrf.mxu0
    %v6411 = vadd.f32 %v6362, %v6410
    %6412 = vmatmul.bf16.gmra.mxu0 %v3212
    %v6413 = vpop.f32.mrf.mxu0
    %v6414 = vadd.f32 %v6365, %v6413
    %v6415 = vpop.f32.mrf.mxu0
    %v6416 = vadd.f32 %v6367, %v6415
    %6417 = vmatmul.bf16.gmra.mxu0 %v3215
    %v6418 = vpop.f32.mrf.mxu0
    %v6419 = vadd.f32 %v6370, %v6418
    %v6420 = vpop.f32.mrf.mxu0
    %v6421 = vadd.f32 %v6372, %v6420
    %6422 = vmatmul.bf16.gmra.mxu0 %v3218
    %v6423 = vpop.f32.mrf.mxu0
    %v6424 = vadd.f32 %v6375, %v6423
    %v6425 = vpop.f32.mrf.mxu0
    %v6426 = vadd.f32 %v6377, %v6425
    %6427 = vmatmul.bf16.gmra.mxu0 %v3255
    %v6428 = vpop.f32.mrf.mxu0
    %v6429 = vadd.f32 %v6380, %v6428
    %v6430 = vpop.f32.mrf.mxu0
    %v6431 = vadd.f32 %v6382, %v6430
    %6432 = vdwg.mxu0
    %6433 = vmatpush.bf16.msra.mxu0 %v5416
    %6434 = vmatpush.bf16.msra.mxu0 %v5412
    %6435 = vmatpush.bf16.msra.mxu0 %v5408
    %6436 = vmatpush.bf16.msra.mxu0 %v5404
    %6437 = vmatpush.bf16.msra.mxu0 %v5400
    %6438 = vmatpush.bf16.msra.mxu0 %v5396
    %6439 = vmatpush.bf16.msra.mxu0 %v5392
    %6440 = vmatpush.bf16.msra.mxu0 %v5388
    %6441 = vmatmul.bf16.gmra.mxu0 %v3201
    %v6442 = vpop.f32.mrf.mxu0
    %v6443 = vadd.f32 %v6394, %v6442
    %v6444 = vpop.f32.mrf.mxu0
    %v6445 = vadd.f32 %v6396, %v6444
    %6446 = vmatmul.bf16.gmra.mxu0 %v3204
    %v6447 = vpop.f32.mrf.mxu0
    %v6448 = vadd.f32 %v6399, %v6447
    %v6449 = vpop.f32.mrf.mxu0
    %v6450 = vadd.f32 %v6401, %v6449
    %6451 = vmatmul.bf16.gmra.mxu0 %v3207
    %v6452 = vpop.f32.mrf.mxu0
    %v6453 = vadd.f32 %v6404, %v6452
    %v6454 = vpop.f32.mrf.mxu0
    %v6455 = vadd.f32 %v6406, %v6454
    %6456 = vmatmul.bf16.gmra.mxu0 %v3210
    %v6457 = vpop.f32.mrf.mxu0
    %v6458 = vadd.f32 %v6409, %v6457
    %v6459 = vpop.f32.mrf.mxu0
    %v6460 = vadd.f32 %v6411, %v6459
    %6461 = vmatmul.bf16.gmra.mxu0 %v3213
    %v6462 = vpop.f32.mrf.mxu0
    %v6463 = vadd.f32 %v6414, %v6462
    %v6464 = vpop.f32.mrf.mxu0
    %v6465 = vadd.f32 %v6416, %v6464
    %6466 = vmatmul.bf16.gmra.mxu0 %v3216
    %v6467 = vpop.f32.mrf.mxu0
    %v6468 = vadd.f32 %v6419, %v6467
    %v6469 = vpop.f32.mrf.mxu0
    %v6470 = vadd.f32 %v6421, %v6469
    %6471 = vmatmul.bf16.gmra.mxu0 %v3219
    %v6472 = vpop.f32.mrf.mxu0
    %v6473 = vadd.f32 %v6424, %v6472
    %v6474 = vpop.f32.mrf.mxu0
    %v6475 = vadd.f32 %v6426, %v6474
    %6476 = vmatmul.bf16.gmra.mxu0 %v3256
    %v6477 = vpop.f32.mrf.mxu0
    %v6478 = vadd.f32 %v6429, %v6477
    %v6479 = vpop.f32.mrf.mxu0
    %v6480 = vadd.f32 %v6431, %v6479
    %6481 = vdwg.mxu0
    %6482 = vmatpush.bf16.msra.mxu0 %v5448
    %6483 = vmatpush.bf16.msra.mxu0 %v5444
    %6484 = vmatpush.bf16.msra.mxu0 %v5440
    %6485 = vmatpush.bf16.msra.mxu0 %v5436
    %6486 = vmatpush.bf16.msra.mxu0 %v5432
    %6487 = vmatpush.bf16.msra.mxu0 %v5428
    %6488 = vmatpush.bf16.msra.mxu0 %v5424
    %6489 = vmatpush.bf16.msra.mxu0 %v5420
    %6490 = vmatmul.bf16.gmra.mxu0 %v3202
    %v6491 = vpop.f32.mrf.mxu0
    %v6492 = vadd.f32 %v6443, %v6491
    %v6493 = vpop.f32.mrf.mxu0
    %v6494 = vadd.f32 %v6445, %v6493
    %6495 = vmatmul.bf16.gmra.mxu0 %v3205
    %v6496 = vpop.f32.mrf.mxu0
    %v6497 = vadd.f32 %v6448, %v6496
    %v6498 = vpop.f32.mrf.mxu0
    %v6499 = vadd.f32 %v6450, %v6498
    %6500 = vmatmul.bf16.gmra.mxu0 %v3208
    %v6501 = vpop.f32.mrf.mxu0
    %v6502 = vadd.f32 %v6453, %v6501
    %v6503 = vpop.f32.mrf.mxu0
    %v6504 = vadd.f32 %v6455, %v6503
    %6505 = vmatmul.bf16.gmra.mxu0 %v3211
    %v6506 = vpop.f32.mrf.mxu0
    %v6507 = vadd.f32 %v6458, %v6506
    %v6508 = vpop.f32.mrf.mxu0
    %v6509 = vadd.f32 %v6460, %v6508
    %6510 = vmatmul.bf16.gmra.mxu0 %v3214
    %v6511 = vpop.f32.mrf.mxu0
    %v6512 = vadd.f32 %v6463, %v6511
    %v6513 = vpop.f32.mrf.mxu0
    %v6514 = vadd.f32 %v6465, %v6513
    %6515 = vmatmul.bf16.gmra.mxu0 %v3217
    %v6516 = vpop.f32.mrf.mxu0
    %v6517 = vadd.f32 %v6468, %v6516
    %v6518 = vpop.f32.mrf.mxu0
    %v6519 = vadd.f32 %v6470, %v6518
    %6520 = vmatmul.bf16.gmra.mxu0 %v3254
    %v6521 = vpop.f32.mrf.mxu0
    %v6522 = vadd.f32 %v6473, %v6521
    %v6523 = vpop.f32.mrf.mxu0
    %v6524 = vadd.f32 %v6475, %v6523
    %6525 = vmatmul.bf16.gmra.mxu0 %v3270
    %v6526 = vpop.f32.mrf.mxu0
    %v6527 = vadd.f32 %v6478, %v6526
    %v6528 = vpop.f32.mrf.mxu0
    %v6529 = vadd.f32 %v6480, %v6528
    %6530 = vdwg.mxu0
    %6531 = vmatpush.bf16.msra.mxu0 %v5480
    %6532 = vmatpush.bf16.msra.mxu0 %v5476
    %6533 = vmatpush.bf16.msra.mxu0 %v5472
    %6534 = vmatpush.bf16.msra.mxu0 %v5468
    %6535 = vmatpush.bf16.msra.mxu0 %v5464
    %6536 = vmatpush.bf16.msra.mxu0 %v5460
    %6537 = vmatpush.bf16.msra.mxu0 %v5456
    %6538 = vmatpush.bf16.msra.mxu0 %v5452
    %6539 = vmatmul.bf16.gmra.mxu0 %v3203
    %v6540 = vpop.f32.mrf.mxu0
    %v6541 = vadd.f32 %v6492, %v6540
    %v6542 = vpop.f32.mrf.mxu0
    %v6543 = vadd.f32 %v6494, %v6542
    %6544 = vmatmul.bf16.gmra.mxu0 %v3206
    %v6545 = vpop.f32.mrf.mxu0
    %v6546 = vadd.f32 %v6497, %v6545
    %v6547 = vpop.f32.mrf.mxu0
    %v6548 = vadd.f32 %v6499, %v6547
    %6549 = vmatmul.bf16.gmra.mxu0 %v3209
    %v6550 = vpop.f32.mrf.mxu0
    %v6551 = vadd.f32 %v6502, %v6550
    %v6552 = vpop.f32.mrf.mxu0
    %v6553 = vadd.f32 %v6504, %v6552
    %6554 = vmatmul.bf16.gmra.mxu0 %v3212
    %v6555 = vpop.f32.mrf.mxu0
    %v6556 = vadd.f32 %v6507, %v6555
    %v6557 = vpop.f32.mrf.mxu0
    %v6558 = vadd.f32 %v6509, %v6557
    %6559 = vmatmul.bf16.gmra.mxu0 %v3215
    %v6560 = vpop.f32.mrf.mxu0
    %v6561 = vadd.f32 %v6512, %v6560
    %v6562 = vpop.f32.mrf.mxu0
    %v6563 = vadd.f32 %v6514, %v6562
    %6564 = vmatmul.bf16.gmra.mxu0 %v3218
    %v6565 = vpop.f32.mrf.mxu0
    %v6566 = vadd.f32 %v6517, %v6565
    %v6567 = vpop.f32.mrf.mxu0
    %v6568 = vadd.f32 %v6519, %v6567
    %6569 = vmatmul.bf16.gmra.mxu0 %v3255
    %v6570 = vpop.f32.mrf.mxu0
    %v6571 = vadd.f32 %v6522, %v6570
    %v6572 = vpop.f32.mrf.mxu0
    %v6573 = vadd.f32 %v6524, %v6572
    %6574 = vmatmul.bf16.gmra.mxu0 %v3271
    %v6575 = vpop.f32.mrf.mxu0
    %v6576 = vadd.f32 %v6527, %v6575
    %v6577 = vpop.f32.mrf.mxu0
    %v6578 = vadd.f32 %v6529, %v6577
    %6579 = vdwg.mxu0
    %6580 = vmatpush.bf16.msra.mxu0 %v5512
    %6581 = vmatpush.bf16.msra.mxu0 %v5508
    %6582 = vmatpush.bf16.msra.mxu0 %v5504
    %6583 = vmatpush.bf16.msra.mxu0 %v5500
    %6584 = vmatpush.bf16.msra.mxu0 %v5496
    %6585 = vmatpush.bf16.msra.mxu0 %v5492
    %6586 = vmatpush.bf16.msra.mxu0 %v5488
    %6587 = vmatpush.bf16.msra.mxu0 %v5484
    %6588 = vmatmul.bf16.gmra.mxu0 %v3204
    %v6589 = vpop.f32.mrf.mxu0
    %v6590 = vadd.f32 %v6541, %v6589
    %v6591 = vpop.f32.mrf.mxu0
    %v6592 = vadd.f32 %v6543, %v6591
    %6593 = vmatmul.bf16.gmra.mxu0 %v3207
    %v6594 = vpop.f32.mrf.mxu0
    %v6595 = vadd.f32 %v6546, %v6594
    %v6596 = vpop.f32.mrf.mxu0
    %v6597 = vadd.f32 %v6548, %v6596
    %6598 = vmatmul.bf16.gmra.mxu0 %v3210
    %v6599 = vpop.f32.mrf.mxu0
    %v6600 = vadd.f32 %v6551, %v6599
    %v6601 = vpop.f32.mrf.mxu0
    %v6602 = vadd.f32 %v6553, %v6601
    %6603 = vmatmul.bf16.gmra.mxu0 %v3213
    %v6604 = vpop.f32.mrf.mxu0
    %v6605 = vadd.f32 %v6556, %v6604
    %v6606 = vpop.f32.mrf.mxu0
    %v6607 = vadd.f32 %v6558, %v6606
    %6608 = vmatmul.bf16.gmra.mxu0 %v3216
    %v6609 = vpop.f32.mrf.mxu0
    %v6610 = vadd.f32 %v6561, %v6609
    %v6611 = vpop.f32.mrf.mxu0
    %v6612 = vadd.f32 %v6563, %v6611
    %6613 = vmatmul.bf16.gmra.mxu0 %v3219
    %v6614 = vpop.f32.mrf.mxu0
    %v6615 = vadd.f32 %v6566, %v6614
    %v6616 = vpop.f32.mrf.mxu0
    %v6617 = vadd.f32 %v6568, %v6616
    %6618 = vmatmul.bf16.gmra.mxu0 %v3256
    %v6619 = vpop.f32.mrf.mxu0
    %v6620 = vadd.f32 %v6571, %v6619
    %v6621 = vpop.f32.mrf.mxu0
    %v6622 = vadd.f32 %v6573, %v6621
    %6623 = vmatmul.bf16.gmra.mxu0 %v3272
    %v6624 = vpop.f32.mrf.mxu0
    %v6625 = vadd.f32 %v6576, %v6624
    %v6626 = vpop.f32.mrf.mxu0
    %v6627 = vadd.f32 %v6578, %v6626
    %6628 = vdwg.mxu0
    %6629 = vmatpush.bf16.msra.mxu0 %v5544
    %6630 = vmatpush.bf16.msra.mxu0 %v5540
    %6631 = vmatpush.bf16.msra.mxu0 %v5536
    %6632 = vmatpush.bf16.msra.mxu0 %v5532
    %6633 = vmatpush.bf16.msra.mxu0 %v5528
    %6634 = vmatpush.bf16.msra.mxu0 %v5524
    %6635 = vmatpush.bf16.msra.mxu0 %v5520
    %6636 = vmatpush.bf16.msra.mxu0 %v5516
    %6637 = vmatmul.bf16.gmra.mxu0 %v3205
    %v6638 = vpop.f32.mrf.mxu0
    %v6639 = vadd.f32 %v6590, %v6638
    %v6640 = vpop.f32.mrf.mxu0
    %v6641 = vadd.f32 %v6592, %v6640
    %6642 = vmatmul.bf16.gmra.mxu0 %v3208
    %v6643 = vpop.f32.mrf.mxu0
    %v6644 = vadd.f32 %v6595, %v6643
    %v6645 = vpop.f32.mrf.mxu0
    %v6646 = vadd.f32 %v6597, %v6645
    %6647 = vmatmul.bf16.gmra.mxu0 %v3211
    %v6648 = vpop.f32.mrf.mxu0
    %v6649 = vadd.f32 %v6600, %v6648
    %v6650 = vpop.f32.mrf.mxu0
    %v6651 = vadd.f32 %v6602, %v6650
    %6652 = vmatmul.bf16.gmra.mxu0 %v3214
    %v6653 = vpop.f32.mrf.mxu0
    %v6654 = vadd.f32 %v6605, %v6653
    %v6655 = vpop.f32.mrf.mxu0
    %v6656 = vadd.f32 %v6607, %v6655
    %6657 = vmatmul.bf16.gmra.mxu0 %v3217
    %v6658 = vpop.f32.mrf.mxu0
    %v6659 = vadd.f32 %v6610, %v6658
    %v6660 = vpop.f32.mrf.mxu0
    %v6661 = vadd.f32 %v6612, %v6660
    %6662 = vmatmul.bf16.gmra.mxu0 %v3254
    %v6663 = vpop.f32.mrf.mxu0
    %v6664 = vadd.f32 %v6615, %v6663
    %v6665 = vpop.f32.mrf.mxu0
    %v6666 = vadd.f32 %v6617, %v6665
    %6667 = vmatmul.bf16.gmra.mxu0 %v3270
    %v6668 = vpop.f32.mrf.mxu0
    %v6669 = vadd.f32 %v6620, %v6668
    %v6670 = vpop.f32.mrf.mxu0
    %v6671 = vadd.f32 %v6622, %v6670
    %6672 = vmatmul.bf16.gmra.mxu0 %v3286
    %v6673 = vpop.f32.mrf.mxu0
    %v6674 = vadd.f32 %v6625, %v6673
    %v6675 = vpop.f32.mrf.mxu0
    %v6676 = vadd.f32 %v6627, %v6675
    %6677 = vdwg.mxu0
    %6678 = vmatpush.bf16.msra.mxu0 %v5576
    %6679 = vmatpush.bf16.msra.mxu0 %v5572
    %6680 = vmatpush.bf16.msra.mxu0 %v5568
    %6681 = vmatpush.bf16.msra.mxu0 %v5564
    %6682 = vmatpush.bf16.msra.mxu0 %v5560
    %6683 = vmatpush.bf16.msra.mxu0 %v5556
    %6684 = vmatpush.bf16.msra.mxu0 %v5552
    %6685 = vmatpush.bf16.msra.mxu0 %v5548
    %6686 = vmatmul.bf16.gmra.mxu0 %v3206
    %v6687 = vpop.f32.mrf.mxu0
    %v6688 = vadd.f32 %v6639, %v6687
    %v6689 = vpop.f32.mrf.mxu0
    %v6690 = vadd.f32 %v6641, %v6689
    %6691 = vmatmul.bf16.gmra.mxu0 %v3209
    %v6692 = vpop.f32.mrf.mxu0
    %v6693 = vadd.f32 %v6644, %v6692
    %v6694 = vpop.f32.mrf.mxu0
    %v6695 = vadd.f32 %v6646, %v6694
    %6696 = vmatmul.bf16.gmra.mxu0 %v3212
    %v6697 = vpop.f32.mrf.mxu0
    %v6698 = vadd.f32 %v6649, %v6697
    %v6699 = vpop.f32.mrf.mxu0
    %v6700 = vadd.f32 %v6651, %v6699
    %6701 = vmatmul.bf16.gmra.mxu0 %v3215
    %v6702 = vpop.f32.mrf.mxu0
    %v6703 = vadd.f32 %v6654, %v6702
    %v6704 = vpop.f32.mrf.mxu0
    %v6705 = vadd.f32 %v6656, %v6704
    %6706 = vmatmul.bf16.gmra.mxu0 %v3218
    %v6707 = vpop.f32.mrf.mxu0
    %v6708 = vadd.f32 %v6659, %v6707
    %v6709 = vpop.f32.mrf.mxu0
    %v6710 = vadd.f32 %v6661, %v6709
    %6711 = vmatmul.bf16.gmra.mxu0 %v3255
    %v6712 = vpop.f32.mrf.mxu0
    %v6713 = vadd.f32 %v6664, %v6712
    %v6714 = vpop.f32.mrf.mxu0
    %v6715 = vadd.f32 %v6666, %v6714
    %6716 = vmatmul.bf16.gmra.mxu0 %v3271
    %v6717 = vpop.f32.mrf.mxu0
    %v6718 = vadd.f32 %v6669, %v6717
    %v6719 = vpop.f32.mrf.mxu0
    %v6720 = vadd.f32 %v6671, %v6719
    %6721 = vmatmul.bf16.gmra.mxu0 %v3287
    %v6722 = vpop.f32.mrf.mxu0
    %v6723 = vadd.f32 %v6674, %v6722
    %v6724 = vpop.f32.mrf.mxu0
    %v6725 = vadd.f32 %v6676, %v6724
    %6726 = vdwg.mxu0
    %6727 = vmatpush.bf16.msra.mxu0 %v5608
    %6728 = vmatpush.bf16.msra.mxu0 %v5604
    %6729 = vmatpush.bf16.msra.mxu0 %v5600
    %6730 = vmatpush.bf16.msra.mxu0 %v5596
    %6731 = vmatpush.bf16.msra.mxu0 %v5592
    %6732 = vmatpush.bf16.msra.mxu0 %v5588
    %6733 = vmatpush.bf16.msra.mxu0 %v5584
    %6734 = vmatpush.bf16.msra.mxu0 %v5580
    %6735 = vmatmul.bf16.gmra.mxu0 %v3207
    %v6736 = vpop.f32.mrf.mxu0
    %v6737 = vadd.f32 %v6688, %v6736
    %v6738 = vpop.f32.mrf.mxu0
    %v6739 = vadd.f32 %v6690, %v6738
    %6740 = vmatmul.bf16.gmra.mxu0 %v3210
    %v6741 = vpop.f32.mrf.mxu0
    %v6742 = vadd.f32 %v6693, %v6741
    %v6743 = vpop.f32.mrf.mxu0
    %v6744 = vadd.f32 %v6695, %v6743
    %6745 = vmatmul.bf16.gmra.mxu0 %v3213
    %v6746 = vpop.f32.mrf.mxu0
    %v6747 = vadd.f32 %v6698, %v6746
    %v6748 = vpop.f32.mrf.mxu0
    %v6749 = vadd.f32 %v6700, %v6748
    %6750 = vmatmul.bf16.gmra.mxu0 %v3216
    %v6751 = vpop.f32.mrf.mxu0
    %v6752 = vadd.f32 %v6703, %v6751
    %v6753 = vpop.f32.mrf.mxu0
    %v6754 = vadd.f32 %v6705, %v6753
    %6755 = vmatmul.bf16.gmra.mxu0 %v3219
    %v6756 = vpop.f32.mrf.mxu0
    %v6757 = vadd.f32 %v6708, %v6756
    %v6758 = vpop.f32.mrf.mxu0
    %v6759 = vadd.f32 %v6710, %v6758
    %6760 = vmatmul.bf16.gmra.mxu0 %v3256
    %v6761 = vpop.f32.mrf.mxu0
    %v6762 = vadd.f32 %v6713, %v6761
    %v6763 = vpop.f32.mrf.mxu0
    %v6764 = vadd.f32 %v6715, %v6763
    %6765 = vmatmul.bf16.gmra.mxu0 %v3272
    %v6766 = vpop.f32.mrf.mxu0
    %v6767 = vadd.f32 %v6718, %v6766
    %v6768 = vpop.f32.mrf.mxu0
    %v6769 = vadd.f32 %v6720, %v6768
    %6770 = vmatmul.bf16.gmra.mxu0 %v3288
    %v6771 = vpop.f32.mrf.mxu0
    %v6772 = vadd.f32 %v6723, %v6771
    %v6773 = vpop.f32.mrf.mxu0
    %v6774 = vadd.f32 %v6725, %v6773
    %6775 = vdwg.mxu0
    %6776 = vmatpush.bf16.msra.mxu0 %v5640
    %6777 = vmatpush.bf16.msra.mxu0 %v5636
    %6778 = vmatpush.bf16.msra.mxu0 %v5632
    %6779 = vmatpush.bf16.msra.mxu0 %v5628
    %6780 = vmatpush.bf16.msra.mxu0 %v5624
    %6781 = vmatpush.bf16.msra.mxu0 %v5620
    %6782 = vmatpush.bf16.msra.mxu0 %v5616
    %6783 = vmatpush.bf16.msra.mxu0 %v5612
    %6784 = vmatmul.bf16.gmra.mxu0 %v3208
    %v6785 = vpop.f32.mrf.mxu0
    %v6786 = vadd.f32 %v6737, %v6785
    %v6787 = vpop.f32.mrf.mxu0
    %v6788 = vadd.f32 %v6739, %v6787
    %6789 = vmatmul.bf16.gmra.mxu0 %v3211
    %v6790 = vpop.f32.mrf.mxu0
    %v6791 = vadd.f32 %v6742, %v6790
    %v6792 = vpop.f32.mrf.mxu0
    %v6793 = vadd.f32 %v6744, %v6792
    %6794 = vmatmul.bf16.gmra.mxu0 %v3214
    %v6795 = vpop.f32.mrf.mxu0
    %v6796 = vadd.f32 %v6747, %v6795
    %v6797 = vpop.f32.mrf.mxu0
    %v6798 = vadd.f32 %v6749, %v6797
    %6799 = vmatmul.bf16.gmra.mxu0 %v3217
    %v6800 = vpop.f32.mrf.mxu0
    %v6801 = vadd.f32 %v6752, %v6800
    %v6802 = vpop.f32.mrf.mxu0
    %v6803 = vadd.f32 %v6754, %v6802
    %6804 = vmatmul.bf16.gmra.mxu0 %v3254
    %v6805 = vpop.f32.mrf.mxu0
    %v6806 = vadd.f32 %v6757, %v6805
    %v6807 = vpop.f32.mrf.mxu0
    %v6808 = vadd.f32 %v6759, %v6807
    %6809 = vmatmul.bf16.gmra.mxu0 %v3270
    %v6810 = vpop.f32.mrf.mxu0
    %v6811 = vadd.f32 %v6762, %v6810
    %v6812 = vpop.f32.mrf.mxu0
    %v6813 = vadd.f32 %v6764, %v6812
    %6814 = vmatmul.bf16.gmra.mxu0 %v3286
    %v6815 = vpop.f32.mrf.mxu0
    %v6816 = vadd.f32 %v6767, %v6815
    %v6817 = vpop.f32.mrf.mxu0
    %v6818 = vadd.f32 %v6769, %v6817
    %6819 = vmatmul.bf16.gmra.mxu0 %v3302
    %v6820 = vpop.f32.mrf.mxu0
    %v6821 = vadd.f32 %v6772, %v6820
    %v6822 = vpop.f32.mrf.mxu0
    %v6823 = vadd.f32 %v6774, %v6822
    %6824 = vdwg.mxu0
    %6825 = vmatpush.bf16.msra.mxu0 %v5672
    %6826 = vmatpush.bf16.msra.mxu0 %v5668
    %6827 = vmatpush.bf16.msra.mxu0 %v5664
    %6828 = vmatpush.bf16.msra.mxu0 %v5660
    %6829 = vmatpush.bf16.msra.mxu0 %v5656
    %6830 = vmatpush.bf16.msra.mxu0 %v5652
    %6831 = vmatpush.bf16.msra.mxu0 %v5648
    %6832 = vmatpush.bf16.msra.mxu0 %v5644
    %6833 = vmatmul.bf16.gmra.mxu0 %v3209
    %v6834 = vpop.f32.mrf.mxu0
    %v6835 = vadd.f32 %v6786, %v6834
    %v6836 = vpop.f32.mrf.mxu0
    %v6837 = vadd.f32 %v6788, %v6836
    %6838 = vmatmul.bf16.gmra.mxu0 %v3212
    %v6839 = vpop.f32.mrf.mxu0
    %v6840 = vadd.f32 %v6791, %v6839
    %v6841 = vpop.f32.mrf.mxu0
    %v6842 = vadd.f32 %v6793, %v6841
    %6843 = vmatmul.bf16.gmra.mxu0 %v3215
    %v6844 = vpop.f32.mrf.mxu0
    %v6845 = vadd.f32 %v6796, %v6844
    %v6846 = vpop.f32.mrf.mxu0
    %v6847 = vadd.f32 %v6798, %v6846
    %6848 = vmatmul.bf16.gmra.mxu0 %v3218
    %v6849 = vpop.f32.mrf.mxu0
    %v6850 = vadd.f32 %v6801, %v6849
    %v6851 = vpop.f32.mrf.mxu0
    %v6852 = vadd.f32 %v6803, %v6851
    %6853 = vmatmul.bf16.gmra.mxu0 %v3255
    %v6854 = vpop.f32.mrf.mxu0
    %v6855 = vadd.f32 %v6806, %v6854
    %v6856 = vpop.f32.mrf.mxu0
    %v6857 = vadd.f32 %v6808, %v6856
    %6858 = vmatmul.bf16.gmra.mxu0 %v3271
    %v6859 = vpop.f32.mrf.mxu0
    %v6860 = vadd.f32 %v6811, %v6859
    %v6861 = vpop.f32.mrf.mxu0
    %v6862 = vadd.f32 %v6813, %v6861
    %6863 = vmatmul.bf16.gmra.mxu0 %v3287
    %v6864 = vpop.f32.mrf.mxu0
    %v6865 = vadd.f32 %v6816, %v6864
    %v6866 = vpop.f32.mrf.mxu0
    %v6867 = vadd.f32 %v6818, %v6866
    %6868 = vmatmul.bf16.gmra.mxu0 %v3303
    %v6869 = vpop.f32.mrf.mxu0
    %v6870 = vadd.f32 %v6821, %v6869
    %v6871 = vpop.f32.mrf.mxu0
    %v6872 = vadd.f32 %v6823, %v6871
    %6873 = vdwg.mxu0
    %6874 = vmatpush.bf16.msra.mxu0 %v5704
    %6875 = vmatpush.bf16.msra.mxu0 %v5700
    %6876 = vmatpush.bf16.msra.mxu0 %v5696
    %6877 = vmatpush.bf16.msra.mxu0 %v5692
    %6878 = vmatpush.bf16.msra.mxu0 %v5688
    %6879 = vmatpush.bf16.msra.mxu0 %v5684
    %6880 = vmatpush.bf16.msra.mxu0 %v5680
    %6881 = vmatpush.bf16.msra.mxu0 %v5676
    %6882 = vmatmul.bf16.gmra.mxu0 %v3210
    %v6883 = vpop.f32.mrf.mxu0
    %v6884 = vadd.f32 %v6835, %v6883
    %v6885 = vpop.f32.mrf.mxu0
    %v6886 = vadd.f32 %v6837, %v6885
    %6887 = vmatmul.bf16.gmra.mxu0 %v3213
    %v6888 = vpop.f32.mrf.mxu0
    %v6889 = vadd.f32 %v6840, %v6888
    %v6890 = vpop.f32.mrf.mxu0
    %v6891 = vadd.f32 %v6842, %v6890
    %6892 = vmatmul.bf16.gmra.mxu0 %v3216
    %v6893 = vpop.f32.mrf.mxu0
    %v6894 = vadd.f32 %v6845, %v6893
    %v6895 = vpop.f32.mrf.mxu0
    %v6896 = vadd.f32 %v6847, %v6895
    %6897 = vmatmul.bf16.gmra.mxu0 %v3219
    %v6898 = vpop.f32.mrf.mxu0
    %v6899 = vadd.f32 %v6850, %v6898
    %v6900 = vpop.f32.mrf.mxu0
    %v6901 = vadd.f32 %v6852, %v6900
    %6902 = vmatmul.bf16.gmra.mxu0 %v3256
    %v6903 = vpop.f32.mrf.mxu0
    %v6904 = vadd.f32 %v6855, %v6903
    %v6905 = vpop.f32.mrf.mxu0
    %v6906 = vadd.f32 %v6857, %v6905
    %6907 = vmatmul.bf16.gmra.mxu0 %v3272
    %v6908 = vpop.f32.mrf.mxu0
    %v6909 = vadd.f32 %v6860, %v6908
    %v6910 = vpop.f32.mrf.mxu0
    %v6911 = vadd.f32 %v6862, %v6910
    %6912 = vmatmul.bf16.gmra.mxu0 %v3288
    %v6913 = vpop.f32.mrf.mxu0
    %v6914 = vadd.f32 %v6865, %v6913
    %v6915 = vpop.f32.mrf.mxu0
    %v6916 = vadd.f32 %v6867, %v6915
    %6917 = vmatmul.bf16.gmra.mxu0 %v3304
    %v6918 = vpop.f32.mrf.mxu0
    %v6919 = vadd.f32 %v6870, %v6918
    %v6920 = vpop.f32.mrf.mxu0
    %v6921 = vadd.f32 %v6872, %v6920
    %6922 = vdwg.mxu0
    %6923 = vmatpush.bf16.msra.mxu0 %v5257
    %6924 = vmatpush.bf16.msra.mxu0 %v5253
    %6925 = vmatpush.bf16.msra.mxu0 %v5249
    %6926 = vmatpush.bf16.msra.mxu0 %v5245
    %6927 = vmatpush.bf16.msra.mxu0 %v5241
    %6928 = vmatpush.bf16.msra.mxu0 %v5237
    %6929 = vmatpush.bf16.msra.mxu0 %v5233
    %6930 = vmatpush.bf16.msra.mxu0 %v5229
    %6931 = vmatmul.bf16.gmra.mxu0 %v3196
    %v6932 = vpop.f32.mrf.mxu0
    %v6933 = vadd.f32 0.0, %v6932
    %v6934 = vpop.f32.mrf.mxu0
    %v6935 = vadd.f32 0.0, %v6934
    %6936 = vmatmul.bf16.gmra.mxu0 %v3199
    %v6937 = vpop.f32.mrf.mxu0
    %v6938 = vadd.f32 0.0, %v6937
    %v6939 = vpop.f32.mrf.mxu0
    %v6940 = vadd.f32 0.0, %v6939
    %6941 = vmatmul.bf16.gmra.mxu0 %v3202
    %v6942 = vpop.f32.mrf.mxu0
    %v6943 = vadd.f32 0.0, %v6942
    %v6944 = vpop.f32.mrf.mxu0
    %v6945 = vadd.f32 0.0, %v6944
    %6946 = vmatmul.bf16.gmra.mxu0 %v3205
    %v6947 = vpop.f32.mrf.mxu0
    %v6948 = vadd.f32 0.0, %v6947
    %v6949 = vpop.f32.mrf.mxu0
    %v6950 = vadd.f32 0.0, %v6949
    %6951 = vmatmul.bf16.gmra.mxu0 %v3208
    %v6952 = vpop.f32.mrf.mxu0
    %v6953 = vadd.f32 0.0, %v6952
    %v6954 = vpop.f32.mrf.mxu0
    %v6955 = vadd.f32 0.0, %v6954
    %6956 = vmatmul.bf16.gmra.mxu0 %v3211
    %v6957 = vpop.f32.mrf.mxu0
    %v6958 = vadd.f32 0.0, %v6957
    %v6959 = vpop.f32.mrf.mxu0
    %v6960 = vadd.f32 0.0, %v6959
    %6961 = vmatmul.bf16.gmra.mxu0 %v3214
    %v6962 = vpop.f32.mrf.mxu0
    %v6963 = vadd.f32 0.0, %v6962
    %v6964 = vpop.f32.mrf.mxu0
    %v6965 = vadd.f32 0.0, %v6964
    %6966 = vmatmul.bf16.gmra.mxu0 %v3217
    %v6967 = vpop.f32.mrf.mxu0
    %v6968 = vadd.f32 0.0, %v6967
    %v6969 = vpop.f32.mrf.mxu0
    %v6970 = vadd.f32 0.0, %v6969
    %6971 = vdwg.mxu0
    %6972 = vmatpush.bf16.msra.mxu0 %v5289
    %6973 = vmatpush.bf16.msra.mxu0 %v5285
    %6974 = vmatpush.bf16.msra.mxu0 %v5281
    %6975 = vmatpush.bf16.msra.mxu0 %v5277
    %6976 = vmatpush.bf16.msra.mxu0 %v5273
    %6977 = vmatpush.bf16.msra.mxu0 %v5269
    %6978 = vmatpush.bf16.msra.mxu0 %v5265
    %6979 = vmatpush.bf16.msra.mxu0 %v5261
    %6980 = vmatmul.bf16.gmra.mxu0 %v3197
    %v6981 = vpop.f32.mrf.mxu0
    %v6982 = vadd.f32 %v6933, %v6981
    %v6983 = vpop.f32.mrf.mxu0
    %v6984 = vadd.f32 %v6935, %v6983
    %6985 = vmatmul.bf16.gmra.mxu0 %v3200
    %v6986 = vpop.f32.mrf.mxu0
    %v6987 = vadd.f32 %v6938, %v6986
    %v6988 = vpop.f32.mrf.mxu0
    %v6989 = vadd.f32 %v6940, %v6988
    %6990 = vmatmul.bf16.gmra.mxu0 %v3203
    %v6991 = vpop.f32.mrf.mxu0
    %v6992 = vadd.f32 %v6943, %v6991
    %v6993 = vpop.f32.mrf.mxu0
    %v6994 = vadd.f32 %v6945, %v6993
    %6995 = vmatmul.bf16.gmra.mxu0 %v3206
    %v6996 = vpop.f32.mrf.mxu0
    %v6997 = vadd.f32 %v6948, %v6996
    %v6998 = vpop.f32.mrf.mxu0
    %v6999 = vadd.f32 %v6950, %v6998
    %7000 = vmatmul.bf16.gmra.mxu0 %v3209
    %v7001 = vpop.f32.mrf.mxu0
    %v7002 = vadd.f32 %v6953, %v7001
    %v7003 = vpop.f32.mrf.mxu0
    %v7004 = vadd.f32 %v6955, %v7003
    %7005 = vmatmul.bf16.gmra.mxu0 %v3212
    %v7006 = vpop.f32.mrf.mxu0
    %v7007 = vadd.f32 %v6958, %v7006
    %v7008 = vpop.f32.mrf.mxu0
    %v7009 = vadd.f32 %v6960, %v7008
    %7010 = vmatmul.bf16.gmra.mxu0 %v3215
    %v7011 = vpop.f32.mrf.mxu0
    %v7012 = vadd.f32 %v6963, %v7011
    %v7013 = vpop.f32.mrf.mxu0
    %v7014 = vadd.f32 %v6965, %v7013
    %7015 = vmatmul.bf16.gmra.mxu0 %v3218
    %v7016 = vpop.f32.mrf.mxu0
    %v7017 = vadd.f32 %v6968, %v7016
    %v7018 = vpop.f32.mrf.mxu0
    %v7019 = vadd.f32 %v6970, %v7018
    %7020 = vdwg.mxu0
    %7021 = vmatpush.bf16.msra.mxu0 %v5321
    %7022 = vmatpush.bf16.msra.mxu0 %v5317
    %7023 = vmatpush.bf16.msra.mxu0 %v5313
    %7024 = vmatpush.bf16.msra.mxu0 %v5309
    %7025 = vmatpush.bf16.msra.mxu0 %v5305
    %7026 = vmatpush.bf16.msra.mxu0 %v5301
    %7027 = vmatpush.bf16.msra.mxu0 %v5297
    %7028 = vmatpush.bf16.msra.mxu0 %v5293
    %7029 = vmatmul.bf16.gmra.mxu0 %v3198
    %v7030 = vpop.f32.mrf.mxu0
    %v7031 = vadd.f32 %v6982, %v7030
    %v7032 = vpop.f32.mrf.mxu0
    %v7033 = vadd.f32 %v6984, %v7032
    %7034 = vmatmul.bf16.gmra.mxu0 %v3201
    %v7035 = vpop.f32.mrf.mxu0
    %v7036 = vadd.f32 %v6987, %v7035
    %v7037 = vpop.f32.mrf.mxu0
    %v7038 = vadd.f32 %v6989, %v7037
    %7039 = vmatmul.bf16.gmra.mxu0 %v3204
    %v7040 = vpop.f32.mrf.mxu0
    %v7041 = vadd.f32 %v6992, %v7040
    %v7042 = vpop.f32.mrf.mxu0
    %v7043 = vadd.f32 %v6994, %v7042
    %7044 = vmatmul.bf16.gmra.mxu0 %v3207
    %v7045 = vpop.f32.mrf.mxu0
    %v7046 = vadd.f32 %v6997, %v7045
    %v7047 = vpop.f32.mrf.mxu0
    %v7048 = vadd.f32 %v6999, %v7047
    %7049 = vmatmul.bf16.gmra.mxu0 %v3210
    %v7050 = vpop.f32.mrf.mxu0
    %v7051 = vadd.f32 %v7002, %v7050
    %v7052 = vpop.f32.mrf.mxu0
    %v7053 = vadd.f32 %v7004, %v7052
    %7054 = vmatmul.bf16.gmra.mxu0 %v3213
    %v7055 = vpop.f32.mrf.mxu0
    %v7056 = vadd.f32 %v7007, %v7055
    %v7057 = vpop.f32.mrf.mxu0
    %v7058 = vadd.f32 %v7009, %v7057
    %7059 = vmatmul.bf16.gmra.mxu0 %v3216
    %v7060 = vpop.f32.mrf.mxu0
    %v7061 = vadd.f32 %v7012, %v7060
    %v7062 = vpop.f32.mrf.mxu0
    %v7063 = vadd.f32 %v7014, %v7062
    %7064 = vmatmul.bf16.gmra.mxu0 %v3219
    %v7065 = vpop.f32.mrf.mxu0
    %v7066 = vadd.f32 %v7017, %v7065
    %v7067 = vpop.f32.mrf.mxu0
    %v7068 = vadd.f32 %v7019, %v7067
    %7069 = vdwg.mxu0
    %7070 = vmatpush.bf16.msra.mxu0 %v5353
    %7071 = vmatpush.bf16.msra.mxu0 %v5349
    %7072 = vmatpush.bf16.msra.mxu0 %v5345
    %7073 = vmatpush.bf16.msra.mxu0 %v5341
    %7074 = vmatpush.bf16.msra.mxu0 %v5337
    %7075 = vmatpush.bf16.msra.mxu0 %v5333
    %7076 = vmatpush.bf16.msra.mxu0 %v5329
    %7077 = vmatpush.bf16.msra.mxu0 %v5325
    %7078 = vmatmul.bf16.gmra.mxu0 %v3199
    %v7079 = vpop.f32.mrf.mxu0
    %v7080 = vadd.f32 %v7031, %v7079
    %v7081 = vpop.f32.mrf.mxu0
    %v7082 = vadd.f32 %v7033, %v7081
    %7083 = vmatmul.bf16.gmra.mxu0 %v3202
    %v7084 = vpop.f32.mrf.mxu0
    %v7085 = vadd.f32 %v7036, %v7084
    %v7086 = vpop.f32.mrf.mxu0
    %v7087 = vadd.f32 %v7038, %v7086
    %7088 = vmatmul.bf16.gmra.mxu0 %v3205
    %v7089 = vpop.f32.mrf.mxu0
    %v7090 = vadd.f32 %v7041, %v7089
    %v7091 = vpop.f32.mrf.mxu0
    %v7092 = vadd.f32 %v7043, %v7091
    %7093 = vmatmul.bf16.gmra.mxu0 %v3208
    %v7094 = vpop.f32.mrf.mxu0
    %v7095 = vadd.f32 %v7046, %v7094
    %v7096 = vpop.f32.mrf.mxu0
    %v7097 = vadd.f32 %v7048, %v7096
    %7098 = vmatmul.bf16.gmra.mxu0 %v3211
    %v7099 = vpop.f32.mrf.mxu0
    %v7100 = vadd.f32 %v7051, %v7099
    %v7101 = vpop.f32.mrf.mxu0
    %v7102 = vadd.f32 %v7053, %v7101
    %7103 = vmatmul.bf16.gmra.mxu0 %v3214
    %v7104 = vpop.f32.mrf.mxu0
    %v7105 = vadd.f32 %v7056, %v7104
    %v7106 = vpop.f32.mrf.mxu0
    %v7107 = vadd.f32 %v7058, %v7106
    %7108 = vmatmul.bf16.gmra.mxu0 %v3217
    %v7109 = vpop.f32.mrf.mxu0
    %v7110 = vadd.f32 %v7061, %v7109
    %v7111 = vpop.f32.mrf.mxu0
    %v7112 = vadd.f32 %v7063, %v7111
    %7113 = vmatmul.bf16.gmra.mxu0 %v3254
    %v7114 = vpop.f32.mrf.mxu0
    %v7115 = vadd.f32 %v7066, %v7114
    %v7116 = vpop.f32.mrf.mxu0
    %v7117 = vadd.f32 %v7068, %v7116
    %7118 = vdwg.mxu0
    %7119 = vmatpush.bf16.msra.mxu0 %v5385
    %7120 = vmatpush.bf16.msra.mxu0 %v5381
    %7121 = vmatpush.bf16.msra.mxu0 %v5377
    %7122 = vmatpush.bf16.msra.mxu0 %v5373
    %7123 = vmatpush.bf16.msra.mxu0 %v5369
    %7124 = vmatpush.bf16.msra.mxu0 %v5365
    %7125 = vmatpush.bf16.msra.mxu0 %v5361
    %7126 = vmatpush.bf16.msra.mxu0 %v5357
    %7127 = vmatmul.bf16.gmra.mxu0 %v3200
    %v7128 = vpop.f32.mrf.mxu0
    %v7129 = vadd.f32 %v7080, %v7128
    %v7130 = vpop.f32.mrf.mxu0
    %v7131 = vadd.f32 %v7082, %v7130
    %7132 = vmatmul.bf16.gmra.mxu0 %v3203
    %v7133 = vpop.f32.mrf.mxu0
    %v7134 = vadd.f32 %v7085, %v7133
    %v7135 = vpop.f32.mrf.mxu0
    %v7136 = vadd.f32 %v7087, %v7135
    %7137 = vmatmul.bf16.gmra.mxu0 %v3206
    %v7138 = vpop.f32.mrf.mxu0
    %v7139 = vadd.f32 %v7090, %v7138
    %v7140 = vpop.f32.mrf.mxu0
    %v7141 = vadd.f32 %v7092, %v7140
    %7142 = vmatmul.bf16.gmra.mxu0 %v3209
    %v7143 = vpop.f32.mrf.mxu0
    %v7144 = vadd.f32 %v7095, %v7143
    %v7145 = vpop.f32.mrf.mxu0
    %v7146 = vadd.f32 %v7097, %v7145
    %7147 = vmatmul.bf16.gmra.mxu0 %v3212
    %v7148 = vpop.f32.mrf.mxu0
    %v7149 = vadd.f32 %v7100, %v7148
    %v7150 = vpop.f32.mrf.mxu0
    %v7151 = vadd.f32 %v7102, %v7150
    %7152 = vmatmul.bf16.gmra.mxu0 %v3215
    %v7153 = vpop.f32.mrf.mxu0
    %v7154 = vadd.f32 %v7105, %v7153
    %v7155 = vpop.f32.mrf.mxu0
    %v7156 = vadd.f32 %v7107, %v7155
    %7157 = vmatmul.bf16.gmra.mxu0 %v3218
    %v7158 = vpop.f32.mrf.mxu0
    %v7159 = vadd.f32 %v7110, %v7158
    %v7160 = vpop.f32.mrf.mxu0
    %v7161 = vadd.f32 %v7112, %v7160
    %7162 = vmatmul.bf16.gmra.mxu0 %v3255
    %v7163 = vpop.f32.mrf.mxu0
    %v7164 = vadd.f32 %v7115, %v7163
    %v7165 = vpop.f32.mrf.mxu0
    %v7166 = vadd.f32 %v7117, %v7165
    %7167 = vdwg.mxu0
    %7168 = vmatpush.bf16.msra.mxu0 %v5417
    %7169 = vmatpush.bf16.msra.mxu0 %v5413
    %7170 = vmatpush.bf16.msra.mxu0 %v5409
    %7171 = vmatpush.bf16.msra.mxu0 %v5405
    %7172 = vmatpush.bf16.msra.mxu0 %v5401
    %7173 = vmatpush.bf16.msra.mxu0 %v5397
    %7174 = vmatpush.bf16.msra.mxu0 %v5393
    %7175 = vmatpush.bf16.msra.mxu0 %v5389
    %7176 = vmatmul.bf16.gmra.mxu0 %v3201
    %v7177 = vpop.f32.mrf.mxu0
    %v7178 = vadd.f32 %v7129, %v7177
    %v7179 = vpop.f32.mrf.mxu0
    %v7180 = vadd.f32 %v7131, %v7179
    %7181 = vmatmul.bf16.gmra.mxu0 %v3204
    %v7182 = vpop.f32.mrf.mxu0
    %v7183 = vadd.f32 %v7134, %v7182
    %v7184 = vpop.f32.mrf.mxu0
    %v7185 = vadd.f32 %v7136, %v7184
    %7186 = vmatmul.bf16.gmra.mxu0 %v3207
    %v7187 = vpop.f32.mrf.mxu0
    %v7188 = vadd.f32 %v7139, %v7187
    %v7189 = vpop.f32.mrf.mxu0
    %v7190 = vadd.f32 %v7141, %v7189
    %7191 = vmatmul.bf16.gmra.mxu0 %v3210
    %v7192 = vpop.f32.mrf.mxu0
    %v7193 = vadd.f32 %v7144, %v7192
    %v7194 = vpop.f32.mrf.mxu0
    %v7195 = vadd.f32 %v7146, %v7194
    %7196 = vmatmul.bf16.gmra.mxu0 %v3213
    %v7197 = vpop.f32.mrf.mxu0
    %v7198 = vadd.f32 %v7149, %v7197
    %v7199 = vpop.f32.mrf.mxu0
    %v7200 = vadd.f32 %v7151, %v7199
    %7201 = vmatmul.bf16.gmra.mxu0 %v3216
    %v7202 = vpop.f32.mrf.mxu0
    %v7203 = vadd.f32 %v7154, %v7202
    %v7204 = vpop.f32.mrf.mxu0
    %v7205 = vadd.f32 %v7156, %v7204
    %7206 = vmatmul.bf16.gmra.mxu0 %v3219
    %v7207 = vpop.f32.mrf.mxu0
    %v7208 = vadd.f32 %v7159, %v7207
    %v7209 = vpop.f32.mrf.mxu0
    %v7210 = vadd.f32 %v7161, %v7209
    %7211 = vmatmul.bf16.gmra.mxu0 %v3256
    %v7212 = vpop.f32.mrf.mxu0
    %v7213 = vadd.f32 %v7164, %v7212
    %v7214 = vpop.f32.mrf.mxu0
    %v7215 = vadd.f32 %v7166, %v7214
    %7216 = vdwg.mxu0
    %7217 = vmatpush.bf16.msra.mxu0 %v5449
    %7218 = vmatpush.bf16.msra.mxu0 %v5445
    %7219 = vmatpush.bf16.msra.mxu0 %v5441
    %7220 = vmatpush.bf16.msra.mxu0 %v5437
    %7221 = vmatpush.bf16.msra.mxu0 %v5433
    %7222 = vmatpush.bf16.msra.mxu0 %v5429
    %7223 = vmatpush.bf16.msra.mxu0 %v5425
    %7224 = vmatpush.bf16.msra.mxu0 %v5421
    %7225 = vmatmul.bf16.gmra.mxu0 %v3202
    %v7226 = vpop.f32.mrf.mxu0
    %v7227 = vadd.f32 %v7178, %v7226
    %v7228 = vpop.f32.mrf.mxu0
    %v7229 = vadd.f32 %v7180, %v7228
    %7230 = vmatmul.bf16.gmra.mxu0 %v3205
    %v7231 = vpop.f32.mrf.mxu0
    %v7232 = vadd.f32 %v7183, %v7231
    %v7233 = vpop.f32.mrf.mxu0
    %v7234 = vadd.f32 %v7185, %v7233
    %7235 = vmatmul.bf16.gmra.mxu0 %v3208
    %v7236 = vpop.f32.mrf.mxu0
    %v7237 = vadd.f32 %v7188, %v7236
    %v7238 = vpop.f32.mrf.mxu0
    %v7239 = vadd.f32 %v7190, %v7238
    %7240 = vmatmul.bf16.gmra.mxu0 %v3211
    %v7241 = vpop.f32.mrf.mxu0
    %v7242 = vadd.f32 %v7193, %v7241
    %v7243 = vpop.f32.mrf.mxu0
    %v7244 = vadd.f32 %v7195, %v7243
    %7245 = vmatmul.bf16.gmra.mxu0 %v3214
    %v7246 = vpop.f32.mrf.mxu0
    %v7247 = vadd.f32 %v7198, %v7246
    %v7248 = vpop.f32.mrf.mxu0
    %v7249 = vadd.f32 %v7200, %v7248
    %7250 = vmatmul.bf16.gmra.mxu0 %v3217
    %v7251 = vpop.f32.mrf.mxu0
    %v7252 = vadd.f32 %v7203, %v7251
    %v7253 = vpop.f32.mrf.mxu0
    %v7254 = vadd.f32 %v7205, %v7253
    %7255 = vmatmul.bf16.gmra.mxu0 %v3254
    %v7256 = vpop.f32.mrf.mxu0
    %v7257 = vadd.f32 %v7208, %v7256
    %v7258 = vpop.f32.mrf.mxu0
    %v7259 = vadd.f32 %v7210, %v7258
    %7260 = vmatmul.bf16.gmra.mxu0 %v3270
    %v7261 = vpop.f32.mrf.mxu0
    %v7262 = vadd.f32 %v7213, %v7261
    %v7263 = vpop.f32.mrf.mxu0
    %v7264 = vadd.f32 %v7215, %v7263
    %7265 = vdwg.mxu0
    %7266 = vmatpush.bf16.msra.mxu0 %v5481
    %7267 = vmatpush.bf16.msra.mxu0 %v5477
    %7268 = vmatpush.bf16.msra.mxu0 %v5473
    %7269 = vmatpush.bf16.msra.mxu0 %v5469
    %7270 = vmatpush.bf16.msra.mxu0 %v5465
    %7271 = vmatpush.bf16.msra.mxu0 %v5461
    %7272 = vmatpush.bf16.msra.mxu0 %v5457
    %7273 = vmatpush.bf16.msra.mxu0 %v5453
    %7274 = vmatmul.bf16.gmra.mxu0 %v3203
    %v7275 = vpop.f32.mrf.mxu0
    %v7276 = vadd.f32 %v7227, %v7275
    %v7277 = vpop.f32.mrf.mxu0
    %v7278 = vadd.f32 %v7229, %v7277
    %7279 = vmatmul.bf16.gmra.mxu0 %v3206
    %v7280 = vpop.f32.mrf.mxu0
    %v7281 = vadd.f32 %v7232, %v7280
    %v7282 = vpop.f32.mrf.mxu0
    %v7283 = vadd.f32 %v7234, %v7282
    %7284 = vmatmul.bf16.gmra.mxu0 %v3209
    %v7285 = vpop.f32.mrf.mxu0
    %v7286 = vadd.f32 %v7237, %v7285
    %v7287 = vpop.f32.mrf.mxu0
    %v7288 = vadd.f32 %v7239, %v7287
    %7289 = vmatmul.bf16.gmra.mxu0 %v3212
    %v7290 = vpop.f32.mrf.mxu0
    %v7291 = vadd.f32 %v7242, %v7290
    %v7292 = vpop.f32.mrf.mxu0
    %v7293 = vadd.f32 %v7244, %v7292
    %7294 = vmatmul.bf16.gmra.mxu0 %v3215
    %v7295 = vpop.f32.mrf.mxu0
    %v7296 = vadd.f32 %v7247, %v7295
    %v7297 = vpop.f32.mrf.mxu0
    %v7298 = vadd.f32 %v7249, %v7297
    %7299 = vmatmul.bf16.gmra.mxu0 %v3218
    %v7300 = vpop.f32.mrf.mxu0
    %v7301 = vadd.f32 %v7252, %v7300
    %v7302 = vpop.f32.mrf.mxu0
    %v7303 = vadd.f32 %v7254, %v7302
    %7304 = vmatmul.bf16.gmra.mxu0 %v3255
    %v7305 = vpop.f32.mrf.mxu0
    %v7306 = vadd.f32 %v7257, %v7305
    %v7307 = vpop.f32.mrf.mxu0
    %v7308 = vadd.f32 %v7259, %v7307
    %7309 = vmatmul.bf16.gmra.mxu0 %v3271
    %v7310 = vpop.f32.mrf.mxu0
    %v7311 = vadd.f32 %v7262, %v7310
    %v7312 = vpop.f32.mrf.mxu0
    %v7313 = vadd.f32 %v7264, %v7312
    %7314 = vdwg.mxu0
    %7315 = vmatpush.bf16.msra.mxu0 %v5513
    %7316 = vmatpush.bf16.msra.mxu0 %v5509
    %7317 = vmatpush.bf16.msra.mxu0 %v5505
    %7318 = vmatpush.bf16.msra.mxu0 %v5501
    %7319 = vmatpush.bf16.msra.mxu0 %v5497
    %7320 = vmatpush.bf16.msra.mxu0 %v5493
    %7321 = vmatpush.bf16.msra.mxu0 %v5489
    %7322 = vmatpush.bf16.msra.mxu0 %v5485
    %7323 = vmatmul.bf16.gmra.mxu0 %v3204
    %v7324 = vpop.f32.mrf.mxu0
    %v7325 = vadd.f32 %v7276, %v7324
    %v7326 = vpop.f32.mrf.mxu0
    %v7327 = vadd.f32 %v7278, %v7326
    %7328 = vmatmul.bf16.gmra.mxu0 %v3207
    %v7329 = vpop.f32.mrf.mxu0
    %v7330 = vadd.f32 %v7281, %v7329
    %v7331 = vpop.f32.mrf.mxu0
    %v7332 = vadd.f32 %v7283, %v7331
    %7333 = vmatmul.bf16.gmra.mxu0 %v3210
    %v7334 = vpop.f32.mrf.mxu0
    %v7335 = vadd.f32 %v7286, %v7334
    %v7336 = vpop.f32.mrf.mxu0
    %v7337 = vadd.f32 %v7288, %v7336
    %7338 = vmatmul.bf16.gmra.mxu0 %v3213
    %v7339 = vpop.f32.mrf.mxu0
    %v7340 = vadd.f32 %v7291, %v7339
    %v7341 = vpop.f32.mrf.mxu0
    %v7342 = vadd.f32 %v7293, %v7341
    %7343 = vmatmul.bf16.gmra.mxu0 %v3216
    %v7344 = vpop.f32.mrf.mxu0
    %v7345 = vadd.f32 %v7296, %v7344
    %v7346 = vpop.f32.mrf.mxu0
    %v7347 = vadd.f32 %v7298, %v7346
    %7348 = vmatmul.bf16.gmra.mxu0 %v3219
    %v7349 = vpop.f32.mrf.mxu0
    %v7350 = vadd.f32 %v7301, %v7349
    %v7351 = vpop.f32.mrf.mxu0
    %v7352 = vadd.f32 %v7303, %v7351
    %7353 = vmatmul.bf16.gmra.mxu0 %v3256
    %v7354 = vpop.f32.mrf.mxu0
    %v7355 = vadd.f32 %v7306, %v7354
    %v7356 = vpop.f32.mrf.mxu0
    %v7357 = vadd.f32 %v7308, %v7356
    %7358 = vmatmul.bf16.gmra.mxu0 %v3272
    %v7359 = vpop.f32.mrf.mxu0
    %v7360 = vadd.f32 %v7311, %v7359
    %v7361 = vpop.f32.mrf.mxu0
    %v7362 = vadd.f32 %v7313, %v7361
    %7363 = vdwg.mxu0
    %7364 = vmatpush.bf16.msra.mxu0 %v5545
    %7365 = vmatpush.bf16.msra.mxu0 %v5541
    %7366 = vmatpush.bf16.msra.mxu0 %v5537
    %7367 = vmatpush.bf16.msra.mxu0 %v5533
    %7368 = vmatpush.bf16.msra.mxu0 %v5529
    %7369 = vmatpush.bf16.msra.mxu0 %v5525
    %7370 = vmatpush.bf16.msra.mxu0 %v5521
    %7371 = vmatpush.bf16.msra.mxu0 %v5517
    %7372 = vmatmul.bf16.gmra.mxu0 %v3205
    %v7373 = vpop.f32.mrf.mxu0
    %v7374 = vadd.f32 %v7325, %v7373
    %v7375 = vpop.f32.mrf.mxu0
    %v7376 = vadd.f32 %v7327, %v7375
    %7377 = vmatmul.bf16.gmra.mxu0 %v3208
    %v7378 = vpop.f32.mrf.mxu0
    %v7379 = vadd.f32 %v7330, %v7378
    %v7380 = vpop.f32.mrf.mxu0
    %v7381 = vadd.f32 %v7332, %v7380
    %7382 = vmatmul.bf16.gmra.mxu0 %v3211
    %v7383 = vpop.f32.mrf.mxu0
    %v7384 = vadd.f32 %v7335, %v7383
    %v7385 = vpop.f32.mrf.mxu0
    %v7386 = vadd.f32 %v7337, %v7385
    %7387 = vmatmul.bf16.gmra.mxu0 %v3214
    %v7388 = vpop.f32.mrf.mxu0
    %v7389 = vadd.f32 %v7340, %v7388
    %v7390 = vpop.f32.mrf.mxu0
    %v7391 = vadd.f32 %v7342, %v7390
    %7392 = vmatmul.bf16.gmra.mxu0 %v3217
    %v7393 = vpop.f32.mrf.mxu0
    %v7394 = vadd.f32 %v7345, %v7393
    %v7395 = vpop.f32.mrf.mxu0
    %v7396 = vadd.f32 %v7347, %v7395
    %7397 = vmatmul.bf16.gmra.mxu0 %v3254
    %v7398 = vpop.f32.mrf.mxu0
    %v7399 = vadd.f32 %v7350, %v7398
    %v7400 = vpop.f32.mrf.mxu0
    %v7401 = vadd.f32 %v7352, %v7400
    %7402 = vmatmul.bf16.gmra.mxu0 %v3270
    %v7403 = vpop.f32.mrf.mxu0
    %v7404 = vadd.f32 %v7355, %v7403
    %v7405 = vpop.f32.mrf.mxu0
    %v7406 = vadd.f32 %v7357, %v7405
    %7407 = vmatmul.bf16.gmra.mxu0 %v3286
    %v7408 = vpop.f32.mrf.mxu0
    %v7409 = vadd.f32 %v7360, %v7408
    %v7410 = vpop.f32.mrf.mxu0
    %v7411 = vadd.f32 %v7362, %v7410
    %7412 = vdwg.mxu0
    %7413 = vmatpush.bf16.msra.mxu0 %v5577
    %7414 = vmatpush.bf16.msra.mxu0 %v5573
    %7415 = vmatpush.bf16.msra.mxu0 %v5569
    %7416 = vmatpush.bf16.msra.mxu0 %v5565
    %7417 = vmatpush.bf16.msra.mxu0 %v5561
    %7418 = vmatpush.bf16.msra.mxu0 %v5557
    %7419 = vmatpush.bf16.msra.mxu0 %v5553
    %7420 = vmatpush.bf16.msra.mxu0 %v5549
    %7421 = vmatmul.bf16.gmra.mxu0 %v3206
    %v7422 = vpop.f32.mrf.mxu0
    %v7423 = vadd.f32 %v7374, %v7422
    %v7424 = vpop.f32.mrf.mxu0
    %v7425 = vadd.f32 %v7376, %v7424
    %7426 = vmatmul.bf16.gmra.mxu0 %v3209
    %v7427 = vpop.f32.mrf.mxu0
    %v7428 = vadd.f32 %v7379, %v7427
    %v7429 = vpop.f32.mrf.mxu0
    %v7430 = vadd.f32 %v7381, %v7429
    %7431 = vmatmul.bf16.gmra.mxu0 %v3212
    %v7432 = vpop.f32.mrf.mxu0
    %v7433 = vadd.f32 %v7384, %v7432
    %v7434 = vpop.f32.mrf.mxu0
    %v7435 = vadd.f32 %v7386, %v7434
    %7436 = vmatmul.bf16.gmra.mxu0 %v3215
    %v7437 = vpop.f32.mrf.mxu0
    %v7438 = vadd.f32 %v7389, %v7437
    %v7439 = vpop.f32.mrf.mxu0
    %v7440 = vadd.f32 %v7391, %v7439
    %7441 = vmatmul.bf16.gmra.mxu0 %v3218
    %v7442 = vpop.f32.mrf.mxu0
    %v7443 = vadd.f32 %v7394, %v7442
    %v7444 = vpop.f32.mrf.mxu0
    %v7445 = vadd.f32 %v7396, %v7444
    %7446 = vmatmul.bf16.gmra.mxu0 %v3255
    %v7447 = vpop.f32.mrf.mxu0
    %v7448 = vadd.f32 %v7399, %v7447
    %v7449 = vpop.f32.mrf.mxu0
    %v7450 = vadd.f32 %v7401, %v7449
    %7451 = vmatmul.bf16.gmra.mxu0 %v3271
    %v7452 = vpop.f32.mrf.mxu0
    %v7453 = vadd.f32 %v7404, %v7452
    %v7454 = vpop.f32.mrf.mxu0
    %v7455 = vadd.f32 %v7406, %v7454
    %7456 = vmatmul.bf16.gmra.mxu0 %v3287
    %v7457 = vpop.f32.mrf.mxu0
    %v7458 = vadd.f32 %v7409, %v7457
    %v7459 = vpop.f32.mrf.mxu0
    %v7460 = vadd.f32 %v7411, %v7459
    %7461 = vdwg.mxu0
    %7462 = vmatpush.bf16.msra.mxu0 %v5609
    %7463 = vmatpush.bf16.msra.mxu0 %v5605
    %7464 = vmatpush.bf16.msra.mxu0 %v5601
    %7465 = vmatpush.bf16.msra.mxu0 %v5597
    %7466 = vmatpush.bf16.msra.mxu0 %v5593
    %7467 = vmatpush.bf16.msra.mxu0 %v5589
    %7468 = vmatpush.bf16.msra.mxu0 %v5585
    %7469 = vmatpush.bf16.msra.mxu0 %v5581
    %7470 = vmatmul.bf16.gmra.mxu0 %v3207
    %v7471 = vpop.f32.mrf.mxu0
    %v7472 = vadd.f32 %v7423, %v7471
    %v7473 = vpop.f32.mrf.mxu0
    %v7474 = vadd.f32 %v7425, %v7473
    %7475 = vmatmul.bf16.gmra.mxu0 %v3210
    %v7476 = vpop.f32.mrf.mxu0
    %v7477 = vadd.f32 %v7428, %v7476
    %v7478 = vpop.f32.mrf.mxu0
    %v7479 = vadd.f32 %v7430, %v7478
    %7480 = vmatmul.bf16.gmra.mxu0 %v3213
    %v7481 = vpop.f32.mrf.mxu0
    %v7482 = vadd.f32 %v7433, %v7481
    %v7483 = vpop.f32.mrf.mxu0
    %v7484 = vadd.f32 %v7435, %v7483
    %7485 = vmatmul.bf16.gmra.mxu0 %v3216
    %v7486 = vpop.f32.mrf.mxu0
    %v7487 = vadd.f32 %v7438, %v7486
    %v7488 = vpop.f32.mrf.mxu0
    %v7489 = vadd.f32 %v7440, %v7488
    %7490 = vmatmul.bf16.gmra.mxu0 %v3219
    %v7491 = vpop.f32.mrf.mxu0
    %v7492 = vadd.f32 %v7443, %v7491
    %v7493 = vpop.f32.mrf.mxu0
    %v7494 = vadd.f32 %v7445, %v7493
    %7495 = vmatmul.bf16.gmra.mxu0 %v3256
    %v7496 = vpop.f32.mrf.mxu0
    %v7497 = vadd.f32 %v7448, %v7496
    %v7498 = vpop.f32.mrf.mxu0
    %v7499 = vadd.f32 %v7450, %v7498
    %7500 = vmatmul.bf16.gmra.mxu0 %v3272
    %v7501 = vpop.f32.mrf.mxu0
    %v7502 = vadd.f32 %v7453, %v7501
    %v7503 = vpop.f32.mrf.mxu0
    %v7504 = vadd.f32 %v7455, %v7503
    %7505 = vmatmul.bf16.gmra.mxu0 %v3288
    %v7506 = vpop.f32.mrf.mxu0
    %v7507 = vadd.f32 %v7458, %v7506
    %v7508 = vpop.f32.mrf.mxu0
    %v7509 = vadd.f32 %v7460, %v7508
    %7510 = vdwg.mxu0
    %7511 = vmatpush.bf16.msra.mxu0 %v5641
    %7512 = vmatpush.bf16.msra.mxu0 %v5637
    %7513 = vmatpush.bf16.msra.mxu0 %v5633
    %7514 = vmatpush.bf16.msra.mxu0 %v5629
    %7515 = vmatpush.bf16.msra.mxu0 %v5625
    %7516 = vmatpush.bf16.msra.mxu0 %v5621
    %7517 = vmatpush.bf16.msra.mxu0 %v5617
    %7518 = vmatpush.bf16.msra.mxu0 %v5613
    %7519 = vmatmul.bf16.gmra.mxu0 %v3208
    %v7520 = vpop.f32.mrf.mxu0
    %v7521 = vadd.f32 %v7472, %v7520
    %v7522 = vpop.f32.mrf.mxu0
    %v7523 = vadd.f32 %v7474, %v7522
    %7524 = vmatmul.bf16.gmra.mxu0 %v3211
    %v7525 = vpop.f32.mrf.mxu0
    %v7526 = vadd.f32 %v7477, %v7525
    %v7527 = vpop.f32.mrf.mxu0
    %v7528 = vadd.f32 %v7479, %v7527
    %7529 = vmatmul.bf16.gmra.mxu0 %v3214
    %v7530 = vpop.f32.mrf.mxu0
    %v7531 = vadd.f32 %v7482, %v7530
    %v7532 = vpop.f32.mrf.mxu0
    %v7533 = vadd.f32 %v7484, %v7532
    %7534 = vmatmul.bf16.gmra.mxu0 %v3217
    %v7535 = vpop.f32.mrf.mxu0
    %v7536 = vadd.f32 %v7487, %v7535
    %v7537 = vpop.f32.mrf.mxu0
    %v7538 = vadd.f32 %v7489, %v7537
    %7539 = vmatmul.bf16.gmra.mxu0 %v3254
    %v7540 = vpop.f32.mrf.mxu0
    %v7541 = vadd.f32 %v7492, %v7540
    %v7542 = vpop.f32.mrf.mxu0
    %v7543 = vadd.f32 %v7494, %v7542
    %7544 = vmatmul.bf16.gmra.mxu0 %v3270
    %v7545 = vpop.f32.mrf.mxu0
    %v7546 = vadd.f32 %v7497, %v7545
    %v7547 = vpop.f32.mrf.mxu0
    %v7548 = vadd.f32 %v7499, %v7547
    %7549 = vmatmul.bf16.gmra.mxu0 %v3286
    %v7550 = vpop.f32.mrf.mxu0
    %v7551 = vadd.f32 %v7502, %v7550
    %v7552 = vpop.f32.mrf.mxu0
    %v7553 = vadd.f32 %v7504, %v7552
    %7554 = vmatmul.bf16.gmra.mxu0 %v3302
    %v7555 = vpop.f32.mrf.mxu0
    %v7556 = vadd.f32 %v7507, %v7555
    %v7557 = vpop.f32.mrf.mxu0
    %v7558 = vadd.f32 %v7509, %v7557
    %7559 = vdwg.mxu0
    %7560 = vmatpush.bf16.msra.mxu0 %v5673
    %7561 = vmatpush.bf16.msra.mxu0 %v5669
    %7562 = vmatpush.bf16.msra.mxu0 %v5665
    %7563 = vmatpush.bf16.msra.mxu0 %v5661
    %7564 = vmatpush.bf16.msra.mxu0 %v5657
    %7565 = vmatpush.bf16.msra.mxu0 %v5653
    %7566 = vmatpush.bf16.msra.mxu0 %v5649
    %7567 = vmatpush.bf16.msra.mxu0 %v5645
    %7568 = vmatmul.bf16.gmra.mxu0 %v3209
    %v7569 = vpop.f32.mrf.mxu0
    %v7570 = vadd.f32 %v7521, %v7569
    %v7571 = vpop.f32.mrf.mxu0
    %v7572 = vadd.f32 %v7523, %v7571
    %7573 = vmatmul.bf16.gmra.mxu0 %v3212
    %v7574 = vpop.f32.mrf.mxu0
    %v7575 = vadd.f32 %v7526, %v7574
    %v7576 = vpop.f32.mrf.mxu0
    %v7577 = vadd.f32 %v7528, %v7576
    %7578 = vmatmul.bf16.gmra.mxu0 %v3215
    %v7579 = vpop.f32.mrf.mxu0
    %v7580 = vadd.f32 %v7531, %v7579
    %v7581 = vpop.f32.mrf.mxu0
    %v7582 = vadd.f32 %v7533, %v7581
    %7583 = vmatmul.bf16.gmra.mxu0 %v3218
    %v7584 = vpop.f32.mrf.mxu0
    %v7585 = vadd.f32 %v7536, %v7584
    %v7586 = vpop.f32.mrf.mxu0
    %v7587 = vadd.f32 %v7538, %v7586
    %7588 = vmatmul.bf16.gmra.mxu0 %v3255
    %v7589 = vpop.f32.mrf.mxu0
    %v7590 = vadd.f32 %v7541, %v7589
    %v7591 = vpop.f32.mrf.mxu0
    %v7592 = vadd.f32 %v7543, %v7591
    %7593 = vmatmul.bf16.gmra.mxu0 %v3271
    %v7594 = vpop.f32.mrf.mxu0
    %v7595 = vadd.f32 %v7546, %v7594
    %v7596 = vpop.f32.mrf.mxu0
    %v7597 = vadd.f32 %v7548, %v7596
    %7598 = vmatmul.bf16.gmra.mxu0 %v3287
    %v7599 = vpop.f32.mrf.mxu0
    %v7600 = vadd.f32 %v7551, %v7599
    %v7601 = vpop.f32.mrf.mxu0
    %v7602 = vadd.f32 %v7553, %v7601
    %7603 = vmatmul.bf16.gmra.mxu0 %v3303
    %v7604 = vpop.f32.mrf.mxu0
    %v7605 = vadd.f32 %v7556, %v7604
    %v7606 = vpop.f32.mrf.mxu0
    %v7607 = vadd.f32 %v7558, %v7606
    %7608 = vdwg.mxu0
    %7609 = vmatpush.bf16.msra.mxu0 %v5705
    %7610 = vmatpush.bf16.msra.mxu0 %v5701
    %7611 = vmatpush.bf16.msra.mxu0 %v5697
    %7612 = vmatpush.bf16.msra.mxu0 %v5693
    %7613 = vmatpush.bf16.msra.mxu0 %v5689
    %7614 = vmatpush.bf16.msra.mxu0 %v5685
    %7615 = vmatpush.bf16.msra.mxu0 %v5681
    %7616 = vmatpush.bf16.msra.mxu0 %v5677
    %7617 = vmatmul.bf16.gmra.mxu0 %v3210
    %v7618 = vpop.f32.mrf.mxu0
    %v7619 = vadd.f32 %v7570, %v7618
    %v7620 = vpop.f32.mrf.mxu0
    %v7621 = vadd.f32 %v7572, %v7620
    %7622 = vmatmul.bf16.gmra.mxu0 %v3213
    %v7623 = vpop.f32.mrf.mxu0
    %v7624 = vadd.f32 %v7575, %v7623
    %v7625 = vpop.f32.mrf.mxu0
    %v7626 = vadd.f32 %v7577, %v7625
    %7627 = vmatmul.bf16.gmra.mxu0 %v3216
    %v7628 = vpop.f32.mrf.mxu0
    %v7629 = vadd.f32 %v7580, %v7628
    %v7630 = vpop.f32.mrf.mxu0
    %v7631 = vadd.f32 %v7582, %v7630
    %7632 = vmatmul.bf16.gmra.mxu0 %v3219
    %v7633 = vpop.f32.mrf.mxu0
    %v7634 = vadd.f32 %v7585, %v7633
    %v7635 = vpop.f32.mrf.mxu0
    %v7636 = vadd.f32 %v7587, %v7635
    %7637 = vmatmul.bf16.gmra.mxu0 %v3256
    %v7638 = vpop.f32.mrf.mxu0
    %v7639 = vadd.f32 %v7590, %v7638
    %v7640 = vpop.f32.mrf.mxu0
    %v7641 = vadd.f32 %v7592, %v7640
    %7642 = vmatmul.bf16.gmra.mxu0 %v3272
    %v7643 = vpop.f32.mrf.mxu0
    %v7644 = vadd.f32 %v7595, %v7643
    %v7645 = vpop.f32.mrf.mxu0
    %v7646 = vadd.f32 %v7597, %v7645
    %7647 = vmatmul.bf16.gmra.mxu0 %v3288
    %v7648 = vpop.f32.mrf.mxu0
    %v7649 = vadd.f32 %v7600, %v7648
    %v7650 = vpop.f32.mrf.mxu0
    %v7651 = vadd.f32 %v7602, %v7650
    %7652 = vmatmul.bf16.gmra.mxu0 %v3304
    %v7653 = vpop.f32.mrf.mxu0
    %v7654 = vadd.f32 %v7605, %v7653
    %v7655 = vpop.f32.mrf.mxu0
    %v7656 = vadd.f32 %v7607, %v7655
    %7657 = vdwg.mxu0
    %7658 = vmatpush.bf16.msra.mxu0 %v5258
    %7659 = vmatpush.bf16.msra.mxu0 %v5254
    %7660 = vmatpush.bf16.msra.mxu0 %v5250
    %7661 = vmatpush.bf16.msra.mxu0 %v5246
    %7662 = vmatpush.bf16.msra.mxu0 %v5242
    %7663 = vmatpush.bf16.msra.mxu0 %v5238
    %7664 = vmatpush.bf16.msra.mxu0 %v5234
    %7665 = vmatpush.bf16.msra.mxu0 %v5230
    %7666 = vmatmul.bf16.gmra.mxu0 %v3196
    %v7667 = vpop.f32.mrf.mxu0
    %v7668 = vadd.f32 0.0, %v7667
    %v7669 = vpop.f32.mrf.mxu0
    %v7670 = vadd.f32 0.0, %v7669
    %7671 = vmatmul.bf16.gmra.mxu0 %v3199
    %v7672 = vpop.f32.mrf.mxu0
    %v7673 = vadd.f32 0.0, %v7672
    %v7674 = vpop.f32.mrf.mxu0
    %v7675 = vadd.f32 0.0, %v7674
    %7676 = vmatmul.bf16.gmra.mxu0 %v3202
    %v7677 = vpop.f32.mrf.mxu0
    %v7678 = vadd.f32 0.0, %v7677
    %v7679 = vpop.f32.mrf.mxu0
    %v7680 = vadd.f32 0.0, %v7679
    %7681 = vmatmul.bf16.gmra.mxu0 %v3205
    %v7682 = vpop.f32.mrf.mxu0
    %v7683 = vadd.f32 0.0, %v7682
    %v7684 = vpop.f32.mrf.mxu0
    %v7685 = vadd.f32 0.0, %v7684
    %7686 = vmatmul.bf16.gmra.mxu0 %v3208
    %v7687 = vpop.f32.mrf.mxu0
    %v7688 = vadd.f32 0.0, %v7687
    %v7689 = vpop.f32.mrf.mxu0
    %v7690 = vadd.f32 0.0, %v7689
    %7691 = vmatmul.bf16.gmra.mxu0 %v3211
    %v7692 = vpop.f32.mrf.mxu0
    %v7693 = vadd.f32 0.0, %v7692
    %v7694 = vpop.f32.mrf.mxu0
    %v7695 = vadd.f32 0.0, %v7694
    %7696 = vmatmul.bf16.gmra.mxu0 %v3214
    %v7697 = vpop.f32.mrf.mxu0
    %v7698 = vadd.f32 0.0, %v7697
    %v7699 = vpop.f32.mrf.mxu0
    %v7700 = vadd.f32 0.0, %v7699
    %7701 = vmatmul.bf16.gmra.mxu0 %v3217
    %v7702 = vpop.f32.mrf.mxu0
    %v7703 = vadd.f32 0.0, %v7702
    %v7704 = vpop.f32.mrf.mxu0
    %v7705 = vadd.f32 0.0, %v7704
    %7706 = vdwg.mxu0
    %7707 = vmatpush.bf16.msra.mxu0 %v5290
    %7708 = vmatpush.bf16.msra.mxu0 %v5286
    %7709 = vmatpush.bf16.msra.mxu0 %v5282
    %7710 = vmatpush.bf16.msra.mxu0 %v5278
    %7711 = vmatpush.bf16.msra.mxu0 %v5274
    %7712 = vmatpush.bf16.msra.mxu0 %v5270
    %7713 = vmatpush.bf16.msra.mxu0 %v5266
    %7714 = vmatpush.bf16.msra.mxu0 %v5262
    %7715 = vmatmul.bf16.gmra.mxu0 %v3197
    %v7716 = vpop.f32.mrf.mxu0
    %v7717 = vadd.f32 %v7668, %v7716
    %v7718 = vpop.f32.mrf.mxu0
    %v7719 = vadd.f32 %v7670, %v7718
    %7720 = vmatmul.bf16.gmra.mxu0 %v3200
    %v7721 = vpop.f32.mrf.mxu0
    %v7722 = vadd.f32 %v7673, %v7721
    %v7723 = vpop.f32.mrf.mxu0
    %v7724 = vadd.f32 %v7675, %v7723
    %7725 = vmatmul.bf16.gmra.mxu0 %v3203
    %v7726 = vpop.f32.mrf.mxu0
    %v7727 = vadd.f32 %v7678, %v7726
    %v7728 = vpop.f32.mrf.mxu0
    %v7729 = vadd.f32 %v7680, %v7728
    %7730 = vmatmul.bf16.gmra.mxu0 %v3206
    %v7731 = vpop.f32.mrf.mxu0
    %v7732 = vadd.f32 %v7683, %v7731
    %v7733 = vpop.f32.mrf.mxu0
    %v7734 = vadd.f32 %v7685, %v7733
    %7735 = vmatmul.bf16.gmra.mxu0 %v3209
    %v7736 = vpop.f32.mrf.mxu0
    %v7737 = vadd.f32 %v7688, %v7736
    %v7738 = vpop.f32.mrf.mxu0
    %v7739 = vadd.f32 %v7690, %v7738
    %7740 = vmatmul.bf16.gmra.mxu0 %v3212
    %v7741 = vpop.f32.mrf.mxu0
    %v7742 = vadd.f32 %v7693, %v7741
    %v7743 = vpop.f32.mrf.mxu0
    %v7744 = vadd.f32 %v7695, %v7743
    %7745 = vmatmul.bf16.gmra.mxu0 %v3215
    %v7746 = vpop.f32.mrf.mxu0
    %v7747 = vadd.f32 %v7698, %v7746
    %v7748 = vpop.f32.mrf.mxu0
    %v7749 = vadd.f32 %v7700, %v7748
    %7750 = vmatmul.bf16.gmra.mxu0 %v3218
    %v7751 = vpop.f32.mrf.mxu0
    %v7752 = vadd.f32 %v7703, %v7751
    %v7753 = vpop.f32.mrf.mxu0
    %v7754 = vadd.f32 %v7705, %v7753
    %7755 = vdwg.mxu0
    %7756 = vmatpush.bf16.msra.mxu0 %v5322
    %7757 = vmatpush.bf16.msra.mxu0 %v5318
    %7758 = vmatpush.bf16.msra.mxu0 %v5314
    %7759 = vmatpush.bf16.msra.mxu0 %v5310
    %7760 = vmatpush.bf16.msra.mxu0 %v5306
    %7761 = vmatpush.bf16.msra.mxu0 %v5302
    %7762 = vmatpush.bf16.msra.mxu0 %v5298
    %7763 = vmatpush.bf16.msra.mxu0 %v5294
    %7764 = vmatmul.bf16.gmra.mxu0 %v3198
    %v7765 = vpop.f32.mrf.mxu0
    %v7766 = vadd.f32 %v7717, %v7765
    %v7767 = vpop.f32.mrf.mxu0
    %v7768 = vadd.f32 %v7719, %v7767
    %7769 = vmatmul.bf16.gmra.mxu0 %v3201
    %v7770 = vpop.f32.mrf.mxu0
    %v7771 = vadd.f32 %v7722, %v7770
    %v7772 = vpop.f32.mrf.mxu0
    %v7773 = vadd.f32 %v7724, %v7772
    %7774 = vmatmul.bf16.gmra.mxu0 %v3204
    %v7775 = vpop.f32.mrf.mxu0
    %v7776 = vadd.f32 %v7727, %v7775
    %v7777 = vpop.f32.mrf.mxu0
    %v7778 = vadd.f32 %v7729, %v7777
    %7779 = vmatmul.bf16.gmra.mxu0 %v3207
    %v7780 = vpop.f32.mrf.mxu0
    %v7781 = vadd.f32 %v7732, %v7780
    %v7782 = vpop.f32.mrf.mxu0
    %v7783 = vadd.f32 %v7734, %v7782
    %7784 = vmatmul.bf16.gmra.mxu0 %v3210
    %v7785 = vpop.f32.mrf.mxu0
    %v7786 = vadd.f32 %v7737, %v7785
    %v7787 = vpop.f32.mrf.mxu0
    %v7788 = vadd.f32 %v7739, %v7787
    %7789 = vmatmul.bf16.gmra.mxu0 %v3213
    %v7790 = vpop.f32.mrf.mxu0
    %v7791 = vadd.f32 %v7742, %v7790
    %v7792 = vpop.f32.mrf.mxu0
    %v7793 = vadd.f32 %v7744, %v7792
    %7794 = vmatmul.bf16.gmra.mxu0 %v3216
    %v7795 = vpop.f32.mrf.mxu0
    %v7796 = vadd.f32 %v7747, %v7795
    %v7797 = vpop.f32.mrf.mxu0
    %v7798 = vadd.f32 %v7749, %v7797
    %7799 = vmatmul.bf16.gmra.mxu0 %v3219
    %v7800 = vpop.f32.mrf.mxu0
    %v7801 = vadd.f32 %v7752, %v7800
    %v7802 = vpop.f32.mrf.mxu0
    %v7803 = vadd.f32 %v7754, %v7802
    %7804 = vdwg.mxu0
    %7805 = vmatpush.bf16.msra.mxu0 %v5354
    %7806 = vmatpush.bf16.msra.mxu0 %v5350
    %7807 = vmatpush.bf16.msra.mxu0 %v5346
    %7808 = vmatpush.bf16.msra.mxu0 %v5342
    %7809 = vmatpush.bf16.msra.mxu0 %v5338
    %7810 = vmatpush.bf16.msra.mxu0 %v5334
    %7811 = vmatpush.bf16.msra.mxu0 %v5330
    %7812 = vmatpush.bf16.msra.mxu0 %v5326
    %7813 = vmatmul.bf16.gmra.mxu0 %v3199
    %v7814 = vpop.f32.mrf.mxu0
    %v7815 = vadd.f32 %v7766, %v7814
    %v7816 = vpop.f32.mrf.mxu0
    %v7817 = vadd.f32 %v7768, %v7816
    %7818 = vmatmul.bf16.gmra.mxu0 %v3202
    %v7819 = vpop.f32.mrf.mxu0
    %v7820 = vadd.f32 %v7771, %v7819
    %v7821 = vpop.f32.mrf.mxu0
    %v7822 = vadd.f32 %v7773, %v7821
    %7823 = vmatmul.bf16.gmra.mxu0 %v3205
    %v7824 = vpop.f32.mrf.mxu0
    %v7825 = vadd.f32 %v7776, %v7824
    %v7826 = vpop.f32.mrf.mxu0
    %v7827 = vadd.f32 %v7778, %v7826
    %7828 = vmatmul.bf16.gmra.mxu0 %v3208
    %v7829 = vpop.f32.mrf.mxu0
    %v7830 = vadd.f32 %v7781, %v7829
    %v7831 = vpop.f32.mrf.mxu0
    %v7832 = vadd.f32 %v7783, %v7831
    %7833 = vmatmul.bf16.gmra.mxu0 %v3211
    %v7834 = vpop.f32.mrf.mxu0
    %v7835 = vadd.f32 %v7786, %v7834
    %v7836 = vpop.f32.mrf.mxu0
    %v7837 = vadd.f32 %v7788, %v7836
    %7838 = vmatmul.bf16.gmra.mxu0 %v3214
    %v7839 = vpop.f32.mrf.mxu0
    %v7840 = vadd.f32 %v7791, %v7839
    %v7841 = vpop.f32.mrf.mxu0
    %v7842 = vadd.f32 %v7793, %v7841
    %7843 = vmatmul.bf16.gmra.mxu0 %v3217
    %v7844 = vpop.f32.mrf.mxu0
    %v7845 = vadd.f32 %v7796, %v7844
    %v7846 = vpop.f32.mrf.mxu0
    %v7847 = vadd.f32 %v7798, %v7846
    %7848 = vmatmul.bf16.gmra.mxu0 %v3254
    %v7849 = vpop.f32.mrf.mxu0
    %v7850 = vadd.f32 %v7801, %v7849
    %v7851 = vpop.f32.mrf.mxu0
    %v7852 = vadd.f32 %v7803, %v7851
    %7853 = vdwg.mxu0
    %7854 = vmatpush.bf16.msra.mxu0 %v5386
    %7855 = vmatpush.bf16.msra.mxu0 %v5382
    %7856 = vmatpush.bf16.msra.mxu0 %v5378
    %7857 = vmatpush.bf16.msra.mxu0 %v5374
    %7858 = vmatpush.bf16.msra.mxu0 %v5370
    %7859 = vmatpush.bf16.msra.mxu0 %v5366
    %7860 = vmatpush.bf16.msra.mxu0 %v5362
    %7861 = vmatpush.bf16.msra.mxu0 %v5358
    %7862 = vmatmul.bf16.gmra.mxu0 %v3200
    %v7863 = vpop.f32.mrf.mxu0
    %v7864 = vadd.f32 %v7815, %v7863
    %v7865 = vpop.f32.mrf.mxu0
    %v7866 = vadd.f32 %v7817, %v7865
    %7867 = vmatmul.bf16.gmra.mxu0 %v3203
    %v7868 = vpop.f32.mrf.mxu0
    %v7869 = vadd.f32 %v7820, %v7868
    %v7870 = vpop.f32.mrf.mxu0
    %v7871 = vadd.f32 %v7822, %v7870
    %7872 = vmatmul.bf16.gmra.mxu0 %v3206
    %v7873 = vpop.f32.mrf.mxu0
    %v7874 = vadd.f32 %v7825, %v7873
    %v7875 = vpop.f32.mrf.mxu0
    %v7876 = vadd.f32 %v7827, %v7875
    %7877 = vmatmul.bf16.gmra.mxu0 %v3209
    %v7878 = vpop.f32.mrf.mxu0
    %v7879 = vadd.f32 %v7830, %v7878
    %v7880 = vpop.f32.mrf.mxu0
    %v7881 = vadd.f32 %v7832, %v7880
    %7882 = vmatmul.bf16.gmra.mxu0 %v3212
    %v7883 = vpop.f32.mrf.mxu0
    %v7884 = vadd.f32 %v7835, %v7883
    %v7885 = vpop.f32.mrf.mxu0
    %v7886 = vadd.f32 %v7837, %v7885
    %7887 = vmatmul.bf16.gmra.mxu0 %v3215
    %v7888 = vpop.f32.mrf.mxu0
    %v7889 = vadd.f32 %v7840, %v7888
    %v7890 = vpop.f32.mrf.mxu0
    %v7891 = vadd.f32 %v7842, %v7890
    %7892 = vmatmul.bf16.gmra.mxu0 %v3218
    %v7893 = vpop.f32.mrf.mxu0
    %v7894 = vadd.f32 %v7845, %v7893
    %v7895 = vpop.f32.mrf.mxu0
    %v7896 = vadd.f32 %v7847, %v7895
    %7897 = vmatmul.bf16.gmra.mxu0 %v3255
    %v7898 = vpop.f32.mrf.mxu0
    %v7899 = vadd.f32 %v7850, %v7898
    %v7900 = vpop.f32.mrf.mxu0
    %v7901 = vadd.f32 %v7852, %v7900
    %7902 = vdwg.mxu0
    %7903 = vmatpush.bf16.msra.mxu0 %v5418
    %7904 = vmatpush.bf16.msra.mxu0 %v5414
    %7905 = vmatpush.bf16.msra.mxu0 %v5410
    %7906 = vmatpush.bf16.msra.mxu0 %v5406
    %7907 = vmatpush.bf16.msra.mxu0 %v5402
    %7908 = vmatpush.bf16.msra.mxu0 %v5398
    %7909 = vmatpush.bf16.msra.mxu0 %v5394
    %7910 = vmatpush.bf16.msra.mxu0 %v5390
    %7911 = vmatmul.bf16.gmra.mxu0 %v3201
    %v7912 = vpop.f32.mrf.mxu0
    %v7913 = vadd.f32 %v7864, %v7912
    %v7914 = vpop.f32.mrf.mxu0
    %v7915 = vadd.f32 %v7866, %v7914
    %7916 = vmatmul.bf16.gmra.mxu0 %v3204
    %v7917 = vpop.f32.mrf.mxu0
    %v7918 = vadd.f32 %v7869, %v7917
    %v7919 = vpop.f32.mrf.mxu0
    %v7920 = vadd.f32 %v7871, %v7919
    %7921 = vmatmul.bf16.gmra.mxu0 %v3207
    %v7922 = vpop.f32.mrf.mxu0
    %v7923 = vadd.f32 %v7874, %v7922
    %v7924 = vpop.f32.mrf.mxu0
    %v7925 = vadd.f32 %v7876, %v7924
    %7926 = vmatmul.bf16.gmra.mxu0 %v3210
    %v7927 = vpop.f32.mrf.mxu0
    %v7928 = vadd.f32 %v7879, %v7927
    %v7929 = vpop.f32.mrf.mxu0
    %v7930 = vadd.f32 %v7881, %v7929
    %7931 = vmatmul.bf16.gmra.mxu0 %v3213
    %v7932 = vpop.f32.mrf.mxu0
    %v7933 = vadd.f32 %v7884, %v7932
    %v7934 = vpop.f32.mrf.mxu0
    %v7935 = vadd.f32 %v7886, %v7934
    %7936 = vmatmul.bf16.gmra.mxu0 %v3216
    %v7937 = vpop.f32.mrf.mxu0
    %v7938 = vadd.f32 %v7889, %v7937
    %v7939 = vpop.f32.mrf.mxu0
    %v7940 = vadd.f32 %v7891, %v7939
    %7941 = vmatmul.bf16.gmra.mxu0 %v3219
    %v7942 = vpop.f32.mrf.mxu0
    %v7943 = vadd.f32 %v7894, %v7942
    %v7944 = vpop.f32.mrf.mxu0
    %v7945 = vadd.f32 %v7896, %v7944
    %7946 = vmatmul.bf16.gmra.mxu0 %v3256
    %v7947 = vpop.f32.mrf.mxu0
    %v7948 = vadd.f32 %v7899, %v7947
    %v7949 = vpop.f32.mrf.mxu0
    %v7950 = vadd.f32 %v7901, %v7949
    %7951 = vdwg.mxu0
    %7952 = vmatpush.bf16.msra.mxu0 %v5450
    %7953 = vmatpush.bf16.msra.mxu0 %v5446
    %7954 = vmatpush.bf16.msra.mxu0 %v5442
    %7955 = vmatpush.bf16.msra.mxu0 %v5438
    %7956 = vmatpush.bf16.msra.mxu0 %v5434
    %7957 = vmatpush.bf16.msra.mxu0 %v5430
    %7958 = vmatpush.bf16.msra.mxu0 %v5426
    %7959 = vmatpush.bf16.msra.mxu0 %v5422
    %7960 = vmatmul.bf16.gmra.mxu0 %v3202
    %v7961 = vpop.f32.mrf.mxu0
    %v7962 = vadd.f32 %v7913, %v7961
    %v7963 = vpop.f32.mrf.mxu0
    %v7964 = vadd.f32 %v7915, %v7963
    %7965 = vmatmul.bf16.gmra.mxu0 %v3205
    %v7966 = vpop.f32.mrf.mxu0
    %v7967 = vadd.f32 %v7918, %v7966
    %v7968 = vpop.f32.mrf.mxu0
    %v7969 = vadd.f32 %v7920, %v7968
    %7970 = vmatmul.bf16.gmra.mxu0 %v3208
    %v7971 = vpop.f32.mrf.mxu0
    %v7972 = vadd.f32 %v7923, %v7971
    %v7973 = vpop.f32.mrf.mxu0
    %v7974 = vadd.f32 %v7925, %v7973
    %7975 = vmatmul.bf16.gmra.mxu0 %v3211
    %v7976 = vpop.f32.mrf.mxu0
    %v7977 = vadd.f32 %v7928, %v7976
    %v7978 = vpop.f32.mrf.mxu0
    %v7979 = vadd.f32 %v7930, %v7978
    %7980 = vmatmul.bf16.gmra.mxu0 %v3214
    %v7981 = vpop.f32.mrf.mxu0
    %v7982 = vadd.f32 %v7933, %v7981
    %v7983 = vpop.f32.mrf.mxu0
    %v7984 = vadd.f32 %v7935, %v7983
    %7985 = vmatmul.bf16.gmra.mxu0 %v3217
    %v7986 = vpop.f32.mrf.mxu0
    %v7987 = vadd.f32 %v7938, %v7986
    %v7988 = vpop.f32.mrf.mxu0
    %v7989 = vadd.f32 %v7940, %v7988
    %7990 = vmatmul.bf16.gmra.mxu0 %v3254
    %v7991 = vpop.f32.mrf.mxu0
    %v7992 = vadd.f32 %v7943, %v7991
    %v7993 = vpop.f32.mrf.mxu0
    %v7994 = vadd.f32 %v7945, %v7993
    %7995 = vmatmul.bf16.gmra.mxu0 %v3270
    %v7996 = vpop.f32.mrf.mxu0
    %v7997 = vadd.f32 %v7948, %v7996
    %v7998 = vpop.f32.mrf.mxu0
    %v7999 = vadd.f32 %v7950, %v7998
    %8000 = vdwg.mxu0
    %8001 = vmatpush.bf16.msra.mxu0 %v5482
    %8002 = vmatpush.bf16.msra.mxu0 %v5478
    %8003 = vmatpush.bf16.msra.mxu0 %v5474
    %8004 = vmatpush.bf16.msra.mxu0 %v5470
    %8005 = vmatpush.bf16.msra.mxu0 %v5466
    %8006 = vmatpush.bf16.msra.mxu0 %v5462
    %8007 = vmatpush.bf16.msra.mxu0 %v5458
    %8008 = vmatpush.bf16.msra.mxu0 %v5454
    %8009 = vmatmul.bf16.gmra.mxu0 %v3203
    %v8010 = vpop.f32.mrf.mxu0
    %v8011 = vadd.f32 %v7962, %v8010
    %v8012 = vpop.f32.mrf.mxu0
    %v8013 = vadd.f32 %v7964, %v8012
    %8014 = vmatmul.bf16.gmra.mxu0 %v3206
    %v8015 = vpop.f32.mrf.mxu0
    %v8016 = vadd.f32 %v7967, %v8015
    %v8017 = vpop.f32.mrf.mxu0
    %v8018 = vadd.f32 %v7969, %v8017
    %8019 = vmatmul.bf16.gmra.mxu0 %v3209
    %v8020 = vpop.f32.mrf.mxu0
    %v8021 = vadd.f32 %v7972, %v8020
    %v8022 = vpop.f32.mrf.mxu0
    %v8023 = vadd.f32 %v7974, %v8022
    %8024 = vmatmul.bf16.gmra.mxu0 %v3212
    %v8025 = vpop.f32.mrf.mxu0
    %v8026 = vadd.f32 %v7977, %v8025
    %v8027 = vpop.f32.mrf.mxu0
    %v8028 = vadd.f32 %v7979, %v8027
    %8029 = vmatmul.bf16.gmra.mxu0 %v3215
    %v8030 = vpop.f32.mrf.mxu0
    %v8031 = vadd.f32 %v7982, %v8030
    %v8032 = vpop.f32.mrf.mxu0
    %v8033 = vadd.f32 %v7984, %v8032
    %8034 = vmatmul.bf16.gmra.mxu0 %v3218
    %v8035 = vpop.f32.mrf.mxu0
    %v8036 = vadd.f32 %v7987, %v8035
    %v8037 = vpop.f32.mrf.mxu0
    %v8038 = vadd.f32 %v7989, %v8037
    %8039 = vmatmul.bf16.gmra.mxu0 %v3255
    %v8040 = vpop.f32.mrf.mxu0
    %v8041 = vadd.f32 %v7992, %v8040
    %v8042 = vpop.f32.mrf.mxu0
    %v8043 = vadd.f32 %v7994, %v8042
    %8044 = vmatmul.bf16.gmra.mxu0 %v3271
    %v8045 = vpop.f32.mrf.mxu0
    %v8046 = vadd.f32 %v7997, %v8045
    %v8047 = vpop.f32.mrf.mxu0
    %v8048 = vadd.f32 %v7999, %v8047
    %8049 = vdwg.mxu0
    %8050 = vmatpush.bf16.msra.mxu0 %v5514
    %8051 = vmatpush.bf16.msra.mxu0 %v5510
    %8052 = vmatpush.bf16.msra.mxu0 %v5506
    %8053 = vmatpush.bf16.msra.mxu0 %v5502
    %8054 = vmatpush.bf16.msra.mxu0 %v5498
    %8055 = vmatpush.bf16.msra.mxu0 %v5494
    %8056 = vmatpush.bf16.msra.mxu0 %v5490
    %8057 = vmatpush.bf16.msra.mxu0 %v5486
    %8058 = vmatmul.bf16.gmra.mxu0 %v3204
    %v8059 = vpop.f32.mrf.mxu0
    %v8060 = vadd.f32 %v8011, %v8059
    %v8061 = vpop.f32.mrf.mxu0
    %v8062 = vadd.f32 %v8013, %v8061
    %8063 = vmatmul.bf16.gmra.mxu0 %v3207
    %v8064 = vpop.f32.mrf.mxu0
    %v8065 = vadd.f32 %v8016, %v8064
    %v8066 = vpop.f32.mrf.mxu0
    %v8067 = vadd.f32 %v8018, %v8066
    %8068 = vmatmul.bf16.gmra.mxu0 %v3210
    %v8069 = vpop.f32.mrf.mxu0
    %v8070 = vadd.f32 %v8021, %v8069
    %v8071 = vpop.f32.mrf.mxu0
    %v8072 = vadd.f32 %v8023, %v8071
    %8073 = vmatmul.bf16.gmra.mxu0 %v3213
    %v8074 = vpop.f32.mrf.mxu0
    %v8075 = vadd.f32 %v8026, %v8074
    %v8076 = vpop.f32.mrf.mxu0
    %v8077 = vadd.f32 %v8028, %v8076
    %8078 = vmatmul.bf16.gmra.mxu0 %v3216
    %v8079 = vpop.f32.mrf.mxu0
    %v8080 = vadd.f32 %v8031, %v8079
    %v8081 = vpop.f32.mrf.mxu0
    %v8082 = vadd.f32 %v8033, %v8081
    %8083 = vmatmul.bf16.gmra.mxu0 %v3219
    %v8084 = vpop.f32.mrf.mxu0
    %v8085 = vadd.f32 %v8036, %v8084
    %v8086 = vpop.f32.mrf.mxu0
    %v8087 = vadd.f32 %v8038, %v8086
    %8088 = vmatmul.bf16.gmra.mxu0 %v3256
    %v8089 = vpop.f32.mrf.mxu0
    %v8090 = vadd.f32 %v8041, %v8089
    %v8091 = vpop.f32.mrf.mxu0
    %v8092 = vadd.f32 %v8043, %v8091
    %8093 = vmatmul.bf16.gmra.mxu0 %v3272
    %v8094 = vpop.f32.mrf.mxu0
    %v8095 = vadd.f32 %v8046, %v8094
    %v8096 = vpop.f32.mrf.mxu0
    %v8097 = vadd.f32 %v8048, %v8096
    %8098 = vdwg.mxu0
    %8099 = vmatpush.bf16.msra.mxu0 %v5546
    %8100 = vmatpush.bf16.msra.mxu0 %v5542
    %8101 = vmatpush.bf16.msra.mxu0 %v5538
    %8102 = vmatpush.bf16.msra.mxu0 %v5534
    %8103 = vmatpush.bf16.msra.mxu0 %v5530
    %8104 = vmatpush.bf16.msra.mxu0 %v5526
    %8105 = vmatpush.bf16.msra.mxu0 %v5522
    %8106 = vmatpush.bf16.msra.mxu0 %v5518
    %8107 = vmatmul.bf16.gmra.mxu0 %v3205
    %v8108 = vpop.f32.mrf.mxu0
    %v8109 = vadd.f32 %v8060, %v8108
    %v8110 = vpop.f32.mrf.mxu0
    %v8111 = vadd.f32 %v8062, %v8110
    %8112 = vmatmul.bf16.gmra.mxu0 %v3208
    %v8113 = vpop.f32.mrf.mxu0
    %v8114 = vadd.f32 %v8065, %v8113
    %v8115 = vpop.f32.mrf.mxu0
    %v8116 = vadd.f32 %v8067, %v8115
    %8117 = vmatmul.bf16.gmra.mxu0 %v3211
    %v8118 = vpop.f32.mrf.mxu0
    %v8119 = vadd.f32 %v8070, %v8118
    %v8120 = vpop.f32.mrf.mxu0
    %v8121 = vadd.f32 %v8072, %v8120
    %8122 = vmatmul.bf16.gmra.mxu0 %v3214
    %v8123 = vpop.f32.mrf.mxu0
    %v8124 = vadd.f32 %v8075, %v8123
    %v8125 = vpop.f32.mrf.mxu0
    %v8126 = vadd.f32 %v8077, %v8125
    %8127 = vmatmul.bf16.gmra.mxu0 %v3217
    %v8128 = vpop.f32.mrf.mxu0
    %v8129 = vadd.f32 %v8080, %v8128
    %v8130 = vpop.f32.mrf.mxu0
    %v8131 = vadd.f32 %v8082, %v8130
    %8132 = vmatmul.bf16.gmra.mxu0 %v3254
    %v8133 = vpop.f32.mrf.mxu0
    %v8134 = vadd.f32 %v8085, %v8133
    %v8135 = vpop.f32.mrf.mxu0
    %v8136 = vadd.f32 %v8087, %v8135
    %8137 = vmatmul.bf16.gmra.mxu0 %v3270
    %v8138 = vpop.f32.mrf.mxu0
    %v8139 = vadd.f32 %v8090, %v8138
    %v8140 = vpop.f32.mrf.mxu0
    %v8141 = vadd.f32 %v8092, %v8140
    %8142 = vmatmul.bf16.gmra.mxu0 %v3286
    %v8143 = vpop.f32.mrf.mxu0
    %v8144 = vadd.f32 %v8095, %v8143
    %v8145 = vpop.f32.mrf.mxu0
    %v8146 = vadd.f32 %v8097, %v8145
    %8147 = vdwg.mxu0
    %8148 = vmatpush.bf16.msra.mxu0 %v5578
    %8149 = vmatpush.bf16.msra.mxu0 %v5574
    %8150 = vmatpush.bf16.msra.mxu0 %v5570
    %8151 = vmatpush.bf16.msra.mxu0 %v5566
    %8152 = vmatpush.bf16.msra.mxu0 %v5562
    %8153 = vmatpush.bf16.msra.mxu0 %v5558
    %8154 = vmatpush.bf16.msra.mxu0 %v5554
    %8155 = vmatpush.bf16.msra.mxu0 %v5550
    %8156 = vmatmul.bf16.gmra.mxu0 %v3206
    %v8157 = vpop.f32.mrf.mxu0
    %v8158 = vadd.f32 %v8109, %v8157
    %v8159 = vpop.f32.mrf.mxu0
    %v8160 = vadd.f32 %v8111, %v8159
    %8161 = vmatmul.bf16.gmra.mxu0 %v3209
    %v8162 = vpop.f32.mrf.mxu0
    %v8163 = vadd.f32 %v8114, %v8162
    %v8164 = vpop.f32.mrf.mxu0
    %v8165 = vadd.f32 %v8116, %v8164
    %8166 = vmatmul.bf16.gmra.mxu0 %v3212
    %v8167 = vpop.f32.mrf.mxu0
    %v8168 = vadd.f32 %v8119, %v8167
    %v8169 = vpop.f32.mrf.mxu0
    %v8170 = vadd.f32 %v8121, %v8169
    %8171 = vmatmul.bf16.gmra.mxu0 %v3215
    %v8172 = vpop.f32.mrf.mxu0
    %v8173 = vadd.f32 %v8124, %v8172
    %v8174 = vpop.f32.mrf.mxu0
    %v8175 = vadd.f32 %v8126, %v8174
    %8176 = vmatmul.bf16.gmra.mxu0 %v3218
    %v8177 = vpop.f32.mrf.mxu0
    %v8178 = vadd.f32 %v8129, %v8177
    %v8179 = vpop.f32.mrf.mxu0
    %v8180 = vadd.f32 %v8131, %v8179
    %8181 = vmatmul.bf16.gmra.mxu0 %v3255
    %v8182 = vpop.f32.mrf.mxu0
    %v8183 = vadd.f32 %v8134, %v8182
    %v8184 = vpop.f32.mrf.mxu0
    %v8185 = vadd.f32 %v8136, %v8184
    %8186 = vmatmul.bf16.gmra.mxu0 %v3271
    %v8187 = vpop.f32.mrf.mxu0
    %v8188 = vadd.f32 %v8139, %v8187
    %v8189 = vpop.f32.mrf.mxu0
    %v8190 = vadd.f32 %v8141, %v8189
    %8191 = vmatmul.bf16.gmra.mxu0 %v3287
    %v8192 = vpop.f32.mrf.mxu0
    %v8193 = vadd.f32 %v8144, %v8192
    %v8194 = vpop.f32.mrf.mxu0
    %v8195 = vadd.f32 %v8146, %v8194
    %8196 = vdwg.mxu0
    %8197 = vmatpush.bf16.msra.mxu0 %v5610
    %8198 = vmatpush.bf16.msra.mxu0 %v5606
    %8199 = vmatpush.bf16.msra.mxu0 %v5602
    %8200 = vmatpush.bf16.msra.mxu0 %v5598
    %8201 = vmatpush.bf16.msra.mxu0 %v5594
    %8202 = vmatpush.bf16.msra.mxu0 %v5590
    %8203 = vmatpush.bf16.msra.mxu0 %v5586
    %8204 = vmatpush.bf16.msra.mxu0 %v5582
    %8205 = vmatmul.bf16.gmra.mxu0 %v3207
    %v8206 = vpop.f32.mrf.mxu0
    %v8207 = vadd.f32 %v8158, %v8206
    %v8208 = vpop.f32.mrf.mxu0
    %v8209 = vadd.f32 %v8160, %v8208
    %8210 = vmatmul.bf16.gmra.mxu0 %v3210
    %v8211 = vpop.f32.mrf.mxu0
    %v8212 = vadd.f32 %v8163, %v8211
    %v8213 = vpop.f32.mrf.mxu0
    %v8214 = vadd.f32 %v8165, %v8213
    %8215 = vmatmul.bf16.gmra.mxu0 %v3213
    %v8216 = vpop.f32.mrf.mxu0
    %v8217 = vadd.f32 %v8168, %v8216
    %v8218 = vpop.f32.mrf.mxu0
    %v8219 = vadd.f32 %v8170, %v8218
    %8220 = vmatmul.bf16.gmra.mxu0 %v3216
    %v8221 = vpop.f32.mrf.mxu0
    %v8222 = vadd.f32 %v8173, %v8221
    %v8223 = vpop.f32.mrf.mxu0
    %v8224 = vadd.f32 %v8175, %v8223
    %8225 = vmatmul.bf16.gmra.mxu0 %v3219
    %v8226 = vpop.f32.mrf.mxu0
    %v8227 = vadd.f32 %v8178, %v8226
    %v8228 = vpop.f32.mrf.mxu0
    %v8229 = vadd.f32 %v8180, %v8228
    %8230 = vmatmul.bf16.gmra.mxu0 %v3256
    %v8231 = vpop.f32.mrf.mxu0
    %v8232 = vadd.f32 %v8183, %v8231
    %v8233 = vpop.f32.mrf.mxu0
    %v8234 = vadd.f32 %v8185, %v8233
    %8235 = vmatmul.bf16.gmra.mxu0 %v3272
    %v8236 = vpop.f32.mrf.mxu0
    %v8237 = vadd.f32 %v8188, %v8236
    %v8238 = vpop.f32.mrf.mxu0
    %v8239 = vadd.f32 %v8190, %v8238
    %8240 = vmatmul.bf16.gmra.mxu0 %v3288
    %v8241 = vpop.f32.mrf.mxu0
    %v8242 = vadd.f32 %v8193, %v8241
    %v8243 = vpop.f32.mrf.mxu0
    %v8244 = vadd.f32 %v8195, %v8243
    %8245 = vdwg.mxu0
    %8246 = vmatpush.bf16.msra.mxu0 %v5642
    %8247 = vmatpush.bf16.msra.mxu0 %v5638
    %8248 = vmatpush.bf16.msra.mxu0 %v5634
    %8249 = vmatpush.bf16.msra.mxu0 %v5630
    %8250 = vmatpush.bf16.msra.mxu0 %v5626
    %8251 = vmatpush.bf16.msra.mxu0 %v5622
    %8252 = vmatpush.bf16.msra.mxu0 %v5618
    %8253 = vmatpush.bf16.msra.mxu0 %v5614
    %8254 = vmatmul.bf16.gmra.mxu0 %v3208
    %v8255 = vpop.f32.mrf.mxu0
    %v8256 = vadd.f32 %v8207, %v8255
    %v8257 = vpop.f32.mrf.mxu0
    %v8258 = vadd.f32 %v8209, %v8257
    %8259 = vmatmul.bf16.gmra.mxu0 %v3211
    %v8260 = vpop.f32.mrf.mxu0
    %v8261 = vadd.f32 %v8212, %v8260
    %v8262 = vpop.f32.mrf.mxu0
    %v8263 = vadd.f32 %v8214, %v8262
    %8264 = vmatmul.bf16.gmra.mxu0 %v3214
    %v8265 = vpop.f32.mrf.mxu0
    %v8266 = vadd.f32 %v8217, %v8265
    %v8267 = vpop.f32.mrf.mxu0
    %v8268 = vadd.f32 %v8219, %v8267
    %8269 = vmatmul.bf16.gmra.mxu0 %v3217
    %v8270 = vpop.f32.mrf.mxu0
    %v8271 = vadd.f32 %v8222, %v8270
    %v8272 = vpop.f32.mrf.mxu0
    %v8273 = vadd.f32 %v8224, %v8272
    %8274 = vmatmul.bf16.gmra.mxu0 %v3254
    %v8275 = vpop.f32.mrf.mxu0
    %v8276 = vadd.f32 %v8227, %v8275
    %v8277 = vpop.f32.mrf.mxu0
    %v8278 = vadd.f32 %v8229, %v8277
    %8279 = vmatmul.bf16.gmra.mxu0 %v3270
    %v8280 = vpop.f32.mrf.mxu0
    %v8281 = vadd.f32 %v8232, %v8280
    %v8282 = vpop.f32.mrf.mxu0
    %v8283 = vadd.f32 %v8234, %v8282
    %8284 = vmatmul.bf16.gmra.mxu0 %v3286
    %v8285 = vpop.f32.mrf.mxu0
    %v8286 = vadd.f32 %v8237, %v8285
    %v8287 = vpop.f32.mrf.mxu0
    %v8288 = vadd.f32 %v8239, %v8287
    %8289 = vmatmul.bf16.gmra.mxu0 %v3302
    %v8290 = vpop.f32.mrf.mxu0
    %v8291 = vadd.f32 %v8242, %v8290
    %v8292 = vpop.f32.mrf.mxu0
    %v8293 = vadd.f32 %v8244, %v8292
    %8294 = vdwg.mxu0
    %8295 = vmatpush.bf16.msra.mxu0 %v5674
    %8296 = vmatpush.bf16.msra.mxu0 %v5670
    %8297 = vmatpush.bf16.msra.mxu0 %v5666
    %8298 = vmatpush.bf16.msra.mxu0 %v5662
    %8299 = vmatpush.bf16.msra.mxu0 %v5658
    %8300 = vmatpush.bf16.msra.mxu0 %v5654
    %8301 = vmatpush.bf16.msra.mxu0 %v5650
    %8302 = vmatpush.bf16.msra.mxu0 %v5646
    %8303 = vmatmul.bf16.gmra.mxu0 %v3209
    %v8304 = vpop.f32.mrf.mxu0
    %v8305 = vadd.f32 %v8256, %v8304
    %v8306 = vpop.f32.mrf.mxu0
    %v8307 = vadd.f32 %v8258, %v8306
    %8308 = vmatmul.bf16.gmra.mxu0 %v3212
    %v8309 = vpop.f32.mrf.mxu0
    %v8310 = vadd.f32 %v8261, %v8309
    %v8311 = vpop.f32.mrf.mxu0
    %v8312 = vadd.f32 %v8263, %v8311
    %8313 = vmatmul.bf16.gmra.mxu0 %v3215
    %v8314 = vpop.f32.mrf.mxu0
    %v8315 = vadd.f32 %v8266, %v8314
    %v8316 = vpop.f32.mrf.mxu0
    %v8317 = vadd.f32 %v8268, %v8316
    %8318 = vmatmul.bf16.gmra.mxu0 %v3218
    %v8319 = vpop.f32.mrf.mxu0
    %v8320 = vadd.f32 %v8271, %v8319
    %v8321 = vpop.f32.mrf.mxu0
    %v8322 = vadd.f32 %v8273, %v8321
    %8323 = vmatmul.bf16.gmra.mxu0 %v3255
    %v8324 = vpop.f32.mrf.mxu0
    %v8325 = vadd.f32 %v8276, %v8324
    %v8326 = vpop.f32.mrf.mxu0
    %v8327 = vadd.f32 %v8278, %v8326
    %8328 = vmatmul.bf16.gmra.mxu0 %v3271
    %v8329 = vpop.f32.mrf.mxu0
    %v8330 = vadd.f32 %v8281, %v8329
    %v8331 = vpop.f32.mrf.mxu0
    %v8332 = vadd.f32 %v8283, %v8331
    %8333 = vmatmul.bf16.gmra.mxu0 %v3287
    %v8334 = vpop.f32.mrf.mxu0
    %v8335 = vadd.f32 %v8286, %v8334
    %v8336 = vpop.f32.mrf.mxu0
    %v8337 = vadd.f32 %v8288, %v8336
    %8338 = vmatmul.bf16.gmra.mxu0 %v3303
    %v8339 = vpop.f32.mrf.mxu0
    %v8340 = vadd.f32 %v8291, %v8339
    %v8341 = vpop.f32.mrf.mxu0
    %v8342 = vadd.f32 %v8293, %v8341
    %8343 = vdwg.mxu0
    %8344 = vmatpush.bf16.msra.mxu0 %v5706
    %8345 = vmatpush.bf16.msra.mxu0 %v5702
    %8346 = vmatpush.bf16.msra.mxu0 %v5698
    %8347 = vmatpush.bf16.msra.mxu0 %v5694
    %8348 = vmatpush.bf16.msra.mxu0 %v5690
    %8349 = vmatpush.bf16.msra.mxu0 %v5686
    %8350 = vmatpush.bf16.msra.mxu0 %v5682
    %8351 = vmatpush.bf16.msra.mxu0 %v5678
    %8352 = vmatmul.bf16.gmra.mxu0 %v3210
    %v8353 = vpop.f32.mrf.mxu0
    %v8354 = vadd.f32 %v8305, %v8353
    %v8355 = vpop.f32.mrf.mxu0
    %v8356 = vadd.f32 %v8307, %v8355
    %8357 = vmatmul.bf16.gmra.mxu0 %v3213
    %v8358 = vpop.f32.mrf.mxu0
    %v8359 = vadd.f32 %v8310, %v8358
    %v8360 = vpop.f32.mrf.mxu0
    %v8361 = vadd.f32 %v8312, %v8360
    %8362 = vmatmul.bf16.gmra.mxu0 %v3216
    %v8363 = vpop.f32.mrf.mxu0
    %v8364 = vadd.f32 %v8315, %v8363
    %v8365 = vpop.f32.mrf.mxu0
    %v8366 = vadd.f32 %v8317, %v8365
    %8367 = vmatmul.bf16.gmra.mxu0 %v3219
    %v8368 = vpop.f32.mrf.mxu0
    %v8369 = vadd.f32 %v8320, %v8368
    %v8370 = vpop.f32.mrf.mxu0
    %v8371 = vadd.f32 %v8322, %v8370
    %8372 = vmatmul.bf16.gmra.mxu0 %v3256
    %v8373 = vpop.f32.mrf.mxu0
    %v8374 = vadd.f32 %v8325, %v8373
    %v8375 = vpop.f32.mrf.mxu0
    %v8376 = vadd.f32 %v8327, %v8375
    %8377 = vmatmul.bf16.gmra.mxu0 %v3272
    %v8378 = vpop.f32.mrf.mxu0
    %v8379 = vadd.f32 %v8330, %v8378
    %v8380 = vpop.f32.mrf.mxu0
    %v8381 = vadd.f32 %v8332, %v8380
    %8382 = vmatmul.bf16.gmra.mxu0 %v3288
    %v8383 = vpop.f32.mrf.mxu0
    %v8384 = vadd.f32 %v8335, %v8383
    %v8385 = vpop.f32.mrf.mxu0
    %v8386 = vadd.f32 %v8337, %v8385
    %8387 = vmatmul.bf16.gmra.mxu0 %v3304
    %v8388 = vpop.f32.mrf.mxu0
    %v8389 = vadd.f32 %v8340, %v8388
    %v8390 = vpop.f32.mrf.mxu0
    %v8391 = vadd.f32 %v8342, %v8390
    %8392 = vdwg.mxu0
    %8393 = vmatpush.bf16.msra.mxu0 %v5259
    %8394 = vmatpush.bf16.msra.mxu0 %v5255
    %8395 = vmatpush.bf16.msra.mxu0 %v5251
    %8396 = vmatpush.bf16.msra.mxu0 %v5247
    %8397 = vmatpush.bf16.msra.mxu0 %v5243
    %8398 = vmatpush.bf16.msra.mxu0 %v5239
    %8399 = vmatpush.bf16.msra.mxu0 %v5235
    %8400 = vmatpush.bf16.msra.mxu0 %v5231
    %8401 = vmatmul.bf16.gmra.mxu0 %v3196
    %v8402 = vpop.f32.mrf.mxu0
    %v8403 = vadd.f32 0.0, %v8402
    %v8404 = vpop.f32.mrf.mxu0
    %v8405 = vadd.f32 0.0, %v8404
    %8406 = vmatmul.bf16.gmra.mxu0 %v3199
    %v8407 = vpop.f32.mrf.mxu0
    %v8408 = vadd.f32 0.0, %v8407
    %v8409 = vpop.f32.mrf.mxu0
    %v8410 = vadd.f32 0.0, %v8409
    %8411 = vmatmul.bf16.gmra.mxu0 %v3202
    %v8412 = vpop.f32.mrf.mxu0
    %v8413 = vadd.f32 0.0, %v8412
    %v8414 = vpop.f32.mrf.mxu0
    %v8415 = vadd.f32 0.0, %v8414
    %8416 = vmatmul.bf16.gmra.mxu0 %v3205
    %v8417 = vpop.f32.mrf.mxu0
    %v8418 = vadd.f32 0.0, %v8417
    %v8419 = vpop.f32.mrf.mxu0
    %v8420 = vadd.f32 0.0, %v8419
    %8421 = vmatmul.bf16.gmra.mxu0 %v3208
    %v8422 = vpop.f32.mrf.mxu0
    %v8423 = vadd.f32 0.0, %v8422
    %v8424 = vpop.f32.mrf.mxu0
    %v8425 = vadd.f32 0.0, %v8424
    %8426 = vmatmul.bf16.gmra.mxu0 %v3211
    %v8427 = vpop.f32.mrf.mxu0
    %v8428 = vadd.f32 0.0, %v8427
    %v8429 = vpop.f32.mrf.mxu0
    %v8430 = vadd.f32 0.0, %v8429
    %8431 = vmatmul.bf16.gmra.mxu0 %v3214
    %v8432 = vpop.f32.mrf.mxu0
    %v8433 = vadd.f32 0.0, %v8432
    %v8434 = vpop.f32.mrf.mxu0
    %v8435 = vadd.f32 0.0, %v8434
    %8436 = vmatmul.bf16.gmra.mxu0 %v3217
    %v8437 = vpop.f32.mrf.mxu0
    %v8438 = vadd.f32 0.0, %v8437
    %v8439 = vpop.f32.mrf.mxu0
    %v8440 = vadd.f32 0.0, %v8439
    %8441 = vdwg.mxu0
    %8442 = vmatpush.bf16.msra.mxu0 %v5291
    %8443 = vmatpush.bf16.msra.mxu0 %v5287
    %8444 = vmatpush.bf16.msra.mxu0 %v5283
    %8445 = vmatpush.bf16.msra.mxu0 %v5279
    %8446 = vmatpush.bf16.msra.mxu0 %v5275
    %8447 = vmatpush.bf16.msra.mxu0 %v5271
    %8448 = vmatpush.bf16.msra.mxu0 %v5267
    %8449 = vmatpush.bf16.msra.mxu0 %v5263
    %8450 = vmatmul.bf16.gmra.mxu0 %v3197
    %v8451 = vpop.f32.mrf.mxu0
    %v8452 = vadd.f32 %v8403, %v8451
    %v8453 = vpop.f32.mrf.mxu0
    %v8454 = vadd.f32 %v8405, %v8453
    %8455 = vmatmul.bf16.gmra.mxu0 %v3200
    %v8456 = vpop.f32.mrf.mxu0
    %v8457 = vadd.f32 %v8408, %v8456
    %v8458 = vpop.f32.mrf.mxu0
    %v8459 = vadd.f32 %v8410, %v8458
    %8460 = vmatmul.bf16.gmra.mxu0 %v3203
    %v8461 = vpop.f32.mrf.mxu0
    %v8462 = vadd.f32 %v8413, %v8461
    %v8463 = vpop.f32.mrf.mxu0
    %v8464 = vadd.f32 %v8415, %v8463
    %8465 = vmatmul.bf16.gmra.mxu0 %v3206
    %v8466 = vpop.f32.mrf.mxu0
    %v8467 = vadd.f32 %v8418, %v8466
    %v8468 = vpop.f32.mrf.mxu0
    %v8469 = vadd.f32 %v8420, %v8468
    %8470 = vmatmul.bf16.gmra.mxu0 %v3209
    %v8471 = vpop.f32.mrf.mxu0
    %v8472 = vadd.f32 %v8423, %v8471
    %v8473 = vpop.f32.mrf.mxu0
    %v8474 = vadd.f32 %v8425, %v8473
    %8475 = vmatmul.bf16.gmra.mxu0 %v3212
    %v8476 = vpop.f32.mrf.mxu0
    %v8477 = vadd.f32 %v8428, %v8476
    %v8478 = vpop.f32.mrf.mxu0
    %v8479 = vadd.f32 %v8430, %v8478
    %8480 = vmatmul.bf16.gmra.mxu0 %v3215
    %v8481 = vpop.f32.mrf.mxu0
    %v8482 = vadd.f32 %v8433, %v8481
    %v8483 = vpop.f32.mrf.mxu0
    %v8484 = vadd.f32 %v8435, %v8483
    %8485 = vmatmul.bf16.gmra.mxu0 %v3218
    %v8486 = vpop.f32.mrf.mxu0
    %v8487 = vadd.f32 %v8438, %v8486
    %v8488 = vpop.f32.mrf.mxu0
    %v8489 = vadd.f32 %v8440, %v8488
    %8490 = vdwg.mxu0
    %8491 = vmatpush.bf16.msra.mxu0 %v5323
    %8492 = vmatpush.bf16.msra.mxu0 %v5319
    %8493 = vmatpush.bf16.msra.mxu0 %v5315
    %8494 = vmatpush.bf16.msra.mxu0 %v5311
    %8495 = vmatpush.bf16.msra.mxu0 %v5307
    %8496 = vmatpush.bf16.msra.mxu0 %v5303
    %8497 = vmatpush.bf16.msra.mxu0 %v5299
    %8498 = vmatpush.bf16.msra.mxu0 %v5295
    %8499 = vmatmul.bf16.gmra.mxu0 %v3198
    %v8500 = vpop.f32.mrf.mxu0
    %v8501 = vadd.f32 %v8452, %v8500
    %v8502 = vpop.f32.mrf.mxu0
    %v8503 = vadd.f32 %v8454, %v8502
    %8504 = vmatmul.bf16.gmra.mxu0 %v3201
    %v8505 = vpop.f32.mrf.mxu0
    %v8506 = vadd.f32 %v8457, %v8505
    %v8507 = vpop.f32.mrf.mxu0
    %v8508 = vadd.f32 %v8459, %v8507
    %8509 = vmatmul.bf16.gmra.mxu0 %v3204
    %v8510 = vpop.f32.mrf.mxu0
    %v8511 = vadd.f32 %v8462, %v8510
    %v8512 = vpop.f32.mrf.mxu0
    %v8513 = vadd.f32 %v8464, %v8512
    %8514 = vmatmul.bf16.gmra.mxu0 %v3207
    %v8515 = vpop.f32.mrf.mxu0
    %v8516 = vadd.f32 %v8467, %v8515
    %v8517 = vpop.f32.mrf.mxu0
    %v8518 = vadd.f32 %v8469, %v8517
    %8519 = vmatmul.bf16.gmra.mxu0 %v3210
    %v8520 = vpop.f32.mrf.mxu0
    %v8521 = vadd.f32 %v8472, %v8520
    %v8522 = vpop.f32.mrf.mxu0
    %v8523 = vadd.f32 %v8474, %v8522
    %8524 = vmatmul.bf16.gmra.mxu0 %v3213
    %v8525 = vpop.f32.mrf.mxu0
    %v8526 = vadd.f32 %v8477, %v8525
    %v8527 = vpop.f32.mrf.mxu0
    %v8528 = vadd.f32 %v8479, %v8527
    %8529 = vmatmul.bf16.gmra.mxu0 %v3216
    %v8530 = vpop.f32.mrf.mxu0
    %v8531 = vadd.f32 %v8482, %v8530
    %v8532 = vpop.f32.mrf.mxu0
    %v8533 = vadd.f32 %v8484, %v8532
    %8534 = vmatmul.bf16.gmra.mxu0 %v3219
    %v8535 = vpop.f32.mrf.mxu0
    %v8536 = vadd.f32 %v8487, %v8535
    %v8537 = vpop.f32.mrf.mxu0
    %v8538 = vadd.f32 %v8489, %v8537
    %8539 = vdwg.mxu0
    %8540 = vmatpush.bf16.msra.mxu0 %v5355
    %8541 = vmatpush.bf16.msra.mxu0 %v5351
    %8542 = vmatpush.bf16.msra.mxu0 %v5347
    %8543 = vmatpush.bf16.msra.mxu0 %v5343
    %8544 = vmatpush.bf16.msra.mxu0 %v5339
    %8545 = vmatpush.bf16.msra.mxu0 %v5335
    %8546 = vmatpush.bf16.msra.mxu0 %v5331
    %8547 = vmatpush.bf16.msra.mxu0 %v5327
    %8548 = vmatmul.bf16.gmra.mxu0 %v3199
    %v8549 = vpop.f32.mrf.mxu0
    %v8550 = vadd.f32 %v8501, %v8549
    %v8551 = vpop.f32.mrf.mxu0
    %v8552 = vadd.f32 %v8503, %v8551
    %8553 = vmatmul.bf16.gmra.mxu0 %v3202
    %v8554 = vpop.f32.mrf.mxu0
    %v8555 = vadd.f32 %v8506, %v8554
    %v8556 = vpop.f32.mrf.mxu0
    %v8557 = vadd.f32 %v8508, %v8556
    %8558 = vmatmul.bf16.gmra.mxu0 %v3205
    %v8559 = vpop.f32.mrf.mxu0
    %v8560 = vadd.f32 %v8511, %v8559
    %v8561 = vpop.f32.mrf.mxu0
    %v8562 = vadd.f32 %v8513, %v8561
    %8563 = vmatmul.bf16.gmra.mxu0 %v3208
    %v8564 = vpop.f32.mrf.mxu0
    %v8565 = vadd.f32 %v8516, %v8564
    %v8566 = vpop.f32.mrf.mxu0
    %v8567 = vadd.f32 %v8518, %v8566
    %8568 = vmatmul.bf16.gmra.mxu0 %v3211
    %v8569 = vpop.f32.mrf.mxu0
    %v8570 = vadd.f32 %v8521, %v8569
    %v8571 = vpop.f32.mrf.mxu0
    %v8572 = vadd.f32 %v8523, %v8571
    %8573 = vmatmul.bf16.gmra.mxu0 %v3214
    %v8574 = vpop.f32.mrf.mxu0
    %v8575 = vadd.f32 %v8526, %v8574
    %v8576 = vpop.f32.mrf.mxu0
    %v8577 = vadd.f32 %v8528, %v8576
    %8578 = vmatmul.bf16.gmra.mxu0 %v3217
    %v8579 = vpop.f32.mrf.mxu0
    %v8580 = vadd.f32 %v8531, %v8579
    %v8581 = vpop.f32.mrf.mxu0
    %v8582 = vadd.f32 %v8533, %v8581
    %8583 = vmatmul.bf16.gmra.mxu0 %v3254
    %v8584 = vpop.f32.mrf.mxu0
    %v8585 = vadd.f32 %v8536, %v8584
    %v8586 = vpop.f32.mrf.mxu0
    %v8587 = vadd.f32 %v8538, %v8586
    %8588 = vdwg.mxu0
    %8589 = vmatpush.bf16.msra.mxu0 %v5387
    %8590 = vmatpush.bf16.msra.mxu0 %v5383
    %8591 = vmatpush.bf16.msra.mxu0 %v5379
    %8592 = vmatpush.bf16.msra.mxu0 %v5375
    %8593 = vmatpush.bf16.msra.mxu0 %v5371
    %8594 = vmatpush.bf16.msra.mxu0 %v5367
    %8595 = vmatpush.bf16.msra.mxu0 %v5363
    %8596 = vmatpush.bf16.msra.mxu0 %v5359
    %8597 = vmatmul.bf16.gmra.mxu0 %v3200
    %v8598 = vpop.f32.mrf.mxu0
    %v8599 = vadd.f32 %v8550, %v8598
    %v8600 = vpop.f32.mrf.mxu0
    %v8601 = vadd.f32 %v8552, %v8600
    %8602 = vmatmul.bf16.gmra.mxu0 %v3203
    %v8603 = vpop.f32.mrf.mxu0
    %v8604 = vadd.f32 %v8555, %v8603
    %v8605 = vpop.f32.mrf.mxu0
    %v8606 = vadd.f32 %v8557, %v8605
    %8607 = vmatmul.bf16.gmra.mxu0 %v3206
    %v8608 = vpop.f32.mrf.mxu0
    %v8609 = vadd.f32 %v8560, %v8608
    %v8610 = vpop.f32.mrf.mxu0
    %v8611 = vadd.f32 %v8562, %v8610
    %8612 = vmatmul.bf16.gmra.mxu0 %v3209
    %v8613 = vpop.f32.mrf.mxu0
    %v8614 = vadd.f32 %v8565, %v8613
    %v8615 = vpop.f32.mrf.mxu0
    %v8616 = vadd.f32 %v8567, %v8615
    %8617 = vmatmul.bf16.gmra.mxu0 %v3212
    %v8618 = vpop.f32.mrf.mxu0
    %v8619 = vadd.f32 %v8570, %v8618
    %v8620 = vpop.f32.mrf.mxu0
    %v8621 = vadd.f32 %v8572, %v8620
    %8622 = vmatmul.bf16.gmra.mxu0 %v3215
    %v8623 = vpop.f32.mrf.mxu0
    %v8624 = vadd.f32 %v8575, %v8623
    %v8625 = vpop.f32.mrf.mxu0
    %v8626 = vadd.f32 %v8577, %v8625
    %8627 = vmatmul.bf16.gmra.mxu0 %v3218
    %v8628 = vpop.f32.mrf.mxu0
    %v8629 = vadd.f32 %v8580, %v8628
    %v8630 = vpop.f32.mrf.mxu0
    %v8631 = vadd.f32 %v8582, %v8630
    %8632 = vmatmul.bf16.gmra.mxu0 %v3255
    %v8633 = vpop.f32.mrf.mxu0
    %v8634 = vadd.f32 %v8585, %v8633
    %v8635 = vpop.f32.mrf.mxu0
    %v8636 = vadd.f32 %v8587, %v8635
    %8637 = vdwg.mxu0
    %8638 = vmatpush.bf16.msra.mxu0 %v5419
    %8639 = vmatpush.bf16.msra.mxu0 %v5415
    %8640 = vmatpush.bf16.msra.mxu0 %v5411
    %8641 = vmatpush.bf16.msra.mxu0 %v5407
    %8642 = vmatpush.bf16.msra.mxu0 %v5403
    %8643 = vmatpush.bf16.msra.mxu0 %v5399
    %8644 = vmatpush.bf16.msra.mxu0 %v5395
    %8645 = vmatpush.bf16.msra.mxu0 %v5391
    %8646 = vmatmul.bf16.gmra.mxu0 %v3201
    %v8647 = vpop.f32.mrf.mxu0
    %v8648 = vadd.f32 %v8599, %v8647
    %v8649 = vpop.f32.mrf.mxu0
    %v8650 = vadd.f32 %v8601, %v8649
    %8651 = vmatmul.bf16.gmra.mxu0 %v3204
    %v8652 = vpop.f32.mrf.mxu0
    %v8653 = vadd.f32 %v8604, %v8652
    %v8654 = vpop.f32.mrf.mxu0
    %v8655 = vadd.f32 %v8606, %v8654
    %8656 = vmatmul.bf16.gmra.mxu0 %v3207
    %v8657 = vpop.f32.mrf.mxu0
    %v8658 = vadd.f32 %v8609, %v8657
    %v8659 = vpop.f32.mrf.mxu0
    %v8660 = vadd.f32 %v8611, %v8659
    %8661 = vmatmul.bf16.gmra.mxu0 %v3210
    %v8662 = vpop.f32.mrf.mxu0
    %v8663 = vadd.f32 %v8614, %v8662
    %v8664 = vpop.f32.mrf.mxu0
    %v8665 = vadd.f32 %v8616, %v8664
    %8666 = vmatmul.bf16.gmra.mxu0 %v3213
    %v8667 = vpop.f32.mrf.mxu0
    %v8668 = vadd.f32 %v8619, %v8667
    %v8669 = vpop.f32.mrf.mxu0
    %v8670 = vadd.f32 %v8621, %v8669
    %8671 = vmatmul.bf16.gmra.mxu0 %v3216
    %v8672 = vpop.f32.mrf.mxu0
    %v8673 = vadd.f32 %v8624, %v8672
    %v8674 = vpop.f32.mrf.mxu0
    %v8675 = vadd.f32 %v8626, %v8674
    %8676 = vmatmul.bf16.gmra.mxu0 %v3219
    %v8677 = vpop.f32.mrf.mxu0
    %v8678 = vadd.f32 %v8629, %v8677
    %v8679 = vpop.f32.mrf.mxu0
    %v8680 = vadd.f32 %v8631, %v8679
    %8681 = vmatmul.bf16.gmra.mxu0 %v3256
    %v8682 = vpop.f32.mrf.mxu0
    %v8683 = vadd.f32 %v8634, %v8682
    %v8684 = vpop.f32.mrf.mxu0
    %v8685 = vadd.f32 %v8636, %v8684
    %8686 = vdwg.mxu0
    %8687 = vmatpush.bf16.msra.mxu0 %v5451
    %8688 = vmatpush.bf16.msra.mxu0 %v5447
    %8689 = vmatpush.bf16.msra.mxu0 %v5443
    %8690 = vmatpush.bf16.msra.mxu0 %v5439
    %8691 = vmatpush.bf16.msra.mxu0 %v5435
    %8692 = vmatpush.bf16.msra.mxu0 %v5431
    %8693 = vmatpush.bf16.msra.mxu0 %v5427
    %8694 = vmatpush.bf16.msra.mxu0 %v5423
    %8695 = vmatmul.bf16.gmra.mxu0 %v3202
    %v8696 = vpop.f32.mrf.mxu0
    %v8697 = vadd.f32 %v8648, %v8696
    %v8698 = vpop.f32.mrf.mxu0
    %v8699 = vadd.f32 %v8650, %v8698
    %8700 = vmatmul.bf16.gmra.mxu0 %v3205
    %v8701 = vpop.f32.mrf.mxu0
    %v8702 = vadd.f32 %v8653, %v8701
    %v8703 = vpop.f32.mrf.mxu0
    %v8704 = vadd.f32 %v8655, %v8703
    %8705 = vmatmul.bf16.gmra.mxu0 %v3208
    %v8706 = vpop.f32.mrf.mxu0
    %v8707 = vadd.f32 %v8658, %v8706
    %v8708 = vpop.f32.mrf.mxu0
    %v8709 = vadd.f32 %v8660, %v8708
    %8710 = vmatmul.bf16.gmra.mxu0 %v3211
    %v8711 = vpop.f32.mrf.mxu0
    %v8712 = vadd.f32 %v8663, %v8711
    %v8713 = vpop.f32.mrf.mxu0
    %v8714 = vadd.f32 %v8665, %v8713
    %8715 = vmatmul.bf16.gmra.mxu0 %v3214
    %v8716 = vpop.f32.mrf.mxu0
    %v8717 = vadd.f32 %v8668, %v8716
    %v8718 = vpop.f32.mrf.mxu0
    %v8719 = vadd.f32 %v8670, %v8718
    %8720 = vmatmul.bf16.gmra.mxu0 %v3217
    %v8721 = vpop.f32.mrf.mxu0
    %v8722 = vadd.f32 %v8673, %v8721
    %v8723 = vpop.f32.mrf.mxu0
    %v8724 = vadd.f32 %v8675, %v8723
    %8725 = vmatmul.bf16.gmra.mxu0 %v3254
    %v8726 = vpop.f32.mrf.mxu0
    %v8727 = vadd.f32 %v8678, %v8726
    %v8728 = vpop.f32.mrf.mxu0
    %v8729 = vadd.f32 %v8680, %v8728
    %8730 = vmatmul.bf16.gmra.mxu0 %v3270
    %v8731 = vpop.f32.mrf.mxu0
    %v8732 = vadd.f32 %v8683, %v8731
    %v8733 = vpop.f32.mrf.mxu0
    %v8734 = vadd.f32 %v8685, %v8733
    %8735 = vdwg.mxu0
    %8736 = vmatpush.bf16.msra.mxu0 %v5483
    %8737 = vmatpush.bf16.msra.mxu0 %v5479
    %8738 = vmatpush.bf16.msra.mxu0 %v5475
    %8739 = vmatpush.bf16.msra.mxu0 %v5471
    %8740 = vmatpush.bf16.msra.mxu0 %v5467
    %8741 = vmatpush.bf16.msra.mxu0 %v5463
    %8742 = vmatpush.bf16.msra.mxu0 %v5459
    %8743 = vmatpush.bf16.msra.mxu0 %v5455
    %8744 = vmatmul.bf16.gmra.mxu0 %v3203
    %v8745 = vpop.f32.mrf.mxu0
    %v8746 = vadd.f32 %v8697, %v8745
    %v8747 = vpop.f32.mrf.mxu0
    %v8748 = vadd.f32 %v8699, %v8747
    %8749 = vmatmul.bf16.gmra.mxu0 %v3206
    %v8750 = vpop.f32.mrf.mxu0
    %v8751 = vadd.f32 %v8702, %v8750
    %v8752 = vpop.f32.mrf.mxu0
    %v8753 = vadd.f32 %v8704, %v8752
    %8754 = vmatmul.bf16.gmra.mxu0 %v3209
    %v8755 = vpop.f32.mrf.mxu0
    %v8756 = vadd.f32 %v8707, %v8755
    %v8757 = vpop.f32.mrf.mxu0
    %v8758 = vadd.f32 %v8709, %v8757
    %8759 = vmatmul.bf16.gmra.mxu0 %v3212
    %v8760 = vpop.f32.mrf.mxu0
    %v8761 = vadd.f32 %v8712, %v8760
    %v8762 = vpop.f32.mrf.mxu0
    %v8763 = vadd.f32 %v8714, %v8762
    %8764 = vmatmul.bf16.gmra.mxu0 %v3215
    %v8765 = vpop.f32.mrf.mxu0
    %v8766 = vadd.f32 %v8717, %v8765
    %v8767 = vpop.f32.mrf.mxu0
    %v8768 = vadd.f32 %v8719, %v8767
    %8769 = vmatmul.bf16.gmra.mxu0 %v3218
    %v8770 = vpop.f32.mrf.mxu0
    %v8771 = vadd.f32 %v8722, %v8770
    %v8772 = vpop.f32.mrf.mxu0
    %v8773 = vadd.f32 %v8724, %v8772
    %8774 = vmatmul.bf16.gmra.mxu0 %v3255
    %v8775 = vpop.f32.mrf.mxu0
    %v8776 = vadd.f32 %v8727, %v8775
    %v8777 = vpop.f32.mrf.mxu0
    %v8778 = vadd.f32 %v8729, %v8777
    %8779 = vmatmul.bf16.gmra.mxu0 %v3271
    %v8780 = vpop.f32.mrf.mxu0
    %v8781 = vadd.f32 %v8732, %v8780
    %v8782 = vpop.f32.mrf.mxu0
    %v8783 = vadd.f32 %v8734, %v8782
    %8784 = vdwg.mxu0
    %8785 = vmatpush.bf16.msra.mxu0 %v5515
    %8786 = vmatpush.bf16.msra.mxu0 %v5511
    %8787 = vmatpush.bf16.msra.mxu0 %v5507
    %8788 = vmatpush.bf16.msra.mxu0 %v5503
    %8789 = vmatpush.bf16.msra.mxu0 %v5499
    %8790 = vmatpush.bf16.msra.mxu0 %v5495
    %8791 = vmatpush.bf16.msra.mxu0 %v5491
    %8792 = vmatpush.bf16.msra.mxu0 %v5487
    %8793 = vmatmul.bf16.gmra.mxu0 %v3204
    %v8794 = vpop.f32.mrf.mxu0
    %v8795 = vadd.f32 %v8746, %v8794
    %v8796 = vpop.f32.mrf.mxu0
    %v8797 = vadd.f32 %v8748, %v8796
    %8798 = vmatmul.bf16.gmra.mxu0 %v3207
    %v8799 = vpop.f32.mrf.mxu0
    %v8800 = vadd.f32 %v8751, %v8799
    %v8801 = vpop.f32.mrf.mxu0
    %v8802 = vadd.f32 %v8753, %v8801
    %8803 = vmatmul.bf16.gmra.mxu0 %v3210
    %v8804 = vpop.f32.mrf.mxu0
    %v8805 = vadd.f32 %v8756, %v8804
    %v8806 = vpop.f32.mrf.mxu0
    %v8807 = vadd.f32 %v8758, %v8806
    %8808 = vmatmul.bf16.gmra.mxu0 %v3213
    %v8809 = vpop.f32.mrf.mxu0
    %v8810 = vadd.f32 %v8761, %v8809
    %v8811 = vpop.f32.mrf.mxu0
    %v8812 = vadd.f32 %v8763, %v8811
    %8813 = vmatmul.bf16.gmra.mxu0 %v3216
    %v8814 = vpop.f32.mrf.mxu0
    %v8815 = vadd.f32 %v8766, %v8814
    %v8816 = vpop.f32.mrf.mxu0
    %v8817 = vadd.f32 %v8768, %v8816
    %8818 = vmatmul.bf16.gmra.mxu0 %v3219
    %v8819 = vpop.f32.mrf.mxu0
    %v8820 = vadd.f32 %v8771, %v8819
    %v8821 = vpop.f32.mrf.mxu0
    %v8822 = vadd.f32 %v8773, %v8821
    %8823 = vmatmul.bf16.gmra.mxu0 %v3256
    %v8824 = vpop.f32.mrf.mxu0
    %v8825 = vadd.f32 %v8776, %v8824
    %v8826 = vpop.f32.mrf.mxu0
    %v8827 = vadd.f32 %v8778, %v8826
    %8828 = vmatmul.bf16.gmra.mxu0 %v3272
    %v8829 = vpop.f32.mrf.mxu0
    %v8830 = vadd.f32 %v8781, %v8829
    %v8831 = vpop.f32.mrf.mxu0
    %v8832 = vadd.f32 %v8783, %v8831
    %8833 = vdwg.mxu0
    %8834 = vmatpush.bf16.msra.mxu0 %v5547
    %8835 = vmatpush.bf16.msra.mxu0 %v5543
    %8836 = vmatpush.bf16.msra.mxu0 %v5539
    %8837 = vmatpush.bf16.msra.mxu0 %v5535
    %8838 = vmatpush.bf16.msra.mxu0 %v5531
    %8839 = vmatpush.bf16.msra.mxu0 %v5527
    %8840 = vmatpush.bf16.msra.mxu0 %v5523
    %8841 = vmatpush.bf16.msra.mxu0 %v5519
    %8842 = vmatmul.bf16.gmra.mxu0 %v3205
    %v8843 = vpop.f32.mrf.mxu0
    %v8844 = vadd.f32 %v8795, %v8843
    %v8845 = vpop.f32.mrf.mxu0
    %v8846 = vadd.f32 %v8797, %v8845
    %8847 = vmatmul.bf16.gmra.mxu0 %v3208
    %v8848 = vpop.f32.mrf.mxu0
    %v8849 = vadd.f32 %v8800, %v8848
    %v8850 = vpop.f32.mrf.mxu0
    %v8851 = vadd.f32 %v8802, %v8850
    %8852 = vmatmul.bf16.gmra.mxu0 %v3211
    %v8853 = vpop.f32.mrf.mxu0
    %v8854 = vadd.f32 %v8805, %v8853
    %v8855 = vpop.f32.mrf.mxu0
    %v8856 = vadd.f32 %v8807, %v8855
    %8857 = vmatmul.bf16.gmra.mxu0 %v3214
    %v8858 = vpop.f32.mrf.mxu0
    %v8859 = vadd.f32 %v8810, %v8858
    %v8860 = vpop.f32.mrf.mxu0
    %v8861 = vadd.f32 %v8812, %v8860
    %8862 = vmatmul.bf16.gmra.mxu0 %v3217
    %v8863 = vpop.f32.mrf.mxu0
    %v8864 = vadd.f32 %v8815, %v8863
    %v8865 = vpop.f32.mrf.mxu0
    %v8866 = vadd.f32 %v8817, %v8865
    %8867 = vmatmul.bf16.gmra.mxu0 %v3254
    %v8868 = vpop.f32.mrf.mxu0
    %v8869 = vadd.f32 %v8820, %v8868
    %v8870 = vpop.f32.mrf.mxu0
    %v8871 = vadd.f32 %v8822, %v8870
    %8872 = vmatmul.bf16.gmra.mxu0 %v3270
    %v8873 = vpop.f32.mrf.mxu0
    %v8874 = vadd.f32 %v8825, %v8873
    %v8875 = vpop.f32.mrf.mxu0
    %v8876 = vadd.f32 %v8827, %v8875
    %8877 = vmatmul.bf16.gmra.mxu0 %v3286
    %v8878 = vpop.f32.mrf.mxu0
    %v8879 = vadd.f32 %v8830, %v8878
    %v8880 = vpop.f32.mrf.mxu0
    %v8881 = vadd.f32 %v8832, %v8880
    %8882 = vdwg.mxu0
    %8883 = vmatpush.bf16.msra.mxu0 %v5579
    %8884 = vmatpush.bf16.msra.mxu0 %v5575
    %8885 = vmatpush.bf16.msra.mxu0 %v5571
    %8886 = vmatpush.bf16.msra.mxu0 %v5567
    %8887 = vmatpush.bf16.msra.mxu0 %v5563
    %8888 = vmatpush.bf16.msra.mxu0 %v5559
    %8889 = vmatpush.bf16.msra.mxu0 %v5555
    %8890 = vmatpush.bf16.msra.mxu0 %v5551
    %8891 = vmatmul.bf16.gmra.mxu0 %v3206
    %v8892 = vpop.f32.mrf.mxu0
    %v8893 = vadd.f32 %v8844, %v8892
    %v8894 = vpop.f32.mrf.mxu0
    %v8895 = vadd.f32 %v8846, %v8894
    %8896 = vmatmul.bf16.gmra.mxu0 %v3209
    %v8897 = vpop.f32.mrf.mxu0
    %v8898 = vadd.f32 %v8849, %v8897
    %v8899 = vpop.f32.mrf.mxu0
    %v8900 = vadd.f32 %v8851, %v8899
    %8901 = vmatmul.bf16.gmra.mxu0 %v3212
    %v8902 = vpop.f32.mrf.mxu0
    %v8903 = vadd.f32 %v8854, %v8902
    %v8904 = vpop.f32.mrf.mxu0
    %v8905 = vadd.f32 %v8856, %v8904
    %8906 = vmatmul.bf16.gmra.mxu0 %v3215
    %v8907 = vpop.f32.mrf.mxu0
    %v8908 = vadd.f32 %v8859, %v8907
    %v8909 = vpop.f32.mrf.mxu0
    %v8910 = vadd.f32 %v8861, %v8909
    %8911 = vmatmul.bf16.gmra.mxu0 %v3218
    %v8912 = vpop.f32.mrf.mxu0
    %v8913 = vadd.f32 %v8864, %v8912
    %v8914 = vpop.f32.mrf.mxu0
    %v8915 = vadd.f32 %v8866, %v8914
    %8916 = vmatmul.bf16.gmra.mxu0 %v3255
    %v8917 = vpop.f32.mrf.mxu0
    %v8918 = vadd.f32 %v8869, %v8917
    %v8919 = vpop.f32.mrf.mxu0
    %v8920 = vadd.f32 %v8871, %v8919
    %8921 = vmatmul.bf16.gmra.mxu0 %v3271
    %v8922 = vpop.f32.mrf.mxu0
    %v8923 = vadd.f32 %v8874, %v8922
    %v8924 = vpop.f32.mrf.mxu0
    %v8925 = vadd.f32 %v8876, %v8924
    %8926 = vmatmul.bf16.gmra.mxu0 %v3287
    %v8927 = vpop.f32.mrf.mxu0
    %v8928 = vadd.f32 %v8879, %v8927
    %v8929 = vpop.f32.mrf.mxu0
    %v8930 = vadd.f32 %v8881, %v8929
    %8931 = vdwg.mxu0
    %8932 = vmatpush.bf16.msra.mxu0 %v5611
    %8933 = vmatpush.bf16.msra.mxu0 %v5607
    %8934 = vmatpush.bf16.msra.mxu0 %v5603
    %8935 = vmatpush.bf16.msra.mxu0 %v5599
    %8936 = vmatpush.bf16.msra.mxu0 %v5595
    %8937 = vmatpush.bf16.msra.mxu0 %v5591
    %8938 = vmatpush.bf16.msra.mxu0 %v5587
    %8939 = vmatpush.bf16.msra.mxu0 %v5583
    %8940 = vmatmul.bf16.gmra.mxu0 %v3207
    %v8941 = vpop.f32.mrf.mxu0
    %v8942 = vadd.f32 %v8893, %v8941
    %v8943 = vpop.f32.mrf.mxu0
    %v8944 = vadd.f32 %v8895, %v8943
    %8945 = vmatmul.bf16.gmra.mxu0 %v3210
    %v8946 = vpop.f32.mrf.mxu0
    %v8947 = vadd.f32 %v8898, %v8946
    %v8948 = vpop.f32.mrf.mxu0
    %v8949 = vadd.f32 %v8900, %v8948
    %8950 = vmatmul.bf16.gmra.mxu0 %v3213
    %v8951 = vpop.f32.mrf.mxu0
    %v8952 = vadd.f32 %v8903, %v8951
    %v8953 = vpop.f32.mrf.mxu0
    %v8954 = vadd.f32 %v8905, %v8953
    %8955 = vmatmul.bf16.gmra.mxu0 %v3216
    %v8956 = vpop.f32.mrf.mxu0
    %v8957 = vadd.f32 %v8908, %v8956
    %v8958 = vpop.f32.mrf.mxu0
    %v8959 = vadd.f32 %v8910, %v8958
    %8960 = vmatmul.bf16.gmra.mxu0 %v3219
    %v8961 = vpop.f32.mrf.mxu0
    %v8962 = vadd.f32 %v8913, %v8961
    %v8963 = vpop.f32.mrf.mxu0
    %v8964 = vadd.f32 %v8915, %v8963
    %8965 = vmatmul.bf16.gmra.mxu0 %v3256
    %v8966 = vpop.f32.mrf.mxu0
    %v8967 = vadd.f32 %v8918, %v8966
    %v8968 = vpop.f32.mrf.mxu0
    %v8969 = vadd.f32 %v8920, %v8968
    %8970 = vmatmul.bf16.gmra.mxu0 %v3272
    %v8971 = vpop.f32.mrf.mxu0
    %v8972 = vadd.f32 %v8923, %v8971
    %v8973 = vpop.f32.mrf.mxu0
    %v8974 = vadd.f32 %v8925, %v8973
    %8975 = vmatmul.bf16.gmra.mxu0 %v3288
    %v8976 = vpop.f32.mrf.mxu0
    %v8977 = vadd.f32 %v8928, %v8976
    %v8978 = vpop.f32.mrf.mxu0
    %v8979 = vadd.f32 %v8930, %v8978
    %8980 = vdwg.mxu0
    %8981 = vmatpush.bf16.msra.mxu0 %v5643
    %8982 = vmatpush.bf16.msra.mxu0 %v5639
    %8983 = vmatpush.bf16.msra.mxu0 %v5635
    %8984 = vmatpush.bf16.msra.mxu0 %v5631
    %8985 = vmatpush.bf16.msra.mxu0 %v5627
    %8986 = vmatpush.bf16.msra.mxu0 %v5623
    %8987 = vmatpush.bf16.msra.mxu0 %v5619
    %8988 = vmatpush.bf16.msra.mxu0 %v5615
    %8989 = vmatmul.bf16.gmra.mxu0 %v3208
    %v8990 = vpop.f32.mrf.mxu0
    %v8991 = vadd.f32 %v8942, %v8990
    %v8992 = vpop.f32.mrf.mxu0
    %v8993 = vadd.f32 %v8944, %v8992
    %8994 = vmatmul.bf16.gmra.mxu0 %v3211
    %v8995 = vpop.f32.mrf.mxu0
    %v8996 = vadd.f32 %v8947, %v8995
    %v8997 = vpop.f32.mrf.mxu0
    %v8998 = vadd.f32 %v8949, %v8997
    %8999 = vmatmul.bf16.gmra.mxu0 %v3214
    %v9000 = vpop.f32.mrf.mxu0
    %v9001 = vadd.f32 %v8952, %v9000
    %v9002 = vpop.f32.mrf.mxu0
    %v9003 = vadd.f32 %v8954, %v9002
    %9004 = vmatmul.bf16.gmra.mxu0 %v3217
    %v9005 = vpop.f32.mrf.mxu0
    %v9006 = vadd.f32 %v8957, %v9005
    %v9007 = vpop.f32.mrf.mxu0
    %v9008 = vadd.f32 %v8959, %v9007
    %9009 = vmatmul.bf16.gmra.mxu0 %v3254
    %v9010 = vpop.f32.mrf.mxu0
    %v9011 = vadd.f32 %v8962, %v9010
    %v9012 = vpop.f32.mrf.mxu0
    %v9013 = vadd.f32 %v8964, %v9012
    %9014 = vmatmul.bf16.gmra.mxu0 %v3270
    %v9015 = vpop.f32.mrf.mxu0
    %v9016 = vadd.f32 %v8967, %v9015
    %v9017 = vpop.f32.mrf.mxu0
    %v9018 = vadd.f32 %v8969, %v9017
    %9019 = vmatmul.bf16.gmra.mxu0 %v3286
    %v9020 = vpop.f32.mrf.mxu0
    %v9021 = vadd.f32 %v8972, %v9020
    %v9022 = vpop.f32.mrf.mxu0
    %v9023 = vadd.f32 %v8974, %v9022
    %9024 = vmatmul.bf16.gmra.mxu0 %v3302
    %v9025 = vpop.f32.mrf.mxu0
    %v9026 = vadd.f32 %v8977, %v9025
    %v9027 = vpop.f32.mrf.mxu0
    %v9028 = vadd.f32 %v8979, %v9027
    %9029 = vdwg.mxu0
    %9030 = vmatpush.bf16.msra.mxu0 %v5675
    %9031 = vmatpush.bf16.msra.mxu0 %v5671
    %9032 = vmatpush.bf16.msra.mxu0 %v5667
    %9033 = vmatpush.bf16.msra.mxu0 %v5663
    %9034 = vmatpush.bf16.msra.mxu0 %v5659
    %9035 = vmatpush.bf16.msra.mxu0 %v5655
    %9036 = vmatpush.bf16.msra.mxu0 %v5651
    %9037 = vmatpush.bf16.msra.mxu0 %v5647
    %9038 = vmatmul.bf16.gmra.mxu0 %v3209
    %v9039 = vpop.f32.mrf.mxu0
    %v9040 = vadd.f32 %v8991, %v9039
    %v9041 = vpop.f32.mrf.mxu0
    %v9042 = vadd.f32 %v8993, %v9041
    %9043 = vmatmul.bf16.gmra.mxu0 %v3212
    %v9044 = vpop.f32.mrf.mxu0
    %v9045 = vadd.f32 %v8996, %v9044
    %v9046 = vpop.f32.mrf.mxu0
    %v9047 = vadd.f32 %v8998, %v9046
    %9048 = vmatmul.bf16.gmra.mxu0 %v3215
    %v9049 = vpop.f32.mrf.mxu0
    %v9050 = vadd.f32 %v9001, %v9049
    %v9051 = vpop.f32.mrf.mxu0
    %v9052 = vadd.f32 %v9003, %v9051
    %9053 = vmatmul.bf16.gmra.mxu0 %v3218
    %v9054 = vpop.f32.mrf.mxu0
    %v9055 = vadd.f32 %v9006, %v9054
    %v9056 = vpop.f32.mrf.mxu0
    %v9057 = vadd.f32 %v9008, %v9056
    %9058 = vmatmul.bf16.gmra.mxu0 %v3255
    %v9059 = vpop.f32.mrf.mxu0
    %v9060 = vadd.f32 %v9011, %v9059
    %v9061 = vpop.f32.mrf.mxu0
    %v9062 = vadd.f32 %v9013, %v9061
    %9063 = vmatmul.bf16.gmra.mxu0 %v3271
    %v9064 = vpop.f32.mrf.mxu0
    %v9065 = vadd.f32 %v9016, %v9064
    %v9066 = vpop.f32.mrf.mxu0
    %v9067 = vadd.f32 %v9018, %v9066
    %9068 = vmatmul.bf16.gmra.mxu0 %v3287
    %v9069 = vpop.f32.mrf.mxu0
    %v9070 = vadd.f32 %v9021, %v9069
    %v9071 = vpop.f32.mrf.mxu0
    %v9072 = vadd.f32 %v9023, %v9071
    %9073 = vmatmul.bf16.gmra.mxu0 %v3303
    %v9074 = vpop.f32.mrf.mxu0
    %v9075 = vadd.f32 %v9026, %v9074
    %v9076 = vpop.f32.mrf.mxu0
    %v9077 = vadd.f32 %v9028, %v9076
    %9078 = vdwg.mxu0
    %9079 = vmatpush.bf16.msra.mxu0 %v5707
    %9080 = vmatpush.bf16.msra.mxu0 %v5703
    %9081 = vmatpush.bf16.msra.mxu0 %v5699
    %9082 = vmatpush.bf16.msra.mxu0 %v5695
    %9083 = vmatpush.bf16.msra.mxu0 %v5691
    %9084 = vmatpush.bf16.msra.mxu0 %v5687
    %9085 = vmatpush.bf16.msra.mxu0 %v5683
    %9086 = vmatpush.bf16.msra.mxu0 %v5679
    %9087 = vmatmul.bf16.gmra.mxu0 %v3210
    %v9088 = vpop.f32.mrf.mxu0
    %v9089 = vadd.f32 %v9040, %v9088
    %v9090 = vpop.f32.mrf.mxu0
    %v9091 = vadd.f32 %v9042, %v9090
    %9092 = vmatmul.bf16.gmra.mxu0 %v3213
    %v9093 = vpop.f32.mrf.mxu0
    %v9094 = vadd.f32 %v9045, %v9093
    %v9095 = vpop.f32.mrf.mxu0
    %v9096 = vadd.f32 %v9047, %v9095
    %9097 = vmatmul.bf16.gmra.mxu0 %v3216
    %v9098 = vpop.f32.mrf.mxu0
    %v9099 = vadd.f32 %v9050, %v9098
    %v9100 = vpop.f32.mrf.mxu0
    %v9101 = vadd.f32 %v9052, %v9100
    %9102 = vmatmul.bf16.gmra.mxu0 %v3219
    %v9103 = vpop.f32.mrf.mxu0
    %v9104 = vadd.f32 %v9055, %v9103
    %v9105 = vpop.f32.mrf.mxu0
    %v9106 = vadd.f32 %v9057, %v9105
    %9107 = vmatmul.bf16.gmra.mxu0 %v3256
    %v9108 = vpop.f32.mrf.mxu0
    %v9109 = vadd.f32 %v9060, %v9108
    %v9110 = vpop.f32.mrf.mxu0
    %v9111 = vadd.f32 %v9062, %v9110
    %9112 = vmatmul.bf16.gmra.mxu0 %v3272
    %v9113 = vpop.f32.mrf.mxu0
    %v9114 = vadd.f32 %v9065, %v9113
    %v9115 = vpop.f32.mrf.mxu0
    %v9116 = vadd.f32 %v9067, %v9115
    %9117 = vmatmul.bf16.gmra.mxu0 %v3288
    %v9118 = vpop.f32.mrf.mxu0
    %v9119 = vadd.f32 %v9070, %v9118
    %v9120 = vpop.f32.mrf.mxu0
    %v9121 = vadd.f32 %v9072, %v9120
    %9122 = vmatmul.bf16.gmra.mxu0 %v3304
    %v9123 = vpop.f32.mrf.mxu0
    %v9124 = vadd.f32 %v9075, %v9123
    %v9125 = vpop.f32.mrf.mxu0
    %v9126 = vadd.f32 %v9077, %v9125
    %9127 = vdwg.mxu0
    %v9128 = vmax.f32 %v6884, %v8354
    %v9129 = vmax.f32 %v7619, %v9089
    %v9130 = vmax.f32 %v6886, %v8356
    %v9131 = vmax.f32 %v7621, %v9091
    %v9132 = vmax.f32 %v6889, %v8359
    %v9133 = vmax.f32 %v7624, %v9094
    %v9134 = vmax.f32 %v6891, %v8361
    %v9135 = vmax.f32 %v7626, %v9096
    %v9136 = vmax.f32 %v6894, %v8364
    %v9137 = vmax.f32 %v7629, %v9099
    %v9138 = vmax.f32 %v6896, %v8366
    %v9139 = vmax.f32 %v7631, %v9101
    %v9140 = vmax.f32 %v6899, %v8369
    %v9141 = vmax.f32 %v7634, %v9104
    %v9142 = vmax.f32 %v6901, %v8371
    %v9143 = vmax.f32 %v7636, %v9106
    %v9144 = vmax.f32 %v6904, %v8374
    %v9145 = vmax.f32 %v7639, %v9109
    %v9146 = vmax.f32 %v6906, %v8376
    %v9147 = vmax.f32 %v7641, %v9111
    %v9148 = vmax.f32 %v6909, %v8379
    %v9149 = vmax.f32 %v7644, %v9114
    %v9150 = vmax.f32 %v6911, %v8381
    %v9151 = vmax.f32 %v7646, %v9116
    %v9152 = vmax.f32 %v6914, %v8384
    %v9153 = vmax.f32 %v7649, %v9119
    %v9154 = vmax.f32 %v6916, %v8386
    %v9155 = vmax.f32 %v7651, %v9121
    %v9156 = vmax.f32 %v6919, %v8389
    %v9157 = vmax.f32 %v7654, %v9124
    %v9158 = vmax.f32 %v6921, %v8391
    %v9159 = vmax.f32 %v7656, %v9126
    %v9160 = vmax.f32 %v9128, %v9132
    %v9161 = vmax.f32 %v9129, %v9133
    %v9162 = vmax.f32 %v9130, %v9134
    %v9163 = vmax.f32 %v9131, %v9135
    %v9164 = vmax.f32 %v9136, %v9140
    %v9165 = vmax.f32 %v9137, %v9141
    %v9166 = vmax.f32 %v9138, %v9142
    %v9167 = vmax.f32 %v9139, %v9143
    %v9168 = vmax.f32 %v9144, %v9148
    %v9169 = vmax.f32 %v9145, %v9149
    %v9170 = vmax.f32 %v9146, %v9150
    %v9171 = vmax.f32 %v9147, %v9151
    %v9172 = vmax.f32 %v9152, %v9156
    %v9173 = vmax.f32 %v9153, %v9157
    %v9174 = vmax.f32 %v9154, %v9158
    %v9175 = vmax.f32 %v9155, %v9159
    %v9176 = vld [vmem:[#allocation7] sm:$0x3]
    %v9178 = vperm.slane %v9176, 0
    %v9179 = vperm.slane %v9176, 1
    %v9182 = vadd.f32 %v9160, %v9178
    %v9183 = vadd.f32 %v9161, %v9179
    %v9184 = vadd.f32 %v9162, %v9178
    %v9185 = vadd.f32 %v9163, %v9179
    %v9186 = vadd.f32 %v9164, %v9178
    %v9187 = vadd.f32 %v9165, %v9179
    %v9188 = vadd.f32 %v9166, %v9178
    %v9189 = vadd.f32 %v9167, %v9179
    %v9190 = vadd.f32 %v9168, %v9178
    %v9191 = vadd.f32 %v9169, %v9179
    %v9192 = vadd.f32 %v9170, %v9178
    %v9193 = vadd.f32 %v9171, %v9179
    %v9194 = vadd.f32 %v9172, %v9178
    %v9195 = vadd.f32 %v9173, %v9179
    %v9196 = vadd.f32 %v9174, %v9178
    %v9197 = vadd.f32 %v9175, %v9179
    %v9198 = vpack.c.bf16 %v9183, %v9182
    %v9199 = vpack.c.bf16 %v9185, %v9184
    %v9200 = vpack.c.bf16 %v9187, %v9186
    %v9201 = vpack.c.bf16 %v9189, %v9188
    %v9202 = vpack.c.bf16 %v9191, %v9190
    %v9203 = vpack.c.bf16 %v9193, %v9192
    %v9204 = vpack.c.bf16 %v9195, %v9194
    %v9205 = vpack.c.bf16 %v9197, %v9196
    %v9208 = vunpack.c.l.b16 %v9198
    %v9209 = vunpack.c.h.b16 %v9198
    %v9210 = vunpack.c.l.b16 %v9199
    %v9211 = vunpack.c.h.b16 %v9199
    %v9212 = vpack.c.b16 %v9210, %v9208
    %v9213 = vpack.c.b16 %v9211, %v9209
    %v9218 = vunpack.c.l.b16 %v9200
    %v9219 = vunpack.c.h.b16 %v9200
    %v9220 = vunpack.c.l.b16 %v9201
    %v9221 = vunpack.c.h.b16 %v9201
    %v9222 = vpack.c.b16 %v9220, %v9218
    %v9223 = vpack.c.b16 %v9221, %v9219
    %v9228 = vunpack.c.l.b16 %v9202
    %v9229 = vunpack.c.h.b16 %v9202
    %v9230 = vunpack.c.l.b16 %v9203
    %v9231 = vunpack.c.h.b16 %v9203
    %v9232 = vpack.c.b16 %v9230, %v9228
    %v9233 = vpack.c.b16 %v9231, %v9229
    %v9238 = vunpack.c.l.b16 %v9204
    %v9239 = vunpack.c.h.b16 %v9204
    %v9240 = vunpack.c.l.b16 %v9205
    %v9241 = vunpack.c.h.b16 %v9205
    %v9242 = vpack.c.b16 %v9240, %v9238
    %v9243 = vpack.c.b16 %v9241, %v9239
    %v9246 = vld [vmem:[#allocation9] sm:$0xff]
    %v9247 = vld [vmem:[#allocation9 + $0x8] sm:$0xff]
    %v9248 = vld [vmem:[#allocation9 + $0x10] sm:$0xff]
    %v9249 = vld [vmem:[#allocation9 + $0x18] sm:$0xff]
    %v9250 = vld [vmem:[#allocation9 + $0x20] sm:$0xff]
    %v9251 = vld [vmem:[#allocation9 + $0x28] sm:$0xff]
    %v9252 = vld [vmem:[#allocation9 + $0x30] sm:$0xff]
    %v9253 = vld [vmem:[#allocation9 + $0x38] sm:$0xff]
    %v9254 = vld [vmem:[#allocation9 + $0x40] sm:$0xff]
    %v9255 = vld [vmem:[#allocation9 + $0x48] sm:$0xff]
    %v9256 = vld [vmem:[#allocation9 + $0x50] sm:$0xff]
    %v9257 = vld [vmem:[#allocation9 + $0x58] sm:$0xff]
    %v9258 = vld [vmem:[#allocation9 + $0x60] sm:$0xff]
    %v9259 = vld [vmem:[#allocation9 + $0x68] sm:$0xff]
    %v9260 = vld [vmem:[#allocation9 + $0x70] sm:$0xff]
    %v9261 = vld [vmem:[#allocation9 + $0x78] sm:$0xff]
    %v9262 = vld [vmem:[#allocation9 + $0x80] sm:$0xff]
    %v9263 = vld [vmem:[#allocation9 + $0x88] sm:$0xff]
    %v9264 = vld [vmem:[#allocation9 + $0x90] sm:$0xff]
    %v9265 = vld [vmem:[#allocation9 + $0x98] sm:$0xff]
    %v9266 = vld [vmem:[#allocation9 + $0xa0] sm:$0xff]
    %v9267 = vld [vmem:[#allocation9 + $0xa8] sm:$0xff]
    %v9268 = vld [vmem:[#allocation9 + $0xb0] sm:$0xff]
    %v9269 = vld [vmem:[#allocation9 + $0xb8] sm:$0xff]
    %v9270 = vld [vmem:[#allocation9 + $0xc0] sm:$0xff]
    %v9271 = vld [vmem:[#allocation9 + $0xc8] sm:$0xff]
    %v9272 = vld [vmem:[#allocation9 + $0xd0] sm:$0xff]
    %v9273 = vld [vmem:[#allocation9 + $0xd8] sm:$0xff]
    %v9274 = vld [vmem:[#allocation9 + $0xe0] sm:$0xff]
    %v9275 = vld [vmem:[#allocation9 + $0xe8] sm:$0xff]
    %v9276 = vld [vmem:[#allocation9 + $0xf0] sm:$0xff]
    %v9277 = vld [vmem:[#allocation9 + $0xf8] sm:$0xff]
    %v9278 = vld [vmem:[#allocation9 + $0x100] sm:$0xff]
    %v9279 = vld [vmem:[#allocation9 + $0x108] sm:$0xff]
    %v9280 = vld [vmem:[#allocation9 + $0x110] sm:$0xff]
    %v9281 = vld [vmem:[#allocation9 + $0x118] sm:$0xff]
    %v9282 = vld [vmem:[#allocation9 + $0x120] sm:$0xff]
    %v9283 = vld [vmem:[#allocation9 + $0x128] sm:$0xff]
    %v9284 = vld [vmem:[#allocation9 + $0x130] sm:$0xff]
    %v9285 = vld [vmem:[#allocation9 + $0x138] sm:$0xff]
    %v9286 = vld [vmem:[#allocation9 + $0x140] sm:$0xff]
    %v9287 = vld [vmem:[#allocation9 + $0x148] sm:$0xff]
    %v9288 = vld [vmem:[#allocation9 + $0x150] sm:$0xff]
    %v9289 = vld [vmem:[#allocation9 + $0x158] sm:$0xff]
    %v9290 = vld [vmem:[#allocation9 + $0x160] sm:$0xff]
    %v9291 = vld [vmem:[#allocation9 + $0x168] sm:$0xff]
    %v9292 = vld [vmem:[#allocation9 + $0x170] sm:$0xff]
    %v9293 = vld [vmem:[#allocation9 + $0x178] sm:$0xff]
    %v9294 = vld [vmem:[#allocation9 + $0x180] sm:$0xff]
    %v9295 = vld [vmem:[#allocation9 + $0x188] sm:$0xff]
    %v9296 = vld [vmem:[#allocation9 + $0x190] sm:$0xff]
    %v9297 = vld [vmem:[#allocation9 + $0x198] sm:$0xff]
    %v9298 = vld [vmem:[#allocation9 + $0x1a0] sm:$0xff]
    %v9299 = vld [vmem:[#allocation9 + $0x1a8] sm:$0xff]
    %v9300 = vld [vmem:[#allocation9 + $0x1b0] sm:$0xff]
    %v9301 = vld [vmem:[#allocation9 + $0x1b8] sm:$0xff]
    %v9302 = vld [vmem:[#allocation9 + $0x1c0] sm:$0xff]
    %v9303 = vld [vmem:[#allocation9 + $0x1c8] sm:$0xff]
    %v9304 = vld [vmem:[#allocation9 + $0x1d0] sm:$0xff]
    %v9305 = vld [vmem:[#allocation9 + $0x1d8] sm:$0xff]
    %v9306 = vld [vmem:[#allocation9 + $0x1e0] sm:$0xff]
    %v9307 = vld [vmem:[#allocation9 + $0x1e8] sm:$0xff]
    %v9308 = vld [vmem:[#allocation9 + $0x1f0] sm:$0xff]
    %v9309 = vld [vmem:[#allocation9 + $0x1f8] sm:$0xff]
    %v9310 = vld [vmem:[#allocation9 + $0x200] sm:$0xff]
    %v9311 = vld [vmem:[#allocation9 + $0x208] sm:$0xff]
    %v9312 = vld [vmem:[#allocation9 + $0x210] sm:$0xff]
    %v9313 = vld [vmem:[#allocation9 + $0x218] sm:$0xff]
    %v9314 = vld [vmem:[#allocation9 + $0x220] sm:$0xff]
    %v9315 = vld [vmem:[#allocation9 + $0x228] sm:$0xff]
    %v9316 = vld [vmem:[#allocation9 + $0x230] sm:$0xff]
    %v9317 = vld [vmem:[#allocation9 + $0x238] sm:$0xff]
    %v9318 = vld [vmem:[#allocation9 + $0x240] sm:$0xff]
    %v9319 = vld [vmem:[#allocation9 + $0x248] sm:$0xff]
    %v9320 = vld [vmem:[#allocation9 + $0x250] sm:$0xff]
    %v9321 = vld [vmem:[#allocation9 + $0x258] sm:$0xff]
    %v9322 = vld [vmem:[#allocation9 + $0x260] sm:$0xff]
    %v9323 = vld [vmem:[#allocation9 + $0x268] sm:$0xff]
    %v9324 = vld [vmem:[#allocation9 + $0x270] sm:$0xff]
    %v9325 = vld [vmem:[#allocation9 + $0x278] sm:$0xff]
    %v9326 = vld [vmem:[#allocation9 + $0x280] sm:$0xff]
    %v9327 = vld [vmem:[#allocation9 + $0x288] sm:$0xff]
    %v9328 = vld [vmem:[#allocation9 + $0x290] sm:$0xff]
    %v9329 = vld [vmem:[#allocation9 + $0x298] sm:$0xff]
    %v9330 = vld [vmem:[#allocation9 + $0x2a0] sm:$0xff]
    %v9331 = vld [vmem:[#allocation9 + $0x2a8] sm:$0xff]
    %v9332 = vld [vmem:[#allocation9 + $0x2b0] sm:$0xff]
    %v9333 = vld [vmem:[#allocation9 + $0x2b8] sm:$0xff]
    %v9334 = vld [vmem:[#allocation9 + $0x2c0] sm:$0xff]
    %v9335 = vld [vmem:[#allocation9 + $0x2c8] sm:$0xff]
    %v9336 = vld [vmem:[#allocation9 + $0x2d0] sm:$0xff]
    %v9337 = vld [vmem:[#allocation9 + $0x2d8] sm:$0xff]
    %v9338 = vld [vmem:[#allocation9 + $0x2e0] sm:$0xff]
    %v9339 = vld [vmem:[#allocation9 + $0x2e8] sm:$0xff]
    %v9340 = vld [vmem:[#allocation9 + $0x2f0] sm:$0xff]
    %v9341 = vld [vmem:[#allocation9 + $0x2f8] sm:$0xff]
    %v9342 = vld [vmem:[#allocation9 + $0x300] sm:$0xff]
    %v9343 = vld [vmem:[#allocation9 + $0x308] sm:$0xff]
    %v9344 = vld [vmem:[#allocation9 + $0x310] sm:$0xff]
    %v9345 = vld [vmem:[#allocation9 + $0x318] sm:$0xff]
    %v9346 = vld [vmem:[#allocation9 + $0x320] sm:$0xff]
    %v9347 = vld [vmem:[#allocation9 + $0x328] sm:$0xff]
    %v9348 = vld [vmem:[#allocation9 + $0x330] sm:$0xff]
    %v9349 = vld [vmem:[#allocation9 + $0x338] sm:$0xff]
    %v9350 = vld [vmem:[#allocation9 + $0x340] sm:$0xff]
    %v9351 = vld [vmem:[#allocation9 + $0x348] sm:$0xff]
    %v9352 = vld [vmem:[#allocation9 + $0x350] sm:$0xff]
    %v9353 = vld [vmem:[#allocation9 + $0x358] sm:$0xff]
    %v9354 = vld [vmem:[#allocation9 + $0x360] sm:$0xff]
    %v9355 = vld [vmem:[#allocation9 + $0x368] sm:$0xff]
    %v9356 = vld [vmem:[#allocation9 + $0x370] sm:$0xff]
    %v9357 = vld [vmem:[#allocation9 + $0x378] sm:$0xff]
    %v9358 = vld [vmem:[#allocation9 + $0x380] sm:$0xff]
    %v9359 = vld [vmem:[#allocation9 + $0x388] sm:$0xff]
    %v9360 = vld [vmem:[#allocation9 + $0x390] sm:$0xff]
    %v9361 = vld [vmem:[#allocation9 + $0x398] sm:$0xff]
    %v9362 = vld [vmem:[#allocation9 + $0x3a0] sm:$0xff]
    %v9363 = vld [vmem:[#allocation9 + $0x3a8] sm:$0xff]
    %v9364 = vld [vmem:[#allocation9 + $0x3b0] sm:$0xff]
    %v9365 = vld [vmem:[#allocation9 + $0x3b8] sm:$0xff]
    %v9366 = vld [vmem:[#allocation9 + $0x3c0] sm:$0xff]
    %v9367 = vld [vmem:[#allocation9 + $0x3c8] sm:$0xff]
    %v9368 = vld [vmem:[#allocation9 + $0x3d0] sm:$0xff]
    %v9369 = vld [vmem:[#allocation9 + $0x3d8] sm:$0xff]
    %v9370 = vld [vmem:[#allocation9 + $0x3e0] sm:$0xff]
    %v9371 = vld [vmem:[#allocation9 + $0x3e8] sm:$0xff]
    %v9372 = vld [vmem:[#allocation9 + $0x3f0] sm:$0xff]
    %v9373 = vld [vmem:[#allocation9 + $0x3f8] sm:$0xff]
    %v9374 = vld [vmem:[#allocation9 + $0x400] sm:$0xff]
    %v9375 = vld [vmem:[#allocation9 + $0x408] sm:$0xff]
    %v9376 = vld [vmem:[#allocation9 + $0x410] sm:$0xff]
    %v9377 = vld [vmem:[#allocation9 + $0x418] sm:$0xff]
    %v9378 = vld [vmem:[#allocation9 + $0x420] sm:$0xff]
    %v9379 = vld [vmem:[#allocation9 + $0x428] sm:$0xff]
    %v9380 = vld [vmem:[#allocation9 + $0x430] sm:$0xff]
    %v9381 = vld [vmem:[#allocation9 + $0x438] sm:$0xff]
    %v9382 = vld [vmem:[#allocation9 + $0x440] sm:$0xff]
    %v9383 = vld [vmem:[#allocation9 + $0x448] sm:$0xff]
    %v9384 = vld [vmem:[#allocation9 + $0x450] sm:$0xff]
    %v9385 = vld [vmem:[#allocation9 + $0x458] sm:$0xff]
    %v9386 = vld [vmem:[#allocation9 + $0x460] sm:$0xff]
    %v9387 = vld [vmem:[#allocation9 + $0x468] sm:$0xff]
    %v9388 = vld [vmem:[#allocation9 + $0x470] sm:$0xff]
    %v9389 = vld [vmem:[#allocation9 + $0x478] sm:$0xff]
    %v9390 = vld [vmem:[#allocation9 + $0x480] sm:$0xff]
    %v9391 = vld [vmem:[#allocation9 + $0x488] sm:$0xff]
    %v9392 = vld [vmem:[#allocation9 + $0x490] sm:$0xff]
    %v9393 = vld [vmem:[#allocation9 + $0x498] sm:$0xff]
    %v9394 = vld [vmem:[#allocation9 + $0x4a0] sm:$0xff]
    %v9395 = vld [vmem:[#allocation9 + $0x4a8] sm:$0xff]
    %v9396 = vld [vmem:[#allocation9 + $0x4b0] sm:$0xff]
    %v9397 = vld [vmem:[#allocation9 + $0x4b8] sm:$0xff]
    %v9398 = vld [vmem:[#allocation9 + $0x4c0] sm:$0xff]
    %v9399 = vld [vmem:[#allocation9 + $0x4c8] sm:$0xff]
    %v9400 = vld [vmem:[#allocation9 + $0x4d0] sm:$0xff]
    %v9401 = vld [vmem:[#allocation9 + $0x4d8] sm:$0xff]
    %v9402 = vld [vmem:[#allocation9 + $0x4e0] sm:$0xff]
    %v9403 = vld [vmem:[#allocation9 + $0x4e8] sm:$0xff]
    %v9404 = vld [vmem:[#allocation9 + $0x4f0] sm:$0xff]
    %v9405 = vld [vmem:[#allocation9 + $0x4f8] sm:$0xff]
    %v9406 = vld [vmem:[#allocation9 + $0x500] sm:$0xff]
    %v9407 = vld [vmem:[#allocation9 + $0x508] sm:$0xff]
    %v9408 = vld [vmem:[#allocation9 + $0x510] sm:$0xff]
    %v9409 = vld [vmem:[#allocation9 + $0x518] sm:$0xff]
    %v9410 = vld [vmem:[#allocation9 + $0x520] sm:$0xff]
    %v9411 = vld [vmem:[#allocation9 + $0x528] sm:$0xff]
    %v9412 = vld [vmem:[#allocation9 + $0x530] sm:$0xff]
    %v9413 = vld [vmem:[#allocation9 + $0x538] sm:$0xff]
    %v9414 = vld [vmem:[#allocation9 + $0x540] sm:$0xff]
    %v9415 = vld [vmem:[#allocation9 + $0x548] sm:$0xff]
    %v9416 = vld [vmem:[#allocation9 + $0x550] sm:$0xff]
    %v9417 = vld [vmem:[#allocation9 + $0x558] sm:$0xff]
    %v9418 = vld [vmem:[#allocation9 + $0x560] sm:$0xff]
    %v9419 = vld [vmem:[#allocation9 + $0x568] sm:$0xff]
    %v9420 = vld [vmem:[#allocation9 + $0x570] sm:$0xff]
    %v9421 = vld [vmem:[#allocation9 + $0x578] sm:$0xff]
    %v9422 = vld [vmem:[#allocation9 + $0x580] sm:$0xff]
    %v9423 = vld [vmem:[#allocation9 + $0x588] sm:$0xff]
    %v9424 = vld [vmem:[#allocation9 + $0x590] sm:$0xff]
    %v9425 = vld [vmem:[#allocation9 + $0x598] sm:$0xff]
    %v9426 = vld [vmem:[#allocation9 + $0x5a0] sm:$0xff]
    %v9427 = vld [vmem:[#allocation9 + $0x5a8] sm:$0xff]
    %v9428 = vld [vmem:[#allocation9 + $0x5b0] sm:$0xff]
    %v9429 = vld [vmem:[#allocation9 + $0x5b8] sm:$0xff]
    %v9430 = vld [vmem:[#allocation9 + $0x5c0] sm:$0xff]
    %v9431 = vld [vmem:[#allocation9 + $0x5c8] sm:$0xff]
    %v9432 = vld [vmem:[#allocation9 + $0x5d0] sm:$0xff]
    %v9433 = vld [vmem:[#allocation9 + $0x5d8] sm:$0xff]
    %v9434 = vld [vmem:[#allocation9 + $0x5e0] sm:$0xff]
    %v9435 = vld [vmem:[#allocation9 + $0x5e8] sm:$0xff]
    %v9436 = vld [vmem:[#allocation9 + $0x5f0] sm:$0xff]
    %v9437 = vld [vmem:[#allocation9 + $0x5f8] sm:$0xff]
    %v9438 = vld [vmem:[#allocation9 + $0x600] sm:$0xff]
    %v9439 = vld [vmem:[#allocation9 + $0x608] sm:$0xff]
    %v9440 = vld [vmem:[#allocation9 + $0x610] sm:$0xff]
    %v9441 = vld [vmem:[#allocation9 + $0x618] sm:$0xff]
    %v9442 = vld [vmem:[#allocation9 + $0x620] sm:$0xff]
    %v9443 = vld [vmem:[#allocation9 + $0x628] sm:$0xff]
    %v9444 = vld [vmem:[#allocation9 + $0x630] sm:$0xff]
    %v9445 = vld [vmem:[#allocation9 + $0x638] sm:$0xff]
    %v9446 = vld [vmem:[#allocation9 + $0x640] sm:$0xff]
    %v9447 = vld [vmem:[#allocation9 + $0x648] sm:$0xff]
    %v9448 = vld [vmem:[#allocation9 + $0x650] sm:$0xff]
    %v9449 = vld [vmem:[#allocation9 + $0x658] sm:$0xff]
    %v9450 = vld [vmem:[#allocation9 + $0x660] sm:$0xff]
    %v9451 = vld [vmem:[#allocation9 + $0x668] sm:$0xff]
    %v9452 = vld [vmem:[#allocation9 + $0x670] sm:$0xff]
    %v9453 = vld [vmem:[#allocation9 + $0x678] sm:$0xff]
    %v9454 = vld [vmem:[#allocation9 + $0x680] sm:$0xff]
    %v9455 = vld [vmem:[#allocation9 + $0x688] sm:$0xff]
    %v9456 = vld [vmem:[#allocation9 + $0x690] sm:$0xff]
    %v9457 = vld [vmem:[#allocation9 + $0x698] sm:$0xff]
    %v9458 = vld [vmem:[#allocation9 + $0x6a0] sm:$0xff]
    %v9459 = vld [vmem:[#allocation9 + $0x6a8] sm:$0xff]
    %v9460 = vld [vmem:[#allocation9 + $0x6b0] sm:$0xff]
    %v9461 = vld [vmem:[#allocation9 + $0x6b8] sm:$0xff]
    %v9462 = vld [vmem:[#allocation9 + $0x6c0] sm:$0xff]
    %v9463 = vld [vmem:[#allocation9 + $0x6c8] sm:$0xff]
    %v9464 = vld [vmem:[#allocation9 + $0x6d0] sm:$0xff]
    %v9465 = vld [vmem:[#allocation9 + $0x6d8] sm:$0xff]
    %v9466 = vld [vmem:[#allocation9 + $0x6e0] sm:$0xff]
    %v9467 = vld [vmem:[#allocation9 + $0x6e8] sm:$0xff]
    %v9468 = vld [vmem:[#allocation9 + $0x6f0] sm:$0xff]
    %v9469 = vld [vmem:[#allocation9 + $0x6f8] sm:$0xff]
    %v9470 = vld [vmem:[#allocation9 + $0x700] sm:$0xff]
    %v9471 = vld [vmem:[#allocation9 + $0x708] sm:$0xff]
    %v9472 = vld [vmem:[#allocation9 + $0x710] sm:$0xff]
    %v9473 = vld [vmem:[#allocation9 + $0x718] sm:$0xff]
    %v9474 = vld [vmem:[#allocation9 + $0x720] sm:$0xff]
    %v9475 = vld [vmem:[#allocation9 + $0x728] sm:$0xff]
    %v9476 = vld [vmem:[#allocation9 + $0x730] sm:$0xff]
    %v9477 = vld [vmem:[#allocation9 + $0x738] sm:$0xff]
    %v9478 = vld [vmem:[#allocation9 + $0x740] sm:$0xff]
    %v9479 = vld [vmem:[#allocation9 + $0x748] sm:$0xff]
    %v9480 = vld [vmem:[#allocation9 + $0x750] sm:$0xff]
    %v9481 = vld [vmem:[#allocation9 + $0x758] sm:$0xff]
    %v9482 = vld [vmem:[#allocation9 + $0x760] sm:$0xff]
    %v9483 = vld [vmem:[#allocation9 + $0x768] sm:$0xff]
    %v9484 = vld [vmem:[#allocation9 + $0x770] sm:$0xff]
    %v9485 = vld [vmem:[#allocation9 + $0x778] sm:$0xff]
    %v9486 = vld [vmem:[#allocation9 + $0x780] sm:$0xff]
    %v9487 = vld [vmem:[#allocation9 + $0x788] sm:$0xff]
    %v9488 = vld [vmem:[#allocation9 + $0x790] sm:$0xff]
    %v9489 = vld [vmem:[#allocation9 + $0x798] sm:$0xff]
    %v9490 = vld [vmem:[#allocation9 + $0x7a0] sm:$0xff]
    %v9491 = vld [vmem:[#allocation9 + $0x7a8] sm:$0xff]
    %v9492 = vld [vmem:[#allocation9 + $0x7b0] sm:$0xff]
    %v9493 = vld [vmem:[#allocation9 + $0x7b8] sm:$0xff]
    %v9494 = vld [vmem:[#allocation9 + $0x7c0] sm:$0xff]
    %v9495 = vld [vmem:[#allocation9 + $0x7c8] sm:$0xff]
    %v9496 = vld [vmem:[#allocation9 + $0x7d0] sm:$0xff]
    %v9497 = vld [vmem:[#allocation9 + $0x7d8] sm:$0xff]
    %v9498 = vld [vmem:[#allocation9 + $0x7e0] sm:$0xff]
    %v9499 = vld [vmem:[#allocation9 + $0x7e8] sm:$0xff]
    %v9500 = vld [vmem:[#allocation9 + $0x7f0] sm:$0xff]
    %v9501 = vld [vmem:[#allocation9 + $0x7f8] sm:$0xff]
    %v9502 = vld [vmem:[#allocation10] sm:$0xf]
    %v9504 = vperm.slane %v9502, 0
    %v9505 = vperm.slane %v9502, 1
    %v9506 = vperm.slane %v9502, 2
    %v9507 = vperm.slane %v9502, 3
    %v9768 = vunpack.c.l.b16 %v9246
    %v9769 = vunpack.c.h.b16 %v9246
    %v9770 = vunpack.c.l.b16 %v9247
    %v9771 = vunpack.c.h.b16 %v9247
    %v9772 = vunpack.c.l.b16 %v9248
    %v9773 = vunpack.c.h.b16 %v9248
    %v9774 = vunpack.c.l.b16 %v9249
    %v9775 = vunpack.c.h.b16 %v9249
    %v9776 = vunpack.c.l.b16 %v9250
    %v9777 = vunpack.c.h.b16 %v9250
    %v9778 = vunpack.c.l.b16 %v9251
    %v9779 = vunpack.c.h.b16 %v9251
    %v9780 = vunpack.c.l.b16 %v9252
    %v9781 = vunpack.c.h.b16 %v9252
    %v9782 = vunpack.c.l.b16 %v9253
    %v9783 = vunpack.c.h.b16 %v9253
    %v9784 = vunpack.c.l.b16 %v9254
    %v9785 = vunpack.c.h.b16 %v9254
    %v9786 = vunpack.c.l.b16 %v9255
    %v9787 = vunpack.c.h.b16 %v9255
    %v9788 = vunpack.c.l.b16 %v9256
    %v9789 = vunpack.c.h.b16 %v9256
    %v9790 = vunpack.c.l.b16 %v9257
    %v9791 = vunpack.c.h.b16 %v9257
    %v9792 = vunpack.c.l.b16 %v9258
    %v9793 = vunpack.c.h.b16 %v9258
    %v9794 = vunpack.c.l.b16 %v9259
    %v9795 = vunpack.c.h.b16 %v9259
    %v9796 = vunpack.c.l.b16 %v9260
    %v9797 = vunpack.c.h.b16 %v9260
    %v9798 = vunpack.c.l.b16 %v9261
    %v9799 = vunpack.c.h.b16 %v9261
    %v9800 = vunpack.c.l.b16 %v9262
    %v9801 = vunpack.c.h.b16 %v9262
    %v9802 = vunpack.c.l.b16 %v9263
    %v9803 = vunpack.c.h.b16 %v9263
    %v9804 = vunpack.c.l.b16 %v9264
    %v9805 = vunpack.c.h.b16 %v9264
    %v9806 = vunpack.c.l.b16 %v9265
    %v9807 = vunpack.c.h.b16 %v9265
    %v9808 = vunpack.c.l.b16 %v9266
    %v9809 = vunpack.c.h.b16 %v9266
    %v9810 = vunpack.c.l.b16 %v9267
    %v9811 = vunpack.c.h.b16 %v9267
    %v9812 = vunpack.c.l.b16 %v9268
    %v9813 = vunpack.c.h.b16 %v9268
    %v9814 = vunpack.c.l.b16 %v9269
    %v9815 = vunpack.c.h.b16 %v9269
    %v9816 = vunpack.c.l.b16 %v9270
    %v9817 = vunpack.c.h.b16 %v9270
    %v9818 = vunpack.c.l.b16 %v9271
    %v9819 = vunpack.c.h.b16 %v9271
    %v9820 = vunpack.c.l.b16 %v9272
    %v9821 = vunpack.c.h.b16 %v9272
    %v9822 = vunpack.c.l.b16 %v9273
    %v9823 = vunpack.c.h.b16 %v9273
    %v9824 = vunpack.c.l.b16 %v9274
    %v9825 = vunpack.c.h.b16 %v9274
    %v9826 = vunpack.c.l.b16 %v9275
    %v9827 = vunpack.c.h.b16 %v9275
    %v9828 = vunpack.c.l.b16 %v9276
    %v9829 = vunpack.c.h.b16 %v9276
    %v9830 = vunpack.c.l.b16 %v9277
    %v9831 = vunpack.c.h.b16 %v9277
    %v9832 = vunpack.c.l.b16 %v9278
    %v9833 = vunpack.c.h.b16 %v9278
    %v9834 = vunpack.c.l.b16 %v9279
    %v9835 = vunpack.c.h.b16 %v9279
    %v9836 = vunpack.c.l.b16 %v9280
    %v9837 = vunpack.c.h.b16 %v9280
    %v9838 = vunpack.c.l.b16 %v9281
    %v9839 = vunpack.c.h.b16 %v9281
    %v9840 = vunpack.c.l.b16 %v9282
    %v9841 = vunpack.c.h.b16 %v9282
    %v9842 = vunpack.c.l.b16 %v9283
    %v9843 = vunpack.c.h.b16 %v9283
    %v9844 = vunpack.c.l.b16 %v9284
    %v9845 = vunpack.c.h.b16 %v9284
    %v9846 = vunpack.c.l.b16 %v9285
    %v9847 = vunpack.c.h.b16 %v9285
    %v9848 = vunpack.c.l.b16 %v9286
    %v9849 = vunpack.c.h.b16 %v9286
    %v9850 = vunpack.c.l.b16 %v9287
    %v9851 = vunpack.c.h.b16 %v9287
    %v9852 = vunpack.c.l.b16 %v9288
    %v9853 = vunpack.c.h.b16 %v9288
    %v9854 = vunpack.c.l.b16 %v9289
    %v9855 = vunpack.c.h.b16 %v9289
    %v9856 = vunpack.c.l.b16 %v9290
    %v9857 = vunpack.c.h.b16 %v9290
    %v9858 = vunpack.c.l.b16 %v9291
    %v9859 = vunpack.c.h.b16 %v9291
    %v9860 = vunpack.c.l.b16 %v9292
    %v9861 = vunpack.c.h.b16 %v9292
    %v9862 = vunpack.c.l.b16 %v9293
    %v9863 = vunpack.c.h.b16 %v9293
    %v9864 = vunpack.c.l.b16 %v9294
    %v9865 = vunpack.c.h.b16 %v9294
    %v9866 = vunpack.c.l.b16 %v9295
    %v9867 = vunpack.c.h.b16 %v9295
    %v9868 = vunpack.c.l.b16 %v9296
    %v9869 = vunpack.c.h.b16 %v9296
    %v9870 = vunpack.c.l.b16 %v9297
    %v9871 = vunpack.c.h.b16 %v9297
    %v9872 = vunpack.c.l.b16 %v9298
    %v9873 = vunpack.c.h.b16 %v9298
    %v9874 = vunpack.c.l.b16 %v9299
    %v9875 = vunpack.c.h.b16 %v9299
    %v9876 = vunpack.c.l.b16 %v9300
    %v9877 = vunpack.c.h.b16 %v9300
    %v9878 = vunpack.c.l.b16 %v9301
    %v9879 = vunpack.c.h.b16 %v9301
    %v9880 = vunpack.c.l.b16 %v9302
    %v9881 = vunpack.c.h.b16 %v9302
    %v9882 = vunpack.c.l.b16 %v9303
    %v9883 = vunpack.c.h.b16 %v9303
    %v9884 = vunpack.c.l.b16 %v9304
    %v9885 = vunpack.c.h.b16 %v9304
    %v9886 = vunpack.c.l.b16 %v9305
    %v9887 = vunpack.c.h.b16 %v9305
    %v9888 = vunpack.c.l.b16 %v9306
    %v9889 = vunpack.c.h.b16 %v9306
    %v9890 = vunpack.c.l.b16 %v9307
    %v9891 = vunpack.c.h.b16 %v9307
    %v9892 = vunpack.c.l.b16 %v9308
    %v9893 = vunpack.c.h.b16 %v9308
    %v9894 = vunpack.c.l.b16 %v9309
    %v9895 = vunpack.c.h.b16 %v9309
    %v9896 = vunpack.c.l.b16 %v9310
    %v9897 = vunpack.c.h.b16 %v9310
    %v9898 = vunpack.c.l.b16 %v9311
    %v9899 = vunpack.c.h.b16 %v9311
    %v9900 = vunpack.c.l.b16 %v9312
    %v9901 = vunpack.c.h.b16 %v9312
    %v9902 = vunpack.c.l.b16 %v9313
    %v9903 = vunpack.c.h.b16 %v9313
    %v9904 = vunpack.c.l.b16 %v9314
    %v9905 = vunpack.c.h.b16 %v9314
    %v9906 = vunpack.c.l.b16 %v9315
    %v9907 = vunpack.c.h.b16 %v9315
    %v9908 = vunpack.c.l.b16 %v9316
    %v9909 = vunpack.c.h.b16 %v9316
    %v9910 = vunpack.c.l.b16 %v9317
    %v9911 = vunpack.c.h.b16 %v9317
    %v9912 = vunpack.c.l.b16 %v9318
    %v9913 = vunpack.c.h.b16 %v9318
    %v9914 = vunpack.c.l.b16 %v9319
    %v9915 = vunpack.c.h.b16 %v9319
    %v9916 = vunpack.c.l.b16 %v9320
    %v9917 = vunpack.c.h.b16 %v9320
    %v9918 = vunpack.c.l.b16 %v9321
    %v9919 = vunpack.c.h.b16 %v9321
    %v9920 = vunpack.c.l.b16 %v9322
    %v9921 = vunpack.c.h.b16 %v9322
    %v9922 = vunpack.c.l.b16 %v9323
    %v9923 = vunpack.c.h.b16 %v9323
    %v9924 = vunpack.c.l.b16 %v9324
    %v9925 = vunpack.c.h.b16 %v9324
    %v9926 = vunpack.c.l.b16 %v9325
    %v9927 = vunpack.c.h.b16 %v9325
    %v9928 = vunpack.c.l.b16 %v9326
    %v9929 = vunpack.c.h.b16 %v9326
    %v9930 = vunpack.c.l.b16 %v9327
    %v9931 = vunpack.c.h.b16 %v9327
    %v9932 = vunpack.c.l.b16 %v9328
    %v9933 = vunpack.c.h.b16 %v9328
    %v9934 = vunpack.c.l.b16 %v9329
    %v9935 = vunpack.c.h.b16 %v9329
    %v9936 = vunpack.c.l.b16 %v9330
    %v9937 = vunpack.c.h.b16 %v9330
    %v9938 = vunpack.c.l.b16 %v9331
    %v9939 = vunpack.c.h.b16 %v9331
    %v9940 = vunpack.c.l.b16 %v9332
    %v9941 = vunpack.c.h.b16 %v9332
    %v9942 = vunpack.c.l.b16 %v9333
    %v9943 = vunpack.c.h.b16 %v9333
    %v9944 = vunpack.c.l.b16 %v9334
    %v9945 = vunpack.c.h.b16 %v9334
    %v9946 = vunpack.c.l.b16 %v9335
    %v9947 = vunpack.c.h.b16 %v9335
    %v9948 = vunpack.c.l.b16 %v9336
    %v9949 = vunpack.c.h.b16 %v9336
    %v9950 = vunpack.c.l.b16 %v9337
    %v9951 = vunpack.c.h.b16 %v9337
    %v9952 = vunpack.c.l.b16 %v9338
    %v9953 = vunpack.c.h.b16 %v9338
    %v9954 = vunpack.c.l.b16 %v9339
    %v9955 = vunpack.c.h.b16 %v9339
    %v9956 = vunpack.c.l.b16 %v9340
    %v9957 = vunpack.c.h.b16 %v9340
    %v9958 = vunpack.c.l.b16 %v9341
    %v9959 = vunpack.c.h.b16 %v9341
    %v9960 = vunpack.c.l.b16 %v9342
    %v9961 = vunpack.c.h.b16 %v9342
    %v9962 = vunpack.c.l.b16 %v9343
    %v9963 = vunpack.c.h.b16 %v9343
    %v9964 = vunpack.c.l.b16 %v9344
    %v9965 = vunpack.c.h.b16 %v9344
    %v9966 = vunpack.c.l.b16 %v9345
    %v9967 = vunpack.c.h.b16 %v9345
    %v9968 = vunpack.c.l.b16 %v9346
    %v9969 = vunpack.c.h.b16 %v9346
    %v9970 = vunpack.c.l.b16 %v9347
    %v9971 = vunpack.c.h.b16 %v9347
    %v9972 = vunpack.c.l.b16 %v9348
    %v9973 = vunpack.c.h.b16 %v9348
    %v9974 = vunpack.c.l.b16 %v9349
    %v9975 = vunpack.c.h.b16 %v9349
    %v9976 = vunpack.c.l.b16 %v9350
    %v9977 = vunpack.c.h.b16 %v9350
    %v9978 = vunpack.c.l.b16 %v9351
    %v9979 = vunpack.c.h.b16 %v9351
    %v9980 = vunpack.c.l.b16 %v9352
    %v9981 = vunpack.c.h.b16 %v9352
    %v9982 = vunpack.c.l.b16 %v9353
    %v9983 = vunpack.c.h.b16 %v9353
    %v9984 = vunpack.c.l.b16 %v9354
    %v9985 = vunpack.c.h.b16 %v9354
    %v9986 = vunpack.c.l.b16 %v9355
    %v9987 = vunpack.c.h.b16 %v9355
    %v9988 = vunpack.c.l.b16 %v9356
    %v9989 = vunpack.c.h.b16 %v9356
    %v9990 = vunpack.c.l.b16 %v9357
    %v9991 = vunpack.c.h.b16 %v9357
    %v9992 = vunpack.c.l.b16 %v9358
    %v9993 = vunpack.c.h.b16 %v9358
    %v9994 = vunpack.c.l.b16 %v9359
    %v9995 = vunpack.c.h.b16 %v9359
    %v9996 = vunpack.c.l.b16 %v9360
    %v9997 = vunpack.c.h.b16 %v9360
    %v9998 = vunpack.c.l.b16 %v9361
    %v9999 = vunpack.c.h.b16 %v9361
    %v10000 = vunpack.c.l.b16 %v9362
    %v10001 = vunpack.c.h.b16 %v9362
    %v10002 = vunpack.c.l.b16 %v9363
    %v10003 = vunpack.c.h.b16 %v9363
    %v10004 = vunpack.c.l.b16 %v9364
    %v10005 = vunpack.c.h.b16 %v9364
    %v10006 = vunpack.c.l.b16 %v9365
    %v10007 = vunpack.c.h.b16 %v9365
    %v10008 = vunpack.c.l.b16 %v9366
    %v10009 = vunpack.c.h.b16 %v9366
    %v10010 = vunpack.c.l.b16 %v9367
    %v10011 = vunpack.c.h.b16 %v9367
    %v10012 = vunpack.c.l.b16 %v9368
    %v10013 = vunpack.c.h.b16 %v9368
    %v10014 = vunpack.c.l.b16 %v9369
    %v10015 = vunpack.c.h.b16 %v9369
    %v10016 = vunpack.c.l.b16 %v9370
    %v10017 = vunpack.c.h.b16 %v9370
    %v10018 = vunpack.c.l.b16 %v9371
    %v10019 = vunpack.c.h.b16 %v9371
    %v10020 = vunpack.c.l.b16 %v9372
    %v10021 = vunpack.c.h.b16 %v9372
    %v10022 = vunpack.c.l.b16 %v9373
    %v10023 = vunpack.c.h.b16 %v9373
    %v10024 = vunpack.c.l.b16 %v9374
    %v10025 = vunpack.c.h.b16 %v9374
    %v10026 = vunpack.c.l.b16 %v9375
    %v10027 = vunpack.c.h.b16 %v9375
    %v10028 = vunpack.c.l.b16 %v9376
    %v10029 = vunpack.c.h.b16 %v9376
    %v10030 = vunpack.c.l.b16 %v9377
    %v10031 = vunpack.c.h.b16 %v9377
    %v10032 = vunpack.c.l.b16 %v9378
    %v10033 = vunpack.c.h.b16 %v9378
    %v10034 = vunpack.c.l.b16 %v9379
    %v10035 = vunpack.c.h.b16 %v9379
    %v10036 = vunpack.c.l.b16 %v9380
    %v10037 = vunpack.c.h.b16 %v9380
    %v10038 = vunpack.c.l.b16 %v9381
    %v10039 = vunpack.c.h.b16 %v9381
    %v10040 = vunpack.c.l.b16 %v9382
    %v10041 = vunpack.c.h.b16 %v9382
    %v10042 = vunpack.c.l.b16 %v9383
    %v10043 = vunpack.c.h.b16 %v9383
    %v10044 = vunpack.c.l.b16 %v9384
    %v10045 = vunpack.c.h.b16 %v9384
    %v10046 = vunpack.c.l.b16 %v9385
    %v10047 = vunpack.c.h.b16 %v9385
    %v10048 = vunpack.c.l.b16 %v9386
    %v10049 = vunpack.c.h.b16 %v9386
    %v10050 = vunpack.c.l.b16 %v9387
    %v10051 = vunpack.c.h.b16 %v9387
    %v10052 = vunpack.c.l.b16 %v9388
    %v10053 = vunpack.c.h.b16 %v9388
    %v10054 = vunpack.c.l.b16 %v9389
    %v10055 = vunpack.c.h.b16 %v9389
    %v10056 = vunpack.c.l.b16 %v9390
    %v10057 = vunpack.c.h.b16 %v9390
    %v10058 = vunpack.c.l.b16 %v9391
    %v10059 = vunpack.c.h.b16 %v9391
    %v10060 = vunpack.c.l.b16 %v9392
    %v10061 = vunpack.c.h.b16 %v9392
    %v10062 = vunpack.c.l.b16 %v9393
    %v10063 = vunpack.c.h.b16 %v9393
    %v10064 = vunpack.c.l.b16 %v9394
    %v10065 = vunpack.c.h.b16 %v9394
    %v10066 = vunpack.c.l.b16 %v9395
    %v10067 = vunpack.c.h.b16 %v9395
    %v10068 = vunpack.c.l.b16 %v9396
    %v10069 = vunpack.c.h.b16 %v9396
    %v10070 = vunpack.c.l.b16 %v9397
    %v10071 = vunpack.c.h.b16 %v9397
    %v10072 = vunpack.c.l.b16 %v9398
    %v10073 = vunpack.c.h.b16 %v9398
    %v10074 = vunpack.c.l.b16 %v9399
    %v10075 = vunpack.c.h.b16 %v9399
    %v10076 = vunpack.c.l.b16 %v9400
    %v10077 = vunpack.c.h.b16 %v9400
    %v10078 = vunpack.c.l.b16 %v9401
    %v10079 = vunpack.c.h.b16 %v9401
    %v10080 = vunpack.c.l.b16 %v9402
    %v10081 = vunpack.c.h.b16 %v9402
    %v10082 = vunpack.c.l.b16 %v9403
    %v10083 = vunpack.c.h.b16 %v9403
    %v10084 = vunpack.c.l.b16 %v9404
    %v10085 = vunpack.c.h.b16 %v9404
    %v10086 = vunpack.c.l.b16 %v9405
    %v10087 = vunpack.c.h.b16 %v9405
    %v10088 = vunpack.c.l.b16 %v9406
    %v10089 = vunpack.c.h.b16 %v9406
    %v10090 = vunpack.c.l.b16 %v9407
    %v10091 = vunpack.c.h.b16 %v9407
    %v10092 = vunpack.c.l.b16 %v9408
    %v10093 = vunpack.c.h.b16 %v9408
    %v10094 = vunpack.c.l.b16 %v9409
    %v10095 = vunpack.c.h.b16 %v9409
    %v10096 = vunpack.c.l.b16 %v9410
    %v10097 = vunpack.c.h.b16 %v9410
    %v10098 = vunpack.c.l.b16 %v9411
    %v10099 = vunpack.c.h.b16 %v9411
    %v10100 = vunpack.c.l.b16 %v9412
    %v10101 = vunpack.c.h.b16 %v9412
    %v10102 = vunpack.c.l.b16 %v9413
    %v10103 = vunpack.c.h.b16 %v9413
    %v10104 = vunpack.c.l.b16 %v9414
    %v10105 = vunpack.c.h.b16 %v9414
    %v10106 = vunpack.c.l.b16 %v9415
    %v10107 = vunpack.c.h.b16 %v9415
    %v10108 = vunpack.c.l.b16 %v9416
    %v10109 = vunpack.c.h.b16 %v9416
    %v10110 = vunpack.c.l.b16 %v9417
    %v10111 = vunpack.c.h.b16 %v9417
    %v10112 = vunpack.c.l.b16 %v9418
    %v10113 = vunpack.c.h.b16 %v9418
    %v10114 = vunpack.c.l.b16 %v9419
    %v10115 = vunpack.c.h.b16 %v9419
    %v10116 = vunpack.c.l.b16 %v9420
    %v10117 = vunpack.c.h.b16 %v9420
    %v10118 = vunpack.c.l.b16 %v9421
    %v10119 = vunpack.c.h.b16 %v9421
    %v10120 = vunpack.c.l.b16 %v9422
    %v10121 = vunpack.c.h.b16 %v9422
    %v10122 = vunpack.c.l.b16 %v9423
    %v10123 = vunpack.c.h.b16 %v9423
    %v10124 = vunpack.c.l.b16 %v9424
    %v10125 = vunpack.c.h.b16 %v9424
    %v10126 = vunpack.c.l.b16 %v9425
    %v10127 = vunpack.c.h.b16 %v9425
    %v10128 = vunpack.c.l.b16 %v9426
    %v10129 = vunpack.c.h.b16 %v9426
    %v10130 = vunpack.c.l.b16 %v9427
    %v10131 = vunpack.c.h.b16 %v9427
    %v10132 = vunpack.c.l.b16 %v9428
    %v10133 = vunpack.c.h.b16 %v9428
    %v10134 = vunpack.c.l.b16 %v9429
    %v10135 = vunpack.c.h.b16 %v9429
    %v10136 = vunpack.c.l.b16 %v9430
    %v10137 = vunpack.c.h.b16 %v9430
    %v10138 = vunpack.c.l.b16 %v9431
    %v10139 = vunpack.c.h.b16 %v9431
    %v10140 = vunpack.c.l.b16 %v9432
    %v10141 = vunpack.c.h.b16 %v9432
    %v10142 = vunpack.c.l.b16 %v9433
    %v10143 = vunpack.c.h.b16 %v9433
    %v10144 = vunpack.c.l.b16 %v9434
    %v10145 = vunpack.c.h.b16 %v9434
    %v10146 = vunpack.c.l.b16 %v9435
    %v10147 = vunpack.c.h.b16 %v9435
    %v10148 = vunpack.c.l.b16 %v9436
    %v10149 = vunpack.c.h.b16 %v9436
    %v10150 = vunpack.c.l.b16 %v9437
    %v10151 = vunpack.c.h.b16 %v9437
    %v10152 = vunpack.c.l.b16 %v9438
    %v10153 = vunpack.c.h.b16 %v9438
    %v10154 = vunpack.c.l.b16 %v9439
    %v10155 = vunpack.c.h.b16 %v9439
    %v10156 = vunpack.c.l.b16 %v9440
    %v10157 = vunpack.c.h.b16 %v9440
    %v10158 = vunpack.c.l.b16 %v9441
    %v10159 = vunpack.c.h.b16 %v9441
    %v10160 = vunpack.c.l.b16 %v9442
    %v10161 = vunpack.c.h.b16 %v9442
    %v10162 = vunpack.c.l.b16 %v9443
    %v10163 = vunpack.c.h.b16 %v9443
    %v10164 = vunpack.c.l.b16 %v9444
    %v10165 = vunpack.c.h.b16 %v9444
    %v10166 = vunpack.c.l.b16 %v9445
    %v10167 = vunpack.c.h.b16 %v9445
    %v10168 = vunpack.c.l.b16 %v9446
    %v10169 = vunpack.c.h.b16 %v9446
    %v10170 = vunpack.c.l.b16 %v9447
    %v10171 = vunpack.c.h.b16 %v9447
    %v10172 = vunpack.c.l.b16 %v9448
    %v10173 = vunpack.c.h.b16 %v9448
    %v10174 = vunpack.c.l.b16 %v9449
    %v10175 = vunpack.c.h.b16 %v9449
    %v10176 = vunpack.c.l.b16 %v9450
    %v10177 = vunpack.c.h.b16 %v9450
    %v10178 = vunpack.c.l.b16 %v9451
    %v10179 = vunpack.c.h.b16 %v9451
    %v10180 = vunpack.c.l.b16 %v9452
    %v10181 = vunpack.c.h.b16 %v9452
    %v10182 = vunpack.c.l.b16 %v9453
    %v10183 = vunpack.c.h.b16 %v9453
    %v10184 = vunpack.c.l.b16 %v9454
    %v10185 = vunpack.c.h.b16 %v9454
    %v10186 = vunpack.c.l.b16 %v9455
    %v10187 = vunpack.c.h.b16 %v9455
    %v10188 = vunpack.c.l.b16 %v9456
    %v10189 = vunpack.c.h.b16 %v9456
    %v10190 = vunpack.c.l.b16 %v9457
    %v10191 = vunpack.c.h.b16 %v9457
    %v10192 = vunpack.c.l.b16 %v9458
    %v10193 = vunpack.c.h.b16 %v9458
    %v10194 = vunpack.c.l.b16 %v9459
    %v10195 = vunpack.c.h.b16 %v9459
    %v10196 = vunpack.c.l.b16 %v9460
    %v10197 = vunpack.c.h.b16 %v9460
    %v10198 = vunpack.c.l.b16 %v9461
    %v10199 = vunpack.c.h.b16 %v9461
    %v10200 = vunpack.c.l.b16 %v9462
    %v10201 = vunpack.c.h.b16 %v9462
    %v10202 = vunpack.c.l.b16 %v9463
    %v10203 = vunpack.c.h.b16 %v9463
    %v10204 = vunpack.c.l.b16 %v9464
    %v10205 = vunpack.c.h.b16 %v9464
    %v10206 = vunpack.c.l.b16 %v9465
    %v10207 = vunpack.c.h.b16 %v9465
    %v10208 = vunpack.c.l.b16 %v9466
    %v10209 = vunpack.c.h.b16 %v9466
    %v10210 = vunpack.c.l.b16 %v9467
    %v10211 = vunpack.c.h.b16 %v9467
    %v10212 = vunpack.c.l.b16 %v9468
    %v10213 = vunpack.c.h.b16 %v9468
    %v10214 = vunpack.c.l.b16 %v9469
    %v10215 = vunpack.c.h.b16 %v9469
    %v10216 = vunpack.c.l.b16 %v9470
    %v10217 = vunpack.c.h.b16 %v9470
    %v10218 = vunpack.c.l.b16 %v9471
    %v10219 = vunpack.c.h.b16 %v9471
    %v10220 = vunpack.c.l.b16 %v9472
    %v10221 = vunpack.c.h.b16 %v9472
    %v10222 = vunpack.c.l.b16 %v9473
    %v10223 = vunpack.c.h.b16 %v9473
    %v10224 = vunpack.c.l.b16 %v9474
    %v10225 = vunpack.c.h.b16 %v9474
    %v10226 = vunpack.c.l.b16 %v9475
    %v10227 = vunpack.c.h.b16 %v9475
    %v10228 = vunpack.c.l.b16 %v9476
    %v10229 = vunpack.c.h.b16 %v9476
    %v10230 = vunpack.c.l.b16 %v9477
    %v10231 = vunpack.c.h.b16 %v9477
    %v10232 = vunpack.c.l.b16 %v9478
    %v10233 = vunpack.c.h.b16 %v9478
    %v10234 = vunpack.c.l.b16 %v9479
    %v10235 = vunpack.c.h.b16 %v9479
    %v10236 = vunpack.c.l.b16 %v9480
    %v10237 = vunpack.c.h.b16 %v9480
    %v10238 = vunpack.c.l.b16 %v9481
    %v10239 = vunpack.c.h.b16 %v9481
    %v10240 = vunpack.c.l.b16 %v9482
    %v10241 = vunpack.c.h.b16 %v9482
    %v10242 = vunpack.c.l.b16 %v9483
    %v10243 = vunpack.c.h.b16 %v9483
    %v10244 = vunpack.c.l.b16 %v9484
    %v10245 = vunpack.c.h.b16 %v9484
    %v10246 = vunpack.c.l.b16 %v9485
    %v10247 = vunpack.c.h.b16 %v9485
    %v10248 = vunpack.c.l.b16 %v9486
    %v10249 = vunpack.c.h.b16 %v9486
    %v10250 = vunpack.c.l.b16 %v9487
    %v10251 = vunpack.c.h.b16 %v9487
    %v10252 = vunpack.c.l.b16 %v9488
    %v10253 = vunpack.c.h.b16 %v9488
    %v10254 = vunpack.c.l.b16 %v9489
    %v10255 = vunpack.c.h.b16 %v9489
    %v10256 = vunpack.c.l.b16 %v9490
    %v10257 = vunpack.c.h.b16 %v9490
    %v10258 = vunpack.c.l.b16 %v9491
    %v10259 = vunpack.c.h.b16 %v9491
    %v10260 = vunpack.c.l.b16 %v9492
    %v10261 = vunpack.c.h.b16 %v9492
    %v10262 = vunpack.c.l.b16 %v9493
    %v10263 = vunpack.c.h.b16 %v9493
    %v10264 = vunpack.c.l.b16 %v9494
    %v10265 = vunpack.c.h.b16 %v9494
    %v10266 = vunpack.c.l.b16 %v9495
    %v10267 = vunpack.c.h.b16 %v9495
    %v10268 = vunpack.c.l.b16 %v9496
    %v10269 = vunpack.c.h.b16 %v9496
    %v10270 = vunpack.c.l.b16 %v9497
    %v10271 = vunpack.c.h.b16 %v9497
    %v10272 = vunpack.c.l.b16 %v9498
    %v10273 = vunpack.c.h.b16 %v9498
    %v10274 = vunpack.c.l.b16 %v9499
    %v10275 = vunpack.c.h.b16 %v9499
    %v10276 = vunpack.c.l.b16 %v9500
    %v10277 = vunpack.c.h.b16 %v9500
    %v10278 = vunpack.c.l.b16 %v9501
    %v10279 = vunpack.c.h.b16 %v9501
    %v10280 = vpack.c.b16 %v9772, %v9768
    %v10281 = vpack.c.b16 %v9773, %v9769
    %v10282 = vpack.c.b16 %v9774, %v9770
    %v10283 = vpack.c.b16 %v9775, %v9771
    %v10284 = vpack.c.b16 %v9780, %v9776
    %v10285 = vpack.c.b16 %v9781, %v9777
    %v10286 = vpack.c.b16 %v9782, %v9778
    %v10287 = vpack.c.b16 %v9783, %v9779
    %v10288 = vpack.c.b16 %v9788, %v9784
    %v10289 = vpack.c.b16 %v9789, %v9785
    %v10290 = vpack.c.b16 %v9790, %v9786
    %v10291 = vpack.c.b16 %v9791, %v9787
    %v10292 = vpack.c.b16 %v9796, %v9792
    %v10293 = vpack.c.b16 %v9797, %v9793
    %v10294 = vpack.c.b16 %v9798, %v9794
    %v10295 = vpack.c.b16 %v9799, %v9795
    %v10296 = vpack.c.b16 %v9804, %v9800
    %v10297 = vpack.c.b16 %v9805, %v9801
    %v10298 = vpack.c.b16 %v9806, %v9802
    %v10299 = vpack.c.b16 %v9807, %v9803
    %v10300 = vpack.c.b16 %v9812, %v9808
    %v10301 = vpack.c.b16 %v9813, %v9809
    %v10302 = vpack.c.b16 %v9814, %v9810
    %v10303 = vpack.c.b16 %v9815, %v9811
    %v10304 = vpack.c.b16 %v9820, %v9816
    %v10305 = vpack.c.b16 %v9821, %v9817
    %v10306 = vpack.c.b16 %v9822, %v9818
    %v10307 = vpack.c.b16 %v9823, %v9819
    %v10308 = vpack.c.b16 %v9828, %v9824
    %v10309 = vpack.c.b16 %v9829, %v9825
    %v10310 = vpack.c.b16 %v9830, %v9826
    %v10311 = vpack.c.b16 %v9831, %v9827
    %v10312 = vpack.c.b16 %v9836, %v9832
    %v10313 = vpack.c.b16 %v9837, %v9833
    %v10314 = vpack.c.b16 %v9838, %v9834
    %v10315 = vpack.c.b16 %v9839, %v9835
    %v10316 = vpack.c.b16 %v9844, %v9840
    %v10317 = vpack.c.b16 %v9845, %v9841
    %v10318 = vpack.c.b16 %v9846, %v9842
    %v10319 = vpack.c.b16 %v9847, %v9843
    %v10320 = vpack.c.b16 %v9852, %v9848
    %v10321 = vpack.c.b16 %v9853, %v9849
    %v10322 = vpack.c.b16 %v9854, %v9850
    %v10323 = vpack.c.b16 %v9855, %v9851
    %v10324 = vpack.c.b16 %v9860, %v9856
    %v10325 = vpack.c.b16 %v9861, %v9857
    %v10326 = vpack.c.b16 %v9862, %v9858
    %v10327 = vpack.c.b16 %v9863, %v9859
    %v10328 = vpack.c.b16 %v9868, %v9864
    %v10329 = vpack.c.b16 %v9869, %v9865
    %v10330 = vpack.c.b16 %v9870, %v9866
    %v10331 = vpack.c.b16 %v9871, %v9867
    %v10332 = vpack.c.b16 %v9876, %v9872
    %v10333 = vpack.c.b16 %v9877, %v9873
    %v10334 = vpack.c.b16 %v9878, %v9874
    %v10335 = vpack.c.b16 %v9879, %v9875
    %v10336 = vpack.c.b16 %v9884, %v9880
    %v10337 = vpack.c.b16 %v9885, %v9881
    %v10338 = vpack.c.b16 %v9886, %v9882
    %v10339 = vpack.c.b16 %v9887, %v9883
    %v10340 = vpack.c.b16 %v9892, %v9888
    %v10341 = vpack.c.b16 %v9893, %v9889
    %v10342 = vpack.c.b16 %v9894, %v9890
    %v10343 = vpack.c.b16 %v9895, %v9891
    %v10344 = vpack.c.b16 %v9900, %v9896
    %v10345 = vpack.c.b16 %v9901, %v9897
    %v10346 = vpack.c.b16 %v9902, %v9898
    %v10347 = vpack.c.b16 %v9903, %v9899
    %v10348 = vpack.c.b16 %v9908, %v9904
    %v10349 = vpack.c.b16 %v9909, %v9905
    %v10350 = vpack.c.b16 %v9910, %v9906
    %v10351 = vpack.c.b16 %v9911, %v9907
    %v10352 = vpack.c.b16 %v9916, %v9912
    %v10353 = vpack.c.b16 %v9917, %v9913
    %v10354 = vpack.c.b16 %v9918, %v9914
    %v10355 = vpack.c.b16 %v9919, %v9915
    %v10356 = vpack.c.b16 %v9924, %v9920
    %v10357 = vpack.c.b16 %v9925, %v9921
    %v10358 = vpack.c.b16 %v9926, %v9922
    %v10359 = vpack.c.b16 %v9927, %v9923
    %v10360 = vpack.c.b16 %v9932, %v9928
    %v10361 = vpack.c.b16 %v9933, %v9929
    %v10362 = vpack.c.b16 %v9934, %v9930
    %v10363 = vpack.c.b16 %v9935, %v9931
    %v10364 = vpack.c.b16 %v9940, %v9936
    %v10365 = vpack.c.b16 %v9941, %v9937
    %v10366 = vpack.c.b16 %v9942, %v9938
    %v10367 = vpack.c.b16 %v9943, %v9939
    %v10368 = vpack.c.b16 %v9948, %v9944
    %v10369 = vpack.c.b16 %v9949, %v9945
    %v10370 = vpack.c.b16 %v9950, %v9946
    %v10371 = vpack.c.b16 %v9951, %v9947
    %v10372 = vpack.c.b16 %v9956, %v9952
    %v10373 = vpack.c.b16 %v9957, %v9953
    %v10374 = vpack.c.b16 %v9958, %v9954
    %v10375 = vpack.c.b16 %v9959, %v9955
    %v10376 = vpack.c.b16 %v9964, %v9960
    %v10377 = vpack.c.b16 %v9965, %v9961
    %v10378 = vpack.c.b16 %v9966, %v9962
    %v10379 = vpack.c.b16 %v9967, %v9963
    %v10380 = vpack.c.b16 %v9972, %v9968
    %v10381 = vpack.c.b16 %v9973, %v9969
    %v10382 = vpack.c.b16 %v9974, %v9970
    %v10383 = vpack.c.b16 %v9975, %v9971
    %v10384 = vpack.c.b16 %v9980, %v9976
    %v10385 = vpack.c.b16 %v9981, %v9977
    %v10386 = vpack.c.b16 %v9982, %v9978
    %v10387 = vpack.c.b16 %v9983, %v9979
    %v10388 = vpack.c.b16 %v9988, %v9984
    %v10389 = vpack.c.b16 %v9989, %v9985
    %v10390 = vpack.c.b16 %v9990, %v9986
    %v10391 = vpack.c.b16 %v9991, %v9987
    %v10392 = vpack.c.b16 %v9996, %v9992
    %v10393 = vpack.c.b16 %v9997, %v9993
    %v10394 = vpack.c.b16 %v9998, %v9994
    %v10395 = vpack.c.b16 %v9999, %v9995
    %v10396 = vpack.c.b16 %v10004, %v10000
    %v10397 = vpack.c.b16 %v10005, %v10001
    %v10398 = vpack.c.b16 %v10006, %v10002
    %v10399 = vpack.c.b16 %v10007, %v10003
    %v10400 = vpack.c.b16 %v10012, %v10008
    %v10401 = vpack.c.b16 %v10013, %v10009
    %v10402 = vpack.c.b16 %v10014, %v10010
    %v10403 = vpack.c.b16 %v10015, %v10011
    %v10404 = vpack.c.b16 %v10020, %v10016
    %v10405 = vpack.c.b16 %v10021, %v10017
    %v10406 = vpack.c.b16 %v10022, %v10018
    %v10407 = vpack.c.b16 %v10023, %v10019
    %v10408 = vpack.c.b16 %v10028, %v10024
    %v10409 = vpack.c.b16 %v10029, %v10025
    %v10410 = vpack.c.b16 %v10030, %v10026
    %v10411 = vpack.c.b16 %v10031, %v10027
    %v10412 = vpack.c.b16 %v10036, %v10032
    %v10413 = vpack.c.b16 %v10037, %v10033
    %v10414 = vpack.c.b16 %v10038, %v10034
    %v10415 = vpack.c.b16 %v10039, %v10035
    %v10416 = vpack.c.b16 %v10044, %v10040
    %v10417 = vpack.c.b16 %v10045, %v10041
    %v10418 = vpack.c.b16 %v10046, %v10042
    %v10419 = vpack.c.b16 %v10047, %v10043
    %v10420 = vpack.c.b16 %v10052, %v10048
    %v10421 = vpack.c.b16 %v10053, %v10049
    %v10422 = vpack.c.b16 %v10054, %v10050
    %v10423 = vpack.c.b16 %v10055, %v10051
    %v10424 = vpack.c.b16 %v10060, %v10056
    %v10425 = vpack.c.b16 %v10061, %v10057
    %v10426 = vpack.c.b16 %v10062, %v10058
    %v10427 = vpack.c.b16 %v10063, %v10059
    %v10428 = vpack.c.b16 %v10068, %v10064
    %v10429 = vpack.c.b16 %v10069, %v10065
    %v10430 = vpack.c.b16 %v10070, %v10066
    %v10431 = vpack.c.b16 %v10071, %v10067
    %v10432 = vpack.c.b16 %v10076, %v10072
    %v10433 = vpack.c.b16 %v10077, %v10073
    %v10434 = vpack.c.b16 %v10078, %v10074
    %v10435 = vpack.c.b16 %v10079, %v10075
    %v10436 = vpack.c.b16 %v10084, %v10080
    %v10437 = vpack.c.b16 %v10085, %v10081
    %v10438 = vpack.c.b16 %v10086, %v10082
    %v10439 = vpack.c.b16 %v10087, %v10083
    %v10440 = vpack.c.b16 %v10092, %v10088
    %v10441 = vpack.c.b16 %v10093, %v10089
    %v10442 = vpack.c.b16 %v10094, %v10090
    %v10443 = vpack.c.b16 %v10095, %v10091
    %v10444 = vpack.c.b16 %v10100, %v10096
    %v10445 = vpack.c.b16 %v10101, %v10097
    %v10446 = vpack.c.b16 %v10102, %v10098
    %v10447 = vpack.c.b16 %v10103, %v10099
    %v10448 = vpack.c.b16 %v10108, %v10104
    %v10449 = vpack.c.b16 %v10109, %v10105
    %v10450 = vpack.c.b16 %v10110, %v10106
    %v10451 = vpack.c.b16 %v10111, %v10107
    %v10452 = vpack.c.b16 %v10116, %v10112
    %v10453 = vpack.c.b16 %v10117, %v10113
    %v10454 = vpack.c.b16 %v10118, %v10114
    %v10455 = vpack.c.b16 %v10119, %v10115
    %v10456 = vpack.c.b16 %v10124, %v10120
    %v10457 = vpack.c.b16 %v10125, %v10121
    %v10458 = vpack.c.b16 %v10126, %v10122
    %v10459 = vpack.c.b16 %v10127, %v10123
    %v10460 = vpack.c.b16 %v10132, %v10128
    %v10461 = vpack.c.b16 %v10133, %v10129
    %v10462 = vpack.c.b16 %v10134, %v10130
    %v10463 = vpack.c.b16 %v10135, %v10131
    %v10464 = vpack.c.b16 %v10140, %v10136
    %v10465 = vpack.c.b16 %v10141, %v10137
    %v10466 = vpack.c.b16 %v10142, %v10138
    %v10467 = vpack.c.b16 %v10143, %v10139
    %v10468 = vpack.c.b16 %v10148, %v10144
    %v10469 = vpack.c.b16 %v10149, %v10145
    %v10470 = vpack.c.b16 %v10150, %v10146
    %v10471 = vpack.c.b16 %v10151, %v10147
    %v10472 = vpack.c.b16 %v10156, %v10152
    %v10473 = vpack.c.b16 %v10157, %v10153
    %v10474 = vpack.c.b16 %v10158, %v10154
    %v10475 = vpack.c.b16 %v10159, %v10155
    %v10476 = vpack.c.b16 %v10164, %v10160
    %v10477 = vpack.c.b16 %v10165, %v10161
    %v10478 = vpack.c.b16 %v10166, %v10162
    %v10479 = vpack.c.b16 %v10167, %v10163
    %v10480 = vpack.c.b16 %v10172, %v10168
    %v10481 = vpack.c.b16 %v10173, %v10169
    %v10482 = vpack.c.b16 %v10174, %v10170
    %v10483 = vpack.c.b16 %v10175, %v10171
    %v10484 = vpack.c.b16 %v10180, %v10176
    %v10485 = vpack.c.b16 %v10181, %v10177
    %v10486 = vpack.c.b16 %v10182, %v10178
    %v10487 = vpack.c.b16 %v10183, %v10179
    %v10488 = vpack.c.b16 %v10188, %v10184
    %v10489 = vpack.c.b16 %v10189, %v10185
    %v10490 = vpack.c.b16 %v10190, %v10186
    %v10491 = vpack.c.b16 %v10191, %v10187
    %v10492 = vpack.c.b16 %v10196, %v10192
    %v10493 = vpack.c.b16 %v10197, %v10193
    %v10494 = vpack.c.b16 %v10198, %v10194
    %v10495 = vpack.c.b16 %v10199, %v10195
    %v10496 = vpack.c.b16 %v10204, %v10200
    %v10497 = vpack.c.b16 %v10205, %v10201
    %v10498 = vpack.c.b16 %v10206, %v10202
    %v10499 = vpack.c.b16 %v10207, %v10203
    %v10500 = vpack.c.b16 %v10212, %v10208
    %v10501 = vpack.c.b16 %v10213, %v10209
    %v10502 = vpack.c.b16 %v10214, %v10210
    %v10503 = vpack.c.b16 %v10215, %v10211
    %v10504 = vpack.c.b16 %v10220, %v10216
    %v10505 = vpack.c.b16 %v10221, %v10217
    %v10506 = vpack.c.b16 %v10222, %v10218
    %v10507 = vpack.c.b16 %v10223, %v10219
    %v10508 = vpack.c.b16 %v10228, %v10224
    %v10509 = vpack.c.b16 %v10229, %v10225
    %v10510 = vpack.c.b16 %v10230, %v10226
    %v10511 = vpack.c.b16 %v10231, %v10227
    %v10512 = vpack.c.b16 %v10236, %v10232
    %v10513 = vpack.c.b16 %v10237, %v10233
    %v10514 = vpack.c.b16 %v10238, %v10234
    %v10515 = vpack.c.b16 %v10239, %v10235
    %v10516 = vpack.c.b16 %v10244, %v10240
    %v10517 = vpack.c.b16 %v10245, %v10241
    %v10518 = vpack.c.b16 %v10246, %v10242
    %v10519 = vpack.c.b16 %v10247, %v10243
    %v10520 = vpack.c.b16 %v10252, %v10248
    %v10521 = vpack.c.b16 %v10253, %v10249
    %v10522 = vpack.c.b16 %v10254, %v10250
    %v10523 = vpack.c.b16 %v10255, %v10251
    %v10524 = vpack.c.b16 %v10260, %v10256
    %v10525 = vpack.c.b16 %v10261, %v10257
    %v10526 = vpack.c.b16 %v10262, %v10258
    %v10527 = vpack.c.b16 %v10263, %v10259
    %v10528 = vpack.c.b16 %v10268, %v10264
    %v10529 = vpack.c.b16 %v10269, %v10265
    %v10530 = vpack.c.b16 %v10270, %v10266
    %v10531 = vpack.c.b16 %v10271, %v10267
    %v10532 = vpack.c.b16 %v10276, %v10272
    %v10533 = vpack.c.b16 %v10277, %v10273
    %v10534 = vpack.c.b16 %v10278, %v10274
    %v10535 = vpack.c.b16 %v10279, %v10275
    %10792 = vmatpush.bf16.msra.mxu0 %v10308
    %10793 = vmatpush.bf16.msra.mxu0 %v10304
    %10794 = vmatpush.bf16.msra.mxu0 %v10300
    %10795 = vmatpush.bf16.msra.mxu0 %v10296
    %10796 = vmatpush.bf16.msra.mxu0 %v10292
    %10797 = vmatpush.bf16.msra.mxu0 %v10288
    %10798 = vmatpush.bf16.msra.mxu0 %v10284
    %10799 = vmatpush.bf16.msra.mxu0 %v10280
    %10800 = vmatmul.bf16.gmra.mxu0 %v9212
    %v10801 = vpop.f32.mrf.mxu0
    %v10802 = vadd.f32 %v9504, %v10801
    %v10803 = vpop.f32.mrf.mxu0
    %v10804 = vadd.f32 %v9504, %v10803
    %10805 = vdwg.mxu0
    %10806 = vmatpush.bf16.msra.mxu0 %v10340
    %10807 = vmatpush.bf16.msra.mxu0 %v10336
    %10808 = vmatpush.bf16.msra.mxu0 %v10332
    %10809 = vmatpush.bf16.msra.mxu0 %v10328
    %10810 = vmatpush.bf16.msra.mxu0 %v10324
    %10811 = vmatpush.bf16.msra.mxu0 %v10320
    %10812 = vmatpush.bf16.msra.mxu0 %v10316
    %10813 = vmatpush.bf16.msra.mxu0 %v10312
    %10814 = vmatmul.bf16.gmra.mxu0 %v9213
    %v10815 = vpop.f32.mrf.mxu0
    %v10816 = vadd.f32 %v10802, %v10815
    %v10817 = vpop.f32.mrf.mxu0
    %v10818 = vadd.f32 %v10804, %v10817
    %10819 = vdwg.mxu0
    %10820 = vmatpush.bf16.msra.mxu0 %v10372
    %10821 = vmatpush.bf16.msra.mxu0 %v10368
    %10822 = vmatpush.bf16.msra.mxu0 %v10364
    %10823 = vmatpush.bf16.msra.mxu0 %v10360
    %10824 = vmatpush.bf16.msra.mxu0 %v10356
    %10825 = vmatpush.bf16.msra.mxu0 %v10352
    %10826 = vmatpush.bf16.msra.mxu0 %v10348
    %10827 = vmatpush.bf16.msra.mxu0 %v10344
    %10828 = vmatmul.bf16.gmra.mxu0 %v9222
    %v10829 = vpop.f32.mrf.mxu0
    %v10830 = vadd.f32 %v10816, %v10829
    %v10831 = vpop.f32.mrf.mxu0
    %v10832 = vadd.f32 %v10818, %v10831
    %10833 = vdwg.mxu0
    %10834 = vmatpush.bf16.msra.mxu0 %v10404
    %10835 = vmatpush.bf16.msra.mxu0 %v10400
    %10836 = vmatpush.bf16.msra.mxu0 %v10396
    %10837 = vmatpush.bf16.msra.mxu0 %v10392
    %10838 = vmatpush.bf16.msra.mxu0 %v10388
    %10839 = vmatpush.bf16.msra.mxu0 %v10384
    %10840 = vmatpush.bf16.msra.mxu0 %v10380
    %10841 = vmatpush.bf16.msra.mxu0 %v10376
    %10842 = vmatmul.bf16.gmra.mxu0 %v9223
    %v10843 = vpop.f32.mrf.mxu0
    %v10844 = vadd.f32 %v10830, %v10843
    %v10845 = vpop.f32.mrf.mxu0
    %v10846 = vadd.f32 %v10832, %v10845
    %10847 = vdwg.mxu0
    %10848 = vmatpush.bf16.msra.mxu0 %v10436
    %10849 = vmatpush.bf16.msra.mxu0 %v10432
    %10850 = vmatpush.bf16.msra.mxu0 %v10428
    %10851 = vmatpush.bf16.msra.mxu0 %v10424
    %10852 = vmatpush.bf16.msra.mxu0 %v10420
    %10853 = vmatpush.bf16.msra.mxu0 %v10416
    %10854 = vmatpush.bf16.msra.mxu0 %v10412
    %10855 = vmatpush.bf16.msra.mxu0 %v10408
    %10856 = vmatmul.bf16.gmra.mxu0 %v9232
    %v10857 = vpop.f32.mrf.mxu0
    %v10858 = vadd.f32 %v10844, %v10857
    %v10859 = vpop.f32.mrf.mxu0
    %v10860 = vadd.f32 %v10846, %v10859
    %10861 = vdwg.mxu0
    %10862 = vmatpush.bf16.msra.mxu0 %v10468
    %10863 = vmatpush.bf16.msra.mxu0 %v10464
    %10864 = vmatpush.bf16.msra.mxu0 %v10460
    %10865 = vmatpush.bf16.msra.mxu0 %v10456
    %10866 = vmatpush.bf16.msra.mxu0 %v10452
    %10867 = vmatpush.bf16.msra.mxu0 %v10448
    %10868 = vmatpush.bf16.msra.mxu0 %v10444
    %10869 = vmatpush.bf16.msra.mxu0 %v10440
    %10870 = vmatmul.bf16.gmra.mxu0 %v9233
    %v10871 = vpop.f32.mrf.mxu0
    %v10872 = vadd.f32 %v10858, %v10871
    %v10873 = vpop.f32.mrf.mxu0
    %v10874 = vadd.f32 %v10860, %v10873
    %10875 = vdwg.mxu0
    %10876 = vmatpush.bf16.msra.mxu0 %v10500
    %10877 = vmatpush.bf16.msra.mxu0 %v10496
    %10878 = vmatpush.bf16.msra.mxu0 %v10492
    %10879 = vmatpush.bf16.msra.mxu0 %v10488
    %10880 = vmatpush.bf16.msra.mxu0 %v10484
    %10881 = vmatpush.bf16.msra.mxu0 %v10480
    %10882 = vmatpush.bf16.msra.mxu0 %v10476
    %10883 = vmatpush.bf16.msra.mxu0 %v10472
    %10884 = vmatmul.bf16.gmra.mxu0 %v9242
    %v10885 = vpop.f32.mrf.mxu0
    %v10886 = vadd.f32 %v10872, %v10885
    %v10887 = vpop.f32.mrf.mxu0
    %v10888 = vadd.f32 %v10874, %v10887
    %10889 = vdwg.mxu0
    %10890 = vmatpush.bf16.msra.mxu0 %v10532
    %10891 = vmatpush.bf16.msra.mxu0 %v10528
    %10892 = vmatpush.bf16.msra.mxu0 %v10524
    %10893 = vmatpush.bf16.msra.mxu0 %v10520
    %10894 = vmatpush.bf16.msra.mxu0 %v10516
    %10895 = vmatpush.bf16.msra.mxu0 %v10512
    %10896 = vmatpush.bf16.msra.mxu0 %v10508
    %10897 = vmatpush.bf16.msra.mxu0 %v10504
    %10898 = vmatmul.bf16.gmra.mxu0 %v9243
    %v10899 = vpop.f32.mrf.mxu0
    %v10900 = vadd.f32 %v10886, %v10899
    %v10901 = vpop.f32.mrf.mxu0
    %v10902 = vadd.f32 %v10888, %v10901
    %10903 = vdwg.mxu0
    %10904 = vmatpush.bf16.msra.mxu0 %v10309
    %10905 = vmatpush.bf16.msra.mxu0 %v10305
    %10906 = vmatpush.bf16.msra.mxu0 %v10301
    %10907 = vmatpush.bf16.msra.mxu0 %v10297
    %10908 = vmatpush.bf16.msra.mxu0 %v10293
    %10909 = vmatpush.bf16.msra.mxu0 %v10289
    %10910 = vmatpush.bf16.msra.mxu0 %v10285
    %10911 = vmatpush.bf16.msra.mxu0 %v10281
    %10912 = vmatmul.bf16.gmra.mxu0 %v9212
    %v10913 = vpop.f32.mrf.mxu0
    %v10914 = vadd.f32 %v9505, %v10913
    %v10915 = vpop.f32.mrf.mxu0
    %v10916 = vadd.f32 %v9505, %v10915
    %10917 = vdwg.mxu0
    %10918 = vmatpush.bf16.msra.mxu0 %v10341
    %10919 = vmatpush.bf16.msra.mxu0 %v10337
    %10920 = vmatpush.bf16.msra.mxu0 %v10333
    %10921 = vmatpush.bf16.msra.mxu0 %v10329
    %10922 = vmatpush.bf16.msra.mxu0 %v10325
    %10923 = vmatpush.bf16.msra.mxu0 %v10321
    %10924 = vmatpush.bf16.msra.mxu0 %v10317
    %10925 = vmatpush.bf16.msra.mxu0 %v10313
    %10926 = vmatmul.bf16.gmra.mxu0 %v9213
    %v10927 = vpop.f32.mrf.mxu0
    %v10928 = vadd.f32 %v10914, %v10927
    %v10929 = vpop.f32.mrf.mxu0
    %v10930 = vadd.f32 %v10916, %v10929
    %10931 = vdwg.mxu0
    %10932 = vmatpush.bf16.msra.mxu0 %v10373
    %10933 = vmatpush.bf16.msra.mxu0 %v10369
    %10934 = vmatpush.bf16.msra.mxu0 %v10365
    %10935 = vmatpush.bf16.msra.mxu0 %v10361
    %10936 = vmatpush.bf16.msra.mxu0 %v10357
    %10937 = vmatpush.bf16.msra.mxu0 %v10353
    %10938 = vmatpush.bf16.msra.mxu0 %v10349
    %10939 = vmatpush.bf16.msra.mxu0 %v10345
    %10940 = vmatmul.bf16.gmra.mxu0 %v9222
    %v10941 = vpop.f32.mrf.mxu0
    %v10942 = vadd.f32 %v10928, %v10941
    %v10943 = vpop.f32.mrf.mxu0
    %v10944 = vadd.f32 %v10930, %v10943
    %10945 = vdwg.mxu0
    %10946 = vmatpush.bf16.msra.mxu0 %v10405
    %10947 = vmatpush.bf16.msra.mxu0 %v10401
    %10948 = vmatpush.bf16.msra.mxu0 %v10397
    %10949 = vmatpush.bf16.msra.mxu0 %v10393
    %10950 = vmatpush.bf16.msra.mxu0 %v10389
    %10951 = vmatpush.bf16.msra.mxu0 %v10385
    %10952 = vmatpush.bf16.msra.mxu0 %v10381
    %10953 = vmatpush.bf16.msra.mxu0 %v10377
    %10954 = vmatmul.bf16.gmra.mxu0 %v9223
    %v10955 = vpop.f32.mrf.mxu0
    %v10956 = vadd.f32 %v10942, %v10955
    %v10957 = vpop.f32.mrf.mxu0
    %v10958 = vadd.f32 %v10944, %v10957
    %10959 = vdwg.mxu0
    %10960 = vmatpush.bf16.msra.mxu0 %v10437
    %10961 = vmatpush.bf16.msra.mxu0 %v10433
    %10962 = vmatpush.bf16.msra.mxu0 %v10429
    %10963 = vmatpush.bf16.msra.mxu0 %v10425
    %10964 = vmatpush.bf16.msra.mxu0 %v10421
    %10965 = vmatpush.bf16.msra.mxu0 %v10417
    %10966 = vmatpush.bf16.msra.mxu0 %v10413
    %10967 = vmatpush.bf16.msra.mxu0 %v10409
    %10968 = vmatmul.bf16.gmra.mxu0 %v9232
    %v10969 = vpop.f32.mrf.mxu0
    %v10970 = vadd.f32 %v10956, %v10969
    %v10971 = vpop.f32.mrf.mxu0
    %v10972 = vadd.f32 %v10958, %v10971
    %10973 = vdwg.mxu0
    %10974 = vmatpush.bf16.msra.mxu0 %v10469
    %10975 = vmatpush.bf16.msra.mxu0 %v10465
    %10976 = vmatpush.bf16.msra.mxu0 %v10461
    %10977 = vmatpush.bf16.msra.mxu0 %v10457
    %10978 = vmatpush.bf16.msra.mxu0 %v10453
    %10979 = vmatpush.bf16.msra.mxu0 %v10449
    %10980 = vmatpush.bf16.msra.mxu0 %v10445
    %10981 = vmatpush.bf16.msra.mxu0 %v10441
    %10982 = vmatmul.bf16.gmra.mxu0 %v9233
    %v10983 = vpop.f32.mrf.mxu0
    %v10984 = vadd.f32 %v10970, %v10983
    %v10985 = vpop.f32.mrf.mxu0
    %v10986 = vadd.f32 %v10972, %v10985
    %10987 = vdwg.mxu0
    %10988 = vmatpush.bf16.msra.mxu0 %v10501
    %10989 = vmatpush.bf16.msra.mxu0 %v10497
    %10990 = vmatpush.bf16.msra.mxu0 %v10493
    %10991 = vmatpush.bf16.msra.mxu0 %v10489
    %10992 = vmatpush.bf16.msra.mxu0 %v10485
    %10993 = vmatpush.bf16.msra.mxu0 %v10481
    %10994 = vmatpush.bf16.msra.mxu0 %v10477
    %10995 = vmatpush.bf16.msra.mxu0 %v10473
    %10996 = vmatmul.bf16.gmra.mxu0 %v9242
    %v10997 = vpop.f32.mrf.mxu0
    %v10998 = vadd.f32 %v10984, %v10997
    %v10999 = vpop.f32.mrf.mxu0
    %v11000 = vadd.f32 %v10986, %v10999
    %11001 = vdwg.mxu0
    %11002 = vmatpush.bf16.msra.mxu0 %v10533
    %11003 = vmatpush.bf16.msra.mxu0 %v10529
    %11004 = vmatpush.bf16.msra.mxu0 %v10525
    %11005 = vmatpush.bf16.msra.mxu0 %v10521
    %11006 = vmatpush.bf16.msra.mxu0 %v10517
    %11007 = vmatpush.bf16.msra.mxu0 %v10513
    %11008 = vmatpush.bf16.msra.mxu0 %v10509
    %11009 = vmatpush.bf16.msra.mxu0 %v10505
    %11010 = vmatmul.bf16.gmra.mxu0 %v9243
    %v11011 = vpop.f32.mrf.mxu0
    %v11012 = vadd.f32 %v10998, %v11011
    %v11013 = vpop.f32.mrf.mxu0
    %v11014 = vadd.f32 %v11000, %v11013
    %11015 = vdwg.mxu0
    %11016 = vmatpush.bf16.msra.mxu0 %v10310
    %11017 = vmatpush.bf16.msra.mxu0 %v10306
    %11018 = vmatpush.bf16.msra.mxu0 %v10302
    %11019 = vmatpush.bf16.msra.mxu0 %v10298
    %11020 = vmatpush.bf16.msra.mxu0 %v10294
    %11021 = vmatpush.bf16.msra.mxu0 %v10290
    %11022 = vmatpush.bf16.msra.mxu0 %v10286
    %11023 = vmatpush.bf16.msra.mxu0 %v10282
    %11024 = vmatmul.bf16.gmra.mxu0 %v9212
    %v11025 = vpop.f32.mrf.mxu0
    %v11026 = vadd.f32 %v9506, %v11025
    %v11027 = vpop.f32.mrf.mxu0
    %v11028 = vadd.f32 %v9506, %v11027
    %11029 = vdwg.mxu0
    %11030 = vmatpush.bf16.msra.mxu0 %v10342
    %11031 = vmatpush.bf16.msra.mxu0 %v10338
    %11032 = vmatpush.bf16.msra.mxu0 %v10334
    %11033 = vmatpush.bf16.msra.mxu0 %v10330
    %11034 = vmatpush.bf16.msra.mxu0 %v10326
    %11035 = vmatpush.bf16.msra.mxu0 %v10322
    %11036 = vmatpush.bf16.msra.mxu0 %v10318
    %11037 = vmatpush.bf16.msra.mxu0 %v10314
    %11038 = vmatmul.bf16.gmra.mxu0 %v9213
    %v11039 = vpop.f32.mrf.mxu0
    %v11040 = vadd.f32 %v11026, %v11039
    %v11041 = vpop.f32.mrf.mxu0
    %v11042 = vadd.f32 %v11028, %v11041
    %11043 = vdwg.mxu0
    %11044 = vmatpush.bf16.msra.mxu0 %v10374
    %11045 = vmatpush.bf16.msra.mxu0 %v10370
    %11046 = vmatpush.bf16.msra.mxu0 %v10366
    %11047 = vmatpush.bf16.msra.mxu0 %v10362
    %11048 = vmatpush.bf16.msra.mxu0 %v10358
    %11049 = vmatpush.bf16.msra.mxu0 %v10354
    %11050 = vmatpush.bf16.msra.mxu0 %v10350
    %11051 = vmatpush.bf16.msra.mxu0 %v10346
    %11052 = vmatmul.bf16.gmra.mxu0 %v9222
    %v11053 = vpop.f32.mrf.mxu0
    %v11054 = vadd.f32 %v11040, %v11053
    %v11055 = vpop.f32.mrf.mxu0
    %v11056 = vadd.f32 %v11042, %v11055
    %11057 = vdwg.mxu0
    %11058 = vmatpush.bf16.msra.mxu0 %v10406
    %11059 = vmatpush.bf16.msra.mxu0 %v10402
    %11060 = vmatpush.bf16.msra.mxu0 %v10398
    %11061 = vmatpush.bf16.msra.mxu0 %v10394
    %11062 = vmatpush.bf16.msra.mxu0 %v10390
    %11063 = vmatpush.bf16.msra.mxu0 %v10386
    %11064 = vmatpush.bf16.msra.mxu0 %v10382
    %11065 = vmatpush.bf16.msra.mxu0 %v10378
    %11066 = vmatmul.bf16.gmra.mxu0 %v9223
    %v11067 = vpop.f32.mrf.mxu0
    %v11068 = vadd.f32 %v11054, %v11067
    %v11069 = vpop.f32.mrf.mxu0
    %v11070 = vadd.f32 %v11056, %v11069
    %11071 = vdwg.mxu0
    %11072 = vmatpush.bf16.msra.mxu0 %v10438
    %11073 = vmatpush.bf16.msra.mxu0 %v10434
    %11074 = vmatpush.bf16.msra.mxu0 %v10430
    %11075 = vmatpush.bf16.msra.mxu0 %v10426
    %11076 = vmatpush.bf16.msra.mxu0 %v10422
    %11077 = vmatpush.bf16.msra.mxu0 %v10418
    %11078 = vmatpush.bf16.msra.mxu0 %v10414
    %11079 = vmatpush.bf16.msra.mxu0 %v10410
    %11080 = vmatmul.bf16.gmra.mxu0 %v9232
    %v11081 = vpop.f32.mrf.mxu0
    %v11082 = vadd.f32 %v11068, %v11081
    %v11083 = vpop.f32.mrf.mxu0
    %v11084 = vadd.f32 %v11070, %v11083
    %11085 = vdwg.mxu0
    %11086 = vmatpush.bf16.msra.mxu0 %v10470
    %11087 = vmatpush.bf16.msra.mxu0 %v10466
    %11088 = vmatpush.bf16.msra.mxu0 %v10462
    %11089 = vmatpush.bf16.msra.mxu0 %v10458
    %11090 = vmatpush.bf16.msra.mxu0 %v10454
    %11091 = vmatpush.bf16.msra.mxu0 %v10450
    %11092 = vmatpush.bf16.msra.mxu0 %v10446
    %11093 = vmatpush.bf16.msra.mxu0 %v10442
    %11094 = vmatmul.bf16.gmra.mxu0 %v9233
    %v11095 = vpop.f32.mrf.mxu0
    %v11096 = vadd.f32 %v11082, %v11095
    %v11097 = vpop.f32.mrf.mxu0
    %v11098 = vadd.f32 %v11084, %v11097
    %11099 = vdwg.mxu0
    %11100 = vmatpush.bf16.msra.mxu0 %v10502
    %11101 = vmatpush.bf16.msra.mxu0 %v10498
    %11102 = vmatpush.bf16.msra.mxu0 %v10494
    %11103 = vmatpush.bf16.msra.mxu0 %v10490
    %11104 = vmatpush.bf16.msra.mxu0 %v10486
    %11105 = vmatpush.bf16.msra.mxu0 %v10482
    %11106 = vmatpush.bf16.msra.mxu0 %v10478
    %11107 = vmatpush.bf16.msra.mxu0 %v10474
    %11108 = vmatmul.bf16.gmra.mxu0 %v9242
    %v11109 = vpop.f32.mrf.mxu0
    %v11110 = vadd.f32 %v11096, %v11109
    %v11111 = vpop.f32.mrf.mxu0
    %v11112 = vadd.f32 %v11098, %v11111
    %11113 = vdwg.mxu0
    %11114 = vmatpush.bf16.msra.mxu0 %v10534
    %11115 = vmatpush.bf16.msra.mxu0 %v10530
    %11116 = vmatpush.bf16.msra.mxu0 %v10526
    %11117 = vmatpush.bf16.msra.mxu0 %v10522
    %11118 = vmatpush.bf16.msra.mxu0 %v10518
    %11119 = vmatpush.bf16.msra.mxu0 %v10514
    %11120 = vmatpush.bf16.msra.mxu0 %v10510
    %11121 = vmatpush.bf16.msra.mxu0 %v10506
    %11122 = vmatmul.bf16.gmra.mxu0 %v9243
    %v11123 = vpop.f32.mrf.mxu0
    %v11124 = vadd.f32 %v11110, %v11123
    %v11125 = vpop.f32.mrf.mxu0
    %v11126 = vadd.f32 %v11112, %v11125
    %11127 = vdwg.mxu0
    %11128 = vmatpush.bf16.msra.mxu0 %v10311
    %11129 = vmatpush.bf16.msra.mxu0 %v10307
    %11130 = vmatpush.bf16.msra.mxu0 %v10303
    %11131 = vmatpush.bf16.msra.mxu0 %v10299
    %11132 = vmatpush.bf16.msra.mxu0 %v10295
    %11133 = vmatpush.bf16.msra.mxu0 %v10291
    %11134 = vmatpush.bf16.msra.mxu0 %v10287
    %11135 = vmatpush.bf16.msra.mxu0 %v10283
    %11136 = vmatmul.bf16.gmra.mxu0 %v9212
    %v11137 = vpop.f32.mrf.mxu0
    %v11138 = vadd.f32 %v9507, %v11137
    %v11139 = vpop.f32.mrf.mxu0
    %v11140 = vadd.f32 %v9507, %v11139
    %11141 = vdwg.mxu0
    %11142 = vmatpush.bf16.msra.mxu0 %v10343
    %11143 = vmatpush.bf16.msra.mxu0 %v10339
    %11144 = vmatpush.bf16.msra.mxu0 %v10335
    %11145 = vmatpush.bf16.msra.mxu0 %v10331
    %11146 = vmatpush.bf16.msra.mxu0 %v10327
    %11147 = vmatpush.bf16.msra.mxu0 %v10323
    %11148 = vmatpush.bf16.msra.mxu0 %v10319
    %11149 = vmatpush.bf16.msra.mxu0 %v10315
    %11150 = vmatmul.bf16.gmra.mxu0 %v9213
    %v11151 = vpop.f32.mrf.mxu0
    %v11152 = vadd.f32 %v11138, %v11151
    %v11153 = vpop.f32.mrf.mxu0
    %v11154 = vadd.f32 %v11140, %v11153
    %11155 = vdwg.mxu0
    %11156 = vmatpush.bf16.msra.mxu0 %v10375
    %11157 = vmatpush.bf16.msra.mxu0 %v10371
    %11158 = vmatpush.bf16.msra.mxu0 %v10367
    %11159 = vmatpush.bf16.msra.mxu0 %v10363
    %11160 = vmatpush.bf16.msra.mxu0 %v10359
    %11161 = vmatpush.bf16.msra.mxu0 %v10355
    %11162 = vmatpush.bf16.msra.mxu0 %v10351
    %11163 = vmatpush.bf16.msra.mxu0 %v10347
    %11164 = vmatmul.bf16.gmra.mxu0 %v9222
    %v11165 = vpop.f32.mrf.mxu0
    %v11166 = vadd.f32 %v11152, %v11165
    %v11167 = vpop.f32.mrf.mxu0
    %v11168 = vadd.f32 %v11154, %v11167
    %11169 = vdwg.mxu0
    %11170 = vmatpush.bf16.msra.mxu0 %v10407
    %11171 = vmatpush.bf16.msra.mxu0 %v10403
    %11172 = vmatpush.bf16.msra.mxu0 %v10399
    %11173 = vmatpush.bf16.msra.mxu0 %v10395
    %11174 = vmatpush.bf16.msra.mxu0 %v10391
    %11175 = vmatpush.bf16.msra.mxu0 %v10387
    %11176 = vmatpush.bf16.msra.mxu0 %v10383
    %11177 = vmatpush.bf16.msra.mxu0 %v10379
    %11178 = vmatmul.bf16.gmra.mxu0 %v9223
    %v11179 = vpop.f32.mrf.mxu0
    %v11180 = vadd.f32 %v11166, %v11179
    %v11181 = vpop.f32.mrf.mxu0
    %v11182 = vadd.f32 %v11168, %v11181
    %11183 = vdwg.mxu0
    %11184 = vmatpush.bf16.msra.mxu0 %v10439
    %11185 = vmatpush.bf16.msra.mxu0 %v10435
    %11186 = vmatpush.bf16.msra.mxu0 %v10431
    %11187 = vmatpush.bf16.msra.mxu0 %v10427
    %11188 = vmatpush.bf16.msra.mxu0 %v10423
    %11189 = vmatpush.bf16.msra.mxu0 %v10419
    %11190 = vmatpush.bf16.msra.mxu0 %v10415
    %11191 = vmatpush.bf16.msra.mxu0 %v10411
    %11192 = vmatmul.bf16.gmra.mxu0 %v9232
    %v11193 = vpop.f32.mrf.mxu0
    %v11194 = vadd.f32 %v11180, %v11193
    %v11195 = vpop.f32.mrf.mxu0
    %v11196 = vadd.f32 %v11182, %v11195
    %11197 = vdwg.mxu0
    %11198 = vmatpush.bf16.msra.mxu0 %v10471
    %11199 = vmatpush.bf16.msra.mxu0 %v10467
    %11200 = vmatpush.bf16.msra.mxu0 %v10463
    %11201 = vmatpush.bf16.msra.mxu0 %v10459
    %11202 = vmatpush.bf16.msra.mxu0 %v10455
    %11203 = vmatpush.bf16.msra.mxu0 %v10451
    %11204 = vmatpush.bf16.msra.mxu0 %v10447
    %11205 = vmatpush.bf16.msra.mxu0 %v10443
    %11206 = vmatmul.bf16.gmra.mxu0 %v9233
    %v11207 = vpop.f32.mrf.mxu0
    %v11208 = vadd.f32 %v11194, %v11207
    %v11209 = vpop.f32.mrf.mxu0
    %v11210 = vadd.f32 %v11196, %v11209
    %11211 = vdwg.mxu0
    %11212 = vmatpush.bf16.msra.mxu0 %v10503
    %11213 = vmatpush.bf16.msra.mxu0 %v10499
    %11214 = vmatpush.bf16.msra.mxu0 %v10495
    %11215 = vmatpush.bf16.msra.mxu0 %v10491
    %11216 = vmatpush.bf16.msra.mxu0 %v10487
    %11217 = vmatpush.bf16.msra.mxu0 %v10483
    %11218 = vmatpush.bf16.msra.mxu0 %v10479
    %11219 = vmatpush.bf16.msra.mxu0 %v10475
    %11220 = vmatmul.bf16.gmra.mxu0 %v9242
    %v11221 = vpop.f32.mrf.mxu0
    %v11222 = vadd.f32 %v11208, %v11221
    %v11223 = vpop.f32.mrf.mxu0
    %v11224 = vadd.f32 %v11210, %v11223
    %11225 = vdwg.mxu0
    %11226 = vmatpush.bf16.msra.mxu0 %v10535
    %11227 = vmatpush.bf16.msra.mxu0 %v10531
    %11228 = vmatpush.bf16.msra.mxu0 %v10527
    %11229 = vmatpush.bf16.msra.mxu0 %v10523
    %11230 = vmatpush.bf16.msra.mxu0 %v10519
    %11231 = vmatpush.bf16.msra.mxu0 %v10515
    %11232 = vmatpush.bf16.msra.mxu0 %v10511
    %11233 = vmatpush.bf16.msra.mxu0 %v10507
    %11234 = vmatmul.bf16.gmra.mxu0 %v9243
    %v11235 = vpop.f32.mrf.mxu0
    %v11236 = vadd.f32 %v11222, %v11235
    %v11237 = vpop.f32.mrf.mxu0
    %v11238 = vadd.f32 %v11224, %v11237
    %11239 = vdwg.mxu0
    %v11240 = vmax.f32 %v10900, 0.0
    %v11241 = vmax.f32 %v11012, 0.0
    %v11242 = vmax.f32 %v11124, 0.0
    %v11243 = vmax.f32 %v11236, 0.0
    %v11244 = vmax.f32 %v10902, 0.0
    %v11245 = vmax.f32 %v11014, 0.0
    %v11246 = vmax.f32 %v11126, 0.0
    %v11247 = vmax.f32 %v11238, 0.0
    %v11248 = vpack.c.bf16 %v11244, %v11240
    %v11249 = vpack.c.bf16 %v11245, %v11241
    %v11250 = vpack.c.bf16 %v11246, %v11242
    %v11251 = vpack.c.bf16 %v11247, %v11243
    %v11252 = vld [vmem:[#allocation12] sm:$0xf]
    %v11253 = vld [vmem:[#allocation12 + $0x4] sm:$0xf]
    %v11254 = vld [vmem:[#allocation12 + $0x8] sm:$0xf]
    %v11255 = vld [vmem:[#allocation12 + $0xc] sm:$0xf]
    %v11256 = vld [vmem:[#allocation12 + $0x10] sm:$0xf]
    %v11257 = vld [vmem:[#allocation12 + $0x14] sm:$0xf]
    %v11258 = vld [vmem:[#allocation12 + $0x18] sm:$0xf]
    %v11259 = vld [vmem:[#allocation12 + $0x1c] sm:$0xf]
    %v11260 = vld [vmem:[#allocation12 + $0x20] sm:$0xf]
    %v11261 = vld [vmem:[#allocation12 + $0x24] sm:$0xf]
    %v11262 = vld [vmem:[#allocation12 + $0x28] sm:$0xf]
    %v11263 = vld [vmem:[#allocation12 + $0x2c] sm:$0xf]
    %v11264 = vld [vmem:[#allocation12 + $0x30] sm:$0xf]
    %v11265 = vld [vmem:[#allocation12 + $0x34] sm:$0xf]
    %v11266 = vld [vmem:[#allocation12 + $0x38] sm:$0xf]
    %v11267 = vld [vmem:[#allocation12 + $0x3c] sm:$0xf]
    %v11268 = vld [vmem:[#allocation12 + $0x40] sm:$0xf]
    %v11269 = vld [vmem:[#allocation12 + $0x44] sm:$0xf]
    %v11270 = vld [vmem:[#allocation12 + $0x48] sm:$0xf]
    %v11271 = vld [vmem:[#allocation12 + $0x4c] sm:$0xf]
    %v11272 = vld [vmem:[#allocation12 + $0x50] sm:$0xf]
    %v11273 = vld [vmem:[#allocation12 + $0x54] sm:$0xf]
    %v11274 = vld [vmem:[#allocation12 + $0x58] sm:$0xf]
    %v11275 = vld [vmem:[#allocation12 + $0x5c] sm:$0xf]
    %v11276 = vld [vmem:[#allocation12 + $0x60] sm:$0xf]
    %v11277 = vld [vmem:[#allocation12 + $0x64] sm:$0xf]
    %v11278 = vld [vmem:[#allocation12 + $0x68] sm:$0xf]
    %v11279 = vld [vmem:[#allocation12 + $0x6c] sm:$0xf]
    %v11280 = vld [vmem:[#allocation12 + $0x70] sm:$0xf]
    %v11281 = vld [vmem:[#allocation12 + $0x74] sm:$0xf]
    %v11282 = vld [vmem:[#allocation12 + $0x78] sm:$0xf]
    %v11283 = vld [vmem:[#allocation12 + $0x7c] sm:$0xf]
    %v11284 = vld [vmem:[#allocation12 + $0x80] sm:$0xf]
    %v11285 = vld [vmem:[#allocation12 + $0x84] sm:$0xf]
    %v11286 = vld [vmem:[#allocation12 + $0x88] sm:$0xf]
    %v11287 = vld [vmem:[#allocation12 + $0x8c] sm:$0xf]
    %v11288 = vld [vmem:[#allocation12 + $0x90] sm:$0xf]
    %v11289 = vld [vmem:[#allocation12 + $0x94] sm:$0xf]
    %v11290 = vld [vmem:[#allocation12 + $0x98] sm:$0xf]
    %v11291 = vld [vmem:[#allocation12 + $0x9c] sm:$0xf]
    %v11292 = vld [vmem:[#allocation12 + $0xa0] sm:$0xf]
    %v11293 = vld [vmem:[#allocation12 + $0xa4] sm:$0xf]
    %v11294 = vld [vmem:[#allocation12 + $0xa8] sm:$0xf]
    %v11295 = vld [vmem:[#allocation12 + $0xac] sm:$0xf]
    %v11296 = vld [vmem:[#allocation12 + $0xb0] sm:$0xf]
    %v11297 = vld [vmem:[#allocation12 + $0xb4] sm:$0xf]
    %v11298 = vld [vmem:[#allocation12 + $0xb8] sm:$0xf]
    %v11299 = vld [vmem:[#allocation12 + $0xbc] sm:$0xf]
    %v11300 = vld [vmem:[#allocation12 + $0xc0] sm:$0xf]
    %v11301 = vld [vmem:[#allocation12 + $0xc4] sm:$0xf]
    %v11302 = vld [vmem:[#allocation12 + $0xc8] sm:$0xf]
    %v11303 = vld [vmem:[#allocation12 + $0xcc] sm:$0xf]
    %v11304 = vld [vmem:[#allocation12 + $0xd0] sm:$0xf]
    %v11305 = vld [vmem:[#allocation12 + $0xd4] sm:$0xf]
    %v11306 = vld [vmem:[#allocation12 + $0xd8] sm:$0xf]
    %v11307 = vld [vmem:[#allocation12 + $0xdc] sm:$0xf]
    %v11308 = vld [vmem:[#allocation12 + $0xe0] sm:$0xf]
    %v11309 = vld [vmem:[#allocation12 + $0xe4] sm:$0xf]
    %v11310 = vld [vmem:[#allocation12 + $0xe8] sm:$0xf]
    %v11311 = vld [vmem:[#allocation12 + $0xec] sm:$0xf]
    %v11312 = vld [vmem:[#allocation12 + $0xf0] sm:$0xf]
    %v11313 = vld [vmem:[#allocation12 + $0xf4] sm:$0xf]
    %v11314 = vld [vmem:[#allocation12 + $0xf8] sm:$0xf]
    %v11315 = vld [vmem:[#allocation12 + $0xfc] sm:$0xf]
    %v11316 = vld [vmem:[#allocation13] sm:$0x1]
    %v11318 = vperm.slane %v11316, 0
    %v11384 = vunpack.c.l.b16 %v11252
    %v11385 = vunpack.c.l.b16 %v11253
    %v11386 = vunpack.c.l.b16 %v11254
    %v11387 = vunpack.c.l.b16 %v11255
    %v11388 = vunpack.c.l.b16 %v11256
    %v11389 = vunpack.c.l.b16 %v11257
    %v11390 = vunpack.c.l.b16 %v11258
    %v11391 = vunpack.c.l.b16 %v11259
    %v11392 = vunpack.c.l.b16 %v11260
    %v11393 = vunpack.c.l.b16 %v11261
    %v11394 = vunpack.c.l.b16 %v11262
    %v11395 = vunpack.c.l.b16 %v11263
    %v11396 = vunpack.c.l.b16 %v11264
    %v11397 = vunpack.c.l.b16 %v11265
    %v11398 = vunpack.c.l.b16 %v11266
    %v11399 = vunpack.c.l.b16 %v11267
    %v11400 = vunpack.c.l.b16 %v11268
    %v11401 = vunpack.c.l.b16 %v11269
    %v11402 = vunpack.c.l.b16 %v11270
    %v11403 = vunpack.c.l.b16 %v11271
    %v11404 = vunpack.c.l.b16 %v11272
    %v11405 = vunpack.c.l.b16 %v11273
    %v11406 = vunpack.c.l.b16 %v11274
    %v11407 = vunpack.c.l.b16 %v11275
    %v11408 = vunpack.c.l.b16 %v11276
    %v11409 = vunpack.c.l.b16 %v11277
    %v11410 = vunpack.c.l.b16 %v11278
    %v11411 = vunpack.c.l.b16 %v11279
    %v11412 = vunpack.c.l.b16 %v11280
    %v11413 = vunpack.c.l.b16 %v11281
    %v11414 = vunpack.c.l.b16 %v11282
    %v11415 = vunpack.c.l.b16 %v11283
    %v11416 = vunpack.c.l.b16 %v11284
    %v11417 = vunpack.c.l.b16 %v11285
    %v11418 = vunpack.c.l.b16 %v11286
    %v11419 = vunpack.c.l.b16 %v11287
    %v11420 = vunpack.c.l.b16 %v11288
    %v11421 = vunpack.c.l.b16 %v11289
    %v11422 = vunpack.c.l.b16 %v11290
    %v11423 = vunpack.c.l.b16 %v11291
    %v11424 = vunpack.c.l.b16 %v11292
    %v11425 = vunpack.c.l.b16 %v11293
    %v11426 = vunpack.c.l.b16 %v11294
    %v11427 = vunpack.c.l.b16 %v11295
    %v11428 = vunpack.c.l.b16 %v11296
    %v11429 = vunpack.c.l.b16 %v11297
    %v11430 = vunpack.c.l.b16 %v11298
    %v11431 = vunpack.c.l.b16 %v11299
    %v11432 = vunpack.c.l.b16 %v11300
    %v11433 = vunpack.c.l.b16 %v11301
    %v11434 = vunpack.c.l.b16 %v11302
    %v11435 = vunpack.c.l.b16 %v11303
    %v11436 = vunpack.c.l.b16 %v11304
    %v11437 = vunpack.c.l.b16 %v11305
    %v11438 = vunpack.c.l.b16 %v11306
    %v11439 = vunpack.c.l.b16 %v11307
    %v11440 = vunpack.c.l.b16 %v11308
    %v11441 = vunpack.c.l.b16 %v11309
    %v11442 = vunpack.c.l.b16 %v11310
    %v11443 = vunpack.c.l.b16 %v11311
    %v11444 = vunpack.c.l.b16 %v11312
    %v11445 = vunpack.c.l.b16 %v11313
    %v11446 = vunpack.c.l.b16 %v11314
    %v11447 = vunpack.c.l.b16 %v11315
    %v11448 = vpack.c.b16 %v11385, %v11384
    %v11449 = vpack.c.b16 %v11387, %v11386
    %v11450 = vpack.c.b16 %v11389, %v11388
    %v11451 = vpack.c.b16 %v11391, %v11390
    %v11452 = vpack.c.b16 %v11393, %v11392
    %v11453 = vpack.c.b16 %v11395, %v11394
    %v11454 = vpack.c.b16 %v11397, %v11396
    %v11455 = vpack.c.b16 %v11399, %v11398
    %v11456 = vpack.c.b16 %v11401, %v11400
    %v11457 = vpack.c.b16 %v11403, %v11402
    %v11458 = vpack.c.b16 %v11405, %v11404
    %v11459 = vpack.c.b16 %v11407, %v11406
    %v11460 = vpack.c.b16 %v11409, %v11408
    %v11461 = vpack.c.b16 %v11411, %v11410
    %v11462 = vpack.c.b16 %v11413, %v11412
    %v11463 = vpack.c.b16 %v11415, %v11414
    %v11464 = vpack.c.b16 %v11417, %v11416
    %v11465 = vpack.c.b16 %v11419, %v11418
    %v11466 = vpack.c.b16 %v11421, %v11420
    %v11467 = vpack.c.b16 %v11423, %v11422
    %v11468 = vpack.c.b16 %v11425, %v11424
    %v11469 = vpack.c.b16 %v11427, %v11426
    %v11470 = vpack.c.b16 %v11429, %v11428
    %v11471 = vpack.c.b16 %v11431, %v11430
    %v11472 = vpack.c.b16 %v11433, %v11432
    %v11473 = vpack.c.b16 %v11435, %v11434
    %v11474 = vpack.c.b16 %v11437, %v11436
    %v11475 = vpack.c.b16 %v11439, %v11438
    %v11476 = vpack.c.b16 %v11441, %v11440
    %v11477 = vpack.c.b16 %v11443, %v11442
    %v11478 = vpack.c.b16 %v11445, %v11444
    %v11479 = vpack.c.b16 %v11447, %v11446
    %11512 = vmatpush.bf16.msra.mxu0 %v11455
    %11513 = vmatpush.bf16.msra.mxu0 %v11454
    %11514 = vmatpush.bf16.msra.mxu0 %v11453
    %11515 = vmatpush.bf16.msra.mxu0 %v11452
    %11516 = vmatpush.bf16.msra.mxu0 %v11451
    %11517 = vmatpush.bf16.msra.mxu0 %v11450
    %11518 = vmatpush.bf16.msra.mxu0 %v11449
    %11519 = vmatpush.bf16.msra.mxu0 %v11448
    %11520 = vmatmul.bf16.gmra.mxu0 %v11248
    %v11521 = vpop.f32.mrf.mxu0
    %v11522 = vadd.f32 %v11318, %v11521
    %v11523 = vpop.f32.mrf.mxu0
    %v11524 = vadd.f32 %v11318, %v11523
    %11525 = vdwg.mxu0
    %11526 = vmatpush.bf16.msra.mxu0 %v11463
    %11527 = vmatpush.bf16.msra.mxu0 %v11462
    %11528 = vmatpush.bf16.msra.mxu0 %v11461
    %11529 = vmatpush.bf16.msra.mxu0 %v11460
    %11530 = vmatpush.bf16.msra.mxu0 %v11459
    %11531 = vmatpush.bf16.msra.mxu0 %v11458
    %11532 = vmatpush.bf16.msra.mxu0 %v11457
    %11533 = vmatpush.bf16.msra.mxu0 %v11456
    %11534 = vmatmul.bf16.gmra.mxu0 %v11249
    %v11535 = vpop.f32.mrf.mxu0
    %v11536 = vadd.f32 %v11522, %v11535
    %v11537 = vpop.f32.mrf.mxu0
    %v11538 = vadd.f32 %v11524, %v11537
    %11539 = vdwg.mxu0
    %11540 = vmatpush.bf16.msra.mxu0 %v11471
    %11541 = vmatpush.bf16.msra.mxu0 %v11470
    %11542 = vmatpush.bf16.msra.mxu0 %v11469
    %11543 = vmatpush.bf16.msra.mxu0 %v11468
    %11544 = vmatpush.bf16.msra.mxu0 %v11467
    %11545 = vmatpush.bf16.msra.mxu0 %v11466
    %11546 = vmatpush.bf16.msra.mxu0 %v11465
    %11547 = vmatpush.bf16.msra.mxu0 %v11464
    %11548 = vmatmul.bf16.gmra.mxu0 %v11250
    %v11549 = vpop.f32.mrf.mxu0
    %v11550 = vadd.f32 %v11536, %v11549
    %v11551 = vpop.f32.mrf.mxu0
    %v11552 = vadd.f32 %v11538, %v11551
    %11553 = vdwg.mxu0
    %11554 = vmatpush.bf16.msra.mxu0 %v11479
    %11555 = vmatpush.bf16.msra.mxu0 %v11478
    %11556 = vmatpush.bf16.msra.mxu0 %v11477
    %11557 = vmatpush.bf16.msra.mxu0 %v11476
    %11558 = vmatpush.bf16.msra.mxu0 %v11475
    %11559 = vmatpush.bf16.msra.mxu0 %v11474
    %11560 = vmatpush.bf16.msra.mxu0 %v11473
    %11561 = vmatpush.bf16.msra.mxu0 %v11472
    %11562 = vmatmul.bf16.gmra.mxu0 %v11251
    %v11563 = vpop.f32.mrf.mxu0
    %v11564 = vadd.f32 %v11550, %v11563
    %v11565 = vpop.f32.mrf.mxu0
    %v11566 = vadd.f32 %v11552, %v11565
    %11567 = vdwg.mxu0
    %11568 = vst [vmem:[%s9] sm:$0xff] %v11564
    %11569 = vst [vmem:[%s9 + $0x8] sm:$0xff] %v11566
    // Predicated region
    $region70: #{cnn_backbone_forward.1} parent=1 // pred_check
      _
    $region71: #{cnn_backbone_forward.1} parent=1 // pred_check_branch
      %11571 = sbr.rel (0) target = $region73
    $region72: #{cnn_backbone_forward.1} parent=1 // pred_region
      _
    $region73: #{cnn_backbone_forward.1} parent=1 // pred_fallthru
      _
    // Predicated region
    $region74: #{cnn_backbone_forward.1} parent=1 // pred_check
      _
    $region75: #{cnn_backbone_forward.1} parent=1 // pred_check_branch
      %11573 = sbr.rel (0) target = $region77
    $region76: #{cnn_backbone_forward.1} parent=1 // pred_region
      _
    $region77: #{cnn_backbone_forward.1} parent=1 // pred_fallthru
      _
    %11574 = vsyncpa [#allocation3], 1
    %11575 = vsyncpa [#allocation5], 1
    %11576 = vsyncpa [#allocation8], 1
    %11577 = vsyncpa [#allocation11], 1
    %11578 = vsyncpa [#allocation14], 1

</llo_original>
